<compile_context>
chip_gen: v6e
topology: v6e:2x2x1
jax: 0.10.0
libtpu: 0.0.40
codegen_flags: <defaults>
</compile_context>

<pallas_src>
import numpy as np
import jax
import jax.numpy as jnp
from jax.experimental import pallas as pl
from jax.experimental.pallas import tpu as pltpu

# ------------------------- model sizes (small demo) -------------------------
INPUT_SIZE = 8     # T : time length == GRU feature size
HIDDEN_SIZE = 32   # GRU hidden size
OUTPUT_SIZE = 4
NODE_NUM = 16      # V : graph nodes == TCN channels == GRU sequence length
BATCH = 2
DILATIONS = (1, 2, 4, 8)   # TemporalConvNet: 4 levels, kernel_size=2


# ============================ fused Pallas kernel =============================

def generator_kernel(
    x_ref, s_ref,
    w1a_ref, w1b_ref, b1_ref, w2a_ref, w2b_ref, b2_ref,
    tp_ref, ap_ref, alpha_ref,
    wfa_ref, wfb_ref, bf_ref,
    wi_ref, bi_ref, wh_ref, bh_ref, h0_ref,
    wl_ref, bl_ref,
    o_ref,
):
    """Whole Generator forward for the full batch, everything VMEM-resident.

    x_ref   : (B, V, T)
    s_ref   : (n_levels, T, T)  shift-selection matrices (one per dilation)
    w1a/w1b : (n_levels, V, V)  conv1 taps (t-d and t);  b1: (n_levels, V, 1)
    w2a/w2b : (n_levels, V, V)  conv2 taps;              b2: (n_levels, V, 1)
    tp_ref  : (V, T, T)   GCN "T" parameter
    ap_ref  : (V, V, T)   GCN "A" parameter permuted to (w, v, t)
    wfa/wfb : (T, T)      fc weight split over the concat; bf: (1, T)
    wi_ref  : (T, 3H)  [Wir|Wiz|Win]^T ; bi: (1, 3H)
    wh_ref  : (H, 3H)  [Whr|Whz|Whn]^T ; bh: (1, 3H)
    h0_ref  : (B, H)
    wl_ref  : (H, O) ; bl: (1, O)
    o_ref   : (B, V, O)
    """
    B, V, T = x_ref.shape
    H = wh_ref.shape[0]
    n_levels = s_ref.shape[0]

    alpha = alpha_ref[0, 0]
    Tp = tp_ref[...]
    Ap = ap_ref[...]
    wfa, wfb, bf = wfa_ref[...], wfb_ref[...], bf_ref[...]
    wi, bi = wi_ref[...], bi_ref[...]
    wh, bh = wh_ref[...], bh_ref[...]

    gi_per_batch = []                                  # hoisted GRU input proj
    for b in range(B):
        xb = x_ref[b]                                  # (V, T)

        # ---- TCN branch: 4 TemporalBlocks (kernel=2, dilations 1,2,4,8) ----
        h = xb
        for lvl in range(n_levels):
            S = s_ref[lvl]                             # (T, T)
            w1a, w1b, b1 = w1a_ref[lvl], w1b_ref[lvl], b1_ref[lvl]
            w2a, w2b, b2 = w2a_ref[lvl], w2b_ref[lvl], b2_ref[lvl]
            hs = jnp.dot(h, S, preferred_element_type=jnp.float32)
            h1 = jnp.maximum(
                jnp.dot(w1a, hs, preferred_element_type=jnp.float32)
                + jnp.dot(w1b, h, preferred_element_type=jnp.float32) + b1, 0.0)
            h1s = jnp.dot(h1, S, preferred_element_type=jnp.float32)
            h2 = jnp.maximum(
                jnp.dot(w2a, h1s, preferred_element_type=jnp.float32)
                + jnp.dot(w2b, h1, preferred_element_type=jnp.float32) + b2, 0.0)
            h = jnp.maximum(h2 + h, 0.0)               # block residual ReLU
        y_b = h + xb                                   # Generator: tcn(y) + y

        # ---- GCN branch + residual + PReLU ----
        # y1[v,q] = sum_t xb[v,t] * Tp[v,t,q]   (einsum 'nctv,vtq->ncqv')
        y1 = jnp.sum(Tp * xb[:, :, None], axis=1)      # (V, T)
        # y2[w,t] = sum_v Ap[w,v,t] * y1[v,t]   (einsum 'nctv,tvw->nctw')
        y2 = jnp.sum(Ap * y1[None, :, :], axis=1)      # (V, T)
        z = y2 + xb
        g_b = jnp.where(z >= 0.0, z, alpha * z)        # PReLU

        # ---- fc over concat([gcn, tcn], -1), concat folded into split W ----
        xf_b = (jnp.dot(g_b, wfa, preferred_element_type=jnp.float32)
                + jnp.dot(y_b, wfb, preferred_element_type=jnp.float32) + bf)

        # ---- GRU input projection, hoisted off the serial recurrence ----
        gi_per_batch.append(
            jnp.dot(xf_b, wi, preferred_element_type=jnp.float32) + bi)  # (V, 3H)

    # ---- GRU recurrence: fully unrolled, ONE fused gate matmul per step ----
    h_state = h0_ref[...]                              # (B, H)
    step_out = []
    for v in range(V):
        gi_v = jnp.concatenate(
            [gi_per_batch[b][v:v + 1, :] for b in range(B)], axis=0)      # (B, 3H)
        gh = jnp.dot(h_state, wh, preferred_element_type=jnp.float32) + bh  # (B, 3H)
        r = jax.nn.sigmoid(gi_v[:, :H] + gh[:, :H])
        zg = jax.nn.sigmoid(gi_v[:, H:2 * H] + gh[:, H:2 * H])
        n = jnp.tanh(gi_v[:, 2 * H:] + r * gh[:, 2 * H:])
        h_state = (1.0 - zg) * n + zg * h_state
        step_out.append(h_state)

    # ---- final linear head, fused; write (B, V, O) once ----
    wl, bl = wl_ref[...], bl_ref[...]
    for b in range(B):
        hid_b = jnp.concatenate(
            [step_out[v][b:b + 1, :] for v in range(V)], axis=0)          # (V, H)
        o_ref[b] = jnp.dot(hid_b, wl, preferred_element_type=jnp.float32) + bl


# ======================== one-time parameter preparation ======================

def shift_matrix(L, d):
    """S[i, t] = 1 iff i == max(t - d, 0)  =>  (x @ S)[:, t] = x[:, max(t-d, 0)].
    Exactly replicate-left padding + dilation-d tap + chomp."""
    t = np.arange(L)
    src = np.maximum(t - d, 0)
    return jnp.asarray((np.arange(L)[:, None] == src[None, :]).astype(np.float32))


def prepare_params(params):
    """Hoist all per-forward weight preprocessing to load time (done ONCE)."""
    T, V, H, O = INPUT_SIZE, NODE_NUM, HIDDEN_SIZE, OUTPUT_SIZE
    kp = {}
    kp["S"] = jnp.stack([shift_matrix(T, d) for d in DILATIONS], axis=0)
    kp["W1a"] = jnp.stack([w1[:, :, 0] for (w1, b1, w2, b2, d) in params["tcn"]])
    kp["W1b"] = jnp.stack([w1[:, :, 1] for (w1, b1, w2, b2, d) in params["tcn"]])
    kp["B1"] = jnp.stack([b1.reshape(V, 1) for (w1, b1, w2, b2, d) in params["tcn"]])
    kp["W2a"] = jnp.stack([w2[:, :, 0] for (w1, b1, w2, b2, d) in params["tcn"]])
    kp["W2b"] = jnp.stack([w2[:, :, 1] for (w1, b1, w2, b2, d) in params["tcn"]])
    kp["B2"] = jnp.stack([b2.reshape(V, 1) for (w1, b1, w2, b2, d) in params["tcn"]])
    kp["Tp"] = params["Tp"]                            # (V, T, T)
    kp["Ap"] = jnp.transpose(params["A"], (2, 1, 0))   # (W, V, T)
    kp["alpha"] = params["alpha"]
    Wfc = params["W_fc"]
    kp["Wfa"] = Wfc[:, :T].T                           # (T, T)
    kp["Wfb"] = Wfc[:, T:].T                           # (T, T)
    kp["bf"] = params["b_fc"].reshape(1, T)
    wih, whh, bih, bhh = params["gru"]
    kp["Wi"] = wih.T                                   # (T, 3H), gate order [r|z|n]
    kp["Wh"] = whh.T                                   # (H, 3H)
    kp["bi"] = bih.reshape(1, 3 * H)
    kp["bh"] = bhh.reshape(1, 3 * H)
    kp["h0"] = params["hidden_prev"][0]                # (B, H)
    kp["Wl"] = params["W_lin"].T                       # (H, O)
    kp["bl"] = params["b_lin"].reshape(1, O)
    return kp


# ================================= wrapper ====================================

def generator_forward(x, kp):
    """x: (B, node_num, input_size) -> (1, B*node_num, output_size)."""
    B, V, T = x.shape
    O = OUTPUT_SIZE
    vmem = pl.BlockSpec(memory_space=pltpu.MemorySpace.VMEM)
    operands = (x, kp["S"], kp["W1a"], kp["W1b"], kp["B1"], kp["W2a"], kp["W2b"],
                kp["B2"], kp["Tp"], kp["Ap"], kp["alpha"], kp["Wfa"], kp["Wfb"],
                kp["bf"], kp["Wi"], kp["bi"], kp["Wh"], kp["bh"], kp["h0"],
                kp["Wl"], kp["bl"])
    out = pl.pallas_call(
        generator_kernel,
        out_shape=jax.ShapeDtypeStruct((B, V, O), jnp.float32),
        in_specs=[vmem] * len(operands),
        out_specs=vmem,
        cost_estimate=pl.CostEstimate(
            flops=600_000, transcendentals=3_072, bytes_accessed=65_536),
    )(*operands)
    return out.reshape(1, B * V, O)


generator_forward_jit = jax.jit(generator_forward)


# ============================== pure-JAX reference ===========================

def _ref_conv1d_repl_chomp(x, w, b, d):
    B, C, L = x.shape
    xp = jnp.concatenate([jnp.repeat(x[:, :, :1], d, axis=2), x], axis=2)
    return (jnp.einsum('oc,bct->bot', w[:, :, 0], xp[:, :, :L])
            + jnp.einsum('oc,bct->bot', w[:, :, 1], xp[:, :, d:d + L])
            + b[None, :, None])


def ref_generator(x, params):
    B, V, L = x.shape
    H = HIDDEN_SIZE
    h = x
    for (w1, b1, w2, b2, d) in params["tcn"]:
        h1 = jnp.maximum(_ref_conv1d_repl_chomp(h, w1, b1, d), 0.0)
        h2 = jnp.maximum(_ref_conv1d_repl_chomp(h1, w2, b2, d), 0.0)
        h = jnp.maximum(h2 + h, 0.0)
    y = h + x
    x4 = jnp.transpose(x, (0, 2, 1))[:, None, :, :]              # (B,1,T,V)
    x1 = jnp.einsum('nctv,vtq->ncqv', x4, params["Tp"])
    x2 = jnp.einsum('nctv,tvw->nctw', x1, params["A"])
    g = x2 + x4
    a = params["alpha"][0, 0]
    g = jnp.where(g >= 0.0, g, a * g)
    xg = jnp.squeeze(jnp.transpose(g, (0, 3, 2, 1)), axis=3)     # (B, V, T)
    cat = jnp.concatenate([xg, y], axis=2)
    xf = cat @ params["W_fc"].T + params["b_fc"]
    wih, whh, bih, bhh = params["gru"]
    h0 = params["hidden_prev"][0]

    def step(hh, xt):
        gi = xt @ wih.T + bih
        gh = hh @ whh.T + bhh
        r = jax.nn.sigmoid(gi[:, :H] + gh[:, :H])
        z = jax.nn.sigmoid(gi[:, H:2 * H] + gh[:, H:2 * H])
        n = jnp.tanh(gi[:, 2 * H:] + r * gh[:, 2 * H:])
        hn = (1.0 - z) * n + z * hh
        return hn, hn

    _, outs = jax.lax.scan(step, h0, jnp.transpose(xf, (1, 0, 2)))
    out = jnp.transpose(outs, (1, 0, 2)).reshape(B * V, H)
    out = out @ params["W_lin"].T + params["b_lin"]
    return out[None]


# ============================== parameter init ================================

def init_params(key):
    T, V, H, O, B = INPUT_SIZE, NODE_NUM, HIDDEN_SIZE, OUTPUT_SIZE, BATCH
    ks = jax.random.split(key, 32)
    it = iter(range(32))
    u = lambda k, shape, s: jax.random.uniform(k, shape, jnp.float32, -s, s)

    params = {}
    # ConvTemporalGraphical
    params["A"] = u(ks[next(it)], (T, V, V), 1.0 / np.sqrt(V))
    params["Tp"] = u(ks[next(it)], (V, T, T), 1.0 / np.sqrt(T))
    # TCN (4 levels, kernel_size=2, channels = V everywhere, dilations 1,2,4,8)
    tcn = []
    for d in DILATIONS:
        w1 = 0.01 * jax.random.normal(ks[next(it)], (V, V, 2), jnp.float32)
        b1 = u(ks[next(it)], (V,), 1.0 / np.sqrt(2 * V))
        w2 = 0.01 * jax.random.normal(ks[next(it)], (V, V, 2), jnp.float32)
        b2 = u(ks[next(it)], (V,), 1.0 / np.sqrt(2 * V))
        tcn.append((w1, b1, w2, b2, d))
    params["tcn"] = tcn
    # fc: Linear(2T -> T)
    params["W_fc"] = u(ks[next(it)], (T, 2 * T), 1.0 / np.sqrt(2 * T))
    params["b_fc"] = u(ks[next(it)], (T,), 1.0 / np.sqrt(2 * T))
    # GRU
    s = 1.0 / np.sqrt(H)
    params["gru"] = (u(ks[next(it)], (3 * H, T), s), u(ks[next(it)], (3 * H, H), s),
                     u(ks[next(it)], (3 * H,), s), u(ks[next(it)], (3 * H,), s))
    # head Linear(H -> O)
    params["W_lin"] = u(ks[next(it)], (O, H), 1.0 / np.sqrt(H))
    params["b_lin"] = u(ks[next(it)], (O,), 1.0 / np.sqrt(H))
    # PReLU (default single param 0.25) and hidden_prev (zeros)
    params["alpha"] = jnp.full((1, 1), 0.25, jnp.float32)
    params["hidden_prev"] = jnp.zeros((1, B, H), jnp.float32)
    return params


# ==================================== main ====================================

if __name__ == "__main__":
    key = jax.random.PRNGKey(0)
    pkey, xkey = jax.random.split(key)
    params = init_params(pkey)
    kparams = jax.block_until_ready(prepare_params(params))   # one-time prep
    x = jax.random.normal(xkey, (BATCH, NODE_NUM, INPUT_SIZE), jnp.float32)

    out = generator_forward_jit(x, kparams)
    out = jax.block_until_ready(out)
    assert out.shape == (1, BATCH * NODE_NUM, OUTPUT_SIZE), out.shape

    ref = jax.block_until_ready(ref_generator(x, params))
    np.testing.assert_allclose(np.asarray(out), np.asarray(ref), rtol=2e-2, atol=2e-2)

    print("KERNEL_OK")
</pallas_src>

<mosaic_0001>
module attributes {stable_mosaic.version = 11 : i64} {
  func.func @generator_kernel(%arg0: memref<2x16x8xf32, #tpu.memory_space<vmem>>, %arg1: memref<4x8x8xf32, #tpu.memory_space<vmem>>, %arg2: memref<4x16x16xf32, #tpu.memory_space<vmem>>, %arg3: memref<4x16x16xf32, #tpu.memory_space<vmem>>, %arg4: memref<4x16x1xf32, #tpu.memory_space<vmem>>, %arg5: memref<4x16x16xf32, #tpu.memory_space<vmem>>, %arg6: memref<4x16x16xf32, #tpu.memory_space<vmem>>, %arg7: memref<4x16x1xf32, #tpu.memory_space<vmem>>, %arg8: memref<16x8x8xf32, #tpu.memory_space<vmem>>, %arg9: memref<16x16x8xf32, #tpu.memory_space<vmem>>, %arg10: memref<1x1xf32, #tpu.memory_space<vmem>>, %arg11: memref<8x8xf32, #tpu.memory_space<vmem>>, %arg12: memref<8x8xf32, #tpu.memory_space<vmem>>, %arg13: memref<1x8xf32, #tpu.memory_space<vmem>>, %arg14: memref<8x96xf32, #tpu.memory_space<vmem>>, %arg15: memref<1x96xf32, #tpu.memory_space<vmem>>, %arg16: memref<32x96xf32, #tpu.memory_space<vmem>>, %arg17: memref<1x96xf32, #tpu.memory_space<vmem>>, %arg18: memref<2x32xf32, #tpu.memory_space<vmem>>, %arg19: memref<32x4xf32, #tpu.memory_space<vmem>>, %arg20: memref<1x4xf32, #tpu.memory_space<vmem>>, %arg21: memref<2x16x4xf32, #tpu.memory_space<vmem>>) attributes {dimension_semantics = [], scalar_prefetch = 0 : i64, scratch_operands = 0 : i64, tpu.core_type = #tpu.core_type<tc>} {
    %c0 = arith.constant 0 : index
    %c0_0 = arith.constant 0 : index
    %0 = vector.load %arg10[%c0, %c0_0] : memref<1x1xf32, #tpu.memory_space<vmem>>, vector<1x1xf32>
    %1 = vector.extract %0[0, 0] : f32 from vector<1x1xf32>
    %c0_1 = arith.constant 0 : index
    %c0_2 = arith.constant 0 : index
    %c0_3 = arith.constant 0 : index
    %2 = vector.load %arg8[%c0_1, %c0_2, %c0_3] : memref<16x8x8xf32, #tpu.memory_space<vmem>>, vector<16x8x8xf32>
    %c0_4 = arith.constant 0 : index
    %c0_5 = arith.constant 0 : index
    %c0_6 = arith.constant 0 : index
    %3 = vector.load %arg9[%c0_4, %c0_5, %c0_6] : memref<16x16x8xf32, #tpu.memory_space<vmem>>, vector<16x16x8xf32>
    %c0_7 = arith.constant 0 : index
    %c0_8 = arith.constant 0 : index
    %4 = vector.load %arg11[%c0_7, %c0_8] : memref<8x8xf32, #tpu.memory_space<vmem>>, vector<8x8xf32>
    %c0_9 = arith.constant 0 : index
    %c0_10 = arith.constant 0 : index
    %5 = vector.load %arg12[%c0_9, %c0_10] : memref<8x8xf32, #tpu.memory_space<vmem>>, vector<8x8xf32>
    %c0_11 = arith.constant 0 : index
    %c0_12 = arith.constant 0 : index
    %6 = vector.load %arg13[%c0_11, %c0_12] : memref<1x8xf32, #tpu.memory_space<vmem>>, vector<1x8xf32>
    %c0_13 = arith.constant 0 : index
    %c0_14 = arith.constant 0 : index
    %7 = vector.load %arg14[%c0_13, %c0_14] : memref<8x96xf32, #tpu.memory_space<vmem>>, vector<8x96xf32>
    %c0_15 = arith.constant 0 : index
    %c0_16 = arith.constant 0 : index
    %8 = vector.load %arg15[%c0_15, %c0_16] : memref<1x96xf32, #tpu.memory_space<vmem>>, vector<1x96xf32>
    %c0_17 = arith.constant 0 : index
    %c0_18 = arith.constant 0 : index
    %9 = vector.load %arg16[%c0_17, %c0_18] : memref<32x96xf32, #tpu.memory_space<vmem>>, vector<32x96xf32>
    %c0_19 = arith.constant 0 : index
    %c0_20 = arith.constant 0 : index
    %10 = vector.load %arg17[%c0_19, %c0_20] : memref<1x96xf32, #tpu.memory_space<vmem>>, vector<1x96xf32>
    %c0_21 = arith.constant 0 : index
    %c0_22 = arith.constant 0 : index
    %c0_23 = arith.constant 0 : index
    %11 = vector.load %arg0[%c0_21, %c0_22, %c0_23] : memref<2x16x8xf32, #tpu.memory_space<vmem>>, vector<1x16x8xf32>
    %12 = vector.shape_cast %11 : vector<1x16x8xf32> to vector<16x8xf32>
    %c0_24 = arith.constant 0 : index
    %c0_25 = arith.constant 0 : index
    %c0_26 = arith.constant 0 : index
    %13 = vector.load %arg1[%c0_24, %c0_25, %c0_26] : memref<4x8x8xf32, #tpu.memory_space<vmem>>, vector<1x8x8xf32>
    %14 = vector.shape_cast %13 : vector<1x8x8xf32> to vector<8x8xf32>
    %c0_27 = arith.constant 0 : index
    %c0_28 = arith.constant 0 : index
    %c0_29 = arith.constant 0 : index
    %15 = vector.load %arg2[%c0_27, %c0_28, %c0_29] : memref<4x16x16xf32, #tpu.memory_space<vmem>>, vector<1x16x16xf32>
    %16 = vector.shape_cast %15 : vector<1x16x16xf32> to vector<16x16xf32>
    %c0_30 = arith.constant 0 : index
    %c0_31 = arith.constant 0 : index
    %c0_32 = arith.constant 0 : index
    %17 = vector.load %arg3[%c0_30, %c0_31, %c0_32] : memref<4x16x16xf32, #tpu.memory_space<vmem>>, vector<1x16x16xf32>
    %18 = vector.shape_cast %17 : vector<1x16x16xf32> to vector<16x16xf32>
    %c0_33 = arith.constant 0 : index
    %c0_34 = arith.constant 0 : index
    %c0_35 = arith.constant 0 : index
    %19 = vector.load %arg4[%c0_33, %c0_34, %c0_35] : memref<4x16x1xf32, #tpu.memory_space<vmem>>, vector<1x16x1xf32>
    %20 = vector.shape_cast %19 : vector<1x16x1xf32> to vector<16x1xf32>
    %c0_36 = arith.constant 0 : index
    %c0_37 = arith.constant 0 : index
    %c0_38 = arith.constant 0 : index
    %21 = vector.load %arg5[%c0_36, %c0_37, %c0_38] : memref<4x16x16xf32, #tpu.memory_space<vmem>>, vector<1x16x16xf32>
    %22 = vector.shape_cast %21 : vector<1x16x16xf32> to vector<16x16xf32>
    %c0_39 = arith.constant 0 : index
    %c0_40 = arith.constant 0 : index
    %c0_41 = arith.constant 0 : index
    %23 = vector.load %arg6[%c0_39, %c0_40, %c0_41] : memref<4x16x16xf32, #tpu.memory_space<vmem>>, vector<1x16x16xf32>
    %24 = vector.shape_cast %23 : vector<1x16x16xf32> to vector<16x16xf32>
    %c0_42 = arith.constant 0 : index
    %c0_43 = arith.constant 0 : index
    %c0_44 = arith.constant 0 : index
    %25 = vector.load %arg7[%c0_42, %c0_43, %c0_44] : memref<4x16x1xf32, #tpu.memory_space<vmem>>, vector<1x16x1xf32>
    %26 = vector.shape_cast %25 : vector<1x16x1xf32> to vector<16x1xf32>
    %cst = arith.constant dense<0.000000e+00> : vector<16x8xf32>
    %27 = tpu.matmul %12, %14, %cst {dimension_numbers = #tpu.dot_dimension_numbers<[1], [0], [0], [1], [0, 0, 1, 1], [], []>} : vector<16x8xf32>, vector<8x8xf32>, vector<16x8xf32> -> vector<16x8xf32>
    %cst_45 = arith.constant dense<0.000000e+00> : vector<16x8xf32>
    %28 = tpu.matmul %16, %27, %cst_45 {dimension_numbers = #tpu.dot_dimension_numbers<[1], [0], [0], [1], [0, 0, 1, 1], [], []>} : vector<16x16xf32>, vector<16x8xf32>, vector<16x8xf32> -> vector<16x8xf32>
    %cst_46 = arith.constant dense<0.000000e+00> : vector<16x8xf32>
    %29 = tpu.matmul %18, %12, %cst_46 {dimension_numbers = #tpu.dot_dimension_numbers<[1], [0], [0], [1], [0, 0, 1, 1], [], []>} : vector<16x16xf32>, vector<16x8xf32>, vector<16x8xf32> -> vector<16x8xf32>
    %30 = arith.addf %28, %29 : vector<16x8xf32>
    %31 = vector.broadcast %20 : vector<16x1xf32> to vector<16x8xf32>
    %32 = arith.addf %30, %31 : vector<16x8xf32>
    %cst_47 = arith.constant 0.000000e+00 : f32
    %33 = vector.broadcast %cst_47 : f32 to vector<16x8xf32>
    %34 = arith.maximumf %32, %33 : vector<16x8xf32>
    %cst_48 = arith.constant dense<0.000000e+00> : vector<16x8xf32>
    %35 = tpu.matmul %34, %14, %cst_48 {dimension_numbers = #tpu.dot_dimension_numbers<[1], [0], [0], [1], [0, 0, 1, 1], [], []>} : vector<16x8xf32>, vector<8x8xf32>, vector<16x8xf32> -> vector<16x8xf32>
    %cst_49 = arith.constant dense<0.000000e+00> : vector<16x8xf32>
    %36 = tpu.matmul %22, %35, %cst_49 {dimension_numbers = #tpu.dot_dimension_numbers<[1], [0], [0], [1], [0, 0, 1, 1], [], []>} : vector<16x16xf32>, vector<16x8xf32>, vector<16x8xf32> -> vector<16x8xf32>
    %cst_50 = arith.constant dense<0.000000e+00> : vector<16x8xf32>
    %37 = tpu.matmul %24, %34, %cst_50 {dimension_numbers = #tpu.dot_dimension_numbers<[1], [0], [0], [1], [0, 0, 1, 1], [], []>} : vector<16x16xf32>, vector<16x8xf32>, vector<16x8xf32> -> vector<16x8xf32>
    %38 = arith.addf %36, %37 : vector<16x8xf32>
    %39 = vector.broadcast %26 : vector<16x1xf32> to vector<16x8xf32>
    %40 = arith.addf %38, %39 : vector<16x8xf32>
    %cst_51 = arith.constant 0.000000e+00 : f32
    %41 = vector.broadcast %cst_51 : f32 to vector<16x8xf32>
    %42 = arith.maximumf %40, %41 : vector<16x8xf32>
    %43 = arith.addf %42, %12 : vector<16x8xf32>
    %cst_52 = arith.constant 0.000000e+00 : f32
    %44 = vector.broadcast %cst_52 : f32 to vector<16x8xf32>
    %45 = arith.maximumf %43, %44 : vector<16x8xf32>
    %c1 = arith.constant 1 : index
    %c0_53 = arith.constant 0 : index
    %c0_54 = arith.constant 0 : index
    %46 = vector.load %arg1[%c1, %c0_53, %c0_54] : memref<4x8x8xf32, #tpu.memory_space<vmem>>, vector<1x8x8xf32>
    %47 = vector.shape_cast %46 : vector<1x8x8xf32> to vector<8x8xf32>
    %c1_55 = arith.constant 1 : index
    %c0_56 = arith.constant 0 : index
    %c0_57 = arith.constant 0 : index
    %48 = vector.load %arg2[%c1_55, %c0_56, %c0_57] : memref<4x16x16xf32, #tpu.memory_space<vmem>>, vector<1x16x16xf32>
    %49 = vector.shape_cast %48 : vector<1x16x16xf32> to vector<16x16xf32>
    %c1_58 = arith.constant 1 : index
    %c0_59 = arith.constant 0 : index
    %c0_60 = arith.constant 0 : index
    %50 = vector.load %arg3[%c1_58, %c0_59, %c0_60] : memref<4x16x16xf32, #tpu.memory_space<vmem>>, vector<1x16x16xf32>
    %51 = vector.shape_cast %50 : vector<1x16x16xf32> to vector<16x16xf32>
    %c1_61 = arith.constant 1 : index
    %c0_62 = arith.constant 0 : index
    %c0_63 = arith.constant 0 : index
    %52 = vector.load %arg4[%c1_61, %c0_62, %c0_63] : memref<4x16x1xf32, #tpu.memory_space<vmem>>, vector<1x16x1xf32>
    %53 = vector.shape_cast %52 : vector<1x16x1xf32> to vector<16x1xf32>
    %c1_64 = arith.constant 1 : index
    %c0_65 = arith.constant 0 : index
    %c0_66 = arith.constant 0 : index
    %54 = vector.load %arg5[%c1_64, %c0_65, %c0_66] : memref<4x16x16xf32, #tpu.memory_space<vmem>>, vector<1x16x16xf32>
    %55 = vector.shape_cast %54 : vector<1x16x16xf32> to vector<16x16xf32>
    %c1_67 = arith.constant 1 : index
    %c0_68 = arith.constant 0 : index
    %c0_69 = arith.constant 0 : index
    %56 = vector.load %arg6[%c1_67, %c0_68, %c0_69] : memref<4x16x16xf32, #tpu.memory_space<vmem>>, vector<1x16x16xf32>
    %57 = vector.shape_cast %56 : vector<1x16x16xf32> to vector<16x16xf32>
    %c1_70 = arith.constant 1 : index
    %c0_71 = arith.constant 0 : index
    %c0_72 = arith.constant 0 : index
    %58 = vector.load %arg7[%c1_70, %c0_71, %c0_72] : memref<4x16x1xf32, #tpu.memory_space<vmem>>, vector<1x16x1xf32>
    %59 = vector.shape_cast %58 : vector<1x16x1xf32> to vector<16x1xf32>
    %cst_73 = arith.constant dense<0.000000e+00> : vector<16x8xf32>
    %60 = tpu.matmul %45, %47, %cst_73 {dimension_numbers = #tpu.dot_dimension_numbers<[1], [0], [0], [1], [0, 0, 1, 1], [], []>} : vector<16x8xf32>, vector<8x8xf32>, vector<16x8xf32> -> vector<16x8xf32>
    %cst_74 = arith.constant dense<0.000000e+00> : vector<16x8xf32>
    %61 = tpu.matmul %49, %60, %cst_74 {dimension_numbers = #tpu.dot_dimension_numbers<[1], [0], [0], [1], [0, 0, 1, 1], [], []>} : vector<16x16xf32>, vector<16x8xf32>, vector<16x8xf32> -> vector<16x8xf32>
    %cst_75 = arith.constant dense<0.000000e+00> : vector<16x8xf32>
    %62 = tpu.matmul %51, %45, %cst_75 {dimension_numbers = #tpu.dot_dimension_numbers<[1], [0], [0], [1], [0, 0, 1, 1], [], []>} : vector<16x16xf32>, vector<16x8xf32>, vector<16x8xf32> -> vector<16x8xf32>
    %63 = arith.addf %61, %62 : vector<16x8xf32>
    %64 = vector.broadcast %53 : vector<16x1xf32> to vector<16x8xf32>
    %65 = arith.addf %63, %64 : vector<16x8xf32>
    %cst_76 = arith.constant 0.000000e+00 : f32
    %66 = vector.broadcast %cst_76 : f32 to vector<16x8xf32>
    %67 = arith.maximumf %65, %66 : vector<16x8xf32>
    %cst_77 = arith.constant dense<0.000000e+00> : vector<16x8xf32>
    %68 = tpu.matmul %67, %47, %cst_77 {dimension_numbers = #tpu.dot_dimension_numbers<[1], [0], [0], [1], [0, 0, 1, 1], [], []>} : vector<16x8xf32>, vector<8x8xf32>, vector<16x8xf32> -> vector<16x8xf32>
    %cst_78 = arith.constant dense<0.000000e+00> : vector<16x8xf32>
    %69 = tpu.matmul %55, %68, %cst_78 {dimension_numbers = #tpu.dot_dimension_numbers<[1], [0], [0], [1], [0, 0, 1, 1], [], []>} : vector<16x16xf32>, vector<16x8xf32>, vector<16x8xf32> -> vector<16x8xf32>
    %cst_79 = arith.constant dense<0.000000e+00> : vector<16x8xf32>
    %70 = tpu.matmul %57, %67, %cst_79 {dimension_numbers = #tpu.dot_dimension_numbers<[1], [0], [0], [1], [0, 0, 1, 1], [], []>} : vector<16x16xf32>, vector<16x8xf32>, vector<16x8xf32> -> vector<16x8xf32>
    %71 = arith.addf %69, %70 : vector<16x8xf32>
    %72 = vector.broadcast %59 : vector<16x1xf32> to vector<16x8xf32>
    %73 = arith.addf %71, %72 : vector<16x8xf32>
    %cst_80 = arith.constant 0.000000e+00 : f32
    %74 = vector.broadcast %cst_80 : f32 to vector<16x8xf32>
    %75 = arith.maximumf %73, %74 : vector<16x8xf32>
    %76 = arith.addf %75, %45 : vector<16x8xf32>
    %cst_81 = arith.constant 0.000000e+00 : f32
    %77 = vector.broadcast %cst_81 : f32 to vector<16x8xf32>
    %78 = arith.maximumf %76, %77 : vector<16x8xf32>
    %c2 = arith.constant 2 : index
    %c0_82 = arith.constant 0 : index
    %c0_83 = arith.constant 0 : index
    %79 = vector.load %arg1[%c2, %c0_82, %c0_83] : memref<4x8x8xf32, #tpu.memory_space<vmem>>, vector<1x8x8xf32>
    %80 = vector.shape_cast %79 : vector<1x8x8xf32> to vector<8x8xf32>
    %c2_84 = arith.constant 2 : index
    %c0_85 = arith.constant 0 : index
    %c0_86 = arith.constant 0 : index
    %81 = vector.load %arg2[%c2_84, %c0_85, %c0_86] : memref<4x16x16xf32, #tpu.memory_space<vmem>>, vector<1x16x16xf32>
    %82 = vector.shape_cast %81 : vector<1x16x16xf32> to vector<16x16xf32>
    %c2_87 = arith.constant 2 : index
    %c0_88 = arith.constant 0 : index
    %c0_89 = arith.constant 0 : index
    %83 = vector.load %arg3[%c2_87, %c0_88, %c0_89] : memref<4x16x16xf32, #tpu.memory_space<vmem>>, vector<1x16x16xf32>
    %84 = vector.shape_cast %83 : vector<1x16x16xf32> to vector<16x16xf32>
    %c2_90 = arith.constant 2 : index
    %c0_91 = arith.constant 0 : index
    %c0_92 = arith.constant 0 : index
    %85 = vector.load %arg4[%c2_90, %c0_91, %c0_92] : memref<4x16x1xf32, #tpu.memory_space<vmem>>, vector<1x16x1xf32>
    %86 = vector.shape_cast %85 : vector<1x16x1xf32> to vector<16x1xf32>
    %c2_93 = arith.constant 2 : index
    %c0_94 = arith.constant 0 : index
    %c0_95 = arith.constant 0 : index
    %87 = vector.load %arg5[%c2_93, %c0_94, %c0_95] : memref<4x16x16xf32, #tpu.memory_space<vmem>>, vector<1x16x16xf32>
    %88 = vector.shape_cast %87 : vector<1x16x16xf32> to vector<16x16xf32>
    %c2_96 = arith.constant 2 : index
    %c0_97 = arith.constant 0 : index
    %c0_98 = arith.constant 0 : index
    %89 = vector.load %arg6[%c2_96, %c0_97, %c0_98] : memref<4x16x16xf32, #tpu.memory_space<vmem>>, vector<1x16x16xf32>
    %90 = vector.shape_cast %89 : vector<1x16x16xf32> to vector<16x16xf32>
    %c2_99 = arith.constant 2 : index
    %c0_100 = arith.constant 0 : index
    %c0_101 = arith.constant 0 : index
    %91 = vector.load %arg7[%c2_99, %c0_100, %c0_101] : memref<4x16x1xf32, #tpu.memory_space<vmem>>, vector<1x16x1xf32>
    %92 = vector.shape_cast %91 : vector<1x16x1xf32> to vector<16x1xf32>
    %cst_102 = arith.constant dense<0.000000e+00> : vector<16x8xf32>
    %93 = tpu.matmul %78, %80, %cst_102 {dimension_numbers = #tpu.dot_dimension_numbers<[1], [0], [0], [1], [0, 0, 1, 1], [], []>} : vector<16x8xf32>, vector<8x8xf32>, vector<16x8xf32> -> vector<16x8xf32>
    %cst_103 = arith.constant dense<0.000000e+00> : vector<16x8xf32>
    %94 = tpu.matmul %82, %93, %cst_103 {dimension_numbers = #tpu.dot_dimension_numbers<[1], [0], [0], [1], [0, 0, 1, 1], [], []>} : vector<16x16xf32>, vector<16x8xf32>, vector<16x8xf32> -> vector<16x8xf32>
    %cst_104 = arith.constant dense<0.000000e+00> : vector<16x8xf32>
    %95 = tpu.matmul %84, %78, %cst_104 {dimension_numbers = #tpu.dot_dimension_numbers<[1], [0], [0], [1], [0, 0, 1, 1], [], []>} : vector<16x16xf32>, vector<16x8xf32>, vector<16x8xf32> -> vector<16x8xf32>
    %96 = arith.addf %94, %95 : vector<16x8xf32>
    %97 = vector.broadcast %86 : vector<16x1xf32> to vector<16x8xf32>
    %98 = arith.addf %96, %97 : vector<16x8xf32>
    %cst_105 = arith.constant 0.000000e+00 : f32
    %99 = vector.broadcast %cst_105 : f32 to vector<16x8xf32>
    %100 = arith.maximumf %98, %99 : vector<16x8xf32>
    %cst_106 = arith.constant dense<0.000000e+00> : vector<16x8xf32>
    %101 = tpu.matmul %100, %80, %cst_106 {dimension_numbers = #tpu.dot_dimension_numbers<[1], [0], [0], [1], [0, 0, 1, 1], [], []>} : vector<16x8xf32>, vector<8x8xf32>, vector<16x8xf32> -> vector<16x8xf32>
    %cst_107 = arith.constant dense<0.000000e+00> : vector<16x8xf32>
    %102 = tpu.matmul %88, %101, %cst_107 {dimension_numbers = #tpu.dot_dimension_numbers<[1], [0], [0], [1], [0, 0, 1, 1], [], []>} : vector<16x16xf32>, vector<16x8xf32>, vector<16x8xf32> -> vector<16x8xf32>
    %cst_108 = arith.constant dense<0.000000e+00> : vector<16x8xf32>
    %103 = tpu.matmul %90, %100, %cst_108 {dimension_numbers = #tpu.dot_dimension_numbers<[1], [0], [0], [1], [0, 0, 1, 1], [], []>} : vector<16x16xf32>, vector<16x8xf32>, vector<16x8xf32> -> vector<16x8xf32>
    %104 = arith.addf %102, %103 : vector<16x8xf32>
    %105 = vector.broadcast %92 : vector<16x1xf32> to vector<16x8xf32>
    %106 = arith.addf %104, %105 : vector<16x8xf32>
    %cst_109 = arith.constant 0.000000e+00 : f32
    %107 = vector.broadcast %cst_109 : f32 to vector<16x8xf32>
    %108 = arith.maximumf %106, %107 : vector<16x8xf32>
    %109 = arith.addf %108, %78 : vector<16x8xf32>
    %cst_110 = arith.constant 0.000000e+00 : f32
    %110 = vector.broadcast %cst_110 : f32 to vector<16x8xf32>
    %111 = arith.maximumf %109, %110 : vector<16x8xf32>
    %c3 = arith.constant 3 : index
    %c0_111 = arith.constant 0 : index
    %c0_112 = arith.constant 0 : index
    %112 = vector.load %arg1[%c3, %c0_111, %c0_112] : memref<4x8x8xf32, #tpu.memory_space<vmem>>, vector<1x8x8xf32>
    %113 = vector.shape_cast %112 : vector<1x8x8xf32> to vector<8x8xf32>
    %c3_113 = arith.constant 3 : index
    %c0_114 = arith.constant 0 : index
    %c0_115 = arith.constant 0 : index
    %114 = vector.load %arg2[%c3_113, %c0_114, %c0_115] : memref<4x16x16xf32, #tpu.memory_space<vmem>>, vector<1x16x16xf32>
    %115 = vector.shape_cast %114 : vector<1x16x16xf32> to vector<16x16xf32>
    %c3_116 = arith.constant 3 : index
    %c0_117 = arith.constant 0 : index
    %c0_118 = arith.constant 0 : index
    %116 = vector.load %arg3[%c3_116, %c0_117, %c0_118] : memref<4x16x16xf32, #tpu.memory_space<vmem>>, vector<1x16x16xf32>
    %117 = vector.shape_cast %116 : vector<1x16x16xf32> to vector<16x16xf32>
    %c3_119 = arith.constant 3 : index
    %c0_120 = arith.constant 0 : index
    %c0_121 = arith.constant 0 : index
    %118 = vector.load %arg4[%c3_119, %c0_120, %c0_121] : memref<4x16x1xf32, #tpu.memory_space<vmem>>, vector<1x16x1xf32>
    %119 = vector.shape_cast %118 : vector<1x16x1xf32> to vector<16x1xf32>
    %c3_122 = arith.constant 3 : index
    %c0_123 = arith.constant 0 : index
    %c0_124 = arith.constant 0 : index
    %120 = vector.load %arg5[%c3_122, %c0_123, %c0_124] : memref<4x16x16xf32, #tpu.memory_space<vmem>>, vector<1x16x16xf32>
    %121 = vector.shape_cast %120 : vector<1x16x16xf32> to vector<16x16xf32>
    %c3_125 = arith.constant 3 : index
    %c0_126 = arith.constant 0 : index
    %c0_127 = arith.constant 0 : index
    %122 = vector.load %arg6[%c3_125, %c0_126, %c0_127] : memref<4x16x16xf32, #tpu.memory_space<vmem>>, vector<1x16x16xf32>
    %123 = vector.shape_cast %122 : vector<1x16x16xf32> to vector<16x16xf32>
    %c3_128 = arith.constant 3 : index
    %c0_129 = arith.constant 0 : index
    %c0_130 = arith.constant 0 : index
    %124 = vector.load %arg7[%c3_128, %c0_129, %c0_130] : memref<4x16x1xf32, #tpu.memory_space<vmem>>, vector<1x16x1xf32>
    %125 = vector.shape_cast %124 : vector<1x16x1xf32> to vector<16x1xf32>
    %cst_131 = arith.constant dense<0.000000e+00> : vector<16x8xf32>
    %126 = tpu.matmul %111, %113, %cst_131 {dimension_numbers = #tpu.dot_dimension_numbers<[1], [0], [0], [1], [0, 0, 1, 1], [], []>} : vector<16x8xf32>, vector<8x8xf32>, vector<16x8xf32> -> vector<16x8xf32>
    %cst_132 = arith.constant dense<0.000000e+00> : vector<16x8xf32>
    %127 = tpu.matmul %115, %126, %cst_132 {dimension_numbers = #tpu.dot_dimension_numbers<[1], [0], [0], [1], [0, 0, 1, 1], [], []>} : vector<16x16xf32>, vector<16x8xf32>, vector<16x8xf32> -> vector<16x8xf32>
    %cst_133 = arith.constant dense<0.000000e+00> : vector<16x8xf32>
    %128 = tpu.matmul %117, %111, %cst_133 {dimension_numbers = #tpu.dot_dimension_numbers<[1], [0], [0], [1], [0, 0, 1, 1], [], []>} : vector<16x16xf32>, vector<16x8xf32>, vector<16x8xf32> -> vector<16x8xf32>
    %129 = arith.addf %127, %128 : vector<16x8xf32>
    %130 = vector.broadcast %119 : vector<16x1xf32> to vector<16x8xf32>
    %131 = arith.addf %129, %130 : vector<16x8xf32>
    %cst_134 = arith.constant 0.000000e+00 : f32
    %132 = vector.broadcast %cst_134 : f32 to vector<16x8xf32>
    %133 = arith.maximumf %131, %132 : vector<16x8xf32>
    %cst_135 = arith.constant dense<0.000000e+00> : vector<16x8xf32>
    %134 = tpu.matmul %133, %113, %cst_135 {dimension_numbers = #tpu.dot_dimension_numbers<[1], [0], [0], [1], [0, 0, 1, 1], [], []>} : vector<16x8xf32>, vector<8x8xf32>, vector<16x8xf32> -> vector<16x8xf32>
    %cst_136 = arith.constant dense<0.000000e+00> : vector<16x8xf32>
    %135 = tpu.matmul %121, %134, %cst_136 {dimension_numbers = #tpu.dot_dimension_numbers<[1], [0], [0], [1], [0, 0, 1, 1], [], []>} : vector<16x16xf32>, vector<16x8xf32>, vector<16x8xf32> -> vector<16x8xf32>
    %cst_137 = arith.constant dense<0.000000e+00> : vector<16x8xf32>
    %136 = tpu.matmul %123, %133, %cst_137 {dimension_numbers = #tpu.dot_dimension_numbers<[1], [0], [0], [1], [0, 0, 1, 1], [], []>} : vector<16x16xf32>, vector<16x8xf32>, vector<16x8xf32> -> vector<16x8xf32>
    %137 = arith.addf %135, %136 : vector<16x8xf32>
    %138 = vector.broadcast %125 : vector<16x1xf32> to vector<16x8xf32>
    %139 = arith.addf %137, %138 : vector<16x8xf32>
    %cst_138 = arith.constant 0.000000e+00 : f32
    %140 = vector.broadcast %cst_138 : f32 to vector<16x8xf32>
    %141 = arith.maximumf %139, %140 : vector<16x8xf32>
    %142 = arith.addf %141, %111 : vector<16x8xf32>
    %cst_139 = arith.constant 0.000000e+00 : f32
    %143 = vector.broadcast %cst_139 : f32 to vector<16x8xf32>
    %144 = arith.maximumf %142, %143 : vector<16x8xf32>
    %145 = arith.addf %144, %12 : vector<16x8xf32>
    %146 = vector.shape_cast %12 : vector<16x8xf32> to vector<16x8x1xf32>
    %147 = vector.broadcast %146 : vector<16x8x1xf32> to vector<16x8x8xf32>
    %148 = arith.mulf %2, %147 : vector<16x8x8xf32>
    %cst_140 = arith.constant dense<0.000000e+00> : vector<16x8xf32>
    %149 = vector.multi_reduction <add>, %148, %cst_140 [1] : vector<16x8x8xf32> to vector<16x8xf32>
    %150 = vector.shape_cast %149 : vector<16x8xf32> to vector<1x16x8xf32>
    %151 = vector.broadcast %150 : vector<1x16x8xf32> to vector<16x16x8xf32>
    %152 = arith.mulf %3, %151 : vector<16x16x8xf32>
    %cst_141 = arith.constant dense<0.000000e+00> : vector<16x8xf32>
    %153 = vector.multi_reduction <add>, %152, %cst_141 [1] : vector<16x16x8xf32> to vector<16x8xf32>
    %154 = arith.addf %153, %12 : vector<16x8xf32>
    %cst_142 = arith.constant 0.000000e+00 : f32
    %155 = vector.broadcast %cst_142 : f32 to vector<16x8xf32>
    %156 = arith.cmpf oge, %154, %155 : vector<16x8xf32>
    %157 = vector.broadcast %1 : f32 to vector<16x8xf32>
    %158 = arith.mulf %157, %154 : vector<16x8xf32>
    %159 = arith.select %156, %154, %158 : vector<16x8xi1>, vector<16x8xf32>
    %cst_143 = arith.constant dense<0.000000e+00> : vector<16x8xf32>
    %160 = tpu.matmul %159, %4, %cst_143 {dimension_numbers = #tpu.dot_dimension_numbers<[1], [0], [0], [1], [0, 0, 1, 1], [], []>} : vector<16x8xf32>, vector<8x8xf32>, vector<16x8xf32> -> vector<16x8xf32>
    %cst_144 = arith.constant dense<0.000000e+00> : vector<16x8xf32>
    %161 = tpu.matmul %145, %5, %cst_144 {dimension_numbers = #tpu.dot_dimension_numbers<[1], [0], [0], [1], [0, 0, 1, 1], [], []>} : vector<16x8xf32>, vector<8x8xf32>, vector<16x8xf32> -> vector<16x8xf32>
    %162 = arith.addf %160, %161 : vector<16x8xf32>
    %163 = vector.broadcast %6 : vector<1x8xf32> to vector<16x8xf32>
    %164 = arith.addf %162, %163 : vector<16x8xf32>
    %cst_145 = arith.constant dense<0.000000e+00> : vector<16x96xf32>
    %165 = tpu.matmul %164, %7, %cst_145 {dimension_numbers = #tpu.dot_dimension_numbers<[1], [0], [0], [1], [0, 0, 1, 1], [], []>} : vector<16x8xf32>, vector<8x96xf32>, vector<16x96xf32> -> vector<16x96xf32>
    %166 = vector.broadcast %8 : vector<1x96xf32> to vector<16x96xf32>
    %167 = arith.addf %165, %166 : vector<16x96xf32>
    %c1_146 = arith.constant 1 : index
    %c0_147 = arith.constant 0 : index
    %c0_148 = arith.constant 0 : index
    %168 = vector.load %arg0[%c1_146, %c0_147, %c0_148] : memref<2x16x8xf32, #tpu.memory_space<vmem>>, vector<1x16x8xf32>
    %169 = vector.shape_cast %168 : vector<1x16x8xf32> to vector<16x8xf32>
    %c0_149 = arith.constant 0 : index
    %c0_150 = arith.constant 0 : index
    %c0_151 = arith.constant 0 : index
    %170 = vector.load %arg1[%c0_149, %c0_150, %c0_151] : memref<4x8x8xf32, #tpu.memory_space<vmem>>, vector<1x8x8xf32>
    %171 = vector.shape_cast %170 : vector<1x8x8xf32> to vector<8x8xf32>
    %c0_152 = arith.constant 0 : index
    %c0_153 = arith.constant 0 : index
    %c0_154 = arith.constant 0 : index
    %172 = vector.load %arg2[%c0_152, %c0_153, %c0_154] : memref<4x16x16xf32, #tpu.memory_space<vmem>>, vector<1x16x16xf32>
    %173 = vector.shape_cast %172 : vector<1x16x16xf32> to vector<16x16xf32>
    %c0_155 = arith.constant 0 : index
    %c0_156 = arith.constant 0 : index
    %c0_157 = arith.constant 0 : index
    %174 = vector.load %arg3[%c0_155, %c0_156, %c0_157] : memref<4x16x16xf32, #tpu.memory_space<vmem>>, vector<1x16x16xf32>
    %175 = vector.shape_cast %174 : vector<1x16x16xf32> to vector<16x16xf32>
    %c0_158 = arith.constant 0 : index
    %c0_159 = arith.constant 0 : index
    %c0_160 = arith.constant 0 : index
    %176 = vector.load %arg4[%c0_158, %c0_159, %c0_160] : memref<4x16x1xf32, #tpu.memory_space<vmem>>, vector<1x16x1xf32>
    %177 = vector.shape_cast %176 : vector<1x16x1xf32> to vector<16x1xf32>
    %c0_161 = arith.constant 0 : index
    %c0_162 = arith.constant 0 : index
    %c0_163 = arith.constant 0 : index
    %178 = vector.load %arg5[%c0_161, %c0_162, %c0_163] : memref<4x16x16xf32, #tpu.memory_space<vmem>>, vector<1x16x16xf32>
    %179 = vector.shape_cast %178 : vector<1x16x16xf32> to vector<16x16xf32>
    %c0_164 = arith.constant 0 : index
    %c0_165 = arith.constant 0 : index
    %c0_166 = arith.constant 0 : index
    %180 = vector.load %arg6[%c0_164, %c0_165, %c0_166] : memref<4x16x16xf32, #tpu.memory_space<vmem>>, vector<1x16x16xf32>
    %181 = vector.shape_cast %180 : vector<1x16x16xf32> to vector<16x16xf32>
    %c0_167 = arith.constant 0 : index
    %c0_168 = arith.constant 0 : index
    %c0_169 = arith.constant 0 : index
    %182 = vector.load %arg7[%c0_167, %c0_168, %c0_169] : memref<4x16x1xf32, #tpu.memory_space<vmem>>, vector<1x16x1xf32>
    %183 = vector.shape_cast %182 : vector<1x16x1xf32> to vector<16x1xf32>
    %cst_170 = arith.constant dense<0.000000e+00> : vector<16x8xf32>
    %184 = tpu.matmul %169, %171, %cst_170 {dimension_numbers = #tpu.dot_dimension_numbers<[1], [0], [0], [1], [0, 0, 1, 1], [], []>} : vector<16x8xf32>, vector<8x8xf32>, vector<16x8xf32> -> vector<16x8xf32>
    %cst_171 = arith.constant dense<0.000000e+00> : vector<16x8xf32>
    %185 = tpu.matmul %173, %184, %cst_171 {dimension_numbers = #tpu.dot_dimension_numbers<[1], [0], [0], [1], [0, 0, 1, 1], [], []>} : vector<16x16xf32>, vector<16x8xf32>, vector<16x8xf32> -> vector<16x8xf32>
    %cst_172 = arith.constant dense<0.000000e+00> : vector<16x8xf32>
    %186 = tpu.matmul %175, %169, %cst_172 {dimension_numbers = #tpu.dot_dimension_numbers<[1], [0], [0], [1], [0, 0, 1, 1], [], []>} : vector<16x16xf32>, vector<16x8xf32>, vector<16x8xf32> -> vector<16x8xf32>
    %187 = arith.addf %185, %186 : vector<16x8xf32>
    %188 = vector.broadcast %177 : vector<16x1xf32> to vector<16x8xf32>
    %189 = arith.addf %187, %188 : vector<16x8xf32>
    %cst_173 = arith.constant 0.000000e+00 : f32
    %190 = vector.broadcast %cst_173 : f32 to vector<16x8xf32>
    %191 = arith.maximumf %189, %190 : vector<16x8xf32>
    %cst_174 = arith.constant dense<0.000000e+00> : vector<16x8xf32>
    %192 = tpu.matmul %191, %171, %cst_174 {dimension_numbers = #tpu.dot_dimension_numbers<[1], [0], [0], [1], [0, 0, 1, 1], [], []>} : vector<16x8xf32>, vector<8x8xf32>, vector<16x8xf32> -> vector<16x8xf32>
    %cst_175 = arith.constant dense<0.000000e+00> : vector<16x8xf32>
    %193 = tpu.matmul %179, %192, %cst_175 {dimension_numbers = #tpu.dot_dimension_numbers<[1], [0], [0], [1], [0, 0, 1, 1], [], []>} : vector<16x16xf32>, vector<16x8xf32>, vector<16x8xf32> -> vector<16x8xf32>
    %cst_176 = arith.constant dense<0.000000e+00> : vector<16x8xf32>
    %194 = tpu.matmul %181, %191, %cst_176 {dimension_numbers = #tpu.dot_dimension_numbers<[1], [0], [0], [1], [0, 0, 1, 1], [], []>} : vector<16x16xf32>, vector<16x8xf32>, vector<16x8xf32> -> vector<16x8xf32>
    %195 = arith.addf %193, %194 : vector<16x8xf32>
    %196 = vector.broadcast %183 : vector<16x1xf32> to vector<16x8xf32>
    %197 = arith.addf %195, %196 : vector<16x8xf32>
    %cst_177 = arith.constant 0.000000e+00 : f32
    %198 = vector.broadcast %cst_177 : f32 to vector<16x8xf32>
    %199 = arith.maximumf %197, %198 : vector<16x8xf32>
    %200 = arith.addf %199, %169 : vector<16x8xf32>
    %cst_178 = arith.constant 0.000000e+00 : f32
    %201 = vector.broadcast %cst_178 : f32 to vector<16x8xf32>
    %202 = arith.maximumf %200, %201 : vector<16x8xf32>
    %c1_179 = arith.constant 1 : index
    %c0_180 = arith.constant 0 : index
    %c0_181 = arith.constant 0 : index
    %203 = vector.load %arg1[%c1_179, %c0_180, %c0_181] : memref<4x8x8xf32, #tpu.memory_space<vmem>>, vector<1x8x8xf32>
    %204 = vector.shape_cast %203 : vector<1x8x8xf32> to vector<8x8xf32>
    %c1_182 = arith.constant 1 : index
    %c0_183 = arith.constant 0 : index
    %c0_184 = arith.constant 0 : index
    %205 = vector.load %arg2[%c1_182, %c0_183, %c0_184] : memref<4x16x16xf32, #tpu.memory_space<vmem>>, vector<1x16x16xf32>
    %206 = vector.shape_cast %205 : vector<1x16x16xf32> to vector<16x16xf32>
    %c1_185 = arith.constant 1 : index
    %c0_186 = arith.constant 0 : index
    %c0_187 = arith.constant 0 : index
    %207 = vector.load %arg3[%c1_185, %c0_186, %c0_187] : memref<4x16x16xf32, #tpu.memory_space<vmem>>, vector<1x16x16xf32>
    %208 = vector.shape_cast %207 : vector<1x16x16xf32> to vector<16x16xf32>
    %c1_188 = arith.constant 1 : index
    %c0_189 = arith.constant 0 : index
    %c0_190 = arith.constant 0 : index
    %209 = vector.load %arg4[%c1_188, %c0_189, %c0_190] : memref<4x16x1xf32, #tpu.memory_space<vmem>>, vector<1x16x1xf32>
    %210 = vector.shape_cast %209 : vector<1x16x1xf32> to vector<16x1xf32>
    %c1_191 = arith.constant 1 : index
    %c0_192 = arith.constant 0 : index
    %c0_193 = arith.constant 0 : index
    %211 = vector.load %arg5[%c1_191, %c0_192, %c0_193] : memref<4x16x16xf32, #tpu.memory_space<vmem>>, vector<1x16x16xf32>
    %212 = vector.shape_cast %211 : vector<1x16x16xf32> to vector<16x16xf32>
    %c1_194 = arith.constant 1 : index
    %c0_195 = arith.constant 0 : index
    %c0_196 = arith.constant 0 : index
    %213 = vector.load %arg6[%c1_194, %c0_195, %c0_196] : memref<4x16x16xf32, #tpu.memory_space<vmem>>, vector<1x16x16xf32>
    %214 = vector.shape_cast %213 : vector<1x16x16xf32> to vector<16x16xf32>
    %c1_197 = arith.constant 1 : index
    %c0_198 = arith.constant 0 : index
    %c0_199 = arith.constant 0 : index
    %215 = vector.load %arg7[%c1_197, %c0_198, %c0_199] : memref<4x16x1xf32, #tpu.memory_space<vmem>>, vector<1x16x1xf32>
    %216 = vector.shape_cast %215 : vector<1x16x1xf32> to vector<16x1xf32>
    %cst_200 = arith.constant dense<0.000000e+00> : vector<16x8xf32>
    %217 = tpu.matmul %202, %204, %cst_200 {dimension_numbers = #tpu.dot_dimension_numbers<[1], [0], [0], [1], [0, 0, 1, 1], [], []>} : vector<16x8xf32>, vector<8x8xf32>, vector<16x8xf32> -> vector<16x8xf32>
    %cst_201 = arith.constant dense<0.000000e+00> : vector<16x8xf32>
    %218 = tpu.matmul %206, %217, %cst_201 {dimension_numbers = #tpu.dot_dimension_numbers<[1], [0], [0], [1], [0, 0, 1, 1], [], []>} : vector<16x16xf32>, vector<16x8xf32>, vector<16x8xf32> -> vector<16x8xf32>
    %cst_202 = arith.constant dense<0.000000e+00> : vector<16x8xf32>
    %219 = tpu.matmul %208, %202, %cst_202 {dimension_numbers = #tpu.dot_dimension_numbers<[1], [0], [0], [1], [0, 0, 1, 1], [], []>} : vector<16x16xf32>, vector<16x8xf32>, vector<16x8xf32> -> vector<16x8xf32>
    %220 = arith.addf %218, %219 : vector<16x8xf32>
    %221 = vector.broadcast %210 : vector<16x1xf32> to vector<16x8xf32>
    %222 = arith.addf %220, %221 : vector<16x8xf32>
    %cst_203 = arith.constant 0.000000e+00 : f32
    %223 = vector.broadcast %cst_203 : f32 to vector<16x8xf32>
    %224 = arith.maximumf %222, %223 : vector<16x8xf32>
    %cst_204 = arith.constant dense<0.000000e+00> : vector<16x8xf32>
    %225 = tpu.matmul %224, %204, %cst_204 {dimension_numbers = #tpu.dot_dimension_numbers<[1], [0], [0], [1], [0, 0, 1, 1], [], []>} : vector<16x8xf32>, vector<8x8xf32>, vector<16x8xf32> -> vector<16x8xf32>
    %cst_205 = arith.constant dense<0.000000e+00> : vector<16x8xf32>
    %226 = tpu.matmul %212, %225, %cst_205 {dimension_numbers = #tpu.dot_dimension_numbers<[1], [0], [0], [1], [0, 0, 1, 1], [], []>} : vector<16x16xf32>, vector<16x8xf32>, vector<16x8xf32> -> vector<16x8xf32>
    %cst_206 = arith.constant dense<0.000000e+00> : vector<16x8xf32>
    %227 = tpu.matmul %214, %224, %cst_206 {dimension_numbers = #tpu.dot_dimension_numbers<[1], [0], [0], [1], [0, 0, 1, 1], [], []>} : vector<16x16xf32>, vector<16x8xf32>, vector<16x8xf32> -> vector<16x8xf32>
    %228 = arith.addf %226, %227 : vector<16x8xf32>
    %229 = vector.broadcast %216 : vector<16x1xf32> to vector<16x8xf32>
    %230 = arith.addf %228, %229 : vector<16x8xf32>
    %cst_207 = arith.constant 0.000000e+00 : f32
    %231 = vector.broadcast %cst_207 : f32 to vector<16x8xf32>
    %232 = arith.maximumf %230, %231 : vector<16x8xf32>
    %233 = arith.addf %232, %202 : vector<16x8xf32>
    %cst_208 = arith.constant 0.000000e+00 : f32
    %234 = vector.broadcast %cst_208 : f32 to vector<16x8xf32>
    %235 = arith.maximumf %233, %234 : vector<16x8xf32>
    %c2_209 = arith.constant 2 : index
    %c0_210 = arith.constant 0 : index
    %c0_211 = arith.constant 0 : index
    %236 = vector.load %arg1[%c2_209, %c0_210, %c0_211] : memref<4x8x8xf32, #tpu.memory_space<vmem>>, vector<1x8x8xf32>
    %237 = vector.shape_cast %236 : vector<1x8x8xf32> to vector<8x8xf32>
    %c2_212 = arith.constant 2 : index
    %c0_213 = arith.constant 0 : index
    %c0_214 = arith.constant 0 : index
    %238 = vector.load %arg2[%c2_212, %c0_213, %c0_214] : memref<4x16x16xf32, #tpu.memory_space<vmem>>, vector<1x16x16xf32>
    %239 = vector.shape_cast %238 : vector<1x16x16xf32> to vector<16x16xf32>
    %c2_215 = arith.constant 2 : index
    %c0_216 = arith.constant 0 : index
    %c0_217 = arith.constant 0 : index
    %240 = vector.load %arg3[%c2_215, %c0_216, %c0_217] : memref<4x16x16xf32, #tpu.memory_space<vmem>>, vector<1x16x16xf32>
    %241 = vector.shape_cast %240 : vector<1x16x16xf32> to vector<16x16xf32>
    %c2_218 = arith.constant 2 : index
    %c0_219 = arith.constant 0 : index
    %c0_220 = arith.constant 0 : index
    %242 = vector.load %arg4[%c2_218, %c0_219, %c0_220] : memref<4x16x1xf32, #tpu.memory_space<vmem>>, vector<1x16x1xf32>
    %243 = vector.shape_cast %242 : vector<1x16x1xf32> to vector<16x1xf32>
    %c2_221 = arith.constant 2 : index
    %c0_222 = arith.constant 0 : index
    %c0_223 = arith.constant 0 : index
    %244 = vector.load %arg5[%c2_221, %c0_222, %c0_223] : memref<4x16x16xf32, #tpu.memory_space<vmem>>, vector<1x16x16xf32>
    %245 = vector.shape_cast %244 : vector<1x16x16xf32> to vector<16x16xf32>
    %c2_224 = arith.constant 2 : index
    %c0_225 = arith.constant 0 : index
    %c0_226 = arith.constant 0 : index
    %246 = vector.load %arg6[%c2_224, %c0_225, %c0_226] : memref<4x16x16xf32, #tpu.memory_space<vmem>>, vector<1x16x16xf32>
    %247 = vector.shape_cast %246 : vector<1x16x16xf32> to vector<16x16xf32>
    %c2_227 = arith.constant 2 : index
    %c0_228 = arith.constant 0 : index
    %c0_229 = arith.constant 0 : index
    %248 = vector.load %arg7[%c2_227, %c0_228, %c0_229] : memref<4x16x1xf32, #tpu.memory_space<vmem>>, vector<1x16x1xf32>
    %249 = vector.shape_cast %248 : vector<1x16x1xf32> to vector<16x1xf32>
    %cst_230 = arith.constant dense<0.000000e+00> : vector<16x8xf32>
    %250 = tpu.matmul %235, %237, %cst_230 {dimension_numbers = #tpu.dot_dimension_numbers<[1], [0], [0], [1], [0, 0, 1, 1], [], []>} : vector<16x8xf32>, vector<8x8xf32>, vector<16x8xf32> -> vector<16x8xf32>
    %cst_231 = arith.constant dense<0.000000e+00> : vector<16x8xf32>
    %251 = tpu.matmul %239, %250, %cst_231 {dimension_numbers = #tpu.dot_dimension_numbers<[1], [0], [0], [1], [0, 0, 1, 1], [], []>} : vector<16x16xf32>, vector<16x8xf32>, vector<16x8xf32> -> vector<16x8xf32>
    %cst_232 = arith.constant dense<0.000000e+00> : vector<16x8xf32>
    %252 = tpu.matmul %241, %235, %cst_232 {dimension_numbers = #tpu.dot_dimension_numbers<[1], [0], [0], [1], [0, 0, 1, 1], [], []>} : vector<16x16xf32>, vector<16x8xf32>, vector<16x8xf32> -> vector<16x8xf32>
    %253 = arith.addf %251, %252 : vector<16x8xf32>
    %254 = vector.broadcast %243 : vector<16x1xf32> to vector<16x8xf32>
    %255 = arith.addf %253, %254 : vector<16x8xf32>
    %cst_233 = arith.constant 0.000000e+00 : f32
    %256 = vector.broadcast %cst_233 : f32 to vector<16x8xf32>
    %257 = arith.maximumf %255, %256 : vector<16x8xf32>
    %cst_234 = arith.constant dense<0.000000e+00> : vector<16x8xf32>
    %258 = tpu.matmul %257, %237, %cst_234 {dimension_numbers = #tpu.dot_dimension_numbers<[1], [0], [0], [1], [0, 0, 1, 1], [], []>} : vector<16x8xf32>, vector<8x8xf32>, vector<16x8xf32> -> vector<16x8xf32>
    %cst_235 = arith.constant dense<0.000000e+00> : vector<16x8xf32>
    %259 = tpu.matmul %245, %258, %cst_235 {dimension_numbers = #tpu.dot_dimension_numbers<[1], [0], [0], [1], [0, 0, 1, 1], [], []>} : vector<16x16xf32>, vector<16x8xf32>, vector<16x8xf32> -> vector<16x8xf32>
    %cst_236 = arith.constant dense<0.000000e+00> : vector<16x8xf32>
    %260 = tpu.matmul %247, %257, %cst_236 {dimension_numbers = #tpu.dot_dimension_numbers<[1], [0], [0], [1], [0, 0, 1, 1], [], []>} : vector<16x16xf32>, vector<16x8xf32>, vector<16x8xf32> -> vector<16x8xf32>
    %261 = arith.addf %259, %260 : vector<16x8xf32>
    %262 = vector.broadcast %249 : vector<16x1xf32> to vector<16x8xf32>
    %263 = arith.addf %261, %262 : vector<16x8xf32>
    %cst_237 = arith.constant 0.000000e+00 : f32
    %264 = vector.broadcast %cst_237 : f32 to vector<16x8xf32>
    %265 = arith.maximumf %263, %264 : vector<16x8xf32>
    %266 = arith.addf %265, %235 : vector<16x8xf32>
    %cst_238 = arith.constant 0.000000e+00 : f32
    %267 = vector.broadcast %cst_238 : f32 to vector<16x8xf32>
    %268 = arith.maximumf %266, %267 : vector<16x8xf32>
    %c3_239 = arith.constant 3 : index
    %c0_240 = arith.constant 0 : index
    %c0_241 = arith.constant 0 : index
    %269 = vector.load %arg1[%c3_239, %c0_240, %c0_241] : memref<4x8x8xf32, #tpu.memory_space<vmem>>, vector<1x8x8xf32>
    %270 = vector.shape_cast %269 : vector<1x8x8xf32> to vector<8x8xf32>
    %c3_242 = arith.constant 3 : index
    %c0_243 = arith.constant 0 : index
    %c0_244 = arith.constant 0 : index
    %271 = vector.load %arg2[%c3_242, %c0_243, %c0_244] : memref<4x16x16xf32, #tpu.memory_space<vmem>>, vector<1x16x16xf32>
    %272 = vector.shape_cast %271 : vector<1x16x16xf32> to vector<16x16xf32>
    %c3_245 = arith.constant 3 : index
    %c0_246 = arith.constant 0 : index
    %c0_247 = arith.constant 0 : index
    %273 = vector.load %arg3[%c3_245, %c0_246, %c0_247] : memref<4x16x16xf32, #tpu.memory_space<vmem>>, vector<1x16x16xf32>
    %274 = vector.shape_cast %273 : vector<1x16x16xf32> to vector<16x16xf32>
    %c3_248 = arith.constant 3 : index
    %c0_249 = arith.constant 0 : index
    %c0_250 = arith.constant 0 : index
    %275 = vector.load %arg4[%c3_248, %c0_249, %c0_250] : memref<4x16x1xf32, #tpu.memory_space<vmem>>, vector<1x16x1xf32>
    %276 = vector.shape_cast %275 : vector<1x16x1xf32> to vector<16x1xf32>
    %c3_251 = arith.constant 3 : index
    %c0_252 = arith.constant 0 : index
    %c0_253 = arith.constant 0 : index
    %277 = vector.load %arg5[%c3_251, %c0_252, %c0_253] : memref<4x16x16xf32, #tpu.memory_space<vmem>>, vector<1x16x16xf32>
    %278 = vector.shape_cast %277 : vector<1x16x16xf32> to vector<16x16xf32>
    %c3_254 = arith.constant 3 : index
    %c0_255 = arith.constant 0 : index
    %c0_256 = arith.constant 0 : index
    %279 = vector.load %arg6[%c3_254, %c0_255, %c0_256] : memref<4x16x16xf32, #tpu.memory_space<vmem>>, vector<1x16x16xf32>
    %280 = vector.shape_cast %279 : vector<1x16x16xf32> to vector<16x16xf32>
    %c3_257 = arith.constant 3 : index
    %c0_258 = arith.constant 0 : index
    %c0_259 = arith.constant 0 : index
    %281 = vector.load %arg7[%c3_257, %c0_258, %c0_259] : memref<4x16x1xf32, #tpu.memory_space<vmem>>, vector<1x16x1xf32>
    %282 = vector.shape_cast %281 : vector<1x16x1xf32> to vector<16x1xf32>
    %cst_260 = arith.constant dense<0.000000e+00> : vector<16x8xf32>
    %283 = tpu.matmul %268, %270, %cst_260 {dimension_numbers = #tpu.dot_dimension_numbers<[1], [0], [0], [1], [0, 0, 1, 1], [], []>} : vector<16x8xf32>, vector<8x8xf32>, vector<16x8xf32> -> vector<16x8xf32>
    %cst_261 = arith.constant dense<0.000000e+00> : vector<16x8xf32>
    %284 = tpu.matmul %272, %283, %cst_261 {dimension_numbers = #tpu.dot_dimension_numbers<[1], [0], [0], [1], [0, 0, 1, 1], [], []>} : vector<16x16xf32>, vector<16x8xf32>, vector<16x8xf32> -> vector<16x8xf32>
    %cst_262 = arith.constant dense<0.000000e+00> : vector<16x8xf32>
    %285 = tpu.matmul %274, %268, %cst_262 {dimension_numbers = #tpu.dot_dimension_numbers<[1], [0], [0], [1], [0, 0, 1, 1], [], []>} : vector<16x16xf32>, vector<16x8xf32>, vector<16x8xf32> -> vector<16x8xf32>
    %286 = arith.addf %284, %285 : vector<16x8xf32>
    %287 = vector.broadcast %276 : vector<16x1xf32> to vector<16x8xf32>
    %288 = arith.addf %286, %287 : vector<16x8xf32>
    %cst_263 = arith.constant 0.000000e+00 : f32
    %289 = vector.broadcast %cst_263 : f32 to vector<16x8xf32>
    %290 = arith.maximumf %288, %289 : vector<16x8xf32>
    %cst_264 = arith.constant dense<0.000000e+00> : vector<16x8xf32>
    %291 = tpu.matmul %290, %270, %cst_264 {dimension_numbers = #tpu.dot_dimension_numbers<[1], [0], [0], [1], [0, 0, 1, 1], [], []>} : vector<16x8xf32>, vector<8x8xf32>, vector<16x8xf32> -> vector<16x8xf32>
    %cst_265 = arith.constant dense<0.000000e+00> : vector<16x8xf32>
    %292 = tpu.matmul %278, %291, %cst_265 {dimension_numbers = #tpu.dot_dimension_numbers<[1], [0], [0], [1], [0, 0, 1, 1], [], []>} : vector<16x16xf32>, vector<16x8xf32>, vector<16x8xf32> -> vector<16x8xf32>
    %cst_266 = arith.constant dense<0.000000e+00> : vector<16x8xf32>
    %293 = tpu.matmul %280, %290, %cst_266 {dimension_numbers = #tpu.dot_dimension_numbers<[1], [0], [0], [1], [0, 0, 1, 1], [], []>} : vector<16x16xf32>, vector<16x8xf32>, vector<16x8xf32> -> vector<16x8xf32>
    %294 = arith.addf %292, %293 : vector<16x8xf32>
    %295 = vector.broadcast %282 : vector<16x1xf32> to vector<16x8xf32>
    %296 = arith.addf %294, %295 : vector<16x8xf32>
    %cst_267 = arith.constant 0.000000e+00 : f32
    %297 = vector.broadcast %cst_267 : f32 to vector<16x8xf32>
    %298 = arith.maximumf %296, %297 : vector<16x8xf32>
    %299 = arith.addf %298, %268 : vector<16x8xf32>
    %cst_268 = arith.constant 0.000000e+00 : f32
    %300 = vector.broadcast %cst_268 : f32 to vector<16x8xf32>
    %301 = arith.maximumf %299, %300 : vector<16x8xf32>
    %302 = arith.addf %301, %169 : vector<16x8xf32>
    %303 = vector.shape_cast %169 : vector<16x8xf32> to vector<16x8x1xf32>
    %304 = vector.broadcast %303 : vector<16x8x1xf32> to vector<16x8x8xf32>
    %305 = arith.mulf %2, %304 : vector<16x8x8xf32>
    %cst_269 = arith.constant dense<0.000000e+00> : vector<16x8xf32>
    %306 = vector.multi_reduction <add>, %305, %cst_269 [1] : vector<16x8x8xf32> to vector<16x8xf32>
    %307 = vector.shape_cast %306 : vector<16x8xf32> to vector<1x16x8xf32>
    %308 = vector.broadcast %307 : vector<1x16x8xf32> to vector<16x16x8xf32>
    %309 = arith.mulf %3, %308 : vector<16x16x8xf32>
    %cst_270 = arith.constant dense<0.000000e+00> : vector<16x8xf32>
    %310 = vector.multi_reduction <add>, %309, %cst_270 [1] : vector<16x16x8xf32> to vector<16x8xf32>
    %311 = arith.addf %310, %169 : vector<16x8xf32>
    %cst_271 = arith.constant 0.000000e+00 : f32
    %312 = vector.broadcast %cst_271 : f32 to vector<16x8xf32>
    %313 = arith.cmpf oge, %311, %312 : vector<16x8xf32>
    %314 = vector.broadcast %1 : f32 to vector<16x8xf32>
    %315 = arith.mulf %314, %311 : vector<16x8xf32>
    %316 = arith.select %313, %311, %315 : vector<16x8xi1>, vector<16x8xf32>
    %cst_272 = arith.constant dense<0.000000e+00> : vector<16x8xf32>
    %317 = tpu.matmul %316, %4, %cst_272 {dimension_numbers = #tpu.dot_dimension_numbers<[1], [0], [0], [1], [0, 0, 1, 1], [], []>} : vector<16x8xf32>, vector<8x8xf32>, vector<16x8xf32> -> vector<16x8xf32>
    %cst_273 = arith.constant dense<0.000000e+00> : vector<16x8xf32>
    %318 = tpu.matmul %302, %5, %cst_273 {dimension_numbers = #tpu.dot_dimension_numbers<[1], [0], [0], [1], [0, 0, 1, 1], [], []>} : vector<16x8xf32>, vector<8x8xf32>, vector<16x8xf32> -> vector<16x8xf32>
    %319 = arith.addf %317, %318 : vector<16x8xf32>
    %320 = vector.broadcast %6 : vector<1x8xf32> to vector<16x8xf32>
    %321 = arith.addf %319, %320 : vector<16x8xf32>
    %cst_274 = arith.constant dense<0.000000e+00> : vector<16x96xf32>
    %322 = tpu.matmul %321, %7, %cst_274 {dimension_numbers = #tpu.dot_dimension_numbers<[1], [0], [0], [1], [0, 0, 1, 1], [], []>} : vector<16x8xf32>, vector<8x96xf32>, vector<16x96xf32> -> vector<16x96xf32>
    %323 = vector.broadcast %8 : vector<1x96xf32> to vector<16x96xf32>
    %324 = arith.addf %322, %323 : vector<16x96xf32>
    %c0_275 = arith.constant 0 : index
    %c0_276 = arith.constant 0 : index
    %325 = vector.load %arg18[%c0_275, %c0_276] : memref<2x32xf32, #tpu.memory_space<vmem>>, vector<2x32xf32>
    %326 = vector.extract_strided_slice %167 {offsets = [0, 0], sizes = [1, 96], strides = [1, 1]} : vector<16x96xf32> to vector<1x96xf32>
    %327 = vector.extract_strided_slice %324 {offsets = [0, 0], sizes = [1, 96], strides = [1, 1]} : vector<16x96xf32> to vector<1x96xf32>
    %328 = tpu.concatenate %326, %327 in 0 : vector<1x96xf32>, vector<1x96xf32> -> vector<2x96xf32>
    %cst_277 = arith.constant dense<0.000000e+00> : vector<2x96xf32>
    %329 = tpu.matmul %325, %9, %cst_277 {dimension_numbers = #tpu.dot_dimension_numbers<[1], [0], [0], [1], [0, 0, 1, 1], [], []>} : vector<2x32xf32>, vector<32x96xf32>, vector<2x96xf32> -> vector<2x96xf32>
    %330 = vector.broadcast %10 : vector<1x96xf32> to vector<2x96xf32>
    %331 = arith.addf %329, %330 : vector<2x96xf32>
    %332 = vector.extract_strided_slice %328 {offsets = [0, 0], sizes = [2, 32], strides = [1, 1]} : vector<2x96xf32> to vector<2x32xf32>
    %333 = vector.extract_strided_slice %331 {offsets = [0, 0], sizes = [2, 32], strides = [1, 1]} : vector<2x96xf32> to vector<2x32xf32>
    %334 = arith.addf %332, %333 : vector<2x32xf32>
    %335 = arith.negf %334 : vector<2x32xf32>
    %336 = math.exp %335 : vector<2x32xf32>
    %cst_278 = arith.constant 1.000000e+00 : f32
    %337 = vector.broadcast %cst_278 : f32 to vector<2x32xf32>
    %338 = arith.addf %337, %336 : vector<2x32xf32>
    %339 = arith.divf %337, %338 : vector<2x32xf32>
    %340 = vector.extract_strided_slice %328 {offsets = [0, 32], sizes = [2, 32], strides = [1, 1]} : vector<2x96xf32> to vector<2x32xf32>
    %341 = vector.extract_strided_slice %331 {offsets = [0, 32], sizes = [2, 32], strides = [1, 1]} : vector<2x96xf32> to vector<2x32xf32>
    %342 = arith.addf %340, %341 : vector<2x32xf32>
    %343 = arith.negf %342 : vector<2x32xf32>
    %344 = math.exp %343 : vector<2x32xf32>
    %cst_279 = arith.constant 1.000000e+00 : f32
    %345 = vector.broadcast %cst_279 : f32 to vector<2x32xf32>
    %346 = arith.addf %345, %344 : vector<2x32xf32>
    %347 = arith.divf %345, %346 : vector<2x32xf32>
    %348 = vector.extract_strided_slice %328 {offsets = [0, 64], sizes = [2, 32], strides = [1, 1]} : vector<2x96xf32> to vector<2x32xf32>
    %349 = vector.extract_strided_slice %331 {offsets = [0, 64], sizes = [2, 32], strides = [1, 1]} : vector<2x96xf32> to vector<2x32xf32>
    %350 = arith.mulf %339, %349 : vector<2x32xf32>
    %351 = arith.addf %348, %350 : vector<2x32xf32>
    %352 = math.tanh %351 : vector<2x32xf32>
    %cst_280 = arith.constant 1.000000e+00 : f32
    %353 = vector.broadcast %cst_280 : f32 to vector<2x32xf32>
    %354 = arith.subf %353, %347 : vector<2x32xf32>
    %355 = arith.mulf %354, %352 : vector<2x32xf32>
    %356 = arith.mulf %347, %325 : vector<2x32xf32>
    %357 = arith.addf %355, %356 : vector<2x32xf32>
    %358 = vector.extract_strided_slice %167 {offsets = [1, 0], sizes = [1, 96], strides = [1, 1]} : vector<16x96xf32> to vector<1x96xf32>
    %359 = vector.extract_strided_slice %324 {offsets = [1, 0], sizes = [1, 96], strides = [1, 1]} : vector<16x96xf32> to vector<1x96xf32>
    %360 = tpu.concatenate %358, %359 in 0 : vector<1x96xf32>, vector<1x96xf32> -> vector<2x96xf32>
    %cst_281 = arith.constant dense<0.000000e+00> : vector<2x96xf32>
    %361 = tpu.matmul %357, %9, %cst_281 {dimension_numbers = #tpu.dot_dimension_numbers<[1], [0], [0], [1], [0, 0, 1, 1], [], []>} : vector<2x32xf32>, vector<32x96xf32>, vector<2x96xf32> -> vector<2x96xf32>
    %362 = vector.broadcast %10 : vector<1x96xf32> to vector<2x96xf32>
    %363 = arith.addf %361, %362 : vector<2x96xf32>
    %364 = vector.extract_strided_slice %360 {offsets = [0, 0], sizes = [2, 32], strides = [1, 1]} : vector<2x96xf32> to vector<2x32xf32>
    %365 = vector.extract_strided_slice %363 {offsets = [0, 0], sizes = [2, 32], strides = [1, 1]} : vector<2x96xf32> to vector<2x32xf32>
    %366 = arith.addf %364, %365 : vector<2x32xf32>
    %367 = arith.negf %366 : vector<2x32xf32>
    %368 = math.exp %367 : vector<2x32xf32>
    %cst_282 = arith.constant 1.000000e+00 : f32
    %369 = vector.broadcast %cst_282 : f32 to vector<2x32xf32>
    %370 = arith.addf %369, %368 : vector<2x32xf32>
    %371 = arith.divf %369, %370 : vector<2x32xf32>
    %372 = vector.extract_strided_slice %360 {offsets = [0, 32], sizes = [2, 32], strides = [1, 1]} : vector<2x96xf32> to vector<2x32xf32>
    %373 = vector.extract_strided_slice %363 {offsets = [0, 32], sizes = [2, 32], strides = [1, 1]} : vector<2x96xf32> to vector<2x32xf32>
    %374 = arith.addf %372, %373 : vector<2x32xf32>
    %375 = arith.negf %374 : vector<2x32xf32>
    %376 = math.exp %375 : vector<2x32xf32>
    %cst_283 = arith.constant 1.000000e+00 : f32
    %377 = vector.broadcast %cst_283 : f32 to vector<2x32xf32>
    %378 = arith.addf %377, %376 : vector<2x32xf32>
    %379 = arith.divf %377, %378 : vector<2x32xf32>
    %380 = vector.extract_strided_slice %360 {offsets = [0, 64], sizes = [2, 32], strides = [1, 1]} : vector<2x96xf32> to vector<2x32xf32>
    %381 = vector.extract_strided_slice %363 {offsets = [0, 64], sizes = [2, 32], strides = [1, 1]} : vector<2x96xf32> to vector<2x32xf32>
    %382 = arith.mulf %371, %381 : vector<2x32xf32>
    %383 = arith.addf %380, %382 : vector<2x32xf32>
    %384 = math.tanh %383 : vector<2x32xf32>
    %cst_284 = arith.constant 1.000000e+00 : f32
    %385 = vector.broadcast %cst_284 : f32 to vector<2x32xf32>
    %386 = arith.subf %385, %379 : vector<2x32xf32>
    %387 = arith.mulf %386, %384 : vector<2x32xf32>
    %388 = arith.mulf %379, %357 : vector<2x32xf32>
    %389 = arith.addf %387, %388 : vector<2x32xf32>
    %390 = vector.extract_strided_slice %167 {offsets = [2, 0], sizes = [1, 96], strides = [1, 1]} : vector<16x96xf32> to vector<1x96xf32>
    %391 = vector.extract_strided_slice %324 {offsets = [2, 0], sizes = [1, 96], strides = [1, 1]} : vector<16x96xf32> to vector<1x96xf32>
    %392 = tpu.concatenate %390, %391 in 0 : vector<1x96xf32>, vector<1x96xf32> -> vector<2x96xf32>
    %cst_285 = arith.constant dense<0.000000e+00> : vector<2x96xf32>
    %393 = tpu.matmul %389, %9, %cst_285 {dimension_numbers = #tpu.dot_dimension_numbers<[1], [0], [0], [1], [0, 0, 1, 1], [], []>} : vector<2x32xf32>, vector<32x96xf32>, vector<2x96xf32> -> vector<2x96xf32>
    %394 = vector.broadcast %10 : vector<1x96xf32> to vector<2x96xf32>
    %395 = arith.addf %393, %394 : vector<2x96xf32>
    %396 = vector.extract_strided_slice %392 {offsets = [0, 0], sizes = [2, 32], strides = [1, 1]} : vector<2x96xf32> to vector<2x32xf32>
    %397 = vector.extract_strided_slice %395 {offsets = [0, 0], sizes = [2, 32], strides = [1, 1]} : vector<2x96xf32> to vector<2x32xf32>
    %398 = arith.addf %396, %397 : vector<2x32xf32>
    %399 = arith.negf %398 : vector<2x32xf32>
    %400 = math.exp %399 : vector<2x32xf32>
    %cst_286 = arith.constant 1.000000e+00 : f32
    %401 = vector.broadcast %cst_286 : f32 to vector<2x32xf32>
    %402 = arith.addf %401, %400 : vector<2x32xf32>
    %403 = arith.divf %401, %402 : vector<2x32xf32>
    %404 = vector.extract_strided_slice %392 {offsets = [0, 32], sizes = [2, 32], strides = [1, 1]} : vector<2x96xf32> to vector<2x32xf32>
    %405 = vector.extract_strided_slice %395 {offsets = [0, 32], sizes = [2, 32], strides = [1, 1]} : vector<2x96xf32> to vector<2x32xf32>
    %406 = arith.addf %404, %405 : vector<2x32xf32>
    %407 = arith.negf %406 : vector<2x32xf32>
    %408 = math.exp %407 : vector<2x32xf32>
    %cst_287 = arith.constant 1.000000e+00 : f32
    %409 = vector.broadcast %cst_287 : f32 to vector<2x32xf32>
    %410 = arith.addf %409, %408 : vector<2x32xf32>
    %411 = arith.divf %409, %410 : vector<2x32xf32>
    %412 = vector.extract_strided_slice %392 {offsets = [0, 64], sizes = [2, 32], strides = [1, 1]} : vector<2x96xf32> to vector<2x32xf32>
    %413 = vector.extract_strided_slice %395 {offsets = [0, 64], sizes = [2, 32], strides = [1, 1]} : vector<2x96xf32> to vector<2x32xf32>
    %414 = arith.mulf %403, %413 : vector<2x32xf32>
    %415 = arith.addf %412, %414 : vector<2x32xf32>
    %416 = math.tanh %415 : vector<2x32xf32>
    %cst_288 = arith.constant 1.000000e+00 : f32
    %417 = vector.broadcast %cst_288 : f32 to vector<2x32xf32>
    %418 = arith.subf %417, %411 : vector<2x32xf32>
    %419 = arith.mulf %418, %416 : vector<2x32xf32>
    %420 = arith.mulf %411, %389 : vector<2x32xf32>
    %421 = arith.addf %419, %420 : vector<2x32xf32>
    %422 = vector.extract_strided_slice %167 {offsets = [3, 0], sizes = [1, 96], strides = [1, 1]} : vector<16x96xf32> to vector<1x96xf32>
    %423 = vector.extract_strided_slice %324 {offsets = [3, 0], sizes = [1, 96], strides = [1, 1]} : vector<16x96xf32> to vector<1x96xf32>
    %424 = tpu.concatenate %422, %423 in 0 : vector<1x96xf32>, vector<1x96xf32> -> vector<2x96xf32>
    %cst_289 = arith.constant dense<0.000000e+00> : vector<2x96xf32>
    %425 = tpu.matmul %421, %9, %cst_289 {dimension_numbers = #tpu.dot_dimension_numbers<[1], [0], [0], [1], [0, 0, 1, 1], [], []>} : vector<2x32xf32>, vector<32x96xf32>, vector<2x96xf32> -> vector<2x96xf32>
    %426 = vector.broadcast %10 : vector<1x96xf32> to vector<2x96xf32>
    %427 = arith.addf %425, %426 : vector<2x96xf32>
    %428 = vector.extract_strided_slice %424 {offsets = [0, 0], sizes = [2, 32], strides = [1, 1]} : vector<2x96xf32> to vector<2x32xf32>
    %429 = vector.extract_strided_slice %427 {offsets = [0, 0], sizes = [2, 32], strides = [1, 1]} : vector<2x96xf32> to vector<2x32xf32>
    %430 = arith.addf %428, %429 : vector<2x32xf32>
    %431 = arith.negf %430 : vector<2x32xf32>
    %432 = math.exp %431 : vector<2x32xf32>
    %cst_290 = arith.constant 1.000000e+00 : f32
    %433 = vector.broadcast %cst_290 : f32 to vector<2x32xf32>
    %434 = arith.addf %433, %432 : vector<2x32xf32>
    %435 = arith.divf %433, %434 : vector<2x32xf32>
    %436 = vector.extract_strided_slice %424 {offsets = [0, 32], sizes = [2, 32], strides = [1, 1]} : vector<2x96xf32> to vector<2x32xf32>
    %437 = vector.extract_strided_slice %427 {offsets = [0, 32], sizes = [2, 32], strides = [1, 1]} : vector<2x96xf32> to vector<2x32xf32>
    %438 = arith.addf %436, %437 : vector<2x32xf32>
    %439 = arith.negf %438 : vector<2x32xf32>
    %440 = math.exp %439 : vector<2x32xf32>
    %cst_291 = arith.constant 1.000000e+00 : f32
    %441 = vector.broadcast %cst_291 : f32 to vector<2x32xf32>
    %442 = arith.addf %441, %440 : vector<2x32xf32>
    %443 = arith.divf %441, %442 : vector<2x32xf32>
    %444 = vector.extract_strided_slice %424 {offsets = [0, 64], sizes = [2, 32], strides = [1, 1]} : vector<2x96xf32> to vector<2x32xf32>
    %445 = vector.extract_strided_slice %427 {offsets = [0, 64], sizes = [2, 32], strides = [1, 1]} : vector<2x96xf32> to vector<2x32xf32>
    %446 = arith.mulf %435, %445 : vector<2x32xf32>
    %447 = arith.addf %444, %446 : vector<2x32xf32>
    %448 = math.tanh %447 : vector<2x32xf32>
    %cst_292 = arith.constant 1.000000e+00 : f32
    %449 = vector.broadcast %cst_292 : f32 to vector<2x32xf32>
    %450 = arith.subf %449, %443 : vector<2x32xf32>
    %451 = arith.mulf %450, %448 : vector<2x32xf32>
    %452 = arith.mulf %443, %421 : vector<2x32xf32>
    %453 = arith.addf %451, %452 : vector<2x32xf32>
    %454 = vector.extract_strided_slice %167 {offsets = [4, 0], sizes = [1, 96], strides = [1, 1]} : vector<16x96xf32> to vector<1x96xf32>
    %455 = vector.extract_strided_slice %324 {offsets = [4, 0], sizes = [1, 96], strides = [1, 1]} : vector<16x96xf32> to vector<1x96xf32>
    %456 = tpu.concatenate %454, %455 in 0 : vector<1x96xf32>, vector<1x96xf32> -> vector<2x96xf32>
    %cst_293 = arith.constant dense<0.000000e+00> : vector<2x96xf32>
    %457 = tpu.matmul %453, %9, %cst_293 {dimension_numbers = #tpu.dot_dimension_numbers<[1], [0], [0], [1], [0, 0, 1, 1], [], []>} : vector<2x32xf32>, vector<32x96xf32>, vector<2x96xf32> -> vector<2x96xf32>
    %458 = vector.broadcast %10 : vector<1x96xf32> to vector<2x96xf32>
    %459 = arith.addf %457, %458 : vector<2x96xf32>
    %460 = vector.extract_strided_slice %456 {offsets = [0, 0], sizes = [2, 32], strides = [1, 1]} : vector<2x96xf32> to vector<2x32xf32>
    %461 = vector.extract_strided_slice %459 {offsets = [0, 0], sizes = [2, 32], strides = [1, 1]} : vector<2x96xf32> to vector<2x32xf32>
    %462 = arith.addf %460, %461 : vector<2x32xf32>
    %463 = arith.negf %462 : vector<2x32xf32>
    %464 = math.exp %463 : vector<2x32xf32>
    %cst_294 = arith.constant 1.000000e+00 : f32
    %465 = vector.broadcast %cst_294 : f32 to vector<2x32xf32>
    %466 = arith.addf %465, %464 : vector<2x32xf32>
    %467 = arith.divf %465, %466 : vector<2x32xf32>
    %468 = vector.extract_strided_slice %456 {offsets = [0, 32], sizes = [2, 32], strides = [1, 1]} : vector<2x96xf32> to vector<2x32xf32>
    %469 = vector.extract_strided_slice %459 {offsets = [0, 32], sizes = [2, 32], strides = [1, 1]} : vector<2x96xf32> to vector<2x32xf32>
    %470 = arith.addf %468, %469 : vector<2x32xf32>
    %471 = arith.negf %470 : vector<2x32xf32>
    %472 = math.exp %471 : vector<2x32xf32>
    %cst_295 = arith.constant 1.000000e+00 : f32
    %473 = vector.broadcast %cst_295 : f32 to vector<2x32xf32>
    %474 = arith.addf %473, %472 : vector<2x32xf32>
    %475 = arith.divf %473, %474 : vector<2x32xf32>
    %476 = vector.extract_strided_slice %456 {offsets = [0, 64], sizes = [2, 32], strides = [1, 1]} : vector<2x96xf32> to vector<2x32xf32>
    %477 = vector.extract_strided_slice %459 {offsets = [0, 64], sizes = [2, 32], strides = [1, 1]} : vector<2x96xf32> to vector<2x32xf32>
    %478 = arith.mulf %467, %477 : vector<2x32xf32>
    %479 = arith.addf %476, %478 : vector<2x32xf32>
    %480 = math.tanh %479 : vector<2x32xf32>
    %cst_296 = arith.constant 1.000000e+00 : f32
    %481 = vector.broadcast %cst_296 : f32 to vector<2x32xf32>
    %482 = arith.subf %481, %475 : vector<2x32xf32>
    %483 = arith.mulf %482, %480 : vector<2x32xf32>
    %484 = arith.mulf %475, %453 : vector<2x32xf32>
    %485 = arith.addf %483, %484 : vector<2x32xf32>
    %486 = vector.extract_strided_slice %167 {offsets = [5, 0], sizes = [1, 96], strides = [1, 1]} : vector<16x96xf32> to vector<1x96xf32>
    %487 = vector.extract_strided_slice %324 {offsets = [5, 0], sizes = [1, 96], strides = [1, 1]} : vector<16x96xf32> to vector<1x96xf32>
    %488 = tpu.concatenate %486, %487 in 0 : vector<1x96xf32>, vector<1x96xf32> -> vector<2x96xf32>
    %cst_297 = arith.constant dense<0.000000e+00> : vector<2x96xf32>
    %489 = tpu.matmul %485, %9, %cst_297 {dimension_numbers = #tpu.dot_dimension_numbers<[1], [0], [0], [1], [0, 0, 1, 1], [], []>} : vector<2x32xf32>, vector<32x96xf32>, vector<2x96xf32> -> vector<2x96xf32>
    %490 = vector.broadcast %10 : vector<1x96xf32> to vector<2x96xf32>
    %491 = arith.addf %489, %490 : vector<2x96xf32>
    %492 = vector.extract_strided_slice %488 {offsets = [0, 0], sizes = [2, 32], strides = [1, 1]} : vector<2x96xf32> to vector<2x32xf32>
    %493 = vector.extract_strided_slice %491 {offsets = [0, 0], sizes = [2, 32], strides = [1, 1]} : vector<2x96xf32> to vector<2x32xf32>
    %494 = arith.addf %492, %493 : vector<2x32xf32>
    %495 = arith.negf %494 : vector<2x32xf32>
    %496 = math.exp %495 : vector<2x32xf32>
    %cst_298 = arith.constant 1.000000e+00 : f32
    %497 = vector.broadcast %cst_298 : f32 to vector<2x32xf32>
    %498 = arith.addf %497, %496 : vector<2x32xf32>
    %499 = arith.divf %497, %498 : vector<2x32xf32>
    %500 = vector.extract_strided_slice %488 {offsets = [0, 32], sizes = [2, 32], strides = [1, 1]} : vector<2x96xf32> to vector<2x32xf32>
    %501 = vector.extract_strided_slice %491 {offsets = [0, 32], sizes = [2, 32], strides = [1, 1]} : vector<2x96xf32> to vector<2x32xf32>
    %502 = arith.addf %500, %501 : vector<2x32xf32>
    %503 = arith.negf %502 : vector<2x32xf32>
    %504 = math.exp %503 : vector<2x32xf32>
    %cst_299 = arith.constant 1.000000e+00 : f32
    %505 = vector.broadcast %cst_299 : f32 to vector<2x32xf32>
    %506 = arith.addf %505, %504 : vector<2x32xf32>
    %507 = arith.divf %505, %506 : vector<2x32xf32>
    %508 = vector.extract_strided_slice %488 {offsets = [0, 64], sizes = [2, 32], strides = [1, 1]} : vector<2x96xf32> to vector<2x32xf32>
    %509 = vector.extract_strided_slice %491 {offsets = [0, 64], sizes = [2, 32], strides = [1, 1]} : vector<2x96xf32> to vector<2x32xf32>
    %510 = arith.mulf %499, %509 : vector<2x32xf32>
    %511 = arith.addf %508, %510 : vector<2x32xf32>
    %512 = math.tanh %511 : vector<2x32xf32>
    %cst_300 = arith.constant 1.000000e+00 : f32
    %513 = vector.broadcast %cst_300 : f32 to vector<2x32xf32>
    %514 = arith.subf %513, %507 : vector<2x32xf32>
    %515 = arith.mulf %514, %512 : vector<2x32xf32>
    %516 = arith.mulf %507, %485 : vector<2x32xf32>
    %517 = arith.addf %515, %516 : vector<2x32xf32>
    %518 = vector.extract_strided_slice %167 {offsets = [6, 0], sizes = [1, 96], strides = [1, 1]} : vector<16x96xf32> to vector<1x96xf32>
    %519 = vector.extract_strided_slice %324 {offsets = [6, 0], sizes = [1, 96], strides = [1, 1]} : vector<16x96xf32> to vector<1x96xf32>
    %520 = tpu.concatenate %518, %519 in 0 : vector<1x96xf32>, vector<1x96xf32> -> vector<2x96xf32>
    %cst_301 = arith.constant dense<0.000000e+00> : vector<2x96xf32>
    %521 = tpu.matmul %517, %9, %cst_301 {dimension_numbers = #tpu.dot_dimension_numbers<[1], [0], [0], [1], [0, 0, 1, 1], [], []>} : vector<2x32xf32>, vector<32x96xf32>, vector<2x96xf32> -> vector<2x96xf32>
    %522 = vector.broadcast %10 : vector<1x96xf32> to vector<2x96xf32>
    %523 = arith.addf %521, %522 : vector<2x96xf32>
    %524 = vector.extract_strided_slice %520 {offsets = [0, 0], sizes = [2, 32], strides = [1, 1]} : vector<2x96xf32> to vector<2x32xf32>
    %525 = vector.extract_strided_slice %523 {offsets = [0, 0], sizes = [2, 32], strides = [1, 1]} : vector<2x96xf32> to vector<2x32xf32>
    %526 = arith.addf %524, %525 : vector<2x32xf32>
    %527 = arith.negf %526 : vector<2x32xf32>
    %528 = math.exp %527 : vector<2x32xf32>
    %cst_302 = arith.constant 1.000000e+00 : f32
    %529 = vector.broadcast %cst_302 : f32 to vector<2x32xf32>
    %530 = arith.addf %529, %528 : vector<2x32xf32>
    %531 = arith.divf %529, %530 : vector<2x32xf32>
    %532 = vector.extract_strided_slice %520 {offsets = [0, 32], sizes = [2, 32], strides = [1, 1]} : vector<2x96xf32> to vector<2x32xf32>
    %533 = vector.extract_strided_slice %523 {offsets = [0, 32], sizes = [2, 32], strides = [1, 1]} : vector<2x96xf32> to vector<2x32xf32>
    %534 = arith.addf %532, %533 : vector<2x32xf32>
    %535 = arith.negf %534 : vector<2x32xf32>
    %536 = math.exp %535 : vector<2x32xf32>
    %cst_303 = arith.constant 1.000000e+00 : f32
    %537 = vector.broadcast %cst_303 : f32 to vector<2x32xf32>
    %538 = arith.addf %537, %536 : vector<2x32xf32>
    %539 = arith.divf %537, %538 : vector<2x32xf32>
    %540 = vector.extract_strided_slice %520 {offsets = [0, 64], sizes = [2, 32], strides = [1, 1]} : vector<2x96xf32> to vector<2x32xf32>
    %541 = vector.extract_strided_slice %523 {offsets = [0, 64], sizes = [2, 32], strides = [1, 1]} : vector<2x96xf32> to vector<2x32xf32>
    %542 = arith.mulf %531, %541 : vector<2x32xf32>
    %543 = arith.addf %540, %542 : vector<2x32xf32>
    %544 = math.tanh %543 : vector<2x32xf32>
    %cst_304 = arith.constant 1.000000e+00 : f32
    %545 = vector.broadcast %cst_304 : f32 to vector<2x32xf32>
    %546 = arith.subf %545, %539 : vector<2x32xf32>
    %547 = arith.mulf %546, %544 : vector<2x32xf32>
    %548 = arith.mulf %539, %517 : vector<2x32xf32>
    %549 = arith.addf %547, %548 : vector<2x32xf32>
    %550 = vector.extract_strided_slice %167 {offsets = [7, 0], sizes = [1, 96], strides = [1, 1]} : vector<16x96xf32> to vector<1x96xf32>
    %551 = vector.extract_strided_slice %324 {offsets = [7, 0], sizes = [1, 96], strides = [1, 1]} : vector<16x96xf32> to vector<1x96xf32>
    %552 = tpu.concatenate %550, %551 in 0 : vector<1x96xf32>, vector<1x96xf32> -> vector<2x96xf32>
    %cst_305 = arith.constant dense<0.000000e+00> : vector<2x96xf32>
    %553 = tpu.matmul %549, %9, %cst_305 {dimension_numbers = #tpu.dot_dimension_numbers<[1], [0], [0], [1], [0, 0, 1, 1], [], []>} : vector<2x32xf32>, vector<32x96xf32>, vector<2x96xf32> -> vector<2x96xf32>
    %554 = vector.broadcast %10 : vector<1x96xf32> to vector<2x96xf32>
    %555 = arith.addf %553, %554 : vector<2x96xf32>
    %556 = vector.extract_strided_slice %552 {offsets = [0, 0], sizes = [2, 32], strides = [1, 1]} : vector<2x96xf32> to vector<2x32xf32>
    %557 = vector.extract_strided_slice %555 {offsets = [0, 0], sizes = [2, 32], strides = [1, 1]} : vector<2x96xf32> to vector<2x32xf32>
    %558 = arith.addf %556, %557 : vector<2x32xf32>
    %559 = arith.negf %558 : vector<2x32xf32>
    %560 = math.exp %559 : vector<2x32xf32>
    %cst_306 = arith.constant 1.000000e+00 : f32
    %561 = vector.broadcast %cst_306 : f32 to vector<2x32xf32>
    %562 = arith.addf %561, %560 : vector<2x32xf32>
    %563 = arith.divf %561, %562 : vector<2x32xf32>
    %564 = vector.extract_strided_slice %552 {offsets = [0, 32], sizes = [2, 32], strides = [1, 1]} : vector<2x96xf32> to vector<2x32xf32>
    %565 = vector.extract_strided_slice %555 {offsets = [0, 32], sizes = [2, 32], strides = [1, 1]} : vector<2x96xf32> to vector<2x32xf32>
    %566 = arith.addf %564, %565 : vector<2x32xf32>
    %567 = arith.negf %566 : vector<2x32xf32>
    %568 = math.exp %567 : vector<2x32xf32>
    %cst_307 = arith.constant 1.000000e+00 : f32
    %569 = vector.broadcast %cst_307 : f32 to vector<2x32xf32>
    %570 = arith.addf %569, %568 : vector<2x32xf32>
    %571 = arith.divf %569, %570 : vector<2x32xf32>
    %572 = vector.extract_strided_slice %552 {offsets = [0, 64], sizes = [2, 32], strides = [1, 1]} : vector<2x96xf32> to vector<2x32xf32>
    %573 = vector.extract_strided_slice %555 {offsets = [0, 64], sizes = [2, 32], strides = [1, 1]} : vector<2x96xf32> to vector<2x32xf32>
    %574 = arith.mulf %563, %573 : vector<2x32xf32>
    %575 = arith.addf %572, %574 : vector<2x32xf32>
    %576 = math.tanh %575 : vector<2x32xf32>
    %cst_308 = arith.constant 1.000000e+00 : f32
    %577 = vector.broadcast %cst_308 : f32 to vector<2x32xf32>
    %578 = arith.subf %577, %571 : vector<2x32xf32>
    %579 = arith.mulf %578, %576 : vector<2x32xf32>
    %580 = arith.mulf %571, %549 : vector<2x32xf32>
    %581 = arith.addf %579, %580 : vector<2x32xf32>
    %582 = vector.extract_strided_slice %167 {offsets = [8, 0], sizes = [1, 96], strides = [1, 1]} : vector<16x96xf32> to vector<1x96xf32>
    %583 = vector.extract_strided_slice %324 {offsets = [8, 0], sizes = [1, 96], strides = [1, 1]} : vector<16x96xf32> to vector<1x96xf32>
    %584 = tpu.concatenate %582, %583 in 0 : vector<1x96xf32>, vector<1x96xf32> -> vector<2x96xf32>
    %cst_309 = arith.constant dense<0.000000e+00> : vector<2x96xf32>
    %585 = tpu.matmul %581, %9, %cst_309 {dimension_numbers = #tpu.dot_dimension_numbers<[1], [0], [0], [1], [0, 0, 1, 1], [], []>} : vector<2x32xf32>, vector<32x96xf32>, vector<2x96xf32> -> vector<2x96xf32>
    %586 = vector.broadcast %10 : vector<1x96xf32> to vector<2x96xf32>
    %587 = arith.addf %585, %586 : vector<2x96xf32>
    %588 = vector.extract_strided_slice %584 {offsets = [0, 0], sizes = [2, 32], strides = [1, 1]} : vector<2x96xf32> to vector<2x32xf32>
    %589 = vector.extract_strided_slice %587 {offsets = [0, 0], sizes = [2, 32], strides = [1, 1]} : vector<2x96xf32> to vector<2x32xf32>
    %590 = arith.addf %588, %589 : vector<2x32xf32>
    %591 = arith.negf %590 : vector<2x32xf32>
    %592 = math.exp %591 : vector<2x32xf32>
    %cst_310 = arith.constant 1.000000e+00 : f32
    %593 = vector.broadcast %cst_310 : f32 to vector<2x32xf32>
    %594 = arith.addf %593, %592 : vector<2x32xf32>
    %595 = arith.divf %593, %594 : vector<2x32xf32>
    %596 = vector.extract_strided_slice %584 {offsets = [0, 32], sizes = [2, 32], strides = [1, 1]} : vector<2x96xf32> to vector<2x32xf32>
    %597 = vector.extract_strided_slice %587 {offsets = [0, 32], sizes = [2, 32], strides = [1, 1]} : vector<2x96xf32> to vector<2x32xf32>
    %598 = arith.addf %596, %597 : vector<2x32xf32>
    %599 = arith.negf %598 : vector<2x32xf32>
    %600 = math.exp %599 : vector<2x32xf32>
    %cst_311 = arith.constant 1.000000e+00 : f32
    %601 = vector.broadcast %cst_311 : f32 to vector<2x32xf32>
    %602 = arith.addf %601, %600 : vector<2x32xf32>
    %603 = arith.divf %601, %602 : vector<2x32xf32>
    %604 = vector.extract_strided_slice %584 {offsets = [0, 64], sizes = [2, 32], strides = [1, 1]} : vector<2x96xf32> to vector<2x32xf32>
    %605 = vector.extract_strided_slice %587 {offsets = [0, 64], sizes = [2, 32], strides = [1, 1]} : vector<2x96xf32> to vector<2x32xf32>
    %606 = arith.mulf %595, %605 : vector<2x32xf32>
    %607 = arith.addf %604, %606 : vector<2x32xf32>
    %608 = math.tanh %607 : vector<2x32xf32>
    %cst_312 = arith.constant 1.000000e+00 : f32
    %609 = vector.broadcast %cst_312 : f32 to vector<2x32xf32>
    %610 = arith.subf %609, %603 : vector<2x32xf32>
    %611 = arith.mulf %610, %608 : vector<2x32xf32>
    %612 = arith.mulf %603, %581 : vector<2x32xf32>
    %613 = arith.addf %611, %612 : vector<2x32xf32>
    %614 = vector.extract_strided_slice %167 {offsets = [9, 0], sizes = [1, 96], strides = [1, 1]} : vector<16x96xf32> to vector<1x96xf32>
    %615 = vector.extract_strided_slice %324 {offsets = [9, 0], sizes = [1, 96], strides = [1, 1]} : vector<16x96xf32> to vector<1x96xf32>
    %616 = tpu.concatenate %614, %615 in 0 : vector<1x96xf32>, vector<1x96xf32> -> vector<2x96xf32>
    %cst_313 = arith.constant dense<0.000000e+00> : vector<2x96xf32>
    %617 = tpu.matmul %613, %9, %cst_313 {dimension_numbers = #tpu.dot_dimension_numbers<[1], [0], [0], [1], [0, 0, 1, 1], [], []>} : vector<2x32xf32>, vector<32x96xf32>, vector<2x96xf32> -> vector<2x96xf32>
    %618 = vector.broadcast %10 : vector<1x96xf32> to vector<2x96xf32>
    %619 = arith.addf %617, %618 : vector<2x96xf32>
    %620 = vector.extract_strided_slice %616 {offsets = [0, 0], sizes = [2, 32], strides = [1, 1]} : vector<2x96xf32> to vector<2x32xf32>
    %621 = vector.extract_strided_slice %619 {offsets = [0, 0], sizes = [2, 32], strides = [1, 1]} : vector<2x96xf32> to vector<2x32xf32>
    %622 = arith.addf %620, %621 : vector<2x32xf32>
    %623 = arith.negf %622 : vector<2x32xf32>
    %624 = math.exp %623 : vector<2x32xf32>
    %cst_314 = arith.constant 1.000000e+00 : f32
    %625 = vector.broadcast %cst_314 : f32 to vector<2x32xf32>
    %626 = arith.addf %625, %624 : vector<2x32xf32>
    %627 = arith.divf %625, %626 : vector<2x32xf32>
    %628 = vector.extract_strided_slice %616 {offsets = [0, 32], sizes = [2, 32], strides = [1, 1]} : vector<2x96xf32> to vector<2x32xf32>
    %629 = vector.extract_strided_slice %619 {offsets = [0, 32], sizes = [2, 32], strides = [1, 1]} : vector<2x96xf32> to vector<2x32xf32>
    %630 = arith.addf %628, %629 : vector<2x32xf32>
    %631 = arith.negf %630 : vector<2x32xf32>
    %632 = math.exp %631 : vector<2x32xf32>
    %cst_315 = arith.constant 1.000000e+00 : f32
    %633 = vector.broadcast %cst_315 : f32 to vector<2x32xf32>
    %634 = arith.addf %633, %632 : vector<2x32xf32>
    %635 = arith.divf %633, %634 : vector<2x32xf32>
    %636 = vector.extract_strided_slice %616 {offsets = [0, 64], sizes = [2, 32], strides = [1, 1]} : vector<2x96xf32> to vector<2x32xf32>
    %637 = vector.extract_strided_slice %619 {offsets = [0, 64], sizes = [2, 32], strides = [1, 1]} : vector<2x96xf32> to vector<2x32xf32>
    %638 = arith.mulf %627, %637 : vector<2x32xf32>
    %639 = arith.addf %636, %638 : vector<2x32xf32>
    %640 = math.tanh %639 : vector<2x32xf32>
    %cst_316 = arith.constant 1.000000e+00 : f32
    %641 = vector.broadcast %cst_316 : f32 to vector<2x32xf32>
    %642 = arith.subf %641, %635 : vector<2x32xf32>
    %643 = arith.mulf %642, %640 : vector<2x32xf32>
    %644 = arith.mulf %635, %613 : vector<2x32xf32>
    %645 = arith.addf %643, %644 : vector<2x32xf32>
    %646 = vector.extract_strided_slice %167 {offsets = [10, 0], sizes = [1, 96], strides = [1, 1]} : vector<16x96xf32> to vector<1x96xf32>
    %647 = vector.extract_strided_slice %324 {offsets = [10, 0], sizes = [1, 96], strides = [1, 1]} : vector<16x96xf32> to vector<1x96xf32>
    %648 = tpu.concatenate %646, %647 in 0 : vector<1x96xf32>, vector<1x96xf32> -> vector<2x96xf32>
    %cst_317 = arith.constant dense<0.000000e+00> : vector<2x96xf32>
    %649 = tpu.matmul %645, %9, %cst_317 {dimension_numbers = #tpu.dot_dimension_numbers<[1], [0], [0], [1], [0, 0, 1, 1], [], []>} : vector<2x32xf32>, vector<32x96xf32>, vector<2x96xf32> -> vector<2x96xf32>
    %650 = vector.broadcast %10 : vector<1x96xf32> to vector<2x96xf32>
    %651 = arith.addf %649, %650 : vector<2x96xf32>
    %652 = vector.extract_strided_slice %648 {offsets = [0, 0], sizes = [2, 32], strides = [1, 1]} : vector<2x96xf32> to vector<2x32xf32>
    %653 = vector.extract_strided_slice %651 {offsets = [0, 0], sizes = [2, 32], strides = [1, 1]} : vector<2x96xf32> to vector<2x32xf32>
    %654 = arith.addf %652, %653 : vector<2x32xf32>
    %655 = arith.negf %654 : vector<2x32xf32>
    %656 = math.exp %655 : vector<2x32xf32>
    %cst_318 = arith.constant 1.000000e+00 : f32
    %657 = vector.broadcast %cst_318 : f32 to vector<2x32xf32>
    %658 = arith.addf %657, %656 : vector<2x32xf32>
    %659 = arith.divf %657, %658 : vector<2x32xf32>
    %660 = vector.extract_strided_slice %648 {offsets = [0, 32], sizes = [2, 32], strides = [1, 1]} : vector<2x96xf32> to vector<2x32xf32>
    %661 = vector.extract_strided_slice %651 {offsets = [0, 32], sizes = [2, 32], strides = [1, 1]} : vector<2x96xf32> to vector<2x32xf32>
    %662 = arith.addf %660, %661 : vector<2x32xf32>
    %663 = arith.negf %662 : vector<2x32xf32>
    %664 = math.exp %663 : vector<2x32xf32>
    %cst_319 = arith.constant 1.000000e+00 : f32
    %665 = vector.broadcast %cst_319 : f32 to vector<2x32xf32>
    %666 = arith.addf %665, %664 : vector<2x32xf32>
    %667 = arith.divf %665, %666 : vector<2x32xf32>
    %668 = vector.extract_strided_slice %648 {offsets = [0, 64], sizes = [2, 32], strides = [1, 1]} : vector<2x96xf32> to vector<2x32xf32>
    %669 = vector.extract_strided_slice %651 {offsets = [0, 64], sizes = [2, 32], strides = [1, 1]} : vector<2x96xf32> to vector<2x32xf32>
    %670 = arith.mulf %659, %669 : vector<2x32xf32>
    %671 = arith.addf %668, %670 : vector<2x32xf32>
    %672 = math.tanh %671 : vector<2x32xf32>
    %cst_320 = arith.constant 1.000000e+00 : f32
    %673 = vector.broadcast %cst_320 : f32 to vector<2x32xf32>
    %674 = arith.subf %673, %667 : vector<2x32xf32>
    %675 = arith.mulf %674, %672 : vector<2x32xf32>
    %676 = arith.mulf %667, %645 : vector<2x32xf32>
    %677 = arith.addf %675, %676 : vector<2x32xf32>
    %678 = vector.extract_strided_slice %167 {offsets = [11, 0], sizes = [1, 96], strides = [1, 1]} : vector<16x96xf32> to vector<1x96xf32>
    %679 = vector.extract_strided_slice %324 {offsets = [11, 0], sizes = [1, 96], strides = [1, 1]} : vector<16x96xf32> to vector<1x96xf32>
    %680 = tpu.concatenate %678, %679 in 0 : vector<1x96xf32>, vector<1x96xf32> -> vector<2x96xf32>
    %cst_321 = arith.constant dense<0.000000e+00> : vector<2x96xf32>
    %681 = tpu.matmul %677, %9, %cst_321 {dimension_numbers = #tpu.dot_dimension_numbers<[1], [0], [0], [1], [0, 0, 1, 1], [], []>} : vector<2x32xf32>, vector<32x96xf32>, vector<2x96xf32> -> vector<2x96xf32>
    %682 = vector.broadcast %10 : vector<1x96xf32> to vector<2x96xf32>
    %683 = arith.addf %681, %682 : vector<2x96xf32>
    %684 = vector.extract_strided_slice %680 {offsets = [0, 0], sizes = [2, 32], strides = [1, 1]} : vector<2x96xf32> to vector<2x32xf32>
    %685 = vector.extract_strided_slice %683 {offsets = [0, 0], sizes = [2, 32], strides = [1, 1]} : vector<2x96xf32> to vector<2x32xf32>
    %686 = arith.addf %684, %685 : vector<2x32xf32>
    %687 = arith.negf %686 : vector<2x32xf32>
    %688 = math.exp %687 : vector<2x32xf32>
    %cst_322 = arith.constant 1.000000e+00 : f32
    %689 = vector.broadcast %cst_322 : f32 to vector<2x32xf32>
    %690 = arith.addf %689, %688 : vector<2x32xf32>
    %691 = arith.divf %689, %690 : vector<2x32xf32>
    %692 = vector.extract_strided_slice %680 {offsets = [0, 32], sizes = [2, 32], strides = [1, 1]} : vector<2x96xf32> to vector<2x32xf32>
    %693 = vector.extract_strided_slice %683 {offsets = [0, 32], sizes = [2, 32], strides = [1, 1]} : vector<2x96xf32> to vector<2x32xf32>
    %694 = arith.addf %692, %693 : vector<2x32xf32>
    %695 = arith.negf %694 : vector<2x32xf32>
    %696 = math.exp %695 : vector<2x32xf32>
    %cst_323 = arith.constant 1.000000e+00 : f32
    %697 = vector.broadcast %cst_323 : f32 to vector<2x32xf32>
    %698 = arith.addf %697, %696 : vector<2x32xf32>
    %699 = arith.divf %697, %698 : vector<2x32xf32>
    %700 = vector.extract_strided_slice %680 {offsets = [0, 64], sizes = [2, 32], strides = [1, 1]} : vector<2x96xf32> to vector<2x32xf32>
    %701 = vector.extract_strided_slice %683 {offsets = [0, 64], sizes = [2, 32], strides = [1, 1]} : vector<2x96xf32> to vector<2x32xf32>
    %702 = arith.mulf %691, %701 : vector<2x32xf32>
    %703 = arith.addf %700, %702 : vector<2x32xf32>
    %704 = math.tanh %703 : vector<2x32xf32>
    %cst_324 = arith.constant 1.000000e+00 : f32
    %705 = vector.broadcast %cst_324 : f32 to vector<2x32xf32>
    %706 = arith.subf %705, %699 : vector<2x32xf32>
    %707 = arith.mulf %706, %704 : vector<2x32xf32>
    %708 = arith.mulf %699, %677 : vector<2x32xf32>
    %709 = arith.addf %707, %708 : vector<2x32xf32>
    %710 = vector.extract_strided_slice %167 {offsets = [12, 0], sizes = [1, 96], strides = [1, 1]} : vector<16x96xf32> to vector<1x96xf32>
    %711 = vector.extract_strided_slice %324 {offsets = [12, 0], sizes = [1, 96], strides = [1, 1]} : vector<16x96xf32> to vector<1x96xf32>
    %712 = tpu.concatenate %710, %711 in 0 : vector<1x96xf32>, vector<1x96xf32> -> vector<2x96xf32>
    %cst_325 = arith.constant dense<0.000000e+00> : vector<2x96xf32>
    %713 = tpu.matmul %709, %9, %cst_325 {dimension_numbers = #tpu.dot_dimension_numbers<[1], [0], [0], [1], [0, 0, 1, 1], [], []>} : vector<2x32xf32>, vector<32x96xf32>, vector<2x96xf32> -> vector<2x96xf32>
    %714 = vector.broadcast %10 : vector<1x96xf32> to vector<2x96xf32>
    %715 = arith.addf %713, %714 : vector<2x96xf32>
    %716 = vector.extract_strided_slice %712 {offsets = [0, 0], sizes = [2, 32], strides = [1, 1]} : vector<2x96xf32> to vector<2x32xf32>
    %717 = vector.extract_strided_slice %715 {offsets = [0, 0], sizes = [2, 32], strides = [1, 1]} : vector<2x96xf32> to vector<2x32xf32>
    %718 = arith.addf %716, %717 : vector<2x32xf32>
    %719 = arith.negf %718 : vector<2x32xf32>
    %720 = math.exp %719 : vector<2x32xf32>
    %cst_326 = arith.constant 1.000000e+00 : f32
    %721 = vector.broadcast %cst_326 : f32 to vector<2x32xf32>
    %722 = arith.addf %721, %720 : vector<2x32xf32>
    %723 = arith.divf %721, %722 : vector<2x32xf32>
    %724 = vector.extract_strided_slice %712 {offsets = [0, 32], sizes = [2, 32], strides = [1, 1]} : vector<2x96xf32> to vector<2x32xf32>
    %725 = vector.extract_strided_slice %715 {offsets = [0, 32], sizes = [2, 32], strides = [1, 1]} : vector<2x96xf32> to vector<2x32xf32>
    %726 = arith.addf %724, %725 : vector<2x32xf32>
    %727 = arith.negf %726 : vector<2x32xf32>
    %728 = math.exp %727 : vector<2x32xf32>
    %cst_327 = arith.constant 1.000000e+00 : f32
    %729 = vector.broadcast %cst_327 : f32 to vector<2x32xf32>
    %730 = arith.addf %729, %728 : vector<2x32xf32>
    %731 = arith.divf %729, %730 : vector<2x32xf32>
    %732 = vector.extract_strided_slice %712 {offsets = [0, 64], sizes = [2, 32], strides = [1, 1]} : vector<2x96xf32> to vector<2x32xf32>
    %733 = vector.extract_strided_slice %715 {offsets = [0, 64], sizes = [2, 32], strides = [1, 1]} : vector<2x96xf32> to vector<2x32xf32>
    %734 = arith.mulf %723, %733 : vector<2x32xf32>
    %735 = arith.addf %732, %734 : vector<2x32xf32>
    %736 = math.tanh %735 : vector<2x32xf32>
    %cst_328 = arith.constant 1.000000e+00 : f32
    %737 = vector.broadcast %cst_328 : f32 to vector<2x32xf32>
    %738 = arith.subf %737, %731 : vector<2x32xf32>
    %739 = arith.mulf %738, %736 : vector<2x32xf32>
    %740 = arith.mulf %731, %709 : vector<2x32xf32>
    %741 = arith.addf %739, %740 : vector<2x32xf32>
    %742 = vector.extract_strided_slice %167 {offsets = [13, 0], sizes = [1, 96], strides = [1, 1]} : vector<16x96xf32> to vector<1x96xf32>
    %743 = vector.extract_strided_slice %324 {offsets = [13, 0], sizes = [1, 96], strides = [1, 1]} : vector<16x96xf32> to vector<1x96xf32>
    %744 = tpu.concatenate %742, %743 in 0 : vector<1x96xf32>, vector<1x96xf32> -> vector<2x96xf32>
    %cst_329 = arith.constant dense<0.000000e+00> : vector<2x96xf32>
    %745 = tpu.matmul %741, %9, %cst_329 {dimension_numbers = #tpu.dot_dimension_numbers<[1], [0], [0], [1], [0, 0, 1, 1], [], []>} : vector<2x32xf32>, vector<32x96xf32>, vector<2x96xf32> -> vector<2x96xf32>
    %746 = vector.broadcast %10 : vector<1x96xf32> to vector<2x96xf32>
    %747 = arith.addf %745, %746 : vector<2x96xf32>
    %748 = vector.extract_strided_slice %744 {offsets = [0, 0], sizes = [2, 32], strides = [1, 1]} : vector<2x96xf32> to vector<2x32xf32>
    %749 = vector.extract_strided_slice %747 {offsets = [0, 0], sizes = [2, 32], strides = [1, 1]} : vector<2x96xf32> to vector<2x32xf32>
    %750 = arith.addf %748, %749 : vector<2x32xf32>
    %751 = arith.negf %750 : vector<2x32xf32>
    %752 = math.exp %751 : vector<2x32xf32>
    %cst_330 = arith.constant 1.000000e+00 : f32
    %753 = vector.broadcast %cst_330 : f32 to vector<2x32xf32>
    %754 = arith.addf %753, %752 : vector<2x32xf32>
    %755 = arith.divf %753, %754 : vector<2x32xf32>
    %756 = vector.extract_strided_slice %744 {offsets = [0, 32], sizes = [2, 32], strides = [1, 1]} : vector<2x96xf32> to vector<2x32xf32>
    %757 = vector.extract_strided_slice %747 {offsets = [0, 32], sizes = [2, 32], strides = [1, 1]} : vector<2x96xf32> to vector<2x32xf32>
    %758 = arith.addf %756, %757 : vector<2x32xf32>
    %759 = arith.negf %758 : vector<2x32xf32>
    %760 = math.exp %759 : vector<2x32xf32>
    %cst_331 = arith.constant 1.000000e+00 : f32
    %761 = vector.broadcast %cst_331 : f32 to vector<2x32xf32>
    %762 = arith.addf %761, %760 : vector<2x32xf32>
    %763 = arith.divf %761, %762 : vector<2x32xf32>
    %764 = vector.extract_strided_slice %744 {offsets = [0, 64], sizes = [2, 32], strides = [1, 1]} : vector<2x96xf32> to vector<2x32xf32>
    %765 = vector.extract_strided_slice %747 {offsets = [0, 64], sizes = [2, 32], strides = [1, 1]} : vector<2x96xf32> to vector<2x32xf32>
    %766 = arith.mulf %755, %765 : vector<2x32xf32>
    %767 = arith.addf %764, %766 : vector<2x32xf32>
    %768 = math.tanh %767 : vector<2x32xf32>
    %cst_332 = arith.constant 1.000000e+00 : f32
    %769 = vector.broadcast %cst_332 : f32 to vector<2x32xf32>
    %770 = arith.subf %769, %763 : vector<2x32xf32>
    %771 = arith.mulf %770, %768 : vector<2x32xf32>
    %772 = arith.mulf %763, %741 : vector<2x32xf32>
    %773 = arith.addf %771, %772 : vector<2x32xf32>
    %774 = vector.extract_strided_slice %167 {offsets = [14, 0], sizes = [1, 96], strides = [1, 1]} : vector<16x96xf32> to vector<1x96xf32>
    %775 = vector.extract_strided_slice %324 {offsets = [14, 0], sizes = [1, 96], strides = [1, 1]} : vector<16x96xf32> to vector<1x96xf32>
    %776 = tpu.concatenate %774, %775 in 0 : vector<1x96xf32>, vector<1x96xf32> -> vector<2x96xf32>
    %cst_333 = arith.constant dense<0.000000e+00> : vector<2x96xf32>
    %777 = tpu.matmul %773, %9, %cst_333 {dimension_numbers = #tpu.dot_dimension_numbers<[1], [0], [0], [1], [0, 0, 1, 1], [], []>} : vector<2x32xf32>, vector<32x96xf32>, vector<2x96xf32> -> vector<2x96xf32>
    %778 = vector.broadcast %10 : vector<1x96xf32> to vector<2x96xf32>
    %779 = arith.addf %777, %778 : vector<2x96xf32>
    %780 = vector.extract_strided_slice %776 {offsets = [0, 0], sizes = [2, 32], strides = [1, 1]} : vector<2x96xf32> to vector<2x32xf32>
    %781 = vector.extract_strided_slice %779 {offsets = [0, 0], sizes = [2, 32], strides = [1, 1]} : vector<2x96xf32> to vector<2x32xf32>
    %782 = arith.addf %780, %781 : vector<2x32xf32>
    %783 = arith.negf %782 : vector<2x32xf32>
    %784 = math.exp %783 : vector<2x32xf32>
    %cst_334 = arith.constant 1.000000e+00 : f32
    %785 = vector.broadcast %cst_334 : f32 to vector<2x32xf32>
    %786 = arith.addf %785, %784 : vector<2x32xf32>
    %787 = arith.divf %785, %786 : vector<2x32xf32>
    %788 = vector.extract_strided_slice %776 {offsets = [0, 32], sizes = [2, 32], strides = [1, 1]} : vector<2x96xf32> to vector<2x32xf32>
    %789 = vector.extract_strided_slice %779 {offsets = [0, 32], sizes = [2, 32], strides = [1, 1]} : vector<2x96xf32> to vector<2x32xf32>
    %790 = arith.addf %788, %789 : vector<2x32xf32>
    %791 = arith.negf %790 : vector<2x32xf32>
    %792 = math.exp %791 : vector<2x32xf32>
    %cst_335 = arith.constant 1.000000e+00 : f32
    %793 = vector.broadcast %cst_335 : f32 to vector<2x32xf32>
    %794 = arith.addf %793, %792 : vector<2x32xf32>
    %795 = arith.divf %793, %794 : vector<2x32xf32>
    %796 = vector.extract_strided_slice %776 {offsets = [0, 64], sizes = [2, 32], strides = [1, 1]} : vector<2x96xf32> to vector<2x32xf32>
    %797 = vector.extract_strided_slice %779 {offsets = [0, 64], sizes = [2, 32], strides = [1, 1]} : vector<2x96xf32> to vector<2x32xf32>
    %798 = arith.mulf %787, %797 : vector<2x32xf32>
    %799 = arith.addf %796, %798 : vector<2x32xf32>
    %800 = math.tanh %799 : vector<2x32xf32>
    %cst_336 = arith.constant 1.000000e+00 : f32
    %801 = vector.broadcast %cst_336 : f32 to vector<2x32xf32>
    %802 = arith.subf %801, %795 : vector<2x32xf32>
    %803 = arith.mulf %802, %800 : vector<2x32xf32>
    %804 = arith.mulf %795, %773 : vector<2x32xf32>
    %805 = arith.addf %803, %804 : vector<2x32xf32>
    %806 = vector.extract_strided_slice %167 {offsets = [15, 0], sizes = [1, 96], strides = [1, 1]} : vector<16x96xf32> to vector<1x96xf32>
    %807 = vector.extract_strided_slice %324 {offsets = [15, 0], sizes = [1, 96], strides = [1, 1]} : vector<16x96xf32> to vector<1x96xf32>
    %808 = tpu.concatenate %806, %807 in 0 : vector<1x96xf32>, vector<1x96xf32> -> vector<2x96xf32>
    %cst_337 = arith.constant dense<0.000000e+00> : vector<2x96xf32>
    %809 = tpu.matmul %805, %9, %cst_337 {dimension_numbers = #tpu.dot_dimension_numbers<[1], [0], [0], [1], [0, 0, 1, 1], [], []>} : vector<2x32xf32>, vector<32x96xf32>, vector<2x96xf32> -> vector<2x96xf32>
    %810 = vector.broadcast %10 : vector<1x96xf32> to vector<2x96xf32>
    %811 = arith.addf %809, %810 : vector<2x96xf32>
    %812 = vector.extract_strided_slice %808 {offsets = [0, 0], sizes = [2, 32], strides = [1, 1]} : vector<2x96xf32> to vector<2x32xf32>
    %813 = vector.extract_strided_slice %811 {offsets = [0, 0], sizes = [2, 32], strides = [1, 1]} : vector<2x96xf32> to vector<2x32xf32>
    %814 = arith.addf %812, %813 : vector<2x32xf32>
    %815 = arith.negf %814 : vector<2x32xf32>
    %816 = math.exp %815 : vector<2x32xf32>
    %cst_338 = arith.constant 1.000000e+00 : f32
    %817 = vector.broadcast %cst_338 : f32 to vector<2x32xf32>
    %818 = arith.addf %817, %816 : vector<2x32xf32>
    %819 = arith.divf %817, %818 : vector<2x32xf32>
    %820 = vector.extract_strided_slice %808 {offsets = [0, 32], sizes = [2, 32], strides = [1, 1]} : vector<2x96xf32> to vector<2x32xf32>
    %821 = vector.extract_strided_slice %811 {offsets = [0, 32], sizes = [2, 32], strides = [1, 1]} : vector<2x96xf32> to vector<2x32xf32>
    %822 = arith.addf %820, %821 : vector<2x32xf32>
    %823 = arith.negf %822 : vector<2x32xf32>
    %824 = math.exp %823 : vector<2x32xf32>
    %cst_339 = arith.constant 1.000000e+00 : f32
    %825 = vector.broadcast %cst_339 : f32 to vector<2x32xf32>
    %826 = arith.addf %825, %824 : vector<2x32xf32>
    %827 = arith.divf %825, %826 : vector<2x32xf32>
    %828 = vector.extract_strided_slice %808 {offsets = [0, 64], sizes = [2, 32], strides = [1, 1]} : vector<2x96xf32> to vector<2x32xf32>
    %829 = vector.extract_strided_slice %811 {offsets = [0, 64], sizes = [2, 32], strides = [1, 1]} : vector<2x96xf32> to vector<2x32xf32>
    %830 = arith.mulf %819, %829 : vector<2x32xf32>
    %831 = arith.addf %828, %830 : vector<2x32xf32>
    %832 = math.tanh %831 : vector<2x32xf32>
    %cst_340 = arith.constant 1.000000e+00 : f32
    %833 = vector.broadcast %cst_340 : f32 to vector<2x32xf32>
    %834 = arith.subf %833, %827 : vector<2x32xf32>
    %835 = arith.mulf %834, %832 : vector<2x32xf32>
    %836 = arith.mulf %827, %805 : vector<2x32xf32>
    %837 = arith.addf %835, %836 : vector<2x32xf32>
    %c0_341 = arith.constant 0 : index
    %c0_342 = arith.constant 0 : index
    %838 = vector.load %arg19[%c0_341, %c0_342] : memref<32x4xf32, #tpu.memory_space<vmem>>, vector<32x4xf32>
    %c0_343 = arith.constant 0 : index
    %c0_344 = arith.constant 0 : index
    %839 = vector.load %arg20[%c0_343, %c0_344] : memref<1x4xf32, #tpu.memory_space<vmem>>, vector<1x4xf32>
    %840 = vector.extract_strided_slice %357 {offsets = [0, 0], sizes = [1, 32], strides = [1, 1]} : vector<2x32xf32> to vector<1x32xf32>
    %841 = vector.extract_strided_slice %389 {offsets = [0, 0], sizes = [1, 32], strides = [1, 1]} : vector<2x32xf32> to vector<1x32xf32>
    %842 = vector.extract_strided_slice %421 {offsets = [0, 0], sizes = [1, 32], strides = [1, 1]} : vector<2x32xf32> to vector<1x32xf32>
    %843 = vector.extract_strided_slice %453 {offsets = [0, 0], sizes = [1, 32], strides = [1, 1]} : vector<2x32xf32> to vector<1x32xf32>
    %844 = vector.extract_strided_slice %485 {offsets = [0, 0], sizes = [1, 32], strides = [1, 1]} : vector<2x32xf32> to vector<1x32xf32>
    %845 = vector.extract_strided_slice %517 {offsets = [0, 0], sizes = [1, 32], strides = [1, 1]} : vector<2x32xf32> to vector<1x32xf32>
    %846 = vector.extract_strided_slice %549 {offsets = [0, 0], sizes = [1, 32], strides = [1, 1]} : vector<2x32xf32> to vector<1x32xf32>
    %847 = vector.extract_strided_slice %581 {offsets = [0, 0], sizes = [1, 32], strides = [1, 1]} : vector<2x32xf32> to vector<1x32xf32>
    %848 = vector.extract_strided_slice %613 {offsets = [0, 0], sizes = [1, 32], strides = [1, 1]} : vector<2x32xf32> to vector<1x32xf32>
    %849 = vector.extract_strided_slice %645 {offsets = [0, 0], sizes = [1, 32], strides = [1, 1]} : vector<2x32xf32> to vector<1x32xf32>
    %850 = vector.extract_strided_slice %677 {offsets = [0, 0], sizes = [1, 32], strides = [1, 1]} : vector<2x32xf32> to vector<1x32xf32>
    %851 = vector.extract_strided_slice %709 {offsets = [0, 0], sizes = [1, 32], strides = [1, 1]} : vector<2x32xf32> to vector<1x32xf32>
    %852 = vector.extract_strided_slice %741 {offsets = [0, 0], sizes = [1, 32], strides = [1, 1]} : vector<2x32xf32> to vector<1x32xf32>
    %853 = vector.extract_strided_slice %773 {offsets = [0, 0], sizes = [1, 32], strides = [1, 1]} : vector<2x32xf32> to vector<1x32xf32>
    %854 = vector.extract_strided_slice %805 {offsets = [0, 0], sizes = [1, 32], strides = [1, 1]} : vector<2x32xf32> to vector<1x32xf32>
    %855 = vector.extract_strided_slice %837 {offsets = [0, 0], sizes = [1, 32], strides = [1, 1]} : vector<2x32xf32> to vector<1x32xf32>
    %856 = tpu.concatenate %840, %841, %842, %843, %844, %845, %846, %847, %848, %849, %850, %851, %852, %853, %854, %855 in 0 : vector<1x32xf32>, vector<1x32xf32>, vector<1x32xf32>, vector<1x32xf32>, vector<1x32xf32>, vector<1x32xf32>, vector<1x32xf32>, vector<1x32xf32>, vector<1x32xf32>, vector<1x32xf32>, vector<1x32xf32>, vector<1x32xf32>, vector<1x32xf32>, vector<1x32xf32>, vector<1x32xf32>, vector<1x32xf32> -> vector<16x32xf32>
    %cst_345 = arith.constant dense<0.000000e+00> : vector<16x4xf32>
    %857 = tpu.matmul %856, %838, %cst_345 {dimension_numbers = #tpu.dot_dimension_numbers<[1], [0], [0], [1], [0, 0, 1, 1], [], []>} : vector<16x32xf32>, vector<32x4xf32>, vector<16x4xf32> -> vector<16x4xf32>
    %858 = vector.broadcast %839 : vector<1x4xf32> to vector<16x4xf32>
    %859 = arith.addf %857, %858 : vector<16x4xf32>
    %c0_346 = arith.constant 0 : index
    %c0_347 = arith.constant 0 : index
    %c0_348 = arith.constant 0 : index
    %860 = vector.load %arg21[%c0_346, %c0_347, %c0_348] : memref<2x16x4xf32, #tpu.memory_space<vmem>>, vector<1x16x4xf32>
    %861 = vector.shape_cast %860 : vector<1x16x4xf32> to vector<16x4xf32>
    %862 = vector.shape_cast %859 : vector<16x4xf32> to vector<1x16x4xf32>
    tpu.vector_store %arg21[%c0_346, %c0_347, %c0_348], %862 {strides = array<i32>} : memref<2x16x4xf32, #tpu.memory_space<vmem>>, vector<1x16x4xf32>,
    %863 = vector.extract_strided_slice %357 {offsets = [1, 0], sizes = [1, 32], strides = [1, 1]} : vector<2x32xf32> to vector<1x32xf32>
    %864 = vector.extract_strided_slice %389 {offsets = [1, 0], sizes = [1, 32], strides = [1, 1]} : vector<2x32xf32> to vector<1x32xf32>
    %865 = vector.extract_strided_slice %421 {offsets = [1, 0], sizes = [1, 32], strides = [1, 1]} : vector<2x32xf32> to vector<1x32xf32>
    %866 = vector.extract_strided_slice %453 {offsets = [1, 0], sizes = [1, 32], strides = [1, 1]} : vector<2x32xf32> to vector<1x32xf32>
    %867 = vector.extract_strided_slice %485 {offsets = [1, 0], sizes = [1, 32], strides = [1, 1]} : vector<2x32xf32> to vector<1x32xf32>
    %868 = vector.extract_strided_slice %517 {offsets = [1, 0], sizes = [1, 32], strides = [1, 1]} : vector<2x32xf32> to vector<1x32xf32>
    %869 = vector.extract_strided_slice %549 {offsets = [1, 0], sizes = [1, 32], strides = [1, 1]} : vector<2x32xf32> to vector<1x32xf32>
    %870 = vector.extract_strided_slice %581 {offsets = [1, 0], sizes = [1, 32], strides = [1, 1]} : vector<2x32xf32> to vector<1x32xf32>
    %871 = vector.extract_strided_slice %613 {offsets = [1, 0], sizes = [1, 32], strides = [1, 1]} : vector<2x32xf32> to vector<1x32xf32>
    %872 = vector.extract_strided_slice %645 {offsets = [1, 0], sizes = [1, 32], strides = [1, 1]} : vector<2x32xf32> to vector<1x32xf32>
    %873 = vector.extract_strided_slice %677 {offsets = [1, 0], sizes = [1, 32], strides = [1, 1]} : vector<2x32xf32> to vector<1x32xf32>
    %874 = vector.extract_strided_slice %709 {offsets = [1, 0], sizes = [1, 32], strides = [1, 1]} : vector<2x32xf32> to vector<1x32xf32>
    %875 = vector.extract_strided_slice %741 {offsets = [1, 0], sizes = [1, 32], strides = [1, 1]} : vector<2x32xf32> to vector<1x32xf32>
    %876 = vector.extract_strided_slice %773 {offsets = [1, 0], sizes = [1, 32], strides = [1, 1]} : vector<2x32xf32> to vector<1x32xf32>
    %877 = vector.extract_strided_slice %805 {offsets = [1, 0], sizes = [1, 32], strides = [1, 1]} : vector<2x32xf32> to vector<1x32xf32>
    %878 = vector.extract_strided_slice %837 {offsets = [1, 0], sizes = [1, 32], strides = [1, 1]} : vector<2x32xf32> to vector<1x32xf32>
    %879 = tpu.concatenate %863, %864, %865, %866, %867, %868, %869, %870, %871, %872, %873, %874, %875, %876, %877, %878 in 0 : vector<1x32xf32>, vector<1x32xf32>, vector<1x32xf32>, vector<1x32xf32>, vector<1x32xf32>, vector<1x32xf32>, vector<1x32xf32>, vector<1x32xf32>, vector<1x32xf32>, vector<1x32xf32>, vector<1x32xf32>, vector<1x32xf32>, vector<1x32xf32>, vector<1x32xf32>, vector<1x32xf32>, vector<1x32xf32> -> vector<16x32xf32>
    %cst_349 = arith.constant dense<0.000000e+00> : vector<16x4xf32>
    %880 = tpu.matmul %879, %838, %cst_349 {dimension_numbers = #tpu.dot_dimension_numbers<[1], [0], [0], [1], [0, 0, 1, 1], [], []>} : vector<16x32xf32>, vector<32x4xf32>, vector<16x4xf32> -> vector<16x4xf32>
    %881 = vector.broadcast %839 : vector<1x4xf32> to vector<16x4xf32>
    %882 = arith.addf %880, %881 : vector<16x4xf32>
    %c1_350 = arith.constant 1 : index
    %c0_351 = arith.constant 0 : index
    %c0_352 = arith.constant 0 : index
    %883 = vector.load %arg21[%c1_350, %c0_351, %c0_352] : memref<2x16x4xf32, #tpu.memory_space<vmem>>, vector<1x16x4xf32>
    %884 = vector.shape_cast %883 : vector<1x16x4xf32> to vector<16x4xf32>
    %885 = vector.shape_cast %882 : vector<16x4xf32> to vector<1x16x4xf32>
    tpu.vector_store %arg21[%c1_350, %c0_351, %c0_352], %885 {strides = array<i32>} : memref<2x16x4xf32, #tpu.memory_space<vmem>>, vector<1x16x4xf32>,
    return
  }
}

</mosaic_0001>

<llo_original>
// kernel: generator_forward.1
$region0: #{generator_forward.1}
  #allocation0 [shape = 'u32[]', space=smem, size = 0x4, offset = 0x4, fixed_abs, tag = 'smem constant byte address 0x4 - core index']
  #allocation1 [shape = 'u32[144,128]{1,0:T(1,128)}', space=vmem, size = 0x12000, scoped, tag = 'internal scratch']
  #allocation2 [shape = 'f32[1,1]{1,0:T(1,128)S(1)}', space=vmem, size = 0x200, scoped, tag = 'scoped memory for generator_forward.1']
  %s0 = inlined_call_operand.vmem [shape: f32[2,16,8], index: 0, kind: input, shape index: {}]
  %s1 = inlined_call_operand.vmem [shape: f32[4,8,8], index: 1, kind: input, shape index: {}]
  %s2 = inlined_call_operand.vmem [shape: f32[4,16,16], index: 2, kind: input, shape index: {}]
  %s3 = inlined_call_operand.vmem [shape: f32[4,16,16], index: 3, kind: input, shape index: {}]
  %s4 = inlined_call_operand.vmem [shape: f32[4,16,1], index: 4, kind: input, shape index: {}]
  %s5 = inlined_call_operand.vmem [shape: f32[4,16,16], index: 5, kind: input, shape index: {}]
  %s6 = inlined_call_operand.vmem [shape: f32[4,16,16], index: 6, kind: input, shape index: {}]
  %s7 = inlined_call_operand.vmem [shape: f32[4,16,1], index: 7, kind: input, shape index: {}]
  %s8 = inlined_call_operand.vmem [shape: f32[16,8,8], index: 8, kind: input, shape index: {}]
  %s9 = inlined_call_operand.vmem [shape: f32[16,16,8], index: 9, kind: input, shape index: {}]
  %s10 = inlined_call_operand.<no memory space> [shape: f32[1,1], index: 10, kind: input, shape index: {}]
  %s11 = inlined_call_operand.vmem [shape: f32[8,8], index: 11, kind: input, shape index: {}]
  %s12 = inlined_call_operand.vmem [shape: f32[8,8], index: 12, kind: input, shape index: {}]
  %s13 = inlined_call_operand.vmem [shape: f32[1,8], index: 13, kind: input, shape index: {}]
  %s14 = inlined_call_operand.vmem [shape: f32[8,96], index: 14, kind: input, shape index: {}]
  %s15 = inlined_call_operand.vmem [shape: f32[1,96], index: 15, kind: input, shape index: {}]
  %s16 = inlined_call_operand.vmem [shape: f32[32,96], index: 16, kind: input, shape index: {}]
  %s17 = inlined_call_operand.vmem [shape: f32[1,96], index: 17, kind: input, shape index: {}]
  %s18 = inlined_call_operand.vmem [shape: f32[2,32], index: 18, kind: input, shape index: {}]
  %s19 = inlined_call_operand.vmem [shape: f32[32,4], index: 19, kind: input, shape index: {}]
  %s20 = inlined_call_operand.vmem [shape: f32[1,4], index: 20, kind: input, shape index: {}]
  %s21 = inlined_call_operand.vmem [shape: f32[2,16,4], index: 21, kind: output, shape index: {}]
  %s22 = sld [smem:[#allocation0]]
  $region94: #{generator_forward.1} parent=0
    _
  %s24 = ssub.s32 1, %s22
  %s25 = scalar_select 0, %s24, %s22
  %v26 = vstv %s10
  %27 = vst [vmem:[#allocation2] sm:$0x1] %v26
  // Predicated region
  $region2: #{generator_forward.1} parent=0 // pred_check
    _
  $region3: #{generator_forward.1} parent=0 // pred_check_branch
    %29 = sbr.rel (0) target = $region5
  $region4: #{generator_forward.1} parent=0 // pred_region
    _
  $region5: #{generator_forward.1} parent=0 // pred_fallthru
    _
  // Predicated region
  $region6: #{generator_forward.1} parent=0 // pred_check
    _
  $region7: #{generator_forward.1} parent=0 // pred_check_branch
    %31 = sbr.rel (0) target = $region9
  $region8: #{generator_forward.1} parent=0 // pred_region
    _
  $region9: #{generator_forward.1} parent=0 // pred_fallthru
    _
  // Predicated region
  $region10: #{generator_forward.1} parent=0 // pred_check
    _
  $region11: #{generator_forward.1} parent=0 // pred_check_branch
    %33 = sbr.rel (0) target = $region13
  $region12: #{generator_forward.1} parent=0 // pred_region
    _
  $region13: #{generator_forward.1} parent=0 // pred_fallthru
    _
  // Predicated region
  $region14: #{generator_forward.1} parent=0 // pred_check
    _
  $region15: #{generator_forward.1} parent=0 // pred_check_branch
    %35 = sbr.rel (0) target = $region17
  $region16: #{generator_forward.1} parent=0 // pred_region
    _
  $region17: #{generator_forward.1} parent=0 // pred_fallthru
    _
  // Predicated region
  $region18: #{generator_forward.1} parent=0 // pred_check
    _
  $region19: #{generator_forward.1} parent=0 // pred_check_branch
    %37 = sbr.rel (0) target = $region21
  $region20: #{generator_forward.1} parent=0 // pred_region
    _
  $region21: #{generator_forward.1} parent=0 // pred_fallthru
    _
  // Predicated region
  $region22: #{generator_forward.1} parent=0 // pred_check
    _
  $region23: #{generator_forward.1} parent=0 // pred_check_branch
    %39 = sbr.rel (0) target = $region25
  $region24: #{generator_forward.1} parent=0 // pred_region
    _
  $region25: #{generator_forward.1} parent=0 // pred_fallthru
    _
  // Predicated region
  $region26: #{generator_forward.1} parent=0 // pred_check
    _
  $region27: #{generator_forward.1} parent=0 // pred_check_branch
    %41 = sbr.rel (0) target = $region29
  $region28: #{generator_forward.1} parent=0 // pred_region
    _
  $region29: #{generator_forward.1} parent=0 // pred_fallthru
    _
  // Predicated region
  $region30: #{generator_forward.1} parent=0 // pred_check
    _
  $region31: #{generator_forward.1} parent=0 // pred_check_branch
    %43 = sbr.rel (0) target = $region33
  $region32: #{generator_forward.1} parent=0 // pred_region
    _
  $region33: #{generator_forward.1} parent=0 // pred_fallthru
    _
  // Predicated region
  $region34: #{generator_forward.1} parent=0 // pred_check
    _
  $region35: #{generator_forward.1} parent=0 // pred_check_branch
    %45 = sbr.rel (0) target = $region37
  $region36: #{generator_forward.1} parent=0 // pred_region
    _
  $region37: #{generator_forward.1} parent=0 // pred_fallthru
    _
  // Predicated region
  $region38: #{generator_forward.1} parent=0 // pred_check
    _
  $region39: #{generator_forward.1} parent=0 // pred_check_branch
    %47 = sbr.rel (0) target = $region41
  $region40: #{generator_forward.1} parent=0 // pred_region
    _
  $region41: #{generator_forward.1} parent=0 // pred_fallthru
    _
  // Predicated region
  $region42: #{generator_forward.1} parent=0 // pred_check
    _
  $region43: #{generator_forward.1} parent=0 // pred_check_branch
    %49 = sbr.rel (0) target = $region45
  $region44: #{generator_forward.1} parent=0 // pred_region
    _
  $region45: #{generator_forward.1} parent=0 // pred_fallthru
    _
  // Predicated region
  $region46: #{generator_forward.1} parent=0 // pred_check
    _
  $region47: #{generator_forward.1} parent=0 // pred_check_branch
    %51 = sbr.rel (0) target = $region49
  $region48: #{generator_forward.1} parent=0 // pred_region
    _
  $region49: #{generator_forward.1} parent=0 // pred_fallthru
    _
  // Predicated region
  $region50: #{generator_forward.1} parent=0 // pred_check
    _
  $region51: #{generator_forward.1} parent=0 // pred_check_branch
    %53 = sbr.rel (0) target = $region53
  $region52: #{generator_forward.1} parent=0 // pred_region
    _
  $region53: #{generator_forward.1} parent=0 // pred_fallthru
    _
  // Predicated region
  $region54: #{generator_forward.1} parent=0 // pred_check
    _
  $region55: #{generator_forward.1} parent=0 // pred_check_branch
    %55 = sbr.rel (0) target = $region57
  $region56: #{generator_forward.1} parent=0 // pred_region
    _
  $region57: #{generator_forward.1} parent=0 // pred_fallthru
    _
  // Predicated region
  $region58: #{generator_forward.1} parent=0 // pred_check
    _
  $region59: #{generator_forward.1} parent=0 // pred_check_branch
    %57 = sbr.rel (0) target = $region61
  $region60: #{generator_forward.1} parent=0 // pred_region
    _
  $region61: #{generator_forward.1} parent=0 // pred_fallthru
    _
  // Predicated region
  $region62: #{generator_forward.1} parent=0 // pred_check
    _
  $region63: #{generator_forward.1} parent=0 // pred_check_branch
    %59 = sbr.rel (0) target = $region65
  $region64: #{generator_forward.1} parent=0 // pred_region
    _
  $region65: #{generator_forward.1} parent=0 // pred_fallthru
    _
  // Predicated region
  $region66: #{generator_forward.1} parent=0 // pred_check
    _
  $region67: #{generator_forward.1} parent=0 // pred_check_branch
    %61 = sbr.rel (0) target = $region69
  $region68: #{generator_forward.1} parent=0 // pred_region
    _
  $region69: #{generator_forward.1} parent=0 // pred_fallthru
    _
  // Predicated region
  $region70: #{generator_forward.1} parent=0 // pred_check
    _
  $region71: #{generator_forward.1} parent=0 // pred_check_branch
    %63 = sbr.rel (0) target = $region73
  $region72: #{generator_forward.1} parent=0 // pred_region
    _
  $region73: #{generator_forward.1} parent=0 // pred_fallthru
    _
  // Predicated region
  $region74: #{generator_forward.1} parent=0 // pred_check
    _
  $region75: #{generator_forward.1} parent=0 // pred_check_branch
    %65 = sbr.rel (0) target = $region77
  $region76: #{generator_forward.1} parent=0 // pred_region
    _
  $region77: #{generator_forward.1} parent=0 // pred_fallthru
    _
  // Predicated region
  $region78: #{generator_forward.1} parent=0 // pred_check
    _
  $region79: #{generator_forward.1} parent=0 // pred_check_branch
    %67 = sbr.rel (0) target = $region81
  $region80: #{generator_forward.1} parent=0 // pred_region
    _
  $region81: #{generator_forward.1} parent=0 // pred_fallthru
    _
  // Predicated region
  $region82: #{generator_forward.1} parent=0 // pred_check
    _
  $region83: #{generator_forward.1} parent=0 // pred_check_branch
    %69 = sbr.rel (0) target = $region85
  $region84: #{generator_forward.1} parent=0 // pred_region
    _
  $region85: #{generator_forward.1} parent=0 // pred_fallthru
    _
  %v70 = vld [vmem:[#allocation2] sm:$0x1]
  %s71 = vtos %v70
  %v72 = vld [vmem:[%s8] sm:$0xff]
  %v73 = vld [vmem:[%s8 + $0x8] sm:$0xff]
  %v74 = vld [vmem:[%s8 + $0x10] sm:$0xff]
  %v75 = vld [vmem:[%s8 + $0x18] sm:$0xff]
  %v76 = vld [vmem:[%s8 + $0x20] sm:$0xff]
  %v77 = vld [vmem:[%s8 + $0x28] sm:$0xff]
  %v78 = vld [vmem:[%s8 + $0x30] sm:$0xff]
  %v79 = vld [vmem:[%s8 + $0x38] sm:$0xff]
  %v80 = vld [vmem:[%s8 + $0x40] sm:$0xff]
  %v81 = vld [vmem:[%s8 + $0x48] sm:$0xff]
  %v82 = vld [vmem:[%s8 + $0x50] sm:$0xff]
  %v83 = vld [vmem:[%s8 + $0x58] sm:$0xff]
  %v84 = vld [vmem:[%s8 + $0x60] sm:$0xff]
  %v85 = vld [vmem:[%s8 + $0x68] sm:$0xff]
  %v86 = vld [vmem:[%s8 + $0x70] sm:$0xff]
  %v87 = vld [vmem:[%s8 + $0x78] sm:$0xff]
  %v88 = vld [vmem:[%s9] sm:$0xff]
  %v89 = vld [vmem:[%s9 + $0x8] sm:$0xff]
  %v90 = vld [vmem:[%s9 + $0x10] sm:$0xff]
  %v91 = vld [vmem:[%s9 + $0x18] sm:$0xff]
  %v92 = vld [vmem:[%s9 + $0x20] sm:$0xff]
  %v93 = vld [vmem:[%s9 + $0x28] sm:$0xff]
  %v94 = vld [vmem:[%s9 + $0x30] sm:$0xff]
  %v95 = vld [vmem:[%s9 + $0x38] sm:$0xff]
  %v96 = vld [vmem:[%s9 + $0x40] sm:$0xff]
  %v97 = vld [vmem:[%s9 + $0x48] sm:$0xff]
  %v98 = vld [vmem:[%s9 + $0x50] sm:$0xff]
  %v99 = vld [vmem:[%s9 + $0x58] sm:$0xff]
  %v100 = vld [vmem:[%s9 + $0x60] sm:$0xff]
  %v101 = vld [vmem:[%s9 + $0x68] sm:$0xff]
  %v102 = vld [vmem:[%s9 + $0x70] sm:$0xff]
  %v103 = vld [vmem:[%s9 + $0x78] sm:$0xff]
  %v104 = vld [vmem:[%s9 + $0x80] sm:$0xff]
  %v105 = vld [vmem:[%s9 + $0x88] sm:$0xff]
  %v106 = vld [vmem:[%s9 + $0x90] sm:$0xff]
  %v107 = vld [vmem:[%s9 + $0x98] sm:$0xff]
  %v108 = vld [vmem:[%s9 + $0xa0] sm:$0xff]
  %v109 = vld [vmem:[%s9 + $0xa8] sm:$0xff]
  %v110 = vld [vmem:[%s9 + $0xb0] sm:$0xff]
  %v111 = vld [vmem:[%s9 + $0xb8] sm:$0xff]
  %v112 = vld [vmem:[%s9 + $0xc0] sm:$0xff]
  %v113 = vld [vmem:[%s9 + $0xc8] sm:$0xff]
  %v114 = vld [vmem:[%s9 + $0xd0] sm:$0xff]
  %v115 = vld [vmem:[%s9 + $0xd8] sm:$0xff]
  %v116 = vld [vmem:[%s9 + $0xe0] sm:$0xff]
  %v117 = vld [vmem:[%s9 + $0xe8] sm:$0xff]
  %v118 = vld [vmem:[%s9 + $0xf0] sm:$0xff]
  %v119 = vld [vmem:[%s9 + $0xf8] sm:$0xff]
  %v120 = vld [vmem:[%s11] sm:$0xff]
  %v121 = vld [vmem:[%s12] sm:$0xff]
  %v122 = vld [vmem:[%s13] sm:$0x1]
  %v123 = vld [vmem:[%s14] sm:$0xff]
  %v124 = vld [vmem:[%s15] sm:$0x1]
  %v125 = vld [vmem:[%s16] sm:$0xff]
  %v126 = vld [vmem:[%s16 + $0x8] sm:$0xff]
  %v127 = vld [vmem:[%s16 + $0x10] sm:$0xff]
  %v128 = vld [vmem:[%s16 + $0x18] sm:$0xff]
  %v129 = vld [vmem:[%s17] sm:$0x1]
  %v130 = vld [vmem:[%s0] sm:$0xff]
  %v131 = vld [vmem:[%s0 + $0x8] sm:$0xff]
  %v132 = vld [vmem:[%s1] sm:$0xff]
  %v133 = vld [vmem:[%s2] sm:$0xff]
  %v134 = vld [vmem:[%s2 + $0x8] sm:$0xff]
  %v135 = vld [vmem:[%s3] sm:$0xff]
  %v136 = vld [vmem:[%s3 + $0x8] sm:$0xff]
  %v137 = vld [vmem:[%s4] sm:$0xff]
  %v138 = vld [vmem:[%s4 + $0x8] sm:$0xff]
  %v139 = vld [vmem:[%s5] sm:$0xff]
  %v140 = vld [vmem:[%s5 + $0x8] sm:$0xff]
  %v141 = vld [vmem:[%s6] sm:$0xff]
  %v142 = vld [vmem:[%s6 + $0x8] sm:$0xff]
  %v143 = vld [vmem:[%s7] sm:$0xff]
  %v144 = vld [vmem:[%s7 + $0x8] sm:$0xff]
  %vm145 = vcmask 64512
  %v147 = vsel %vm145, %v130, 0
  %v150 = vsel %vm145, %v131, 0
  %152 = vmatprep.subr.mxu0 0.0
  %153 = vmatpush1.msra.mxu0 0.0
  %154 = vmatprep.subr.mxu0 0.0
  %155 = vmatpush1.msra.mxu0 0.0
  %156 = vmatprep.subr.mxu0 0.0
  %157 = vmatpush1.msra.mxu0 0.0
  %158 = vmatprep.subr.mxu0 0.0
  %159 = vmatpush1.msra.mxu0 0.0
  %160 = vmatprep.subr.mxu0 0.0
  %161 = vmatpush1.msra.mxu0 0.0
  %162 = vmatprep.subr.mxu0 0.0
  %163 = vmatpush1.msra.mxu0 0.0
  %164 = vmatprep.subr.mxu0 0.0
  %165 = vmatpush1.msra.mxu0 0.0
  %166 = vmatprep.subr.mxu0 0.0
  %167 = vmatpush1.msra.mxu0 0.0
  %168 = vmatprep.subr.mxu0 0.0
  %169 = vmatpush1.msra.mxu0 0.0
  %170 = vmatprep.subr.mxu0 0.0
  %171 = vmatpush1.msra.mxu0 0.0
  %172 = vmatprep.subr.mxu0 0.0
  %173 = vmatpush1.msra.mxu0 0.0
  %174 = vmatprep.subr.mxu0 0.0
  %175 = vmatpush1.msra.mxu0 0.0
  %176 = vmatprep.subr.mxu0 0.0
  %177 = vmatpush1.msra.mxu0 0.0
  %178 = vmatprep.subr.mxu0 0.0
  %179 = vmatpush1.msra.mxu0 0.0
  %180 = vmatprep.subr.mxu0 0.0
  %181 = vmatpush1.msra.mxu0 0.0
  %182 = vmatprep.subr.mxu0 0.0
  %183 = vmatpush1.msra.mxu0 %v132
  %184 = vmatprep.subr.mxu0 0.0
  %185 = vmatpush2.msra.mxu0 0.0
  %186 = vmatprep.subr.mxu0 0.0
  %187 = vmatpush2.msra.mxu0 0.0
  %188 = vmatprep.subr.mxu0 0.0
  %189 = vmatpush2.msra.mxu0 0.0
  %190 = vmatprep.subr.mxu0 0.0
  %191 = vmatpush2.msra.mxu0 0.0
  %192 = vmatprep.subr.mxu0 0.0
  %193 = vmatpush2.msra.mxu0 0.0
  %194 = vmatprep.subr.mxu0 0.0
  %195 = vmatpush2.msra.mxu0 0.0
  %196 = vmatprep.subr.mxu0 0.0
  %197 = vmatpush2.msra.mxu0 0.0
  %198 = vmatprep.subr.mxu0 0.0
  %199 = vmatpush2.msra.mxu0 0.0
  %200 = vmatprep.subr.mxu0 0.0
  %201 = vmatpush2.msra.mxu0 0.0
  %202 = vmatprep.subr.mxu0 0.0
  %203 = vmatpush2.msra.mxu0 0.0
  %204 = vmatprep.subr.mxu0 0.0
  %205 = vmatpush2.msra.mxu0 0.0
  %206 = vmatprep.subr.mxu0 0.0
  %207 = vmatpush2.msra.mxu0 0.0
  %208 = vmatprep.subr.mxu0 0.0
  %209 = vmatpush2.msra.mxu0 0.0
  %210 = vmatprep.subr.mxu0 0.0
  %211 = vmatpush2.msra.mxu0 0.0
  %212 = vmatprep.subr.mxu0 0.0
  %213 = vmatpush2.msra.mxu0 0.0
  %214 = vmatprep.subr.mxu0 0.0
  %215 = vmatpush2.msra.mxu0 0.0
  %216 = vmatprep.mubr.f32.mxu0 0.0
  %217 = vmatmul.mubr.f32.gmra.mxu0 %v147
  %v218 = vpop.f32.mrf.mxu0
  %v219 = vadd.f32 0.0, %v218
  %v220 = vpop.f32.mrf.mxu0
  %221 = vmatprep.mubr.f32.mxu0 0.0
  %222 = vmatmul.mubr.f32.gmra.mxu0 %v150
  %v223 = vpop.f32.mrf.mxu0
  %v224 = vadd.f32 0.0, %v223
  %v225 = vpop.f32.mrf.mxu0
  %226 = vdwg.mxu0
  %vm227 = vcmask 130048
  %v229 = vsel %vm227, %v135, 0
  %v232 = vsel %vm227, %v136, 0
  %234 = vmatprep.subr.mxu0 0.0
  %235 = vmatpush1.msra.mxu0 0.0
  %236 = vmatprep.subr.mxu0 0.0
  %237 = vmatpush1.msra.mxu0 0.0
  %238 = vmatprep.subr.mxu0 0.0
  %239 = vmatpush1.msra.mxu0 0.0
  %240 = vmatprep.subr.mxu0 0.0
  %241 = vmatpush1.msra.mxu0 0.0
  %242 = vmatprep.subr.mxu0 0.0
  %243 = vmatpush1.msra.mxu0 0.0
  %244 = vmatprep.subr.mxu0 0.0
  %245 = vmatpush1.msra.mxu0 0.0
  %246 = vmatprep.subr.mxu0 0.0
  %247 = vmatpush1.msra.mxu0 0.0
  %248 = vmatprep.subr.mxu0 0.0
  %249 = vmatpush1.msra.mxu0 0.0
  %250 = vmatprep.subr.mxu0 0.0
  %251 = vmatpush1.msra.mxu0 0.0
  %252 = vmatprep.subr.mxu0 0.0
  %253 = vmatpush1.msra.mxu0 0.0
  %254 = vmatprep.subr.mxu0 0.0
  %255 = vmatpush1.msra.mxu0 0.0
  %256 = vmatprep.subr.mxu0 0.0
  %257 = vmatpush1.msra.mxu0 0.0
  %258 = vmatprep.subr.mxu0 0.0
  %259 = vmatpush1.msra.mxu0 0.0
  %260 = vmatprep.subr.mxu0 0.0
  %261 = vmatpush1.msra.mxu0 0.0
  %262 = vmatprep.subr.mxu0 0.0
  %263 = vmatpush1.msra.mxu0 %v131
  %264 = vmatprep.subr.mxu0 0.0
  %265 = vmatpush1.msra.mxu0 %v130
  %266 = vmatprep.subr.mxu0 0.0
  %267 = vmatpush2.msra.mxu0 0.0
  %268 = vmatprep.subr.mxu0 0.0
  %269 = vmatpush2.msra.mxu0 0.0
  %270 = vmatprep.subr.mxu0 0.0
  %271 = vmatpush2.msra.mxu0 0.0
  %272 = vmatprep.subr.mxu0 0.0
  %273 = vmatpush2.msra.mxu0 0.0
  %274 = vmatprep.subr.mxu0 0.0
  %275 = vmatpush2.msra.mxu0 0.0
  %276 = vmatprep.subr.mxu0 0.0
  %277 = vmatpush2.msra.mxu0 0.0
  %278 = vmatprep.subr.mxu0 0.0
  %279 = vmatpush2.msra.mxu0 0.0
  %280 = vmatprep.subr.mxu0 0.0
  %281 = vmatpush2.msra.mxu0 0.0
  %282 = vmatprep.subr.mxu0 0.0
  %283 = vmatpush2.msra.mxu0 0.0
  %284 = vmatprep.subr.mxu0 0.0
  %285 = vmatpush2.msra.mxu0 0.0
  %286 = vmatprep.subr.mxu0 0.0
  %287 = vmatpush2.msra.mxu0 0.0
  %288 = vmatprep.subr.mxu0 0.0
  %289 = vmatpush2.msra.mxu0 0.0
  %290 = vmatprep.subr.mxu0 0.0
  %291 = vmatpush2.msra.mxu0 0.0
  %292 = vmatprep.subr.mxu0 0.0
  %293 = vmatpush2.msra.mxu0 0.0
  %294 = vmatprep.subr.mxu0 0.0
  %295 = vmatpush2.msra.mxu0 0.0
  %296 = vmatprep.subr.mxu0 0.0
  %297 = vmatpush2.msra.mxu0 0.0
  %298 = vmatprep.mubr.f32.mxu0 0.0
  %299 = vmatmul.mubr.f32.gmra.mxu0 %v229
  %v300 = vpop.f32.mrf.mxu0
  %v301 = vadd.f32 0.0, %v300
  %v302 = vpop.f32.mrf.mxu0
  %303 = vmatprep.mubr.f32.mxu0 0.0
  %304 = vmatmul.mubr.f32.gmra.mxu0 %v232
  %v305 = vpop.f32.mrf.mxu0
  %v306 = vadd.f32 0.0, %v305
  %v307 = vpop.f32.mrf.mxu0
  %308 = vdwg.mxu0
  %v310 = vsel %vm227, %v133, 0
  %v313 = vsel %vm227, %v134, 0
  %315 = vmatprep.subr.mxu0 0.0
  %316 = vmatpush1.msra.mxu0 0.0
  %317 = vmatprep.subr.mxu0 0.0
  %318 = vmatpush1.msra.mxu0 0.0
  %319 = vmatprep.subr.mxu0 0.0
  %320 = vmatpush1.msra.mxu0 0.0
  %321 = vmatprep.subr.mxu0 0.0
  %322 = vmatpush1.msra.mxu0 0.0
  %323 = vmatprep.subr.mxu0 0.0
  %324 = vmatpush1.msra.mxu0 0.0
  %325 = vmatprep.subr.mxu0 0.0
  %326 = vmatpush1.msra.mxu0 0.0
  %327 = vmatprep.subr.mxu0 0.0
  %328 = vmatpush1.msra.mxu0 0.0
  %329 = vmatprep.subr.mxu0 0.0
  %330 = vmatpush1.msra.mxu0 0.0
  %331 = vmatprep.subr.mxu0 0.0
  %332 = vmatpush1.msra.mxu0 0.0
  %333 = vmatprep.subr.mxu0 0.0
  %334 = vmatpush1.msra.mxu0 0.0
  %335 = vmatprep.subr.mxu0 0.0
  %336 = vmatpush1.msra.mxu0 0.0
  %337 = vmatprep.subr.mxu0 0.0
  %338 = vmatpush1.msra.mxu0 0.0
  %339 = vmatprep.subr.mxu0 0.0
  %340 = vmatpush1.msra.mxu0 0.0
  %341 = vmatprep.subr.mxu0 0.0
  %342 = vmatpush1.msra.mxu0 0.0
  %343 = vmatprep.subr.mxu0 0.0
  %344 = vmatpush1.msra.mxu0 %v224
  %345 = vmatprep.subr.mxu0 0.0
  %346 = vmatpush1.msra.mxu0 %v219
  %347 = vmatprep.subr.mxu0 0.0
  %348 = vmatpush2.msra.mxu0 0.0
  %349 = vmatprep.subr.mxu0 0.0
  %350 = vmatpush2.msra.mxu0 0.0
  %351 = vmatprep.subr.mxu0 0.0
  %352 = vmatpush2.msra.mxu0 0.0
  %353 = vmatprep.subr.mxu0 0.0
  %354 = vmatpush2.msra.mxu0 0.0
  %355 = vmatprep.subr.mxu0 0.0
  %356 = vmatpush2.msra.mxu0 0.0
  %357 = vmatprep.subr.mxu0 0.0
  %358 = vmatpush2.msra.mxu0 0.0
  %359 = vmatprep.subr.mxu0 0.0
  %360 = vmatpush2.msra.mxu0 0.0
  %361 = vmatprep.subr.mxu0 0.0
  %362 = vmatpush2.msra.mxu0 0.0
  %363 = vmatprep.subr.mxu0 0.0
  %364 = vmatpush2.msra.mxu0 0.0
  %365 = vmatprep.subr.mxu0 0.0
  %366 = vmatpush2.msra.mxu0 0.0
  %367 = vmatprep.subr.mxu0 0.0
  %368 = vmatpush2.msra.mxu0 0.0
  %369 = vmatprep.subr.mxu0 0.0
  %370 = vmatpush2.msra.mxu0 0.0
  %371 = vmatprep.subr.mxu0 0.0
  %372 = vmatpush2.msra.mxu0 0.0
  %373 = vmatprep.subr.mxu0 0.0
  %374 = vmatpush2.msra.mxu0 0.0
  %375 = vmatprep.subr.mxu0 0.0
  %376 = vmatpush2.msra.mxu0 0.0
  %377 = vmatprep.subr.mxu0 0.0
  %378 = vmatpush2.msra.mxu0 0.0
  %379 = vmatprep.mubr.f32.mxu0 0.0
  %380 = vmatmul.mubr.f32.gmra.mxu0 %v310
  %v381 = vpop.f32.mrf.mxu0
  %v382 = vadd.f32 %v301, %v381
  %v383 = vpop.f32.mrf.mxu0
  %384 = vmatprep.mubr.f32.mxu0 0.0
  %385 = vmatmul.mubr.f32.gmra.mxu0 %v313
  %v386 = vpop.f32.mrf.mxu0
  %v387 = vadd.f32 %v306, %v386
  %v388 = vpop.f32.mrf.mxu0
  %389 = vdwg.mxu0
  %391 = vset.pattern.permute.xlu0 0
  %392 = vperm.xlu0 %391, %v137
  %v393 = vpop.permute.xlu0 %392
  %396 = vset.pattern.permute.xlu0 0
  %397 = vperm.xlu0 %396, %v138
  %v398 = vpop.permute.xlu0 %397
  %v400 = vadd.f32 %v382, %v393
  %v401 = vadd.f32 %v387, %v398
  %v402 = vmax.f32 %v400, 0.0
  %v403 = vmax.f32 %v401, 0.0
  %v405 = vsel %vm145, %v402, 0
  %v408 = vsel %vm145, %v403, 0
  %410 = vmatprep.subr.mxu0 0.0
  %411 = vmatpush1.msra.mxu0 0.0
  %412 = vmatprep.subr.mxu0 0.0
  %413 = vmatpush1.msra.mxu0 0.0
  %414 = vmatprep.subr.mxu0 0.0
  %415 = vmatpush1.msra.mxu0 0.0
  %416 = vmatprep.subr.mxu0 0.0
  %417 = vmatpush1.msra.mxu0 0.0
  %418 = vmatprep.subr.mxu0 0.0
  %419 = vmatpush1.msra.mxu0 0.0
  %420 = vmatprep.subr.mxu0 0.0
  %421 = vmatpush1.msra.mxu0 0.0
  %422 = vmatprep.subr.mxu0 0.0
  %423 = vmatpush1.msra.mxu0 0.0
  %424 = vmatprep.subr.mxu0 0.0
  %425 = vmatpush1.msra.mxu0 0.0
  %426 = vmatprep.subr.mxu0 0.0
  %427 = vmatpush1.msra.mxu0 0.0
  %428 = vmatprep.subr.mxu0 0.0
  %429 = vmatpush1.msra.mxu0 0.0
  %430 = vmatprep.subr.mxu0 0.0
  %431 = vmatpush1.msra.mxu0 0.0
  %432 = vmatprep.subr.mxu0 0.0
  %433 = vmatpush1.msra.mxu0 0.0
  %434 = vmatprep.subr.mxu0 0.0
  %435 = vmatpush1.msra.mxu0 0.0
  %436 = vmatprep.subr.mxu0 0.0
  %437 = vmatpush1.msra.mxu0 0.0
  %438 = vmatprep.subr.mxu0 0.0
  %439 = vmatpush1.msra.mxu0 0.0
  %440 = vmatprep.subr.mxu0 0.0
  %441 = vmatpush1.msra.mxu0 %v132
  %442 = vmatprep.subr.mxu0 0.0
  %443 = vmatpush2.msra.mxu0 0.0
  %444 = vmatprep.subr.mxu0 0.0
  %445 = vmatpush2.msra.mxu0 0.0
  %446 = vmatprep.subr.mxu0 0.0
  %447 = vmatpush2.msra.mxu0 0.0
  %448 = vmatprep.subr.mxu0 0.0
  %449 = vmatpush2.msra.mxu0 0.0
  %450 = vmatprep.subr.mxu0 0.0
  %451 = vmatpush2.msra.mxu0 0.0
  %452 = vmatprep.subr.mxu0 0.0
  %453 = vmatpush2.msra.mxu0 0.0
  %454 = vmatprep.subr.mxu0 0.0
  %455 = vmatpush2.msra.mxu0 0.0
  %456 = vmatprep.subr.mxu0 0.0
  %457 = vmatpush2.msra.mxu0 0.0
  %458 = vmatprep.subr.mxu0 0.0
  %459 = vmatpush2.msra.mxu0 0.0
  %460 = vmatprep.subr.mxu0 0.0
  %461 = vmatpush2.msra.mxu0 0.0
  %462 = vmatprep.subr.mxu0 0.0
  %463 = vmatpush2.msra.mxu0 0.0
  %464 = vmatprep.subr.mxu0 0.0
  %465 = vmatpush2.msra.mxu0 0.0
  %466 = vmatprep.subr.mxu0 0.0
  %467 = vmatpush2.msra.mxu0 0.0
  %468 = vmatprep.subr.mxu0 0.0
  %469 = vmatpush2.msra.mxu0 0.0
  %470 = vmatprep.subr.mxu0 0.0
  %471 = vmatpush2.msra.mxu0 0.0
  %472 = vmatprep.subr.mxu0 0.0
  %473 = vmatpush2.msra.mxu0 0.0
  %474 = vmatprep.mubr.f32.mxu0 0.0
  %475 = vmatmul.mubr.f32.gmra.mxu0 %v405
  %v476 = vpop.f32.mrf.mxu0
  %v477 = vadd.f32 0.0, %v476
  %v478 = vpop.f32.mrf.mxu0
  %479 = vmatprep.mubr.f32.mxu0 0.0
  %480 = vmatmul.mubr.f32.gmra.mxu0 %v408
  %v481 = vpop.f32.mrf.mxu0
  %v482 = vadd.f32 0.0, %v481
  %v483 = vpop.f32.mrf.mxu0
  %484 = vdwg.mxu0
  %v486 = vsel %vm227, %v141, 0
  %v489 = vsel %vm227, %v142, 0
  %491 = vmatprep.subr.mxu0 0.0
  %492 = vmatpush1.msra.mxu0 0.0
  %493 = vmatprep.subr.mxu0 0.0
  %494 = vmatpush1.msra.mxu0 0.0
  %495 = vmatprep.subr.mxu0 0.0
  %496 = vmatpush1.msra.mxu0 0.0
  %497 = vmatprep.subr.mxu0 0.0
  %498 = vmatpush1.msra.mxu0 0.0
  %499 = vmatprep.subr.mxu0 0.0
  %500 = vmatpush1.msra.mxu0 0.0
  %501 = vmatprep.subr.mxu0 0.0
  %502 = vmatpush1.msra.mxu0 0.0
  %503 = vmatprep.subr.mxu0 0.0
  %504 = vmatpush1.msra.mxu0 0.0
  %505 = vmatprep.subr.mxu0 0.0
  %506 = vmatpush1.msra.mxu0 0.0
  %507 = vmatprep.subr.mxu0 0.0
  %508 = vmatpush1.msra.mxu0 0.0
  %509 = vmatprep.subr.mxu0 0.0
  %510 = vmatpush1.msra.mxu0 0.0
  %511 = vmatprep.subr.mxu0 0.0
  %512 = vmatpush1.msra.mxu0 0.0
  %513 = vmatprep.subr.mxu0 0.0
  %514 = vmatpush1.msra.mxu0 0.0
  %515 = vmatprep.subr.mxu0 0.0
  %516 = vmatpush1.msra.mxu0 0.0
  %517 = vmatprep.subr.mxu0 0.0
  %518 = vmatpush1.msra.mxu0 0.0
  %519 = vmatprep.subr.mxu0 0.0
  %520 = vmatpush1.msra.mxu0 %v403
  %521 = vmatprep.subr.mxu0 0.0
  %522 = vmatpush1.msra.mxu0 %v402
  %523 = vmatprep.subr.mxu0 0.0
  %524 = vmatpush2.msra.mxu0 0.0
  %525 = vmatprep.subr.mxu0 0.0
  %526 = vmatpush2.msra.mxu0 0.0
  %527 = vmatprep.subr.mxu0 0.0
  %528 = vmatpush2.msra.mxu0 0.0
  %529 = vmatprep.subr.mxu0 0.0
  %530 = vmatpush2.msra.mxu0 0.0
  %531 = vmatprep.subr.mxu0 0.0
  %532 = vmatpush2.msra.mxu0 0.0
  %533 = vmatprep.subr.mxu0 0.0
  %534 = vmatpush2.msra.mxu0 0.0
  %535 = vmatprep.subr.mxu0 0.0
  %536 = vmatpush2.msra.mxu0 0.0
  %537 = vmatprep.subr.mxu0 0.0
  %538 = vmatpush2.msra.mxu0 0.0
  %539 = vmatprep.subr.mxu0 0.0
  %540 = vmatpush2.msra.mxu0 0.0
  %541 = vmatprep.subr.mxu0 0.0
  %542 = vmatpush2.msra.mxu0 0.0
  %543 = vmatprep.subr.mxu0 0.0
  %544 = vmatpush2.msra.mxu0 0.0
  %545 = vmatprep.subr.mxu0 0.0
  %546 = vmatpush2.msra.mxu0 0.0
  %547 = vmatprep.subr.mxu0 0.0
  %548 = vmatpush2.msra.mxu0 0.0
  %549 = vmatprep.subr.mxu0 0.0
  %550 = vmatpush2.msra.mxu0 0.0
  %551 = vmatprep.subr.mxu0 0.0
  %552 = vmatpush2.msra.mxu0 0.0
  %553 = vmatprep.subr.mxu0 0.0
  %554 = vmatpush2.msra.mxu0 0.0
  %555 = vmatprep.mubr.f32.mxu0 0.0
  %556 = vmatmul.mubr.f32.gmra.mxu0 %v486
  %v557 = vpop.f32.mrf.mxu0
  %v558 = vadd.f32 0.0, %v557
  %v559 = vpop.f32.mrf.mxu0
  %560 = vmatprep.mubr.f32.mxu0 0.0
  %561 = vmatmul.mubr.f32.gmra.mxu0 %v489
  %v562 = vpop.f32.mrf.mxu0
  %v563 = vadd.f32 0.0, %v562
  %v564 = vpop.f32.mrf.mxu0
  %565 = vdwg.mxu0
  %v567 = vsel %vm227, %v139, 0
  %v570 = vsel %vm227, %v140, 0
  %572 = vmatprep.subr.mxu0 0.0
  %573 = vmatpush1.msra.mxu0 0.0
  %574 = vmatprep.subr.mxu0 0.0
  %575 = vmatpush1.msra.mxu0 0.0
  %576 = vmatprep.subr.mxu0 0.0
  %577 = vmatpush1.msra.mxu0 0.0
  %578 = vmatprep.subr.mxu0 0.0
  %579 = vmatpush1.msra.mxu0 0.0
  %580 = vmatprep.subr.mxu0 0.0
  %581 = vmatpush1.msra.mxu0 0.0
  %582 = vmatprep.subr.mxu0 0.0
  %583 = vmatpush1.msra.mxu0 0.0
  %584 = vmatprep.subr.mxu0 0.0
  %585 = vmatpush1.msra.mxu0 0.0
  %586 = vmatprep.subr.mxu0 0.0
  %587 = vmatpush1.msra.mxu0 0.0
  %588 = vmatprep.subr.mxu0 0.0
  %589 = vmatpush1.msra.mxu0 0.0
  %590 = vmatprep.subr.mxu0 0.0
  %591 = vmatpush1.msra.mxu0 0.0
  %592 = vmatprep.subr.mxu0 0.0
  %593 = vmatpush1.msra.mxu0 0.0
  %594 = vmatprep.subr.mxu0 0.0
  %595 = vmatpush1.msra.mxu0 0.0
  %596 = vmatprep.subr.mxu0 0.0
  %597 = vmatpush1.msra.mxu0 0.0
  %598 = vmatprep.subr.mxu0 0.0
  %599 = vmatpush1.msra.mxu0 0.0
  %600 = vmatprep.subr.mxu0 0.0
  %601 = vmatpush1.msra.mxu0 %v482
  %602 = vmatprep.subr.mxu0 0.0
  %603 = vmatpush1.msra.mxu0 %v477
  %604 = vmatprep.subr.mxu0 0.0
  %605 = vmatpush2.msra.mxu0 0.0
  %606 = vmatprep.subr.mxu0 0.0
  %607 = vmatpush2.msra.mxu0 0.0
  %608 = vmatprep.subr.mxu0 0.0
  %609 = vmatpush2.msra.mxu0 0.0
  %610 = vmatprep.subr.mxu0 0.0
  %611 = vmatpush2.msra.mxu0 0.0
  %612 = vmatprep.subr.mxu0 0.0
  %613 = vmatpush2.msra.mxu0 0.0
  %614 = vmatprep.subr.mxu0 0.0
  %615 = vmatpush2.msra.mxu0 0.0
  %616 = vmatprep.subr.mxu0 0.0
  %617 = vmatpush2.msra.mxu0 0.0
  %618 = vmatprep.subr.mxu0 0.0
  %619 = vmatpush2.msra.mxu0 0.0
  %620 = vmatprep.subr.mxu0 0.0
  %621 = vmatpush2.msra.mxu0 0.0
  %622 = vmatprep.subr.mxu0 0.0
  %623 = vmatpush2.msra.mxu0 0.0
  %624 = vmatprep.subr.mxu0 0.0
  %625 = vmatpush2.msra.mxu0 0.0
  %626 = vmatprep.subr.mxu0 0.0
  %627 = vmatpush2.msra.mxu0 0.0
  %628 = vmatprep.subr.mxu0 0.0
  %629 = vmatpush2.msra.mxu0 0.0
  %630 = vmatprep.subr.mxu0 0.0
  %631 = vmatpush2.msra.mxu0 0.0
  %632 = vmatprep.subr.mxu0 0.0
  %633 = vmatpush2.msra.mxu0 0.0
  %634 = vmatprep.subr.mxu0 0.0
  %635 = vmatpush2.msra.mxu0 0.0
  %636 = vmatprep.mubr.f32.mxu0 0.0
  %637 = vmatmul.mubr.f32.gmra.mxu0 %v567
  %v638 = vpop.f32.mrf.mxu0
  %v639 = vadd.f32 %v558, %v638
  %v640 = vpop.f32.mrf.mxu0
  %641 = vmatprep.mubr.f32.mxu0 0.0
  %642 = vmatmul.mubr.f32.gmra.mxu0 %v570
  %v643 = vpop.f32.mrf.mxu0
  %v644 = vadd.f32 %v563, %v643
  %v645 = vpop.f32.mrf.mxu0
  %646 = vdwg.mxu0
  %648 = vset.pattern.permute.xlu0 0
  %649 = vperm.xlu0 %648, %v143
  %v650 = vpop.permute.xlu0 %649
  %653 = vset.pattern.permute.xlu0 0
  %654 = vperm.xlu0 %653, %v144
  %v655 = vpop.permute.xlu0 %654
  %v657 = vadd.f32 %v639, %v650
  %v658 = vadd.f32 %v644, %v655
  %v659 = vmax.f32 %v657, 0.0
  %v660 = vmax.f32 %v658, 0.0
  %v661 = vadd.f32 %v659, %v130
  %v662 = vadd.f32 %v660, %v131
  %v663 = vmax.f32 %v661, 0.0
  %v664 = vmax.f32 %v662, 0.0
  %s665 = scalar_lea.vmem %s1, 8
  %v666 = vld [vmem:[%s665] sm:$0xff]
  %s667 = scalar_lea.vmem %s2, 16
  %v668 = vld [vmem:[%s667] sm:$0xff]
  %v669 = vld [vmem:[%s667 + $0x8] sm:$0xff]
  %s670 = scalar_lea.vmem %s3, 16
  %v671 = vld [vmem:[%s670] sm:$0xff]
  %v672 = vld [vmem:[%s670 + $0x8] sm:$0xff]
  %s673 = scalar_lea.vmem %s4, 16
  %v674 = vld [vmem:[%s673] sm:$0xff]
  %v675 = vld [vmem:[%s673 + $0x8] sm:$0xff]
  %s676 = scalar_lea.vmem %s5, 16
  %v677 = vld [vmem:[%s676] sm:$0xff]
  %v678 = vld [vmem:[%s676 + $0x8] sm:$0xff]
  %s679 = scalar_lea.vmem %s6, 16
  %v680 = vld [vmem:[%s679] sm:$0xff]
  %v681 = vld [vmem:[%s679 + $0x8] sm:$0xff]
  %s682 = scalar_lea.vmem %s7, 16
  %v683 = vld [vmem:[%s682] sm:$0xff]
  %v684 = vld [vmem:[%s682 + $0x8] sm:$0xff]
  %v686 = vsel %vm145, %v663, 0
  %v689 = vsel %vm145, %v664, 0
  %691 = vmatprep.subr.mxu0 0.0
  %692 = vmatpush1.msra.mxu0 0.0
  %693 = vmatprep.subr.mxu0 0.0
  %694 = vmatpush1.msra.mxu0 0.0
  %695 = vmatprep.subr.mxu0 0.0
  %696 = vmatpush1.msra.mxu0 0.0
  %697 = vmatprep.subr.mxu0 0.0
  %698 = vmatpush1.msra.mxu0 0.0
  %699 = vmatprep.subr.mxu0 0.0
  %700 = vmatpush1.msra.mxu0 0.0
  %701 = vmatprep.subr.mxu0 0.0
  %702 = vmatpush1.msra.mxu0 0.0
  %703 = vmatprep.subr.mxu0 0.0
  %704 = vmatpush1.msra.mxu0 0.0
  %705 = vmatprep.subr.mxu0 0.0
  %706 = vmatpush1.msra.mxu0 0.0
  %707 = vmatprep.subr.mxu0 0.0
  %708 = vmatpush1.msra.mxu0 0.0
  %709 = vmatprep.subr.mxu0 0.0
  %710 = vmatpush1.msra.mxu0 0.0
  %711 = vmatprep.subr.mxu0 0.0
  %712 = vmatpush1.msra.mxu0 0.0
  %713 = vmatprep.subr.mxu0 0.0
  %714 = vmatpush1.msra.mxu0 0.0
  %715 = vmatprep.subr.mxu0 0.0
  %716 = vmatpush1.msra.mxu0 0.0
  %717 = vmatprep.subr.mxu0 0.0
  %718 = vmatpush1.msra.mxu0 0.0
  %719 = vmatprep.subr.mxu0 0.0
  %720 = vmatpush1.msra.mxu0 0.0
  %721 = vmatprep.subr.mxu0 0.0
  %722 = vmatpush1.msra.mxu0 %v666
  %723 = vmatprep.subr.mxu0 0.0
  %724 = vmatpush2.msra.mxu0 0.0
  %725 = vmatprep.subr.mxu0 0.0
  %726 = vmatpush2.msra.mxu0 0.0
  %727 = vmatprep.subr.mxu0 0.0
  %728 = vmatpush2.msra.mxu0 0.0
  %729 = vmatprep.subr.mxu0 0.0
  %730 = vmatpush2.msra.mxu0 0.0
  %731 = vmatprep.subr.mxu0 0.0
  %732 = vmatpush2.msra.mxu0 0.0
  %733 = vmatprep.subr.mxu0 0.0
  %734 = vmatpush2.msra.mxu0 0.0
  %735 = vmatprep.subr.mxu0 0.0
  %736 = vmatpush2.msra.mxu0 0.0
  %737 = vmatprep.subr.mxu0 0.0
  %738 = vmatpush2.msra.mxu0 0.0
  %739 = vmatprep.subr.mxu0 0.0
  %740 = vmatpush2.msra.mxu0 0.0
  %741 = vmatprep.subr.mxu0 0.0
  %742 = vmatpush2.msra.mxu0 0.0
  %743 = vmatprep.subr.mxu0 0.0
  %744 = vmatpush2.msra.mxu0 0.0
  %745 = vmatprep.subr.mxu0 0.0
  %746 = vmatpush2.msra.mxu0 0.0
  %747 = vmatprep.subr.mxu0 0.0
  %748 = vmatpush2.msra.mxu0 0.0
  %749 = vmatprep.subr.mxu0 0.0
  %750 = vmatpush2.msra.mxu0 0.0
  %751 = vmatprep.subr.mxu0 0.0
  %752 = vmatpush2.msra.mxu0 0.0
  %753 = vmatprep.subr.mxu0 0.0
  %754 = vmatpush2.msra.mxu0 0.0
  %755 = vmatprep.mubr.f32.mxu0 0.0
  %756 = vmatmul.mubr.f32.gmra.mxu0 %v686
  %v757 = vpop.f32.mrf.mxu0
  %v758 = vadd.f32 0.0, %v757
  %v759 = vpop.f32.mrf.mxu0
  %760 = vmatprep.mubr.f32.mxu0 0.0
  %761 = vmatmul.mubr.f32.gmra.mxu0 %v689
  %v762 = vpop.f32.mrf.mxu0
  %v763 = vadd.f32 0.0, %v762
  %v764 = vpop.f32.mrf.mxu0
  %765 = vdwg.mxu0
  %v767 = vsel %vm227, %v671, 0
  %v770 = vsel %vm227, %v672, 0
  %772 = vmatprep.subr.mxu0 0.0
  %773 = vmatpush1.msra.mxu0 0.0
  %774 = vmatprep.subr.mxu0 0.0
  %775 = vmatpush1.msra.mxu0 0.0
  %776 = vmatprep.subr.mxu0 0.0
  %777 = vmatpush1.msra.mxu0 0.0
  %778 = vmatprep.subr.mxu0 0.0
  %779 = vmatpush1.msra.mxu0 0.0
  %780 = vmatprep.subr.mxu0 0.0
  %781 = vmatpush1.msra.mxu0 0.0
  %782 = vmatprep.subr.mxu0 0.0
  %783 = vmatpush1.msra.mxu0 0.0
  %784 = vmatprep.subr.mxu0 0.0
  %785 = vmatpush1.msra.mxu0 0.0
  %786 = vmatprep.subr.mxu0 0.0
  %787 = vmatpush1.msra.mxu0 0.0
  %788 = vmatprep.subr.mxu0 0.0
  %789 = vmatpush1.msra.mxu0 0.0
  %790 = vmatprep.subr.mxu0 0.0
  %791 = vmatpush1.msra.mxu0 0.0
  %792 = vmatprep.subr.mxu0 0.0
  %793 = vmatpush1.msra.mxu0 0.0
  %794 = vmatprep.subr.mxu0 0.0
  %795 = vmatpush1.msra.mxu0 0.0
  %796 = vmatprep.subr.mxu0 0.0
  %797 = vmatpush1.msra.mxu0 0.0
  %798 = vmatprep.subr.mxu0 0.0
  %799 = vmatpush1.msra.mxu0 0.0
  %800 = vmatprep.subr.mxu0 0.0
  %801 = vmatpush1.msra.mxu0 %v664
  %802 = vmatprep.subr.mxu0 0.0
  %803 = vmatpush1.msra.mxu0 %v663
  %804 = vmatprep.subr.mxu0 0.0
  %805 = vmatpush2.msra.mxu0 0.0
  %806 = vmatprep.subr.mxu0 0.0
  %807 = vmatpush2.msra.mxu0 0.0
  %808 = vmatprep.subr.mxu0 0.0
  %809 = vmatpush2.msra.mxu0 0.0
  %810 = vmatprep.subr.mxu0 0.0
  %811 = vmatpush2.msra.mxu0 0.0
  %812 = vmatprep.subr.mxu0 0.0
  %813 = vmatpush2.msra.mxu0 0.0
  %814 = vmatprep.subr.mxu0 0.0
  %815 = vmatpush2.msra.mxu0 0.0
  %816 = vmatprep.subr.mxu0 0.0
  %817 = vmatpush2.msra.mxu0 0.0
  %818 = vmatprep.subr.mxu0 0.0
  %819 = vmatpush2.msra.mxu0 0.0
  %820 = vmatprep.subr.mxu0 0.0
  %821 = vmatpush2.msra.mxu0 0.0
  %822 = vmatprep.subr.mxu0 0.0
  %823 = vmatpush2.msra.mxu0 0.0
  %824 = vmatprep.subr.mxu0 0.0
  %825 = vmatpush2.msra.mxu0 0.0
  %826 = vmatprep.subr.mxu0 0.0
  %827 = vmatpush2.msra.mxu0 0.0
  %828 = vmatprep.subr.mxu0 0.0
  %829 = vmatpush2.msra.mxu0 0.0
  %830 = vmatprep.subr.mxu0 0.0
  %831 = vmatpush2.msra.mxu0 0.0
  %832 = vmatprep.subr.mxu0 0.0
  %833 = vmatpush2.msra.mxu0 0.0
  %834 = vmatprep.subr.mxu0 0.0
  %835 = vmatpush2.msra.mxu0 0.0
  %836 = vmatprep.mubr.f32.mxu0 0.0
  %837 = vmatmul.mubr.f32.gmra.mxu0 %v767
  %v838 = vpop.f32.mrf.mxu0
  %v839 = vadd.f32 0.0, %v838
  %v840 = vpop.f32.mrf.mxu0
  %841 = vmatprep.mubr.f32.mxu0 0.0
  %842 = vmatmul.mubr.f32.gmra.mxu0 %v770
  %v843 = vpop.f32.mrf.mxu0
  %v844 = vadd.f32 0.0, %v843
  %v845 = vpop.f32.mrf.mxu0
  %846 = vdwg.mxu0
  %v848 = vsel %vm227, %v668, 0
  %v851 = vsel %vm227, %v669, 0
  %853 = vmatprep.subr.mxu0 0.0
  %854 = vmatpush1.msra.mxu0 0.0
  %855 = vmatprep.subr.mxu0 0.0
  %856 = vmatpush1.msra.mxu0 0.0
  %857 = vmatprep.subr.mxu0 0.0
  %858 = vmatpush1.msra.mxu0 0.0
  %859 = vmatprep.subr.mxu0 0.0
  %860 = vmatpush1.msra.mxu0 0.0
  %861 = vmatprep.subr.mxu0 0.0
  %862 = vmatpush1.msra.mxu0 0.0
  %863 = vmatprep.subr.mxu0 0.0
  %864 = vmatpush1.msra.mxu0 0.0
  %865 = vmatprep.subr.mxu0 0.0
  %866 = vmatpush1.msra.mxu0 0.0
  %867 = vmatprep.subr.mxu0 0.0
  %868 = vmatpush1.msra.mxu0 0.0
  %869 = vmatprep.subr.mxu0 0.0
  %870 = vmatpush1.msra.mxu0 0.0
  %871 = vmatprep.subr.mxu0 0.0
  %872 = vmatpush1.msra.mxu0 0.0
  %873 = vmatprep.subr.mxu0 0.0
  %874 = vmatpush1.msra.mxu0 0.0
  %875 = vmatprep.subr.mxu0 0.0
  %876 = vmatpush1.msra.mxu0 0.0
  %877 = vmatprep.subr.mxu0 0.0
  %878 = vmatpush1.msra.mxu0 0.0
  %879 = vmatprep.subr.mxu0 0.0
  %880 = vmatpush1.msra.mxu0 0.0
  %881 = vmatprep.subr.mxu0 0.0
  %882 = vmatpush1.msra.mxu0 %v763
  %883 = vmatprep.subr.mxu0 0.0
  %884 = vmatpush1.msra.mxu0 %v758
  %885 = vmatprep.subr.mxu0 0.0
  %886 = vmatpush2.msra.mxu0 0.0
  %887 = vmatprep.subr.mxu0 0.0
  %888 = vmatpush2.msra.mxu0 0.0
  %889 = vmatprep.subr.mxu0 0.0
  %890 = vmatpush2.msra.mxu0 0.0
  %891 = vmatprep.subr.mxu0 0.0
  %892 = vmatpush2.msra.mxu0 0.0
  %893 = vmatprep.subr.mxu0 0.0
  %894 = vmatpush2.msra.mxu0 0.0
  %895 = vmatprep.subr.mxu0 0.0
  %896 = vmatpush2.msra.mxu0 0.0
  %897 = vmatprep.subr.mxu0 0.0
  %898 = vmatpush2.msra.mxu0 0.0
  %899 = vmatprep.subr.mxu0 0.0
  %900 = vmatpush2.msra.mxu0 0.0
  %901 = vmatprep.subr.mxu0 0.0
  %902 = vmatpush2.msra.mxu0 0.0
  %903 = vmatprep.subr.mxu0 0.0
  %904 = vmatpush2.msra.mxu0 0.0
  %905 = vmatprep.subr.mxu0 0.0
  %906 = vmatpush2.msra.mxu0 0.0
  %907 = vmatprep.subr.mxu0 0.0
  %908 = vmatpush2.msra.mxu0 0.0
  %909 = vmatprep.subr.mxu0 0.0
  %910 = vmatpush2.msra.mxu0 0.0
  %911 = vmatprep.subr.mxu0 0.0
  %912 = vmatpush2.msra.mxu0 0.0
  %913 = vmatprep.subr.mxu0 0.0
  %914 = vmatpush2.msra.mxu0 0.0
  %915 = vmatprep.subr.mxu0 0.0
  %916 = vmatpush2.msra.mxu0 0.0
  %917 = vmatprep.mubr.f32.mxu0 0.0
  %918 = vmatmul.mubr.f32.gmra.mxu0 %v848
  %v919 = vpop.f32.mrf.mxu0
  %v920 = vadd.f32 %v839, %v919
  %v921 = vpop.f32.mrf.mxu0
  %922 = vmatprep.mubr.f32.mxu0 0.0
  %923 = vmatmul.mubr.f32.gmra.mxu0 %v851
  %v924 = vpop.f32.mrf.mxu0
  %v925 = vadd.f32 %v844, %v924
  %v926 = vpop.f32.mrf.mxu0
  %927 = vdwg.mxu0
  %929 = vset.pattern.permute.xlu0 0
  %930 = vperm.xlu0 %929, %v674
  %v931 = vpop.permute.xlu0 %930
  %934 = vset.pattern.permute.xlu0 0
  %935 = vperm.xlu0 %934, %v675
  %v936 = vpop.permute.xlu0 %935
  %v938 = vadd.f32 %v920, %v931
  %v939 = vadd.f32 %v925, %v936
  %v940 = vmax.f32 %v938, 0.0
  %v941 = vmax.f32 %v939, 0.0
  %v943 = vsel %vm145, %v940, 0
  %v946 = vsel %vm145, %v941, 0
  %948 = vmatprep.subr.mxu0 0.0
  %949 = vmatpush1.msra.mxu0 0.0
  %950 = vmatprep.subr.mxu0 0.0
  %951 = vmatpush1.msra.mxu0 0.0
  %952 = vmatprep.subr.mxu0 0.0
  %953 = vmatpush1.msra.mxu0 0.0
  %954 = vmatprep.subr.mxu0 0.0
  %955 = vmatpush1.msra.mxu0 0.0
  %956 = vmatprep.subr.mxu0 0.0
  %957 = vmatpush1.msra.mxu0 0.0
  %958 = vmatprep.subr.mxu0 0.0
  %959 = vmatpush1.msra.mxu0 0.0
  %960 = vmatprep.subr.mxu0 0.0
  %961 = vmatpush1.msra.mxu0 0.0
  %962 = vmatprep.subr.mxu0 0.0
  %963 = vmatpush1.msra.mxu0 0.0
  %964 = vmatprep.subr.mxu0 0.0
  %965 = vmatpush1.msra.mxu0 0.0
  %966 = vmatprep.subr.mxu0 0.0
  %967 = vmatpush1.msra.mxu0 0.0
  %968 = vmatprep.subr.mxu0 0.0
  %969 = vmatpush1.msra.mxu0 0.0
  %970 = vmatprep.subr.mxu0 0.0
  %971 = vmatpush1.msra.mxu0 0.0
  %972 = vmatprep.subr.mxu0 0.0
  %973 = vmatpush1.msra.mxu0 0.0
  %974 = vmatprep.subr.mxu0 0.0
  %975 = vmatpush1.msra.mxu0 0.0
  %976 = vmatprep.subr.mxu0 0.0
  %977 = vmatpush1.msra.mxu0 0.0
  %978 = vmatprep.subr.mxu0 0.0
  %979 = vmatpush1.msra.mxu0 %v666
  %980 = vmatprep.subr.mxu0 0.0
  %981 = vmatpush2.msra.mxu0 0.0
  %982 = vmatprep.subr.mxu0 0.0
  %983 = vmatpush2.msra.mxu0 0.0
  %984 = vmatprep.subr.mxu0 0.0
  %985 = vmatpush2.msra.mxu0 0.0
  %986 = vmatprep.subr.mxu0 0.0
  %987 = vmatpush2.msra.mxu0 0.0
  %988 = vmatprep.subr.mxu0 0.0
  %989 = vmatpush2.msra.mxu0 0.0
  %990 = vmatprep.subr.mxu0 0.0
  %991 = vmatpush2.msra.mxu0 0.0
  %992 = vmatprep.subr.mxu0 0.0
  %993 = vmatpush2.msra.mxu0 0.0
  %994 = vmatprep.subr.mxu0 0.0
  %995 = vmatpush2.msra.mxu0 0.0
  %996 = vmatprep.subr.mxu0 0.0
  %997 = vmatpush2.msra.mxu0 0.0
  %998 = vmatprep.subr.mxu0 0.0
  %999 = vmatpush2.msra.mxu0 0.0
  %1000 = vmatprep.subr.mxu0 0.0
  %1001 = vmatpush2.msra.mxu0 0.0
  %1002 = vmatprep.subr.mxu0 0.0
  %1003 = vmatpush2.msra.mxu0 0.0
  %1004 = vmatprep.subr.mxu0 0.0
  %1005 = vmatpush2.msra.mxu0 0.0
  %1006 = vmatprep.subr.mxu0 0.0
  %1007 = vmatpush2.msra.mxu0 0.0
  %1008 = vmatprep.subr.mxu0 0.0
  %1009 = vmatpush2.msra.mxu0 0.0
  %1010 = vmatprep.subr.mxu0 0.0
  %1011 = vmatpush2.msra.mxu0 0.0
  %1012 = vmatprep.mubr.f32.mxu0 0.0
  %1013 = vmatmul.mubr.f32.gmra.mxu0 %v943
  %v1014 = vpop.f32.mrf.mxu0
  %v1015 = vadd.f32 0.0, %v1014
  %v1016 = vpop.f32.mrf.mxu0
  %1017 = vmatprep.mubr.f32.mxu0 0.0
  %1018 = vmatmul.mubr.f32.gmra.mxu0 %v946
  %v1019 = vpop.f32.mrf.mxu0
  %v1020 = vadd.f32 0.0, %v1019
  %v1021 = vpop.f32.mrf.mxu0
  %1022 = vdwg.mxu0
  %v1024 = vsel %vm227, %v680, 0
  %v1027 = vsel %vm227, %v681, 0
  %1029 = vmatprep.subr.mxu0 0.0
  %1030 = vmatpush1.msra.mxu0 0.0
  %1031 = vmatprep.subr.mxu0 0.0
  %1032 = vmatpush1.msra.mxu0 0.0
  %1033 = vmatprep.subr.mxu0 0.0
  %1034 = vmatpush1.msra.mxu0 0.0
  %1035 = vmatprep.subr.mxu0 0.0
  %1036 = vmatpush1.msra.mxu0 0.0
  %1037 = vmatprep.subr.mxu0 0.0
  %1038 = vmatpush1.msra.mxu0 0.0
  %1039 = vmatprep.subr.mxu0 0.0
  %1040 = vmatpush1.msra.mxu0 0.0
  %1041 = vmatprep.subr.mxu0 0.0
  %1042 = vmatpush1.msra.mxu0 0.0
  %1043 = vmatprep.subr.mxu0 0.0
  %1044 = vmatpush1.msra.mxu0 0.0
  %1045 = vmatprep.subr.mxu0 0.0
  %1046 = vmatpush1.msra.mxu0 0.0
  %1047 = vmatprep.subr.mxu0 0.0
  %1048 = vmatpush1.msra.mxu0 0.0
  %1049 = vmatprep.subr.mxu0 0.0
  %1050 = vmatpush1.msra.mxu0 0.0
  %1051 = vmatprep.subr.mxu0 0.0
  %1052 = vmatpush1.msra.mxu0 0.0
  %1053 = vmatprep.subr.mxu0 0.0
  %1054 = vmatpush1.msra.mxu0 0.0
  %1055 = vmatprep.subr.mxu0 0.0
  %1056 = vmatpush1.msra.mxu0 0.0
  %1057 = vmatprep.subr.mxu0 0.0
  %1058 = vmatpush1.msra.mxu0 %v941
  %1059 = vmatprep.subr.mxu0 0.0
  %1060 = vmatpush1.msra.mxu0 %v940
  %1061 = vmatprep.subr.mxu0 0.0
  %1062 = vmatpush2.msra.mxu0 0.0
  %1063 = vmatprep.subr.mxu0 0.0
  %1064 = vmatpush2.msra.mxu0 0.0
  %1065 = vmatprep.subr.mxu0 0.0
  %1066 = vmatpush2.msra.mxu0 0.0
  %1067 = vmatprep.subr.mxu0 0.0
  %1068 = vmatpush2.msra.mxu0 0.0
  %1069 = vmatprep.subr.mxu0 0.0
  %1070 = vmatpush2.msra.mxu0 0.0
  %1071 = vmatprep.subr.mxu0 0.0
  %1072 = vmatpush2.msra.mxu0 0.0
  %1073 = vmatprep.subr.mxu0 0.0
  %1074 = vmatpush2.msra.mxu0 0.0
  %1075 = vmatprep.subr.mxu0 0.0
  %1076 = vmatpush2.msra.mxu0 0.0
  %1077 = vmatprep.subr.mxu0 0.0
  %1078 = vmatpush2.msra.mxu0 0.0
  %1079 = vmatprep.subr.mxu0 0.0
  %1080 = vmatpush2.msra.mxu0 0.0
  %1081 = vmatprep.subr.mxu0 0.0
  %1082 = vmatpush2.msra.mxu0 0.0
  %1083 = vmatprep.subr.mxu0 0.0
  %1084 = vmatpush2.msra.mxu0 0.0
  %1085 = vmatprep.subr.mxu0 0.0
  %1086 = vmatpush2.msra.mxu0 0.0
  %1087 = vmatprep.subr.mxu0 0.0
  %1088 = vmatpush2.msra.mxu0 0.0
  %1089 = vmatprep.subr.mxu0 0.0
  %1090 = vmatpush2.msra.mxu0 0.0
  %1091 = vmatprep.subr.mxu0 0.0
  %1092 = vmatpush2.msra.mxu0 0.0
  %1093 = vmatprep.mubr.f32.mxu0 0.0
  %1094 = vmatmul.mubr.f32.gmra.mxu0 %v1024
  %v1095 = vpop.f32.mrf.mxu0
  %v1096 = vadd.f32 0.0, %v1095
  %v1097 = vpop.f32.mrf.mxu0
  %1098 = vmatprep.mubr.f32.mxu0 0.0
  %1099 = vmatmul.mubr.f32.gmra.mxu0 %v1027
  %v1100 = vpop.f32.mrf.mxu0
  %v1101 = vadd.f32 0.0, %v1100
  %v1102 = vpop.f32.mrf.mxu0
  %1103 = vdwg.mxu0
  %v1105 = vsel %vm227, %v677, 0
  %v1108 = vsel %vm227, %v678, 0
  %1110 = vmatprep.subr.mxu0 0.0
  %1111 = vmatpush1.msra.mxu0 0.0
  %1112 = vmatprep.subr.mxu0 0.0
  %1113 = vmatpush1.msra.mxu0 0.0
  %1114 = vmatprep.subr.mxu0 0.0
  %1115 = vmatpush1.msra.mxu0 0.0
  %1116 = vmatprep.subr.mxu0 0.0
  %1117 = vmatpush1.msra.mxu0 0.0
  %1118 = vmatprep.subr.mxu0 0.0
  %1119 = vmatpush1.msra.mxu0 0.0
  %1120 = vmatprep.subr.mxu0 0.0
  %1121 = vmatpush1.msra.mxu0 0.0
  %1122 = vmatprep.subr.mxu0 0.0
  %1123 = vmatpush1.msra.mxu0 0.0
  %1124 = vmatprep.subr.mxu0 0.0
  %1125 = vmatpush1.msra.mxu0 0.0
  %1126 = vmatprep.subr.mxu0 0.0
  %1127 = vmatpush1.msra.mxu0 0.0
  %1128 = vmatprep.subr.mxu0 0.0
  %1129 = vmatpush1.msra.mxu0 0.0
  %1130 = vmatprep.subr.mxu0 0.0
  %1131 = vmatpush1.msra.mxu0 0.0
  %1132 = vmatprep.subr.mxu0 0.0
  %1133 = vmatpush1.msra.mxu0 0.0
  %1134 = vmatprep.subr.mxu0 0.0
  %1135 = vmatpush1.msra.mxu0 0.0
  %1136 = vmatprep.subr.mxu0 0.0
  %1137 = vmatpush1.msra.mxu0 0.0
  %1138 = vmatprep.subr.mxu0 0.0
  %1139 = vmatpush1.msra.mxu0 %v1020
  %1140 = vmatprep.subr.mxu0 0.0
  %1141 = vmatpush1.msra.mxu0 %v1015
  %1142 = vmatprep.subr.mxu0 0.0
  %1143 = vmatpush2.msra.mxu0 0.0
  %1144 = vmatprep.subr.mxu0 0.0
  %1145 = vmatpush2.msra.mxu0 0.0
  %1146 = vmatprep.subr.mxu0 0.0
  %1147 = vmatpush2.msra.mxu0 0.0
  %1148 = vmatprep.subr.mxu0 0.0
  %1149 = vmatpush2.msra.mxu0 0.0
  %1150 = vmatprep.subr.mxu0 0.0
  %1151 = vmatpush2.msra.mxu0 0.0
  %1152 = vmatprep.subr.mxu0 0.0
  %1153 = vmatpush2.msra.mxu0 0.0
  %1154 = vmatprep.subr.mxu0 0.0
  %1155 = vmatpush2.msra.mxu0 0.0
  %1156 = vmatprep.subr.mxu0 0.0
  %1157 = vmatpush2.msra.mxu0 0.0
  %1158 = vmatprep.subr.mxu0 0.0
  %1159 = vmatpush2.msra.mxu0 0.0
  %1160 = vmatprep.subr.mxu0 0.0
  %1161 = vmatpush2.msra.mxu0 0.0
  %1162 = vmatprep.subr.mxu0 0.0
  %1163 = vmatpush2.msra.mxu0 0.0
  %1164 = vmatprep.subr.mxu0 0.0
  %1165 = vmatpush2.msra.mxu0 0.0
  %1166 = vmatprep.subr.mxu0 0.0
  %1167 = vmatpush2.msra.mxu0 0.0
  %1168 = vmatprep.subr.mxu0 0.0
  %1169 = vmatpush2.msra.mxu0 0.0
  %1170 = vmatprep.subr.mxu0 0.0
  %1171 = vmatpush2.msra.mxu0 0.0
  %1172 = vmatprep.subr.mxu0 0.0
  %1173 = vmatpush2.msra.mxu0 0.0
  %1174 = vmatprep.mubr.f32.mxu0 0.0
  %1175 = vmatmul.mubr.f32.gmra.mxu0 %v1105
  %v1176 = vpop.f32.mrf.mxu0
  %v1177 = vadd.f32 %v1096, %v1176
  %v1178 = vpop.f32.mrf.mxu0
  %1179 = vmatprep.mubr.f32.mxu0 0.0
  %1180 = vmatmul.mubr.f32.gmra.mxu0 %v1108
  %v1181 = vpop.f32.mrf.mxu0
  %v1182 = vadd.f32 %v1101, %v1181
  %v1183 = vpop.f32.mrf.mxu0
  %1184 = vdwg.mxu0
  %1186 = vset.pattern.permute.xlu0 0
  %1187 = vperm.xlu0 %1186, %v683
  %v1188 = vpop.permute.xlu0 %1187
  %1191 = vset.pattern.permute.xlu0 0
  %1192 = vperm.xlu0 %1191, %v684
  %v1193 = vpop.permute.xlu0 %1192
  %v1195 = vadd.f32 %v1177, %v1188
  %v1196 = vadd.f32 %v1182, %v1193
  %v1197 = vmax.f32 %v1195, 0.0
  %v1198 = vmax.f32 %v1196, 0.0
  %v1199 = vadd.f32 %v1197, %v663
  %v1200 = vadd.f32 %v1198, %v664
  %v1201 = vmax.f32 %v1199, 0.0
  %v1202 = vmax.f32 %v1200, 0.0
  %s1203 = scalar_lea.vmem %s1, 16
  %v1204 = vld [vmem:[%s1203] sm:$0xff]
  %s1205 = scalar_lea.vmem %s2, 32
  %v1206 = vld [vmem:[%s1205] sm:$0xff]
  %v1207 = vld [vmem:[%s1205 + $0x8] sm:$0xff]
  %s1208 = scalar_lea.vmem %s3, 32
  %v1209 = vld [vmem:[%s1208] sm:$0xff]
  %v1210 = vld [vmem:[%s1208 + $0x8] sm:$0xff]
  %s1211 = scalar_lea.vmem %s4, 32
  %v1212 = vld [vmem:[%s1211] sm:$0xff]
  %v1213 = vld [vmem:[%s1211 + $0x8] sm:$0xff]
  %s1214 = scalar_lea.vmem %s5, 32
  %v1215 = vld [vmem:[%s1214] sm:$0xff]
  %v1216 = vld [vmem:[%s1214 + $0x8] sm:$0xff]
  %s1217 = scalar_lea.vmem %s6, 32
  %v1218 = vld [vmem:[%s1217] sm:$0xff]
  %v1219 = vld [vmem:[%s1217 + $0x8] sm:$0xff]
  %s1220 = scalar_lea.vmem %s7, 32
  %v1221 = vld [vmem:[%s1220] sm:$0xff]
  %v1222 = vld [vmem:[%s1220 + $0x8] sm:$0xff]
  %v1224 = vsel %vm145, %v1201, 0
  %v1227 = vsel %vm145, %v1202, 0
  %1229 = vmatprep.subr.mxu0 0.0
  %1230 = vmatpush1.msra.mxu0 0.0
  %1231 = vmatprep.subr.mxu0 0.0
  %1232 = vmatpush1.msra.mxu0 0.0
  %1233 = vmatprep.subr.mxu0 0.0
  %1234 = vmatpush1.msra.mxu0 0.0
  %1235 = vmatprep.subr.mxu0 0.0
  %1236 = vmatpush1.msra.mxu0 0.0
  %1237 = vmatprep.subr.mxu0 0.0
  %1238 = vmatpush1.msra.mxu0 0.0
  %1239 = vmatprep.subr.mxu0 0.0
  %1240 = vmatpush1.msra.mxu0 0.0
  %1241 = vmatprep.subr.mxu0 0.0
  %1242 = vmatpush1.msra.mxu0 0.0
  %1243 = vmatprep.subr.mxu0 0.0
  %1244 = vmatpush1.msra.mxu0 0.0
  %1245 = vmatprep.subr.mxu0 0.0
  %1246 = vmatpush1.msra.mxu0 0.0
  %1247 = vmatprep.subr.mxu0 0.0
  %1248 = vmatpush1.msra.mxu0 0.0
  %1249 = vmatprep.subr.mxu0 0.0
  %1250 = vmatpush1.msra.mxu0 0.0
  %1251 = vmatprep.subr.mxu0 0.0
  %1252 = vmatpush1.msra.mxu0 0.0
  %1253 = vmatprep.subr.mxu0 0.0
  %1254 = vmatpush1.msra.mxu0 0.0
  %1255 = vmatprep.subr.mxu0 0.0
  %1256 = vmatpush1.msra.mxu0 0.0
  %1257 = vmatprep.subr.mxu0 0.0
  %1258 = vmatpush1.msra.mxu0 0.0
  %1259 = vmatprep.subr.mxu0 0.0
  %1260 = vmatpush1.msra.mxu0 %v1204
  %1261 = vmatprep.subr.mxu0 0.0
  %1262 = vmatpush2.msra.mxu0 0.0
  %1263 = vmatprep.subr.mxu0 0.0
  %1264 = vmatpush2.msra.mxu0 0.0
  %1265 = vmatprep.subr.mxu0 0.0
  %1266 = vmatpush2.msra.mxu0 0.0
  %1267 = vmatprep.subr.mxu0 0.0
  %1268 = vmatpush2.msra.mxu0 0.0
  %1269 = vmatprep.subr.mxu0 0.0
  %1270 = vmatpush2.msra.mxu0 0.0
  %1271 = vmatprep.subr.mxu0 0.0
  %1272 = vmatpush2.msra.mxu0 0.0
  %1273 = vmatprep.subr.mxu0 0.0
  %1274 = vmatpush2.msra.mxu0 0.0
  %1275 = vmatprep.subr.mxu0 0.0
  %1276 = vmatpush2.msra.mxu0 0.0
  %1277 = vmatprep.subr.mxu0 0.0
  %1278 = vmatpush2.msra.mxu0 0.0
  %1279 = vmatprep.subr.mxu0 0.0
  %1280 = vmatpush2.msra.mxu0 0.0
  %1281 = vmatprep.subr.mxu0 0.0
  %1282 = vmatpush2.msra.mxu0 0.0
  %1283 = vmatprep.subr.mxu0 0.0
  %1284 = vmatpush2.msra.mxu0 0.0
  %1285 = vmatprep.subr.mxu0 0.0
  %1286 = vmatpush2.msra.mxu0 0.0
  %1287 = vmatprep.subr.mxu0 0.0
  %1288 = vmatpush2.msra.mxu0 0.0
  %1289 = vmatprep.subr.mxu0 0.0
  %1290 = vmatpush2.msra.mxu0 0.0
  %1291 = vmatprep.subr.mxu0 0.0
  %1292 = vmatpush2.msra.mxu0 0.0
  %1293 = vmatprep.mubr.f32.mxu0 0.0
  %1294 = vmatmul.mubr.f32.gmra.mxu0 %v1224
  %v1295 = vpop.f32.mrf.mxu0
  %v1296 = vadd.f32 0.0, %v1295
  %v1297 = vpop.f32.mrf.mxu0
  %1298 = vmatprep.mubr.f32.mxu0 0.0
  %1299 = vmatmul.mubr.f32.gmra.mxu0 %v1227
  %v1300 = vpop.f32.mrf.mxu0
  %v1301 = vadd.f32 0.0, %v1300
  %v1302 = vpop.f32.mrf.mxu0
  %1303 = vdwg.mxu0
  %v1305 = vsel %vm227, %v1209, 0
  %v1308 = vsel %vm227, %v1210, 0
  %1310 = vmatprep.subr.mxu0 0.0
  %1311 = vmatpush1.msra.mxu0 0.0
  %1312 = vmatprep.subr.mxu0 0.0
  %1313 = vmatpush1.msra.mxu0 0.0
  %1314 = vmatprep.subr.mxu0 0.0
  %1315 = vmatpush1.msra.mxu0 0.0
  %1316 = vmatprep.subr.mxu0 0.0
  %1317 = vmatpush1.msra.mxu0 0.0
  %1318 = vmatprep.subr.mxu0 0.0
  %1319 = vmatpush1.msra.mxu0 0.0
  %1320 = vmatprep.subr.mxu0 0.0
  %1321 = vmatpush1.msra.mxu0 0.0
  %1322 = vmatprep.subr.mxu0 0.0
  %1323 = vmatpush1.msra.mxu0 0.0
  %1324 = vmatprep.subr.mxu0 0.0
  %1325 = vmatpush1.msra.mxu0 0.0
  %1326 = vmatprep.subr.mxu0 0.0
  %1327 = vmatpush1.msra.mxu0 0.0
  %1328 = vmatprep.subr.mxu0 0.0
  %1329 = vmatpush1.msra.mxu0 0.0
  %1330 = vmatprep.subr.mxu0 0.0
  %1331 = vmatpush1.msra.mxu0 0.0
  %1332 = vmatprep.subr.mxu0 0.0
  %1333 = vmatpush1.msra.mxu0 0.0
  %1334 = vmatprep.subr.mxu0 0.0
  %1335 = vmatpush1.msra.mxu0 0.0
  %1336 = vmatprep.subr.mxu0 0.0
  %1337 = vmatpush1.msra.mxu0 0.0
  %1338 = vmatprep.subr.mxu0 0.0
  %1339 = vmatpush1.msra.mxu0 %v1202
  %1340 = vmatprep.subr.mxu0 0.0
  %1341 = vmatpush1.msra.mxu0 %v1201
  %1342 = vmatprep.subr.mxu0 0.0
  %1343 = vmatpush2.msra.mxu0 0.0
  %1344 = vmatprep.subr.mxu0 0.0
  %1345 = vmatpush2.msra.mxu0 0.0
  %1346 = vmatprep.subr.mxu0 0.0
  %1347 = vmatpush2.msra.mxu0 0.0
  %1348 = vmatprep.subr.mxu0 0.0
  %1349 = vmatpush2.msra.mxu0 0.0
  %1350 = vmatprep.subr.mxu0 0.0
  %1351 = vmatpush2.msra.mxu0 0.0
  %1352 = vmatprep.subr.mxu0 0.0
  %1353 = vmatpush2.msra.mxu0 0.0
  %1354 = vmatprep.subr.mxu0 0.0
  %1355 = vmatpush2.msra.mxu0 0.0
  %1356 = vmatprep.subr.mxu0 0.0
  %1357 = vmatpush2.msra.mxu0 0.0
  %1358 = vmatprep.subr.mxu0 0.0
  %1359 = vmatpush2.msra.mxu0 0.0
  %1360 = vmatprep.subr.mxu0 0.0
  %1361 = vmatpush2.msra.mxu0 0.0
  %1362 = vmatprep.subr.mxu0 0.0
  %1363 = vmatpush2.msra.mxu0 0.0
  %1364 = vmatprep.subr.mxu0 0.0
  %1365 = vmatpush2.msra.mxu0 0.0
  %1366 = vmatprep.subr.mxu0 0.0
  %1367 = vmatpush2.msra.mxu0 0.0
  %1368 = vmatprep.subr.mxu0 0.0
  %1369 = vmatpush2.msra.mxu0 0.0
  %1370 = vmatprep.subr.mxu0 0.0
  %1371 = vmatpush2.msra.mxu0 0.0
  %1372 = vmatprep.subr.mxu0 0.0
  %1373 = vmatpush2.msra.mxu0 0.0
  %1374 = vmatprep.mubr.f32.mxu0 0.0
  %1375 = vmatmul.mubr.f32.gmra.mxu0 %v1305
  %v1376 = vpop.f32.mrf.mxu0
  %v1377 = vadd.f32 0.0, %v1376
  %v1378 = vpop.f32.mrf.mxu0
  %1379 = vmatprep.mubr.f32.mxu0 0.0
  %1380 = vmatmul.mubr.f32.gmra.mxu0 %v1308
  %v1381 = vpop.f32.mrf.mxu0
  %v1382 = vadd.f32 0.0, %v1381
  %v1383 = vpop.f32.mrf.mxu0
  %1384 = vdwg.mxu0
  %v1386 = vsel %vm227, %v1206, 0
  %v1389 = vsel %vm227, %v1207, 0
  %1391 = vmatprep.subr.mxu0 0.0
  %1392 = vmatpush1.msra.mxu0 0.0
  %1393 = vmatprep.subr.mxu0 0.0
  %1394 = vmatpush1.msra.mxu0 0.0
  %1395 = vmatprep.subr.mxu0 0.0
  %1396 = vmatpush1.msra.mxu0 0.0
  %1397 = vmatprep.subr.mxu0 0.0
  %1398 = vmatpush1.msra.mxu0 0.0
  %1399 = vmatprep.subr.mxu0 0.0
  %1400 = vmatpush1.msra.mxu0 0.0
  %1401 = vmatprep.subr.mxu0 0.0
  %1402 = vmatpush1.msra.mxu0 0.0
  %1403 = vmatprep.subr.mxu0 0.0
  %1404 = vmatpush1.msra.mxu0 0.0
  %1405 = vmatprep.subr.mxu0 0.0
  %1406 = vmatpush1.msra.mxu0 0.0
  %1407 = vmatprep.subr.mxu0 0.0
  %1408 = vmatpush1.msra.mxu0 0.0
  %1409 = vmatprep.subr.mxu0 0.0
  %1410 = vmatpush1.msra.mxu0 0.0
  %1411 = vmatprep.subr.mxu0 0.0
  %1412 = vmatpush1.msra.mxu0 0.0
  %1413 = vmatprep.subr.mxu0 0.0
  %1414 = vmatpush1.msra.mxu0 0.0
  %1415 = vmatprep.subr.mxu0 0.0
  %1416 = vmatpush1.msra.mxu0 0.0
  %1417 = vmatprep.subr.mxu0 0.0
  %1418 = vmatpush1.msra.mxu0 0.0
  %1419 = vmatprep.subr.mxu0 0.0
  %1420 = vmatpush1.msra.mxu0 %v1301
  %1421 = vmatprep.subr.mxu0 0.0
  %1422 = vmatpush1.msra.mxu0 %v1296
  %1423 = vmatprep.subr.mxu0 0.0
  %1424 = vmatpush2.msra.mxu0 0.0
  %1425 = vmatprep.subr.mxu0 0.0
  %1426 = vmatpush2.msra.mxu0 0.0
  %1427 = vmatprep.subr.mxu0 0.0
  %1428 = vmatpush2.msra.mxu0 0.0
  %1429 = vmatprep.subr.mxu0 0.0
  %1430 = vmatpush2.msra.mxu0 0.0
  %1431 = vmatprep.subr.mxu0 0.0
  %1432 = vmatpush2.msra.mxu0 0.0
  %1433 = vmatprep.subr.mxu0 0.0
  %1434 = vmatpush2.msra.mxu0 0.0
  %1435 = vmatprep.subr.mxu0 0.0
  %1436 = vmatpush2.msra.mxu0 0.0
  %1437 = vmatprep.subr.mxu0 0.0
  %1438 = vmatpush2.msra.mxu0 0.0
  %1439 = vmatprep.subr.mxu0 0.0
  %1440 = vmatpush2.msra.mxu0 0.0
  %1441 = vmatprep.subr.mxu0 0.0
  %1442 = vmatpush2.msra.mxu0 0.0
  %1443 = vmatprep.subr.mxu0 0.0
  %1444 = vmatpush2.msra.mxu0 0.0
  %1445 = vmatprep.subr.mxu0 0.0
  %1446 = vmatpush2.msra.mxu0 0.0
  %1447 = vmatprep.subr.mxu0 0.0
  %1448 = vmatpush2.msra.mxu0 0.0
  %1449 = vmatprep.subr.mxu0 0.0
  %1450 = vmatpush2.msra.mxu0 0.0
  %1451 = vmatprep.subr.mxu0 0.0
  %1452 = vmatpush2.msra.mxu0 0.0
  %1453 = vmatprep.subr.mxu0 0.0
  %1454 = vmatpush2.msra.mxu0 0.0
  %1455 = vmatprep.mubr.f32.mxu0 0.0
  %1456 = vmatmul.mubr.f32.gmra.mxu0 %v1386
  %v1457 = vpop.f32.mrf.mxu0
  %v1458 = vadd.f32 %v1377, %v1457
  %v1459 = vpop.f32.mrf.mxu0
  %1460 = vmatprep.mubr.f32.mxu0 0.0
  %1461 = vmatmul.mubr.f32.gmra.mxu0 %v1389
  %v1462 = vpop.f32.mrf.mxu0
  %v1463 = vadd.f32 %v1382, %v1462
  %v1464 = vpop.f32.mrf.mxu0
  %1465 = vdwg.mxu0
  %1467 = vset.pattern.permute.xlu0 0
  %1468 = vperm.xlu0 %1467, %v1212
  %v1469 = vpop.permute.xlu0 %1468
  %1472 = vset.pattern.permute.xlu0 0
  %1473 = vperm.xlu0 %1472, %v1213
  %v1474 = vpop.permute.xlu0 %1473
  %v1476 = vadd.f32 %v1458, %v1469
  %v1477 = vadd.f32 %v1463, %v1474
  %v1478 = vmax.f32 %v1476, 0.0
  %v1479 = vmax.f32 %v1477, 0.0
  %v1481 = vsel %vm145, %v1478, 0
  %v1484 = vsel %vm145, %v1479, 0
  %1486 = vmatprep.subr.mxu0 0.0
  %1487 = vmatpush1.msra.mxu0 0.0
  %1488 = vmatprep.subr.mxu0 0.0
  %1489 = vmatpush1.msra.mxu0 0.0
  %1490 = vmatprep.subr.mxu0 0.0
  %1491 = vmatpush1.msra.mxu0 0.0
  %1492 = vmatprep.subr.mxu0 0.0
  %1493 = vmatpush1.msra.mxu0 0.0
  %1494 = vmatprep.subr.mxu0 0.0
  %1495 = vmatpush1.msra.mxu0 0.0
  %1496 = vmatprep.subr.mxu0 0.0
  %1497 = vmatpush1.msra.mxu0 0.0
  %1498 = vmatprep.subr.mxu0 0.0
  %1499 = vmatpush1.msra.mxu0 0.0
  %1500 = vmatprep.subr.mxu0 0.0
  %1501 = vmatpush1.msra.mxu0 0.0
  %1502 = vmatprep.subr.mxu0 0.0
  %1503 = vmatpush1.msra.mxu0 0.0
  %1504 = vmatprep.subr.mxu0 0.0
  %1505 = vmatpush1.msra.mxu0 0.0
  %1506 = vmatprep.subr.mxu0 0.0
  %1507 = vmatpush1.msra.mxu0 0.0
  %1508 = vmatprep.subr.mxu0 0.0
  %1509 = vmatpush1.msra.mxu0 0.0
  %1510 = vmatprep.subr.mxu0 0.0
  %1511 = vmatpush1.msra.mxu0 0.0
  %1512 = vmatprep.subr.mxu0 0.0
  %1513 = vmatpush1.msra.mxu0 0.0
  %1514 = vmatprep.subr.mxu0 0.0
  %1515 = vmatpush1.msra.mxu0 0.0
  %1516 = vmatprep.subr.mxu0 0.0
  %1517 = vmatpush1.msra.mxu0 %v1204
  %1518 = vmatprep.subr.mxu0 0.0
  %1519 = vmatpush2.msra.mxu0 0.0
  %1520 = vmatprep.subr.mxu0 0.0
  %1521 = vmatpush2.msra.mxu0 0.0
  %1522 = vmatprep.subr.mxu0 0.0
  %1523 = vmatpush2.msra.mxu0 0.0
  %1524 = vmatprep.subr.mxu0 0.0
  %1525 = vmatpush2.msra.mxu0 0.0
  %1526 = vmatprep.subr.mxu0 0.0
  %1527 = vmatpush2.msra.mxu0 0.0
  %1528 = vmatprep.subr.mxu0 0.0
  %1529 = vmatpush2.msra.mxu0 0.0
  %1530 = vmatprep.subr.mxu0 0.0
  %1531 = vmatpush2.msra.mxu0 0.0
  %1532 = vmatprep.subr.mxu0 0.0
  %1533 = vmatpush2.msra.mxu0 0.0
  %1534 = vmatprep.subr.mxu0 0.0
  %1535 = vmatpush2.msra.mxu0 0.0
  %1536 = vmatprep.subr.mxu0 0.0
  %1537 = vmatpush2.msra.mxu0 0.0
  %1538 = vmatprep.subr.mxu0 0.0
  %1539 = vmatpush2.msra.mxu0 0.0
  %1540 = vmatprep.subr.mxu0 0.0
  %1541 = vmatpush2.msra.mxu0 0.0
  %1542 = vmatprep.subr.mxu0 0.0
  %1543 = vmatpush2.msra.mxu0 0.0
  %1544 = vmatprep.subr.mxu0 0.0
  %1545 = vmatpush2.msra.mxu0 0.0
  %1546 = vmatprep.subr.mxu0 0.0
  %1547 = vmatpush2.msra.mxu0 0.0
  %1548 = vmatprep.subr.mxu0 0.0
  %1549 = vmatpush2.msra.mxu0 0.0
  %1550 = vmatprep.mubr.f32.mxu0 0.0
  %1551 = vmatmul.mubr.f32.gmra.mxu0 %v1481
  %v1552 = vpop.f32.mrf.mxu0
  %v1553 = vadd.f32 0.0, %v1552
  %v1554 = vpop.f32.mrf.mxu0
  %1555 = vmatprep.mubr.f32.mxu0 0.0
  %1556 = vmatmul.mubr.f32.gmra.mxu0 %v1484
  %v1557 = vpop.f32.mrf.mxu0
  %v1558 = vadd.f32 0.0, %v1557
  %v1559 = vpop.f32.mrf.mxu0
  %1560 = vdwg.mxu0
  %v1562 = vsel %vm227, %v1218, 0
  %v1565 = vsel %vm227, %v1219, 0
  %1567 = vmatprep.subr.mxu0 0.0
  %1568 = vmatpush1.msra.mxu0 0.0
  %1569 = vmatprep.subr.mxu0 0.0
  %1570 = vmatpush1.msra.mxu0 0.0
  %1571 = vmatprep.subr.mxu0 0.0
  %1572 = vmatpush1.msra.mxu0 0.0
  %1573 = vmatprep.subr.mxu0 0.0
  %1574 = vmatpush1.msra.mxu0 0.0
  %1575 = vmatprep.subr.mxu0 0.0
  %1576 = vmatpush1.msra.mxu0 0.0
  %1577 = vmatprep.subr.mxu0 0.0
  %1578 = vmatpush1.msra.mxu0 0.0
  %1579 = vmatprep.subr.mxu0 0.0
  %1580 = vmatpush1.msra.mxu0 0.0
  %1581 = vmatprep.subr.mxu0 0.0
  %1582 = vmatpush1.msra.mxu0 0.0
  %1583 = vmatprep.subr.mxu0 0.0
  %1584 = vmatpush1.msra.mxu0 0.0
  %1585 = vmatprep.subr.mxu0 0.0
  %1586 = vmatpush1.msra.mxu0 0.0
  %1587 = vmatprep.subr.mxu0 0.0
  %1588 = vmatpush1.msra.mxu0 0.0
  %1589 = vmatprep.subr.mxu0 0.0
  %1590 = vmatpush1.msra.mxu0 0.0
  %1591 = vmatprep.subr.mxu0 0.0
  %1592 = vmatpush1.msra.mxu0 0.0
  %1593 = vmatprep.subr.mxu0 0.0
  %1594 = vmatpush1.msra.mxu0 0.0
  %1595 = vmatprep.subr.mxu0 0.0
  %1596 = vmatpush1.msra.mxu0 %v1479
  %1597 = vmatprep.subr.mxu0 0.0
  %1598 = vmatpush1.msra.mxu0 %v1478
  %1599 = vmatprep.subr.mxu0 0.0
  %1600 = vmatpush2.msra.mxu0 0.0
  %1601 = vmatprep.subr.mxu0 0.0
  %1602 = vmatpush2.msra.mxu0 0.0
  %1603 = vmatprep.subr.mxu0 0.0
  %1604 = vmatpush2.msra.mxu0 0.0
  %1605 = vmatprep.subr.mxu0 0.0
  %1606 = vmatpush2.msra.mxu0 0.0
  %1607 = vmatprep.subr.mxu0 0.0
  %1608 = vmatpush2.msra.mxu0 0.0
  %1609 = vmatprep.subr.mxu0 0.0
  %1610 = vmatpush2.msra.mxu0 0.0
  %1611 = vmatprep.subr.mxu0 0.0
  %1612 = vmatpush2.msra.mxu0 0.0
  %1613 = vmatprep.subr.mxu0 0.0
  %1614 = vmatpush2.msra.mxu0 0.0
  %1615 = vmatprep.subr.mxu0 0.0
  %1616 = vmatpush2.msra.mxu0 0.0
  %1617 = vmatprep.subr.mxu0 0.0
  %1618 = vmatpush2.msra.mxu0 0.0
  %1619 = vmatprep.subr.mxu0 0.0
  %1620 = vmatpush2.msra.mxu0 0.0
  %1621 = vmatprep.subr.mxu0 0.0
  %1622 = vmatpush2.msra.mxu0 0.0
  %1623 = vmatprep.subr.mxu0 0.0
  %1624 = vmatpush2.msra.mxu0 0.0
  %1625 = vmatprep.subr.mxu0 0.0
  %1626 = vmatpush2.msra.mxu0 0.0
  %1627 = vmatprep.subr.mxu0 0.0
  %1628 = vmatpush2.msra.mxu0 0.0
  %1629 = vmatprep.subr.mxu0 0.0
  %1630 = vmatpush2.msra.mxu0 0.0
  %1631 = vmatprep.mubr.f32.mxu0 0.0
  %1632 = vmatmul.mubr.f32.gmra.mxu0 %v1562
  %v1633 = vpop.f32.mrf.mxu0
  %v1634 = vadd.f32 0.0, %v1633
  %v1635 = vpop.f32.mrf.mxu0
  %1636 = vmatprep.mubr.f32.mxu0 0.0
  %1637 = vmatmul.mubr.f32.gmra.mxu0 %v1565
  %v1638 = vpop.f32.mrf.mxu0
  %v1639 = vadd.f32 0.0, %v1638
  %v1640 = vpop.f32.mrf.mxu0
  %1641 = vdwg.mxu0
  %v1643 = vsel %vm227, %v1215, 0
  %v1646 = vsel %vm227, %v1216, 0
  %1648 = vmatprep.subr.mxu0 0.0
  %1649 = vmatpush1.msra.mxu0 0.0
  %1650 = vmatprep.subr.mxu0 0.0
  %1651 = vmatpush1.msra.mxu0 0.0
  %1652 = vmatprep.subr.mxu0 0.0
  %1653 = vmatpush1.msra.mxu0 0.0
  %1654 = vmatprep.subr.mxu0 0.0
  %1655 = vmatpush1.msra.mxu0 0.0
  %1656 = vmatprep.subr.mxu0 0.0
  %1657 = vmatpush1.msra.mxu0 0.0
  %1658 = vmatprep.subr.mxu0 0.0
  %1659 = vmatpush1.msra.mxu0 0.0
  %1660 = vmatprep.subr.mxu0 0.0
  %1661 = vmatpush1.msra.mxu0 0.0
  %1662 = vmatprep.subr.mxu0 0.0
  %1663 = vmatpush1.msra.mxu0 0.0
  %1664 = vmatprep.subr.mxu0 0.0
  %1665 = vmatpush1.msra.mxu0 0.0
  %1666 = vmatprep.subr.mxu0 0.0
  %1667 = vmatpush1.msra.mxu0 0.0
  %1668 = vmatprep.subr.mxu0 0.0
  %1669 = vmatpush1.msra.mxu0 0.0
  %1670 = vmatprep.subr.mxu0 0.0
  %1671 = vmatpush1.msra.mxu0 0.0
  %1672 = vmatprep.subr.mxu0 0.0
  %1673 = vmatpush1.msra.mxu0 0.0
  %1674 = vmatprep.subr.mxu0 0.0
  %1675 = vmatpush1.msra.mxu0 0.0
  %1676 = vmatprep.subr.mxu0 0.0
  %1677 = vmatpush1.msra.mxu0 %v1558
  %1678 = vmatprep.subr.mxu0 0.0
  %1679 = vmatpush1.msra.mxu0 %v1553
  %1680 = vmatprep.subr.mxu0 0.0
  %1681 = vmatpush2.msra.mxu0 0.0
  %1682 = vmatprep.subr.mxu0 0.0
  %1683 = vmatpush2.msra.mxu0 0.0
  %1684 = vmatprep.subr.mxu0 0.0
  %1685 = vmatpush2.msra.mxu0 0.0
  %1686 = vmatprep.subr.mxu0 0.0
  %1687 = vmatpush2.msra.mxu0 0.0
  %1688 = vmatprep.subr.mxu0 0.0
  %1689 = vmatpush2.msra.mxu0 0.0
  %1690 = vmatprep.subr.mxu0 0.0
  %1691 = vmatpush2.msra.mxu0 0.0
  %1692 = vmatprep.subr.mxu0 0.0
  %1693 = vmatpush2.msra.mxu0 0.0
  %1694 = vmatprep.subr.mxu0 0.0
  %1695 = vmatpush2.msra.mxu0 0.0
  %1696 = vmatprep.subr.mxu0 0.0
  %1697 = vmatpush2.msra.mxu0 0.0
  %1698 = vmatprep.subr.mxu0 0.0
  %1699 = vmatpush2.msra.mxu0 0.0
  %1700 = vmatprep.subr.mxu0 0.0
  %1701 = vmatpush2.msra.mxu0 0.0
  %1702 = vmatprep.subr.mxu0 0.0
  %1703 = vmatpush2.msra.mxu0 0.0
  %1704 = vmatprep.subr.mxu0 0.0
  %1705 = vmatpush2.msra.mxu0 0.0
  %1706 = vmatprep.subr.mxu0 0.0
  %1707 = vmatpush2.msra.mxu0 0.0
  %1708 = vmatprep.subr.mxu0 0.0
  %1709 = vmatpush2.msra.mxu0 0.0
  %1710 = vmatprep.subr.mxu0 0.0
  %1711 = vmatpush2.msra.mxu0 0.0
  %1712 = vmatprep.mubr.f32.mxu0 0.0
  %1713 = vmatmul.mubr.f32.gmra.mxu0 %v1643
  %v1714 = vpop.f32.mrf.mxu0
  %v1715 = vadd.f32 %v1634, %v1714
  %v1716 = vpop.f32.mrf.mxu0
  %1717 = vmatprep.mubr.f32.mxu0 0.0
  %1718 = vmatmul.mubr.f32.gmra.mxu0 %v1646
  %v1719 = vpop.f32.mrf.mxu0
  %v1720 = vadd.f32 %v1639, %v1719
  %v1721 = vpop.f32.mrf.mxu0
  %1722 = vdwg.mxu0
  %1724 = vset.pattern.permute.xlu0 0
  %1725 = vperm.xlu0 %1724, %v1221
  %v1726 = vpop.permute.xlu0 %1725
  %1729 = vset.pattern.permute.xlu0 0
  %1730 = vperm.xlu0 %1729, %v1222
  %v1731 = vpop.permute.xlu0 %1730
  %v1733 = vadd.f32 %v1715, %v1726
  %v1734 = vadd.f32 %v1720, %v1731
  %v1735 = vmax.f32 %v1733, 0.0
  %v1736 = vmax.f32 %v1734, 0.0
  %v1737 = vadd.f32 %v1735, %v1201
  %v1738 = vadd.f32 %v1736, %v1202
  %v1739 = vmax.f32 %v1737, 0.0
  %v1740 = vmax.f32 %v1738, 0.0
  %s1741 = scalar_lea.vmem %s1, 24
  %v1742 = vld [vmem:[%s1741] sm:$0xff]
  %s1743 = scalar_lea.vmem %s2, 48
  %v1744 = vld [vmem:[%s1743] sm:$0xff]
  %v1745 = vld [vmem:[%s1743 + $0x8] sm:$0xff]
  %s1746 = scalar_lea.vmem %s3, 48
  %v1747 = vld [vmem:[%s1746] sm:$0xff]
  %v1748 = vld [vmem:[%s1746 + $0x8] sm:$0xff]
  %s1749 = scalar_lea.vmem %s4, 48
  %v1750 = vld [vmem:[%s1749] sm:$0xff]
  %v1751 = vld [vmem:[%s1749 + $0x8] sm:$0xff]
  %s1752 = scalar_lea.vmem %s5, 48
  %v1753 = vld [vmem:[%s1752] sm:$0xff]
  %v1754 = vld [vmem:[%s1752 + $0x8] sm:$0xff]
  %s1755 = scalar_lea.vmem %s6, 48
  %v1756 = vld [vmem:[%s1755] sm:$0xff]
  %v1757 = vld [vmem:[%s1755 + $0x8] sm:$0xff]
  %s1758 = scalar_lea.vmem %s7, 48
  %v1759 = vld [vmem:[%s1758] sm:$0xff]
  %v1760 = vld [vmem:[%s1758 + $0x8] sm:$0xff]
  %v1762 = vsel %vm145, %v1739, 0
  %v1765 = vsel %vm145, %v1740, 0
  %1767 = vmatprep.subr.mxu0 0.0
  %1768 = vmatpush1.msra.mxu0 0.0
  %1769 = vmatprep.subr.mxu0 0.0
  %1770 = vmatpush1.msra.mxu0 0.0
  %1771 = vmatprep.subr.mxu0 0.0
  %1772 = vmatpush1.msra.mxu0 0.0
  %1773 = vmatprep.subr.mxu0 0.0
  %1774 = vmatpush1.msra.mxu0 0.0
  %1775 = vmatprep.subr.mxu0 0.0
  %1776 = vmatpush1.msra.mxu0 0.0
  %1777 = vmatprep.subr.mxu0 0.0
  %1778 = vmatpush1.msra.mxu0 0.0
  %1779 = vmatprep.subr.mxu0 0.0
  %1780 = vmatpush1.msra.mxu0 0.0
  %1781 = vmatprep.subr.mxu0 0.0
  %1782 = vmatpush1.msra.mxu0 0.0
  %1783 = vmatprep.subr.mxu0 0.0
  %1784 = vmatpush1.msra.mxu0 0.0
  %1785 = vmatprep.subr.mxu0 0.0
  %1786 = vmatpush1.msra.mxu0 0.0
  %1787 = vmatprep.subr.mxu0 0.0
  %1788 = vmatpush1.msra.mxu0 0.0
  %1789 = vmatprep.subr.mxu0 0.0
  %1790 = vmatpush1.msra.mxu0 0.0
  %1791 = vmatprep.subr.mxu0 0.0
  %1792 = vmatpush1.msra.mxu0 0.0
  %1793 = vmatprep.subr.mxu0 0.0
  %1794 = vmatpush1.msra.mxu0 0.0
  %1795 = vmatprep.subr.mxu0 0.0
  %1796 = vmatpush1.msra.mxu0 0.0
  %1797 = vmatprep.subr.mxu0 0.0
  %1798 = vmatpush1.msra.mxu0 %v1742
  %1799 = vmatprep.subr.mxu0 0.0
  %1800 = vmatpush2.msra.mxu0 0.0
  %1801 = vmatprep.subr.mxu0 0.0
  %1802 = vmatpush2.msra.mxu0 0.0
  %1803 = vmatprep.subr.mxu0 0.0
  %1804 = vmatpush2.msra.mxu0 0.0
  %1805 = vmatprep.subr.mxu0 0.0
  %1806 = vmatpush2.msra.mxu0 0.0
  %1807 = vmatprep.subr.mxu0 0.0
  %1808 = vmatpush2.msra.mxu0 0.0
  %1809 = vmatprep.subr.mxu0 0.0
  %1810 = vmatpush2.msra.mxu0 0.0
  %1811 = vmatprep.subr.mxu0 0.0
  %1812 = vmatpush2.msra.mxu0 0.0
  %1813 = vmatprep.subr.mxu0 0.0
  %1814 = vmatpush2.msra.mxu0 0.0
  %1815 = vmatprep.subr.mxu0 0.0
  %1816 = vmatpush2.msra.mxu0 0.0
  %1817 = vmatprep.subr.mxu0 0.0
  %1818 = vmatpush2.msra.mxu0 0.0
  %1819 = vmatprep.subr.mxu0 0.0
  %1820 = vmatpush2.msra.mxu0 0.0
  %1821 = vmatprep.subr.mxu0 0.0
  %1822 = vmatpush2.msra.mxu0 0.0
  %1823 = vmatprep.subr.mxu0 0.0
  %1824 = vmatpush2.msra.mxu0 0.0
  %1825 = vmatprep.subr.mxu0 0.0
  %1826 = vmatpush2.msra.mxu0 0.0
  %1827 = vmatprep.subr.mxu0 0.0
  %1828 = vmatpush2.msra.mxu0 0.0
  %1829 = vmatprep.subr.mxu0 0.0
  %1830 = vmatpush2.msra.mxu0 0.0
  %1831 = vmatprep.mubr.f32.mxu0 0.0
  %1832 = vmatmul.mubr.f32.gmra.mxu0 %v1762
  %v1833 = vpop.f32.mrf.mxu0
  %v1834 = vadd.f32 0.0, %v1833
  %v1835 = vpop.f32.mrf.mxu0
  %1836 = vmatprep.mubr.f32.mxu0 0.0
  %1837 = vmatmul.mubr.f32.gmra.mxu0 %v1765
  %v1838 = vpop.f32.mrf.mxu0
  %v1839 = vadd.f32 0.0, %v1838
  %v1840 = vpop.f32.mrf.mxu0
  %1841 = vdwg.mxu0
  %v1843 = vsel %vm227, %v1747, 0
  %v1846 = vsel %vm227, %v1748, 0
  %1848 = vmatprep.subr.mxu0 0.0
  %1849 = vmatpush1.msra.mxu0 0.0
  %1850 = vmatprep.subr.mxu0 0.0
  %1851 = vmatpush1.msra.mxu0 0.0
  %1852 = vmatprep.subr.mxu0 0.0
  %1853 = vmatpush1.msra.mxu0 0.0
  %1854 = vmatprep.subr.mxu0 0.0
  %1855 = vmatpush1.msra.mxu0 0.0
  %1856 = vmatprep.subr.mxu0 0.0
  %1857 = vmatpush1.msra.mxu0 0.0
  %1858 = vmatprep.subr.mxu0 0.0
  %1859 = vmatpush1.msra.mxu0 0.0
  %1860 = vmatprep.subr.mxu0 0.0
  %1861 = vmatpush1.msra.mxu0 0.0
  %1862 = vmatprep.subr.mxu0 0.0
  %1863 = vmatpush1.msra.mxu0 0.0
  %1864 = vmatprep.subr.mxu0 0.0
  %1865 = vmatpush1.msra.mxu0 0.0
  %1866 = vmatprep.subr.mxu0 0.0
  %1867 = vmatpush1.msra.mxu0 0.0
  %1868 = vmatprep.subr.mxu0 0.0
  %1869 = vmatpush1.msra.mxu0 0.0
  %1870 = vmatprep.subr.mxu0 0.0
  %1871 = vmatpush1.msra.mxu0 0.0
  %1872 = vmatprep.subr.mxu0 0.0
  %1873 = vmatpush1.msra.mxu0 0.0
  %1874 = vmatprep.subr.mxu0 0.0
  %1875 = vmatpush1.msra.mxu0 0.0
  %1876 = vmatprep.subr.mxu0 0.0
  %1877 = vmatpush1.msra.mxu0 %v1740
  %1878 = vmatprep.subr.mxu0 0.0
  %1879 = vmatpush1.msra.mxu0 %v1739
  %1880 = vmatprep.subr.mxu0 0.0
  %1881 = vmatpush2.msra.mxu0 0.0
  %1882 = vmatprep.subr.mxu0 0.0
  %1883 = vmatpush2.msra.mxu0 0.0
  %1884 = vmatprep.subr.mxu0 0.0
  %1885 = vmatpush2.msra.mxu0 0.0
  %1886 = vmatprep.subr.mxu0 0.0
  %1887 = vmatpush2.msra.mxu0 0.0
  %1888 = vmatprep.subr.mxu0 0.0
  %1889 = vmatpush2.msra.mxu0 0.0
  %1890 = vmatprep.subr.mxu0 0.0
  %1891 = vmatpush2.msra.mxu0 0.0
  %1892 = vmatprep.subr.mxu0 0.0
  %1893 = vmatpush2.msra.mxu0 0.0
  %1894 = vmatprep.subr.mxu0 0.0
  %1895 = vmatpush2.msra.mxu0 0.0
  %1896 = vmatprep.subr.mxu0 0.0
  %1897 = vmatpush2.msra.mxu0 0.0
  %1898 = vmatprep.subr.mxu0 0.0
  %1899 = vmatpush2.msra.mxu0 0.0
  %1900 = vmatprep.subr.mxu0 0.0
  %1901 = vmatpush2.msra.mxu0 0.0
  %1902 = vmatprep.subr.mxu0 0.0
  %1903 = vmatpush2.msra.mxu0 0.0
  %1904 = vmatprep.subr.mxu0 0.0
  %1905 = vmatpush2.msra.mxu0 0.0
  %1906 = vmatprep.subr.mxu0 0.0
  %1907 = vmatpush2.msra.mxu0 0.0
  %1908 = vmatprep.subr.mxu0 0.0
  %1909 = vmatpush2.msra.mxu0 0.0
  %1910 = vmatprep.subr.mxu0 0.0
  %1911 = vmatpush2.msra.mxu0 0.0
  %1912 = vmatprep.mubr.f32.mxu0 0.0
  %1913 = vmatmul.mubr.f32.gmra.mxu0 %v1843
  %v1914 = vpop.f32.mrf.mxu0
  %v1915 = vadd.f32 0.0, %v1914
  %v1916 = vpop.f32.mrf.mxu0
  %1917 = vmatprep.mubr.f32.mxu0 0.0
  %1918 = vmatmul.mubr.f32.gmra.mxu0 %v1846
  %v1919 = vpop.f32.mrf.mxu0
  %v1920 = vadd.f32 0.0, %v1919
  %v1921 = vpop.f32.mrf.mxu0
  %1922 = vdwg.mxu0
  %v1924 = vsel %vm227, %v1744, 0
  %v1927 = vsel %vm227, %v1745, 0
  %1929 = vmatprep.subr.mxu0 0.0
  %1930 = vmatpush1.msra.mxu0 0.0
  %1931 = vmatprep.subr.mxu0 0.0
  %1932 = vmatpush1.msra.mxu0 0.0
  %1933 = vmatprep.subr.mxu0 0.0
  %1934 = vmatpush1.msra.mxu0 0.0
  %1935 = vmatprep.subr.mxu0 0.0
  %1936 = vmatpush1.msra.mxu0 0.0
  %1937 = vmatprep.subr.mxu0 0.0
  %1938 = vmatpush1.msra.mxu0 0.0
  %1939 = vmatprep.subr.mxu0 0.0
  %1940 = vmatpush1.msra.mxu0 0.0
  %1941 = vmatprep.subr.mxu0 0.0
  %1942 = vmatpush1.msra.mxu0 0.0
  %1943 = vmatprep.subr.mxu0 0.0
  %1944 = vmatpush1.msra.mxu0 0.0
  %1945 = vmatprep.subr.mxu0 0.0
  %1946 = vmatpush1.msra.mxu0 0.0
  %1947 = vmatprep.subr.mxu0 0.0
  %1948 = vmatpush1.msra.mxu0 0.0
  %1949 = vmatprep.subr.mxu0 0.0
  %1950 = vmatpush1.msra.mxu0 0.0
  %1951 = vmatprep.subr.mxu0 0.0
  %1952 = vmatpush1.msra.mxu0 0.0
  %1953 = vmatprep.subr.mxu0 0.0
  %1954 = vmatpush1.msra.mxu0 0.0
  %1955 = vmatprep.subr.mxu0 0.0
  %1956 = vmatpush1.msra.mxu0 0.0
  %1957 = vmatprep.subr.mxu0 0.0
  %1958 = vmatpush1.msra.mxu0 %v1839
  %1959 = vmatprep.subr.mxu0 0.0
  %1960 = vmatpush1.msra.mxu0 %v1834
  %1961 = vmatprep.subr.mxu0 0.0
  %1962 = vmatpush2.msra.mxu0 0.0
  %1963 = vmatprep.subr.mxu0 0.0
  %1964 = vmatpush2.msra.mxu0 0.0
  %1965 = vmatprep.subr.mxu0 0.0
  %1966 = vmatpush2.msra.mxu0 0.0
  %1967 = vmatprep.subr.mxu0 0.0
  %1968 = vmatpush2.msra.mxu0 0.0
  %1969 = vmatprep.subr.mxu0 0.0
  %1970 = vmatpush2.msra.mxu0 0.0
  %1971 = vmatprep.subr.mxu0 0.0
  %1972 = vmatpush2.msra.mxu0 0.0
  %1973 = vmatprep.subr.mxu0 0.0
  %1974 = vmatpush2.msra.mxu0 0.0
  %1975 = vmatprep.subr.mxu0 0.0
  %1976 = vmatpush2.msra.mxu0 0.0
  %1977 = vmatprep.subr.mxu0 0.0
  %1978 = vmatpush2.msra.mxu0 0.0
  %1979 = vmatprep.subr.mxu0 0.0
  %1980 = vmatpush2.msra.mxu0 0.0
  %1981 = vmatprep.subr.mxu0 0.0
  %1982 = vmatpush2.msra.mxu0 0.0
  %1983 = vmatprep.subr.mxu0 0.0
  %1984 = vmatpush2.msra.mxu0 0.0
  %1985 = vmatprep.subr.mxu0 0.0
  %1986 = vmatpush2.msra.mxu0 0.0
  %1987 = vmatprep.subr.mxu0 0.0
  %1988 = vmatpush2.msra.mxu0 0.0
  %1989 = vmatprep.subr.mxu0 0.0
  %1990 = vmatpush2.msra.mxu0 0.0
  %1991 = vmatprep.subr.mxu0 0.0
  %1992 = vmatpush2.msra.mxu0 0.0
  %1993 = vmatprep.mubr.f32.mxu0 0.0
  %1994 = vmatmul.mubr.f32.gmra.mxu0 %v1924
  %v1995 = vpop.f32.mrf.mxu0
  %v1996 = vadd.f32 %v1915, %v1995
  %v1997 = vpop.f32.mrf.mxu0
  %1998 = vmatprep.mubr.f32.mxu0 0.0
  %1999 = vmatmul.mubr.f32.gmra.mxu0 %v1927
  %v2000 = vpop.f32.mrf.mxu0
  %v2001 = vadd.f32 %v1920, %v2000
  %v2002 = vpop.f32.mrf.mxu0
  %2003 = vdwg.mxu0
  %2005 = vset.pattern.permute.xlu0 0
  %2006 = vperm.xlu0 %2005, %v1750
  %v2007 = vpop.permute.xlu0 %2006
  %2010 = vset.pattern.permute.xlu0 0
  %2011 = vperm.xlu0 %2010, %v1751
  %v2012 = vpop.permute.xlu0 %2011
  %v2014 = vadd.f32 %v1996, %v2007
  %v2015 = vadd.f32 %v2001, %v2012
  %v2016 = vmax.f32 %v2014, 0.0
  %v2017 = vmax.f32 %v2015, 0.0
  %v2019 = vsel %vm145, %v2016, 0
  %v2022 = vsel %vm145, %v2017, 0
  %2024 = vmatprep.subr.mxu0 0.0
  %2025 = vmatpush1.msra.mxu0 0.0
  %2026 = vmatprep.subr.mxu0 0.0
  %2027 = vmatpush1.msra.mxu0 0.0
  %2028 = vmatprep.subr.mxu0 0.0
  %2029 = vmatpush1.msra.mxu0 0.0
  %2030 = vmatprep.subr.mxu0 0.0
  %2031 = vmatpush1.msra.mxu0 0.0
  %2032 = vmatprep.subr.mxu0 0.0
  %2033 = vmatpush1.msra.mxu0 0.0
  %2034 = vmatprep.subr.mxu0 0.0
  %2035 = vmatpush1.msra.mxu0 0.0
  %2036 = vmatprep.subr.mxu0 0.0
  %2037 = vmatpush1.msra.mxu0 0.0
  %2038 = vmatprep.subr.mxu0 0.0
  %2039 = vmatpush1.msra.mxu0 0.0
  %2040 = vmatprep.subr.mxu0 0.0
  %2041 = vmatpush1.msra.mxu0 0.0
  %2042 = vmatprep.subr.mxu0 0.0
  %2043 = vmatpush1.msra.mxu0 0.0
  %2044 = vmatprep.subr.mxu0 0.0
  %2045 = vmatpush1.msra.mxu0 0.0
  %2046 = vmatprep.subr.mxu0 0.0
  %2047 = vmatpush1.msra.mxu0 0.0
  %2048 = vmatprep.subr.mxu0 0.0
  %2049 = vmatpush1.msra.mxu0 0.0
  %2050 = vmatprep.subr.mxu0 0.0
  %2051 = vmatpush1.msra.mxu0 0.0
  %2052 = vmatprep.subr.mxu0 0.0
  %2053 = vmatpush1.msra.mxu0 0.0
  %2054 = vmatprep.subr.mxu0 0.0
  %2055 = vmatpush1.msra.mxu0 %v1742
  %2056 = vmatprep.subr.mxu0 0.0
  %2057 = vmatpush2.msra.mxu0 0.0
  %2058 = vmatprep.subr.mxu0 0.0
  %2059 = vmatpush2.msra.mxu0 0.0
  %2060 = vmatprep.subr.mxu0 0.0
  %2061 = vmatpush2.msra.mxu0 0.0
  %2062 = vmatprep.subr.mxu0 0.0
  %2063 = vmatpush2.msra.mxu0 0.0
  %2064 = vmatprep.subr.mxu0 0.0
  %2065 = vmatpush2.msra.mxu0 0.0
  %2066 = vmatprep.subr.mxu0 0.0
  %2067 = vmatpush2.msra.mxu0 0.0
  %2068 = vmatprep.subr.mxu0 0.0
  %2069 = vmatpush2.msra.mxu0 0.0
  %2070 = vmatprep.subr.mxu0 0.0
  %2071 = vmatpush2.msra.mxu0 0.0
  %2072 = vmatprep.subr.mxu0 0.0
  %2073 = vmatpush2.msra.mxu0 0.0
  %2074 = vmatprep.subr.mxu0 0.0
  %2075 = vmatpush2.msra.mxu0 0.0
  %2076 = vmatprep.subr.mxu0 0.0
  %2077 = vmatpush2.msra.mxu0 0.0
  %2078 = vmatprep.subr.mxu0 0.0
  %2079 = vmatpush2.msra.mxu0 0.0
  %2080 = vmatprep.subr.mxu0 0.0
  %2081 = vmatpush2.msra.mxu0 0.0
  %2082 = vmatprep.subr.mxu0 0.0
  %2083 = vmatpush2.msra.mxu0 0.0
  %2084 = vmatprep.subr.mxu0 0.0
  %2085 = vmatpush2.msra.mxu0 0.0
  %2086 = vmatprep.subr.mxu0 0.0
  %2087 = vmatpush2.msra.mxu0 0.0
  %2088 = vmatprep.mubr.f32.mxu0 0.0
  %2089 = vmatmul.mubr.f32.gmra.mxu0 %v2019
  %v2090 = vpop.f32.mrf.mxu0
  %v2091 = vadd.f32 0.0, %v2090
  %v2092 = vpop.f32.mrf.mxu0
  %2093 = vmatprep.mubr.f32.mxu0 0.0
  %2094 = vmatmul.mubr.f32.gmra.mxu0 %v2022
  %v2095 = vpop.f32.mrf.mxu0
  %v2096 = vadd.f32 0.0, %v2095
  %v2097 = vpop.f32.mrf.mxu0
  %2098 = vdwg.mxu0
  %v2100 = vsel %vm227, %v1756, 0
  %v2103 = vsel %vm227, %v1757, 0
  %2105 = vmatprep.subr.mxu0 0.0
  %2106 = vmatpush1.msra.mxu0 0.0
  %2107 = vmatprep.subr.mxu0 0.0
  %2108 = vmatpush1.msra.mxu0 0.0
  %2109 = vmatprep.subr.mxu0 0.0
  %2110 = vmatpush1.msra.mxu0 0.0
  %2111 = vmatprep.subr.mxu0 0.0
  %2112 = vmatpush1.msra.mxu0 0.0
  %2113 = vmatprep.subr.mxu0 0.0
  %2114 = vmatpush1.msra.mxu0 0.0
  %2115 = vmatprep.subr.mxu0 0.0
  %2116 = vmatpush1.msra.mxu0 0.0
  %2117 = vmatprep.subr.mxu0 0.0
  %2118 = vmatpush1.msra.mxu0 0.0
  %2119 = vmatprep.subr.mxu0 0.0
  %2120 = vmatpush1.msra.mxu0 0.0
  %2121 = vmatprep.subr.mxu0 0.0
  %2122 = vmatpush1.msra.mxu0 0.0
  %2123 = vmatprep.subr.mxu0 0.0
  %2124 = vmatpush1.msra.mxu0 0.0
  %2125 = vmatprep.subr.mxu0 0.0
  %2126 = vmatpush1.msra.mxu0 0.0
  %2127 = vmatprep.subr.mxu0 0.0
  %2128 = vmatpush1.msra.mxu0 0.0
  %2129 = vmatprep.subr.mxu0 0.0
  %2130 = vmatpush1.msra.mxu0 0.0
  %2131 = vmatprep.subr.mxu0 0.0
  %2132 = vmatpush1.msra.mxu0 0.0
  %2133 = vmatprep.subr.mxu0 0.0
  %2134 = vmatpush1.msra.mxu0 %v2017
  %2135 = vmatprep.subr.mxu0 0.0
  %2136 = vmatpush1.msra.mxu0 %v2016
  %2137 = vmatprep.subr.mxu0 0.0
  %2138 = vmatpush2.msra.mxu0 0.0
  %2139 = vmatprep.subr.mxu0 0.0
  %2140 = vmatpush2.msra.mxu0 0.0
  %2141 = vmatprep.subr.mxu0 0.0
  %2142 = vmatpush2.msra.mxu0 0.0
  %2143 = vmatprep.subr.mxu0 0.0
  %2144 = vmatpush2.msra.mxu0 0.0
  %2145 = vmatprep.subr.mxu0 0.0
  %2146 = vmatpush2.msra.mxu0 0.0
  %2147 = vmatprep.subr.mxu0 0.0
  %2148 = vmatpush2.msra.mxu0 0.0
  %2149 = vmatprep.subr.mxu0 0.0
  %2150 = vmatpush2.msra.mxu0 0.0
  %2151 = vmatprep.subr.mxu0 0.0
  %2152 = vmatpush2.msra.mxu0 0.0
  %2153 = vmatprep.subr.mxu0 0.0
  %2154 = vmatpush2.msra.mxu0 0.0
  %2155 = vmatprep.subr.mxu0 0.0
  %2156 = vmatpush2.msra.mxu0 0.0
  %2157 = vmatprep.subr.mxu0 0.0
  %2158 = vmatpush2.msra.mxu0 0.0
  %2159 = vmatprep.subr.mxu0 0.0
  %2160 = vmatpush2.msra.mxu0 0.0
  %2161 = vmatprep.subr.mxu0 0.0
  %2162 = vmatpush2.msra.mxu0 0.0
  %2163 = vmatprep.subr.mxu0 0.0
  %2164 = vmatpush2.msra.mxu0 0.0
  %2165 = vmatprep.subr.mxu0 0.0
  %2166 = vmatpush2.msra.mxu0 0.0
  %2167 = vmatprep.subr.mxu0 0.0
  %2168 = vmatpush2.msra.mxu0 0.0
  %2169 = vmatprep.mubr.f32.mxu0 0.0
  %2170 = vmatmul.mubr.f32.gmra.mxu0 %v2100
  %v2171 = vpop.f32.mrf.mxu0
  %v2172 = vadd.f32 0.0, %v2171
  %v2173 = vpop.f32.mrf.mxu0
  %2174 = vmatprep.mubr.f32.mxu0 0.0
  %2175 = vmatmul.mubr.f32.gmra.mxu0 %v2103
  %v2176 = vpop.f32.mrf.mxu0
  %v2177 = vadd.f32 0.0, %v2176
  %v2178 = vpop.f32.mrf.mxu0
  %2179 = vdwg.mxu0
  %v2181 = vsel %vm227, %v1753, 0
  %v2184 = vsel %vm227, %v1754, 0
  %2186 = vmatprep.subr.mxu0 0.0
  %2187 = vmatpush1.msra.mxu0 0.0
  %2188 = vmatprep.subr.mxu0 0.0
  %2189 = vmatpush1.msra.mxu0 0.0
  %2190 = vmatprep.subr.mxu0 0.0
  %2191 = vmatpush1.msra.mxu0 0.0
  %2192 = vmatprep.subr.mxu0 0.0
  %2193 = vmatpush1.msra.mxu0 0.0
  %2194 = vmatprep.subr.mxu0 0.0
  %2195 = vmatpush1.msra.mxu0 0.0
  %2196 = vmatprep.subr.mxu0 0.0
  %2197 = vmatpush1.msra.mxu0 0.0
  %2198 = vmatprep.subr.mxu0 0.0
  %2199 = vmatpush1.msra.mxu0 0.0
  %2200 = vmatprep.subr.mxu0 0.0
  %2201 = vmatpush1.msra.mxu0 0.0
  %2202 = vmatprep.subr.mxu0 0.0
  %2203 = vmatpush1.msra.mxu0 0.0
  %2204 = vmatprep.subr.mxu0 0.0
  %2205 = vmatpush1.msra.mxu0 0.0
  %2206 = vmatprep.subr.mxu0 0.0
  %2207 = vmatpush1.msra.mxu0 0.0
  %2208 = vmatprep.subr.mxu0 0.0
  %2209 = vmatpush1.msra.mxu0 0.0
  %2210 = vmatprep.subr.mxu0 0.0
  %2211 = vmatpush1.msra.mxu0 0.0
  %2212 = vmatprep.subr.mxu0 0.0
  %2213 = vmatpush1.msra.mxu0 0.0
  %2214 = vmatprep.subr.mxu0 0.0
  %2215 = vmatpush1.msra.mxu0 %v2096
  %2216 = vmatprep.subr.mxu0 0.0
  %2217 = vmatpush1.msra.mxu0 %v2091
  %2218 = vmatprep.subr.mxu0 0.0
  %2219 = vmatpush2.msra.mxu0 0.0
  %2220 = vmatprep.subr.mxu0 0.0
  %2221 = vmatpush2.msra.mxu0 0.0
  %2222 = vmatprep.subr.mxu0 0.0
  %2223 = vmatpush2.msra.mxu0 0.0
  %2224 = vmatprep.subr.mxu0 0.0
  %2225 = vmatpush2.msra.mxu0 0.0
  %2226 = vmatprep.subr.mxu0 0.0
  %2227 = vmatpush2.msra.mxu0 0.0
  %2228 = vmatprep.subr.mxu0 0.0
  %2229 = vmatpush2.msra.mxu0 0.0
  %2230 = vmatprep.subr.mxu0 0.0
  %2231 = vmatpush2.msra.mxu0 0.0
  %2232 = vmatprep.subr.mxu0 0.0
  %2233 = vmatpush2.msra.mxu0 0.0
  %2234 = vmatprep.subr.mxu0 0.0
  %2235 = vmatpush2.msra.mxu0 0.0
  %2236 = vmatprep.subr.mxu0 0.0
  %2237 = vmatpush2.msra.mxu0 0.0
  %2238 = vmatprep.subr.mxu0 0.0
  %2239 = vmatpush2.msra.mxu0 0.0
  %2240 = vmatprep.subr.mxu0 0.0
  %2241 = vmatpush2.msra.mxu0 0.0
  %2242 = vmatprep.subr.mxu0 0.0
  %2243 = vmatpush2.msra.mxu0 0.0
  %2244 = vmatprep.subr.mxu0 0.0
  %2245 = vmatpush2.msra.mxu0 0.0
  %2246 = vmatprep.subr.mxu0 0.0
  %2247 = vmatpush2.msra.mxu0 0.0
  %2248 = vmatprep.subr.mxu0 0.0
  %2249 = vmatpush2.msra.mxu0 0.0
  %2250 = vmatprep.mubr.f32.mxu0 0.0
  %2251 = vmatmul.mubr.f32.gmra.mxu0 %v2181
  %v2252 = vpop.f32.mrf.mxu0
  %v2253 = vadd.f32 %v2172, %v2252
  %v2254 = vpop.f32.mrf.mxu0
  %2255 = vmatprep.mubr.f32.mxu0 0.0
  %2256 = vmatmul.mubr.f32.gmra.mxu0 %v2184
  %v2257 = vpop.f32.mrf.mxu0
  %v2258 = vadd.f32 %v2177, %v2257
  %v2259 = vpop.f32.mrf.mxu0
  %2260 = vdwg.mxu0
  %2262 = vset.pattern.permute.xlu0 0
  %2263 = vperm.xlu0 %2262, %v1759
  %v2264 = vpop.permute.xlu0 %2263
  %2267 = vset.pattern.permute.xlu0 0
  %2268 = vperm.xlu0 %2267, %v1760
  %v2269 = vpop.permute.xlu0 %2268
  %v2271 = vadd.f32 %v2253, %v2264
  %v2272 = vadd.f32 %v2258, %v2269
  %v2273 = vmax.f32 %v2271, 0.0
  %v2274 = vmax.f32 %v2272, 0.0
  %v2275 = vadd.f32 %v2273, %v1739
  %v2276 = vadd.f32 %v2274, %v1740
  %v2277 = vmax.f32 %v2275, 0.0
  %v2278 = vmax.f32 %v2276, 0.0
  %v2279 = vadd.f32 %v2277, %v130
  %v2280 = vadd.f32 %v2278, %v131
  %v2281 = vlaneseq
  %v2282 = vshrl.u32 %v2281, 7
  %v2283 = vsub.s32 0, %v2282
  %v2284 = vrot.slane %v130, %v2283
  %2286 = vbcast.lane.b32.xlu0 %v2284, 256
  %v2287 = vpop.permute.xlu0 %2286
  %v2288 = vlaneseq
  %v2289 = vshrl.u32 %v2288, 7
  %v2290 = vsub.s32 1, %v2289
  %v2291 = vrot.slane %v130, %v2290
  %2293 = vbcast.lane.b32.xlu0 %v2291, 256
  %v2294 = vpop.permute.xlu0 %2293
  %v2295 = vlaneseq
  %v2296 = vshrl.u32 %v2295, 7
  %v2297 = vsub.s32 2, %v2296
  %v2298 = vrot.slane %v130, %v2297
  %2300 = vbcast.lane.b32.xlu0 %v2298, 256
  %v2301 = vpop.permute.xlu0 %2300
  %v2302 = vlaneseq
  %v2303 = vshrl.u32 %v2302, 7
  %v2304 = vsub.s32 3, %v2303
  %v2305 = vrot.slane %v130, %v2304
  %2307 = vbcast.lane.b32.xlu0 %v2305, 256
  %v2308 = vpop.permute.xlu0 %2307
  %v2309 = vlaneseq
  %v2310 = vshrl.u32 %v2309, 7
  %v2311 = vsub.s32 4, %v2310
  %v2312 = vrot.slane %v130, %v2311
  %2314 = vbcast.lane.b32.xlu0 %v2312, 256
  %v2315 = vpop.permute.xlu0 %2314
  %v2316 = vlaneseq
  %v2317 = vshrl.u32 %v2316, 7
  %v2318 = vsub.s32 5, %v2317
  %v2319 = vrot.slane %v130, %v2318
  %2321 = vbcast.lane.b32.xlu0 %v2319, 256
  %v2322 = vpop.permute.xlu0 %2321
  %v2323 = vlaneseq
  %v2324 = vshrl.u32 %v2323, 7
  %v2325 = vsub.s32 6, %v2324
  %v2326 = vrot.slane %v130, %v2325
  %2328 = vbcast.lane.b32.xlu0 %v2326, 256
  %v2329 = vpop.permute.xlu0 %2328
  %v2330 = vlaneseq
  %v2331 = vshrl.u32 %v2330, 7
  %v2332 = vsub.s32 7, %v2331
  %v2333 = vrot.slane %v130, %v2332
  %2335 = vbcast.lane.b32.xlu0 %v2333, 256
  %v2336 = vpop.permute.xlu0 %2335
  %v2337 = vlaneseq
  %v2338 = vshrl.u32 %v2337, 7
  %v2339 = vsub.s32 0, %v2338
  %v2340 = vrot.slane %v131, %v2339
  %2342 = vbcast.lane.b32.xlu0 %v2340, 256
  %v2343 = vpop.permute.xlu0 %2342
  %v2344 = vlaneseq
  %v2345 = vshrl.u32 %v2344, 7
  %v2346 = vsub.s32 1, %v2345
  %v2347 = vrot.slane %v131, %v2346
  %2349 = vbcast.lane.b32.xlu0 %v2347, 256
  %v2350 = vpop.permute.xlu0 %2349
  %v2351 = vlaneseq
  %v2352 = vshrl.u32 %v2351, 7
  %v2353 = vsub.s32 2, %v2352
  %v2354 = vrot.slane %v131, %v2353
  %2356 = vbcast.lane.b32.xlu0 %v2354, 256
  %v2357 = vpop.permute.xlu0 %2356
  %v2358 = vlaneseq
  %v2359 = vshrl.u32 %v2358, 7
  %v2360 = vsub.s32 3, %v2359
  %v2361 = vrot.slane %v131, %v2360
  %2363 = vbcast.lane.b32.xlu0 %v2361, 256
  %v2364 = vpop.permute.xlu0 %2363
  %v2365 = vlaneseq
  %v2366 = vshrl.u32 %v2365, 7
  %v2367 = vsub.s32 4, %v2366
  %v2368 = vrot.slane %v131, %v2367
  %2370 = vbcast.lane.b32.xlu0 %v2368, 256
  %v2371 = vpop.permute.xlu0 %2370
  %v2372 = vlaneseq
  %v2373 = vshrl.u32 %v2372, 7
  %v2374 = vsub.s32 5, %v2373
  %v2375 = vrot.slane %v131, %v2374
  %2377 = vbcast.lane.b32.xlu0 %v2375, 256
  %v2378 = vpop.permute.xlu0 %2377
  %v2379 = vlaneseq
  %v2380 = vshrl.u32 %v2379, 7
  %v2381 = vsub.s32 6, %v2380
  %v2382 = vrot.slane %v131, %v2381
  %2384 = vbcast.lane.b32.xlu0 %v2382, 256
  %v2385 = vpop.permute.xlu0 %2384
  %v2386 = vlaneseq
  %v2387 = vshrl.u32 %v2386, 7
  %v2388 = vsub.s32 7, %v2387
  %v2389 = vrot.slane %v131, %v2388
  %2391 = vbcast.lane.b32.xlu0 %v2389, 256
  %v2392 = vpop.permute.xlu0 %2391
  %v2393 = vmul.f32 %v72, %v2287
  %v2394 = vmul.f32 %v73, %v2294
  %v2395 = vmul.f32 %v74, %v2301
  %v2396 = vmul.f32 %v75, %v2308
  %v2397 = vmul.f32 %v76, %v2315
  %v2398 = vmul.f32 %v77, %v2322
  %v2399 = vmul.f32 %v78, %v2329
  %v2400 = vmul.f32 %v79, %v2336
  %v2401 = vmul.f32 %v80, %v2343
  %v2402 = vmul.f32 %v81, %v2350
  %v2403 = vmul.f32 %v82, %v2357
  %v2404 = vmul.f32 %v83, %v2364
  %v2405 = vmul.f32 %v84, %v2371
  %v2406 = vmul.f32 %v85, %v2378
  %v2407 = vmul.f32 %v86, %v2385
  %v2408 = vmul.f32 %v87, %v2392
  %v2409 = vsel %vm145, %v2393, 0.0
  %v2410 = vrot.slane %v2409, 4
  %v2411 = vadd.f32 %v2409, %v2410
  %v2412 = vrot.slane %v2411, 2
  %v2413 = vadd.f32 %v2411, %v2412
  %v2414 = vrot.slane %v2413, 1
  %v2415 = vadd.f32 %v2413, %v2414
  %v2416 = vsel %vm145, %v2394, 0.0
  %v2417 = vrot.slane %v2416, 4
  %v2418 = vadd.f32 %v2416, %v2417
  %v2419 = vrot.slane %v2418, 2
  %v2420 = vadd.f32 %v2418, %v2419
  %v2421 = vrot.slane %v2420, 1
  %v2422 = vadd.f32 %v2420, %v2421
  %v2423 = vsel %vm145, %v2395, 0.0
  %v2424 = vrot.slane %v2423, 4
  %v2425 = vadd.f32 %v2423, %v2424
  %v2426 = vrot.slane %v2425, 2
  %v2427 = vadd.f32 %v2425, %v2426
  %v2428 = vrot.slane %v2427, 1
  %v2429 = vadd.f32 %v2427, %v2428
  %v2430 = vsel %vm145, %v2396, 0.0
  %v2431 = vrot.slane %v2430, 4
  %v2432 = vadd.f32 %v2430, %v2431
  %v2433 = vrot.slane %v2432, 2
  %v2434 = vadd.f32 %v2432, %v2433
  %v2435 = vrot.slane %v2434, 1
  %v2436 = vadd.f32 %v2434, %v2435
  %v2437 = vsel %vm145, %v2397, 0.0
  %v2438 = vrot.slane %v2437, 4
  %v2439 = vadd.f32 %v2437, %v2438
  %v2440 = vrot.slane %v2439, 2
  %v2441 = vadd.f32 %v2439, %v2440
  %v2442 = vrot.slane %v2441, 1
  %v2443 = vadd.f32 %v2441, %v2442
  %v2444 = vsel %vm145, %v2398, 0.0
  %v2445 = vrot.slane %v2444, 4
  %v2446 = vadd.f32 %v2444, %v2445
  %v2447 = vrot.slane %v2446, 2
  %v2448 = vadd.f32 %v2446, %v2447
  %v2449 = vrot.slane %v2448, 1
  %v2450 = vadd.f32 %v2448, %v2449
  %v2451 = vsel %vm145, %v2399, 0.0
  %v2452 = vrot.slane %v2451, 4
  %v2453 = vadd.f32 %v2451, %v2452
  %v2454 = vrot.slane %v2453, 2
  %v2455 = vadd.f32 %v2453, %v2454
  %v2456 = vrot.slane %v2455, 1
  %v2457 = vadd.f32 %v2455, %v2456
  %v2458 = vsel %vm145, %v2400, 0.0
  %v2459 = vrot.slane %v2458, 4
  %v2460 = vadd.f32 %v2458, %v2459
  %v2461 = vrot.slane %v2460, 2
  %v2462 = vadd.f32 %v2460, %v2461
  %v2463 = vrot.slane %v2462, 1
  %v2464 = vadd.f32 %v2462, %v2463
  %v2465 = vsel %vm145, %v2401, 0.0
  %v2466 = vrot.slane %v2465, 4
  %v2467 = vadd.f32 %v2465, %v2466
  %v2468 = vrot.slane %v2467, 2
  %v2469 = vadd.f32 %v2467, %v2468
  %v2470 = vrot.slane %v2469, 1
  %v2471 = vadd.f32 %v2469, %v2470
  %v2472 = vsel %vm145, %v2402, 0.0
  %v2473 = vrot.slane %v2472, 4
  %v2474 = vadd.f32 %v2472, %v2473
  %v2475 = vrot.slane %v2474, 2
  %v2476 = vadd.f32 %v2474, %v2475
  %v2477 = vrot.slane %v2476, 1
  %v2478 = vadd.f32 %v2476, %v2477
  %v2479 = vsel %vm145, %v2403, 0.0
  %v2480 = vrot.slane %v2479, 4
  %v2481 = vadd.f32 %v2479, %v2480
  %v2482 = vrot.slane %v2481, 2
  %v2483 = vadd.f32 %v2481, %v2482
  %v2484 = vrot.slane %v2483, 1
  %v2485 = vadd.f32 %v2483, %v2484
  %v2486 = vsel %vm145, %v2404, 0.0
  %v2487 = vrot.slane %v2486, 4
  %v2488 = vadd.f32 %v2486, %v2487
  %v2489 = vrot.slane %v2488, 2
  %v2490 = vadd.f32 %v2488, %v2489
  %v2491 = vrot.slane %v2490, 1
  %v2492 = vadd.f32 %v2490, %v2491
  %v2493 = vsel %vm145, %v2405, 0.0
  %v2494 = vrot.slane %v2493, 4
  %v2495 = vadd.f32 %v2493, %v2494
  %v2496 = vrot.slane %v2495, 2
  %v2497 = vadd.f32 %v2495, %v2496
  %v2498 = vrot.slane %v2497, 1
  %v2499 = vadd.f32 %v2497, %v2498
  %v2500 = vsel %vm145, %v2406, 0.0
  %v2501 = vrot.slane %v2500, 4
  %v2502 = vadd.f32 %v2500, %v2501
  %v2503 = vrot.slane %v2502, 2
  %v2504 = vadd.f32 %v2502, %v2503
  %v2505 = vrot.slane %v2504, 1
  %v2506 = vadd.f32 %v2504, %v2505
  %v2507 = vsel %vm145, %v2407, 0.0
  %v2508 = vrot.slane %v2507, 4
  %v2509 = vadd.f32 %v2507, %v2508
  %v2510 = vrot.slane %v2509, 2
  %v2511 = vadd.f32 %v2509, %v2510
  %v2512 = vrot.slane %v2511, 1
  %v2513 = vadd.f32 %v2511, %v2512
  %v2514 = vsel %vm145, %v2408, 0.0
  %v2515 = vrot.slane %v2514, 4
  %v2516 = vadd.f32 %v2514, %v2515
  %v2517 = vrot.slane %v2516, 2
  %v2518 = vadd.f32 %v2516, %v2517
  %v2519 = vrot.slane %v2518, 1
  %v2520 = vadd.f32 %v2518, %v2519
  %vm2537 = vcmask 1041409
  %v2538 = vsel %vm2537, %v2422, %v2415
  %vm2539 = vcmask 1042434
  %v2540 = vsel %vm2539, %v2429, %v2538
  %vm2541 = vcmask 1043459
  %v2542 = vsel %vm2541, %v2436, %v2540
  %vm2543 = vcmask 1044484
  %v2544 = vsel %vm2543, %v2443, %v2542
  %vm2545 = vcmask 1045509
  %v2546 = vsel %vm2545, %v2450, %v2544
  %vm2547 = vcmask 1046534
  %v2548 = vsel %vm2547, %v2457, %v2546
  %vm2549 = vcmask 1047559
  %v2550 = vsel %vm2549, %v2464, %v2548
  %v2551 = vsel %vm2537, %v2478, %v2471
  %v2552 = vsel %vm2539, %v2485, %v2551
  %v2553 = vsel %vm2541, %v2492, %v2552
  %v2554 = vsel %vm2543, %v2499, %v2553
  %v2555 = vsel %vm2545, %v2506, %v2554
  %v2556 = vsel %vm2547, %v2513, %v2555
  %v2557 = vsel %vm2549, %v2520, %v2556
  %v2560 = vmul.f32 %v88, %v2550
  %v2561 = vmul.f32 %v89, %v2557
  %v2562 = vmul.f32 %v90, %v2550
  %v2563 = vmul.f32 %v91, %v2557
  %v2564 = vmul.f32 %v92, %v2550
  %v2565 = vmul.f32 %v93, %v2557
  %v2566 = vmul.f32 %v94, %v2550
  %v2567 = vmul.f32 %v95, %v2557
  %v2568 = vmul.f32 %v96, %v2550
  %v2569 = vmul.f32 %v97, %v2557
  %v2570 = vmul.f32 %v98, %v2550
  %v2571 = vmul.f32 %v99, %v2557
  %v2572 = vmul.f32 %v100, %v2550
  %v2573 = vmul.f32 %v101, %v2557
  %v2574 = vmul.f32 %v102, %v2550
  %v2575 = vmul.f32 %v103, %v2557
  %v2576 = vmul.f32 %v104, %v2550
  %v2577 = vmul.f32 %v105, %v2557
  %v2578 = vmul.f32 %v106, %v2550
  %v2579 = vmul.f32 %v107, %v2557
  %v2580 = vmul.f32 %v108, %v2550
  %v2581 = vmul.f32 %v109, %v2557
  %v2582 = vmul.f32 %v110, %v2550
  %v2583 = vmul.f32 %v111, %v2557
  %v2584 = vmul.f32 %v112, %v2550
  %v2585 = vmul.f32 %v113, %v2557
  %v2586 = vmul.f32 %v114, %v2550
  %v2587 = vmul.f32 %v115, %v2557
  %v2588 = vmul.f32 %v116, %v2550
  %v2589 = vmul.f32 %v117, %v2557
  %v2590 = vmul.f32 %v118, %v2550
  %v2591 = vmul.f32 %v119, %v2557
  %v2592 = vsel %vm145, %v2560, 0.0
  %v2593 = vsel %vm145, %v2561, 0.0
  %v2594 = vadd.f32 %v2592, %v2593
  %v2595 = vrot.slane %v2594, 4
  %v2596 = vadd.f32 %v2594, %v2595
  %v2597 = vrot.slane %v2596, 2
  %v2598 = vadd.f32 %v2596, %v2597
  %v2599 = vrot.slane %v2598, 1
  %v2600 = vadd.f32 %v2598, %v2599
  %v2601 = vsel %vm145, %v2562, 0.0
  %v2602 = vsel %vm145, %v2563, 0.0
  %v2603 = vadd.f32 %v2601, %v2602
  %v2604 = vrot.slane %v2603, 4
  %v2605 = vadd.f32 %v2603, %v2604
  %v2606 = vrot.slane %v2605, 2
  %v2607 = vadd.f32 %v2605, %v2606
  %v2608 = vrot.slane %v2607, 1
  %v2609 = vadd.f32 %v2607, %v2608
  %v2610 = vsel %vm145, %v2564, 0.0
  %v2611 = vsel %vm145, %v2565, 0.0
  %v2612 = vadd.f32 %v2610, %v2611
  %v2613 = vrot.slane %v2612, 4
  %v2614 = vadd.f32 %v2612, %v2613
  %v2615 = vrot.slane %v2614, 2
  %v2616 = vadd.f32 %v2614, %v2615
  %v2617 = vrot.slane %v2616, 1
  %v2618 = vadd.f32 %v2616, %v2617
  %v2619 = vsel %vm145, %v2566, 0.0
  %v2620 = vsel %vm145, %v2567, 0.0
  %v2621 = vadd.f32 %v2619, %v2620
  %v2622 = vrot.slane %v2621, 4
  %v2623 = vadd.f32 %v2621, %v2622
  %v2624 = vrot.slane %v2623, 2
  %v2625 = vadd.f32 %v2623, %v2624
  %v2626 = vrot.slane %v2625, 1
  %v2627 = vadd.f32 %v2625, %v2626
  %v2628 = vsel %vm145, %v2568, 0.0
  %v2629 = vsel %vm145, %v2569, 0.0
  %v2630 = vadd.f32 %v2628, %v2629
  %v2631 = vrot.slane %v2630, 4
  %v2632 = vadd.f32 %v2630, %v2631
  %v2633 = vrot.slane %v2632, 2
  %v2634 = vadd.f32 %v2632, %v2633
  %v2635 = vrot.slane %v2634, 1
  %v2636 = vadd.f32 %v2634, %v2635
  %v2637 = vsel %vm145, %v2570, 0.0
  %v2638 = vsel %vm145, %v2571, 0.0
  %v2639 = vadd.f32 %v2637, %v2638
  %v2640 = vrot.slane %v2639, 4
  %v2641 = vadd.f32 %v2639, %v2640
  %v2642 = vrot.slane %v2641, 2
  %v2643 = vadd.f32 %v2641, %v2642
  %v2644 = vrot.slane %v2643, 1
  %v2645 = vadd.f32 %v2643, %v2644
  %v2646 = vsel %vm145, %v2572, 0.0
  %v2647 = vsel %vm145, %v2573, 0.0
  %v2648 = vadd.f32 %v2646, %v2647
  %v2649 = vrot.slane %v2648, 4
  %v2650 = vadd.f32 %v2648, %v2649
  %v2651 = vrot.slane %v2650, 2
  %v2652 = vadd.f32 %v2650, %v2651
  %v2653 = vrot.slane %v2652, 1
  %v2654 = vadd.f32 %v2652, %v2653
  %v2655 = vsel %vm145, %v2574, 0.0
  %v2656 = vsel %vm145, %v2575, 0.0
  %v2657 = vadd.f32 %v2655, %v2656
  %v2658 = vrot.slane %v2657, 4
  %v2659 = vadd.f32 %v2657, %v2658
  %v2660 = vrot.slane %v2659, 2
  %v2661 = vadd.f32 %v2659, %v2660
  %v2662 = vrot.slane %v2661, 1
  %v2663 = vadd.f32 %v2661, %v2662
  %v2664 = vsel %vm145, %v2576, 0.0
  %v2665 = vsel %vm145, %v2577, 0.0
  %v2666 = vadd.f32 %v2664, %v2665
  %v2667 = vrot.slane %v2666, 4
  %v2668 = vadd.f32 %v2666, %v2667
  %v2669 = vrot.slane %v2668, 2
  %v2670 = vadd.f32 %v2668, %v2669
  %v2671 = vrot.slane %v2670, 1
  %v2672 = vadd.f32 %v2670, %v2671
  %v2673 = vsel %vm145, %v2578, 0.0
  %v2674 = vsel %vm145, %v2579, 0.0
  %v2675 = vadd.f32 %v2673, %v2674
  %v2676 = vrot.slane %v2675, 4
  %v2677 = vadd.f32 %v2675, %v2676
  %v2678 = vrot.slane %v2677, 2
  %v2679 = vadd.f32 %v2677, %v2678
  %v2680 = vrot.slane %v2679, 1
  %v2681 = vadd.f32 %v2679, %v2680
  %v2682 = vsel %vm145, %v2580, 0.0
  %v2683 = vsel %vm145, %v2581, 0.0
  %v2684 = vadd.f32 %v2682, %v2683
  %v2685 = vrot.slane %v2684, 4
  %v2686 = vadd.f32 %v2684, %v2685
  %v2687 = vrot.slane %v2686, 2
  %v2688 = vadd.f32 %v2686, %v2687
  %v2689 = vrot.slane %v2688, 1
  %v2690 = vadd.f32 %v2688, %v2689
  %v2691 = vsel %vm145, %v2582, 0.0
  %v2692 = vsel %vm145, %v2583, 0.0
  %v2693 = vadd.f32 %v2691, %v2692
  %v2694 = vrot.slane %v2693, 4
  %v2695 = vadd.f32 %v2693, %v2694
  %v2696 = vrot.slane %v2695, 2
  %v2697 = vadd.f32 %v2695, %v2696
  %v2698 = vrot.slane %v2697, 1
  %v2699 = vadd.f32 %v2697, %v2698
  %v2700 = vsel %vm145, %v2584, 0.0
  %v2701 = vsel %vm145, %v2585, 0.0
  %v2702 = vadd.f32 %v2700, %v2701
  %v2703 = vrot.slane %v2702, 4
  %v2704 = vadd.f32 %v2702, %v2703
  %v2705 = vrot.slane %v2704, 2
  %v2706 = vadd.f32 %v2704, %v2705
  %v2707 = vrot.slane %v2706, 1
  %v2708 = vadd.f32 %v2706, %v2707
  %v2709 = vsel %vm145, %v2586, 0.0
  %v2710 = vsel %vm145, %v2587, 0.0
  %v2711 = vadd.f32 %v2709, %v2710
  %v2712 = vrot.slane %v2711, 4
  %v2713 = vadd.f32 %v2711, %v2712
  %v2714 = vrot.slane %v2713, 2
  %v2715 = vadd.f32 %v2713, %v2714
  %v2716 = vrot.slane %v2715, 1
  %v2717 = vadd.f32 %v2715, %v2716
  %v2718 = vsel %vm145, %v2588, 0.0
  %v2719 = vsel %vm145, %v2589, 0.0
  %v2720 = vadd.f32 %v2718, %v2719
  %v2721 = vrot.slane %v2720, 4
  %v2722 = vadd.f32 %v2720, %v2721
  %v2723 = vrot.slane %v2722, 2
  %v2724 = vadd.f32 %v2722, %v2723
  %v2725 = vrot.slane %v2724, 1
  %v2726 = vadd.f32 %v2724, %v2725
  %v2727 = vsel %vm145, %v2590, 0.0
  %v2728 = vsel %vm145, %v2591, 0.0
  %v2729 = vadd.f32 %v2727, %v2728
  %v2730 = vrot.slane %v2729, 4
  %v2731 = vadd.f32 %v2729, %v2730
  %v2732 = vrot.slane %v2731, 2
  %v2733 = vadd.f32 %v2731, %v2732
  %v2734 = vrot.slane %v2733, 1
  %v2735 = vadd.f32 %v2733, %v2734
  %v2736 = vrot.slane %v130, 1
  %v2737 = vrot.slane %v130, 2
  %v2738 = vrot.slane %v130, 3
  %v2739 = vrot.slane %v130, 4
  %v2740 = vrot.slane %v130, 5
  %v2741 = vrot.slane %v130, 6
  %v2742 = vrot.slane %v130, 7
  %v2743 = vrot.slane %v131, 1
  %v2744 = vrot.slane %v131, 2
  %v2745 = vrot.slane %v131, 3
  %v2746 = vrot.slane %v131, 4
  %v2747 = vrot.slane %v131, 5
  %v2748 = vrot.slane %v131, 6
  %v2749 = vrot.slane %v131, 7
  %v2766 = vadd.f32 %v2600, %v130
  %v2767 = vadd.f32 %v2609, %v2736
  %v2768 = vadd.f32 %v2618, %v2737
  %v2769 = vadd.f32 %v2627, %v2738
  %v2770 = vadd.f32 %v2636, %v2739
  %v2771 = vadd.f32 %v2645, %v2740
  %v2772 = vadd.f32 %v2654, %v2741
  %v2773 = vadd.f32 %v2663, %v2742
  %v2774 = vadd.f32 %v2672, %v131
  %v2775 = vadd.f32 %v2681, %v2743
  %v2776 = vadd.f32 %v2690, %v2744
  %v2777 = vadd.f32 %v2699, %v2745
  %v2778 = vadd.f32 %v2708, %v2746
  %v2779 = vadd.f32 %v2717, %v2747
  %v2780 = vadd.f32 %v2726, %v2748
  %v2781 = vadd.f32 %v2735, %v2749
  %vm2782 = vcmp.ge.f32.partialorder %v2766, 0.0
  %vm2783 = vcmp.ge.f32.partialorder %v2767, 0.0
  %vm2784 = vcmp.ge.f32.partialorder %v2768, 0.0
  %vm2785 = vcmp.ge.f32.partialorder %v2769, 0.0
  %vm2786 = vcmp.ge.f32.partialorder %v2770, 0.0
  %vm2787 = vcmp.ge.f32.partialorder %v2771, 0.0
  %vm2788 = vcmp.ge.f32.partialorder %v2772, 0.0
  %vm2789 = vcmp.ge.f32.partialorder %v2773, 0.0
  %vm2790 = vcmp.ge.f32.partialorder %v2774, 0.0
  %vm2791 = vcmp.ge.f32.partialorder %v2775, 0.0
  %vm2792 = vcmp.ge.f32.partialorder %v2776, 0.0
  %vm2793 = vcmp.ge.f32.partialorder %v2777, 0.0
  %vm2794 = vcmp.ge.f32.partialorder %v2778, 0.0
  %vm2795 = vcmp.ge.f32.partialorder %v2779, 0.0
  %vm2796 = vcmp.ge.f32.partialorder %v2780, 0.0
  %vm2797 = vcmp.ge.f32.partialorder %v2781, 0.0
  %v2798 = vstv %s71
  %v2799 = vmul.f32 %v2798, %v2766
  %v2800 = vmul.f32 %v2798, %v2767
  %v2801 = vmul.f32 %v2798, %v2768
  %v2802 = vmul.f32 %v2798, %v2769
  %v2803 = vmul.f32 %v2798, %v2770
  %v2804 = vmul.f32 %v2798, %v2771
  %v2805 = vmul.f32 %v2798, %v2772
  %v2806 = vmul.f32 %v2798, %v2773
  %v2807 = vmul.f32 %v2798, %v2774
  %v2808 = vmul.f32 %v2798, %v2775
  %v2809 = vmul.f32 %v2798, %v2776
  %v2810 = vmul.f32 %v2798, %v2777
  %v2811 = vmul.f32 %v2798, %v2778
  %v2812 = vmul.f32 %v2798, %v2779
  %v2813 = vmul.f32 %v2798, %v2780
  %v2814 = vmul.f32 %v2798, %v2781
  %v2815 = vsel %vm2782, %v2766, %v2799
  %v2816 = vsel %vm2783, %v2767, %v2800
  %v2817 = vsel %vm2784, %v2768, %v2801
  %v2818 = vsel %vm2785, %v2769, %v2802
  %v2819 = vsel %vm2786, %v2770, %v2803
  %v2820 = vsel %vm2787, %v2771, %v2804
  %v2821 = vsel %vm2788, %v2772, %v2805
  %v2822 = vsel %vm2789, %v2773, %v2806
  %v2823 = vsel %vm2790, %v2774, %v2807
  %v2824 = vsel %vm2791, %v2775, %v2808
  %v2825 = vsel %vm2792, %v2776, %v2809
  %v2826 = vsel %vm2793, %v2777, %v2810
  %v2827 = vsel %vm2794, %v2778, %v2811
  %v2828 = vsel %vm2795, %v2779, %v2812
  %v2829 = vsel %vm2796, %v2780, %v2813
  %v2830 = vsel %vm2797, %v2781, %v2814
  %v2832 = vsel %vm145, %v2279, 0
  %v2835 = vsel %vm145, %v2280, 0
  %2837 = vmatprep.subr.mxu0 0.0
  %2838 = vmatpush1.msra.mxu0 0.0
  %2839 = vmatprep.subr.mxu0 0.0
  %2840 = vmatpush1.msra.mxu0 0.0
  %2841 = vmatprep.subr.mxu0 0.0
  %2842 = vmatpush1.msra.mxu0 0.0
  %2843 = vmatprep.subr.mxu0 0.0
  %2844 = vmatpush1.msra.mxu0 0.0
  %2845 = vmatprep.subr.mxu0 0.0
  %2846 = vmatpush1.msra.mxu0 0.0
  %2847 = vmatprep.subr.mxu0 0.0
  %2848 = vmatpush1.msra.mxu0 0.0
  %2849 = vmatprep.subr.mxu0 0.0
  %2850 = vmatpush1.msra.mxu0 0.0
  %2851 = vmatprep.subr.mxu0 0.0
  %2852 = vmatpush1.msra.mxu0 0.0
  %2853 = vmatprep.subr.mxu0 0.0
  %2854 = vmatpush1.msra.mxu0 0.0
  %2855 = vmatprep.subr.mxu0 0.0
  %2856 = vmatpush1.msra.mxu0 0.0
  %2857 = vmatprep.subr.mxu0 0.0
  %2858 = vmatpush1.msra.mxu0 0.0
  %2859 = vmatprep.subr.mxu0 0.0
  %2860 = vmatpush1.msra.mxu0 0.0
  %2861 = vmatprep.subr.mxu0 0.0
  %2862 = vmatpush1.msra.mxu0 0.0
  %2863 = vmatprep.subr.mxu0 0.0
  %2864 = vmatpush1.msra.mxu0 0.0
  %2865 = vmatprep.subr.mxu0 0.0
  %2866 = vmatpush1.msra.mxu0 0.0
  %2867 = vmatprep.subr.mxu0 0.0
  %2868 = vmatpush1.msra.mxu0 %v121
  %2869 = vmatprep.subr.mxu0 0.0
  %2870 = vmatpush2.msra.mxu0 0.0
  %2871 = vmatprep.subr.mxu0 0.0
  %2872 = vmatpush2.msra.mxu0 0.0
  %2873 = vmatprep.subr.mxu0 0.0
  %2874 = vmatpush2.msra.mxu0 0.0
  %2875 = vmatprep.subr.mxu0 0.0
  %2876 = vmatpush2.msra.mxu0 0.0
  %2877 = vmatprep.subr.mxu0 0.0
  %2878 = vmatpush2.msra.mxu0 0.0
  %2879 = vmatprep.subr.mxu0 0.0
  %2880 = vmatpush2.msra.mxu0 0.0
  %2881 = vmatprep.subr.mxu0 0.0
  %2882 = vmatpush2.msra.mxu0 0.0
  %2883 = vmatprep.subr.mxu0 0.0
  %2884 = vmatpush2.msra.mxu0 0.0
  %2885 = vmatprep.subr.mxu0 0.0
  %2886 = vmatpush2.msra.mxu0 0.0
  %2887 = vmatprep.subr.mxu0 0.0
  %2888 = vmatpush2.msra.mxu0 0.0
  %2889 = vmatprep.subr.mxu0 0.0
  %2890 = vmatpush2.msra.mxu0 0.0
  %2891 = vmatprep.subr.mxu0 0.0
  %2892 = vmatpush2.msra.mxu0 0.0
  %2893 = vmatprep.subr.mxu0 0.0
  %2894 = vmatpush2.msra.mxu0 0.0
  %2895 = vmatprep.subr.mxu0 0.0
  %2896 = vmatpush2.msra.mxu0 0.0
  %2897 = vmatprep.subr.mxu0 0.0
  %2898 = vmatpush2.msra.mxu0 0.0
  %2899 = vmatprep.subr.mxu0 0.0
  %2900 = vmatpush2.msra.mxu0 0.0
  %2901 = vmatprep.mubr.f32.mxu0 0.0
  %2902 = vmatmul.mubr.f32.gmra.mxu0 %v2832
  %v2903 = vpop.f32.mrf.mxu0
  %v2904 = vadd.f32 0.0, %v2903
  %v2905 = vpop.f32.mrf.mxu0
  %2906 = vmatprep.mubr.f32.mxu0 0.0
  %2907 = vmatmul.mubr.f32.gmra.mxu0 %v2835
  %v2908 = vpop.f32.mrf.mxu0
  %v2909 = vadd.f32 0.0, %v2908
  %v2910 = vpop.f32.mrf.mxu0
  %2911 = vdwg.mxu0
  %v2928 = vrot.slane %v2816, 7
  %v2929 = vsel %vm2537, %v2928, %v2815
  %v2930 = vrot.slane %v2817, 6
  %v2931 = vsel %vm2539, %v2930, %v2929
  %v2932 = vrot.slane %v2818, 5
  %v2933 = vsel %vm2541, %v2932, %v2931
  %v2934 = vrot.slane %v2819, 4
  %v2935 = vsel %vm2543, %v2934, %v2933
  %v2936 = vrot.slane %v2820, 3
  %v2937 = vsel %vm2545, %v2936, %v2935
  %v2938 = vrot.slane %v2821, 2
  %v2939 = vsel %vm2547, %v2938, %v2937
  %v2940 = vrot.slane %v2822, 1
  %v2941 = vsel %vm2549, %v2940, %v2939
  %v2942 = vrot.slane %v2824, 7
  %v2943 = vsel %vm2537, %v2942, %v2823
  %v2944 = vrot.slane %v2825, 6
  %v2945 = vsel %vm2539, %v2944, %v2943
  %v2946 = vrot.slane %v2826, 5
  %v2947 = vsel %vm2541, %v2946, %v2945
  %v2948 = vrot.slane %v2827, 4
  %v2949 = vsel %vm2543, %v2948, %v2947
  %v2950 = vrot.slane %v2828, 3
  %v2951 = vsel %vm2545, %v2950, %v2949
  %v2952 = vrot.slane %v2829, 2
  %v2953 = vsel %vm2547, %v2952, %v2951
  %v2954 = vrot.slane %v2830, 1
  %v2955 = vsel %vm2549, %v2954, %v2953
  %v2956 = vsel %vm145, %v2941, 0
  %v2958 = vsel %vm145, %v2955, 0
  %2960 = vmatprep.subr.mxu0 0.0
  %2961 = vmatpush1.msra.mxu0 0.0
  %2962 = vmatprep.subr.mxu0 0.0
  %2963 = vmatpush1.msra.mxu0 0.0
  %2964 = vmatprep.subr.mxu0 0.0
  %2965 = vmatpush1.msra.mxu0 0.0
  %2966 = vmatprep.subr.mxu0 0.0
  %2967 = vmatpush1.msra.mxu0 0.0
  %2968 = vmatprep.subr.mxu0 0.0
  %2969 = vmatpush1.msra.mxu0 0.0
  %2970 = vmatprep.subr.mxu0 0.0
  %2971 = vmatpush1.msra.mxu0 0.0
  %2972 = vmatprep.subr.mxu0 0.0
  %2973 = vmatpush1.msra.mxu0 0.0
  %2974 = vmatprep.subr.mxu0 0.0
  %2975 = vmatpush1.msra.mxu0 0.0
  %2976 = vmatprep.subr.mxu0 0.0
  %2977 = vmatpush1.msra.mxu0 0.0
  %2978 = vmatprep.subr.mxu0 0.0
  %2979 = vmatpush1.msra.mxu0 0.0
  %2980 = vmatprep.subr.mxu0 0.0
  %2981 = vmatpush1.msra.mxu0 0.0
  %2982 = vmatprep.subr.mxu0 0.0
  %2983 = vmatpush1.msra.mxu0 0.0
  %2984 = vmatprep.subr.mxu0 0.0
  %2985 = vmatpush1.msra.mxu0 0.0
  %2986 = vmatprep.subr.mxu0 0.0
  %2987 = vmatpush1.msra.mxu0 0.0
  %2988 = vmatprep.subr.mxu0 0.0
  %2989 = vmatpush1.msra.mxu0 0.0
  %2990 = vmatprep.subr.mxu0 0.0
  %2991 = vmatpush1.msra.mxu0 %v120
  %2992 = vmatprep.subr.mxu0 0.0
  %2993 = vmatpush2.msra.mxu0 0.0
  %2994 = vmatprep.subr.mxu0 0.0
  %2995 = vmatpush2.msra.mxu0 0.0
  %2996 = vmatprep.subr.mxu0 0.0
  %2997 = vmatpush2.msra.mxu0 0.0
  %2998 = vmatprep.subr.mxu0 0.0
  %2999 = vmatpush2.msra.mxu0 0.0
  %3000 = vmatprep.subr.mxu0 0.0
  %3001 = vmatpush2.msra.mxu0 0.0
  %3002 = vmatprep.subr.mxu0 0.0
  %3003 = vmatpush2.msra.mxu0 0.0
  %3004 = vmatprep.subr.mxu0 0.0
  %3005 = vmatpush2.msra.mxu0 0.0
  %3006 = vmatprep.subr.mxu0 0.0
  %3007 = vmatpush2.msra.mxu0 0.0
  %3008 = vmatprep.subr.mxu0 0.0
  %3009 = vmatpush2.msra.mxu0 0.0
  %3010 = vmatprep.subr.mxu0 0.0
  %3011 = vmatpush2.msra.mxu0 0.0
  %3012 = vmatprep.subr.mxu0 0.0
  %3013 = vmatpush2.msra.mxu0 0.0
  %3014 = vmatprep.subr.mxu0 0.0
  %3015 = vmatpush2.msra.mxu0 0.0
  %3016 = vmatprep.subr.mxu0 0.0
  %3017 = vmatpush2.msra.mxu0 0.0
  %3018 = vmatprep.subr.mxu0 0.0
  %3019 = vmatpush2.msra.mxu0 0.0
  %3020 = vmatprep.subr.mxu0 0.0
  %3021 = vmatpush2.msra.mxu0 0.0
  %3022 = vmatprep.subr.mxu0 0.0
  %3023 = vmatpush2.msra.mxu0 0.0
  %3024 = vmatprep.mubr.f32.mxu0 0.0
  %3025 = vmatmul.mubr.f32.gmra.mxu0 %v2956
  %v3026 = vpop.f32.mrf.mxu0
  %v3027 = vadd.f32 %v2904, %v3026
  %v3028 = vpop.f32.mrf.mxu0
  %3029 = vmatprep.mubr.f32.mxu0 0.0
  %3030 = vmatmul.mubr.f32.gmra.mxu0 %v2958
  %v3031 = vpop.f32.mrf.mxu0
  %v3032 = vadd.f32 %v2909, %v3031
  %v3033 = vpop.f32.mrf.mxu0
  %3034 = vdwg.mxu0
  %v3036 = vlaneseq
  %v3037 = vshrl.u32 %v3036, 7
  %v3038 = vsub.s32 0, %v3037
  %v3039 = vrot.slane %v122, %v3038
  %v3041 = vadd.f32 %v3027, %v3039
  %v3042 = vadd.f32 %v3032, %v3039
  %v3044 = vlaneseq
  %v3045 = vshrl.u32 %v3044, 7
  %v3046 = vsub.s32 0, %v3045
  %v3047 = vrot.slane %v124, %v3046
  %v3050 = vsel %vm145, %v3041, 0
  %v3053 = vsel %vm145, %v3042, 0
  %3055 = vmatprep.subr.mxu0 0.0
  %3056 = vmatpush1.msra.mxu0 0.0
  %3057 = vmatprep.subr.mxu0 0.0
  %3058 = vmatpush1.msra.mxu0 0.0
  %3059 = vmatprep.subr.mxu0 0.0
  %3060 = vmatpush1.msra.mxu0 0.0
  %3061 = vmatprep.subr.mxu0 0.0
  %3062 = vmatpush1.msra.mxu0 0.0
  %3063 = vmatprep.subr.mxu0 0.0
  %3064 = vmatpush1.msra.mxu0 0.0
  %3065 = vmatprep.subr.mxu0 0.0
  %3066 = vmatpush1.msra.mxu0 0.0
  %3067 = vmatprep.subr.mxu0 0.0
  %3068 = vmatpush1.msra.mxu0 0.0
  %3069 = vmatprep.subr.mxu0 0.0
  %3070 = vmatpush1.msra.mxu0 0.0
  %3071 = vmatprep.subr.mxu0 0.0
  %3072 = vmatpush1.msra.mxu0 0.0
  %3073 = vmatprep.subr.mxu0 0.0
  %3074 = vmatpush1.msra.mxu0 0.0
  %3075 = vmatprep.subr.mxu0 0.0
  %3076 = vmatpush1.msra.mxu0 0.0
  %3077 = vmatprep.subr.mxu0 0.0
  %3078 = vmatpush1.msra.mxu0 0.0
  %3079 = vmatprep.subr.mxu0 0.0
  %3080 = vmatpush1.msra.mxu0 0.0
  %3081 = vmatprep.subr.mxu0 0.0
  %3082 = vmatpush1.msra.mxu0 0.0
  %3083 = vmatprep.subr.mxu0 0.0
  %3084 = vmatpush1.msra.mxu0 0.0
  %3085 = vmatprep.subr.mxu0 0.0
  %3086 = vmatpush1.msra.mxu0 %v123
  %3087 = vmatprep.subr.mxu0 0.0
  %3088 = vmatpush2.msra.mxu0 0.0
  %3089 = vmatprep.subr.mxu0 0.0
  %3090 = vmatpush2.msra.mxu0 0.0
  %3091 = vmatprep.subr.mxu0 0.0
  %3092 = vmatpush2.msra.mxu0 0.0
  %3093 = vmatprep.subr.mxu0 0.0
  %3094 = vmatpush2.msra.mxu0 0.0
  %3095 = vmatprep.subr.mxu0 0.0
  %3096 = vmatpush2.msra.mxu0 0.0
  %3097 = vmatprep.subr.mxu0 0.0
  %3098 = vmatpush2.msra.mxu0 0.0
  %3099 = vmatprep.subr.mxu0 0.0
  %3100 = vmatpush2.msra.mxu0 0.0
  %3101 = vmatprep.subr.mxu0 0.0
  %3102 = vmatpush2.msra.mxu0 0.0
  %3103 = vmatprep.subr.mxu0 0.0
  %3104 = vmatpush2.msra.mxu0 0.0
  %3105 = vmatprep.subr.mxu0 0.0
  %3106 = vmatpush2.msra.mxu0 0.0
  %3107 = vmatprep.subr.mxu0 0.0
  %3108 = vmatpush2.msra.mxu0 0.0
  %3109 = vmatprep.subr.mxu0 0.0
  %3110 = vmatpush2.msra.mxu0 0.0
  %3111 = vmatprep.subr.mxu0 0.0
  %3112 = vmatpush2.msra.mxu0 0.0
  %3113 = vmatprep.subr.mxu0 0.0
  %3114 = vmatpush2.msra.mxu0 0.0
  %3115 = vmatprep.subr.mxu0 0.0
  %3116 = vmatpush2.msra.mxu0 0.0
  %3117 = vmatprep.subr.mxu0 0.0
  %3118 = vmatpush2.msra.mxu0 0.0
  %3119 = vmatprep.mubr.f32.mxu0 0.0
  %3120 = vmatmul.mubr.f32.gmra.mxu0 %v3050
  %v3121 = vpop.f32.mrf.mxu0
  %v3122 = vadd.f32 %v3047, %v3121
  %v3123 = vpop.f32.mrf.mxu0
  %3124 = vmatprep.mubr.f32.mxu0 0.0
  %3125 = vmatmul.mubr.f32.gmra.mxu0 %v3053
  %v3126 = vpop.f32.mrf.mxu0
  %v3127 = vadd.f32 %v3047, %v3126
  %v3128 = vpop.f32.mrf.mxu0
  %3129 = vdwg.mxu0
  %s3130 = scalar_lea.vmem %s0, 16
  %v3131 = vld [vmem:[%s3130] sm:$0xff]
  %v3132 = vld [vmem:[%s3130 + $0x8] sm:$0xff]
  %v3134 = vsel %vm145, %v3131, 0
  %v3137 = vsel %vm145, %v3132, 0
  %3139 = vmatprep.subr.mxu0 0.0
  %3140 = vmatpush1.msra.mxu0 0.0
  %3141 = vmatprep.subr.mxu0 0.0
  %3142 = vmatpush1.msra.mxu0 0.0
  %3143 = vmatprep.subr.mxu0 0.0
  %3144 = vmatpush1.msra.mxu0 0.0
  %3145 = vmatprep.subr.mxu0 0.0
  %3146 = vmatpush1.msra.mxu0 0.0
  %3147 = vmatprep.subr.mxu0 0.0
  %3148 = vmatpush1.msra.mxu0 0.0
  %3149 = vmatprep.subr.mxu0 0.0
  %3150 = vmatpush1.msra.mxu0 0.0
  %3151 = vmatprep.subr.mxu0 0.0
  %3152 = vmatpush1.msra.mxu0 0.0
  %3153 = vmatprep.subr.mxu0 0.0
  %3154 = vmatpush1.msra.mxu0 0.0
  %3155 = vmatprep.subr.mxu0 0.0
  %3156 = vmatpush1.msra.mxu0 0.0
  %3157 = vmatprep.subr.mxu0 0.0
  %3158 = vmatpush1.msra.mxu0 0.0
  %3159 = vmatprep.subr.mxu0 0.0
  %3160 = vmatpush1.msra.mxu0 0.0
  %3161 = vmatprep.subr.mxu0 0.0
  %3162 = vmatpush1.msra.mxu0 0.0
  %3163 = vmatprep.subr.mxu0 0.0
  %3164 = vmatpush1.msra.mxu0 0.0
  %3165 = vmatprep.subr.mxu0 0.0
  %3166 = vmatpush1.msra.mxu0 0.0
  %3167 = vmatprep.subr.mxu0 0.0
  %3168 = vmatpush1.msra.mxu0 0.0
  %3169 = vmatprep.subr.mxu0 0.0
  %3170 = vmatpush1.msra.mxu0 %v132
  %3171 = vmatprep.subr.mxu0 0.0
  %3172 = vmatpush2.msra.mxu0 0.0
  %3173 = vmatprep.subr.mxu0 0.0
  %3174 = vmatpush2.msra.mxu0 0.0
  %3175 = vmatprep.subr.mxu0 0.0
  %3176 = vmatpush2.msra.mxu0 0.0
  %3177 = vmatprep.subr.mxu0 0.0
  %3178 = vmatpush2.msra.mxu0 0.0
  %3179 = vmatprep.subr.mxu0 0.0
  %3180 = vmatpush2.msra.mxu0 0.0
  %3181 = vmatprep.subr.mxu0 0.0
  %3182 = vmatpush2.msra.mxu0 0.0
  %3183 = vmatprep.subr.mxu0 0.0
  %3184 = vmatpush2.msra.mxu0 0.0
  %3185 = vmatprep.subr.mxu0 0.0
  %3186 = vmatpush2.msra.mxu0 0.0
  %3187 = vmatprep.subr.mxu0 0.0
  %3188 = vmatpush2.msra.mxu0 0.0
  %3189 = vmatprep.subr.mxu0 0.0
  %3190 = vmatpush2.msra.mxu0 0.0
  %3191 = vmatprep.subr.mxu0 0.0
  %3192 = vmatpush2.msra.mxu0 0.0
  %3193 = vmatprep.subr.mxu0 0.0
  %3194 = vmatpush2.msra.mxu0 0.0
  %3195 = vmatprep.subr.mxu0 0.0
  %3196 = vmatpush2.msra.mxu0 0.0
  %3197 = vmatprep.subr.mxu0 0.0
  %3198 = vmatpush2.msra.mxu0 0.0
  %3199 = vmatprep.subr.mxu0 0.0
  %3200 = vmatpush2.msra.mxu0 0.0
  %3201 = vmatprep.subr.mxu0 0.0
  %3202 = vmatpush2.msra.mxu0 0.0
  %3203 = vmatprep.mubr.f32.mxu0 0.0
  %3204 = vmatmul.mubr.f32.gmra.mxu0 %v3134
  %v3205 = vpop.f32.mrf.mxu0
  %v3206 = vadd.f32 0.0, %v3205
  %v3207 = vpop.f32.mrf.mxu0
  %3208 = vmatprep.mubr.f32.mxu0 0.0
  %3209 = vmatmul.mubr.f32.gmra.mxu0 %v3137
  %v3210 = vpop.f32.mrf.mxu0
  %v3211 = vadd.f32 0.0, %v3210
  %v3212 = vpop.f32.mrf.mxu0
  %3213 = vdwg.mxu0
  %3214 = vmatprep.subr.mxu0 0.0
  %3215 = vmatpush1.msra.mxu0 0.0
  %3216 = vmatprep.subr.mxu0 0.0
  %3217 = vmatpush1.msra.mxu0 0.0
  %3218 = vmatprep.subr.mxu0 0.0
  %3219 = vmatpush1.msra.mxu0 0.0
  %3220 = vmatprep.subr.mxu0 0.0
  %3221 = vmatpush1.msra.mxu0 0.0
  %3222 = vmatprep.subr.mxu0 0.0
  %3223 = vmatpush1.msra.mxu0 0.0
  %3224 = vmatprep.subr.mxu0 0.0
  %3225 = vmatpush1.msra.mxu0 0.0
  %3226 = vmatprep.subr.mxu0 0.0
  %3227 = vmatpush1.msra.mxu0 0.0
  %3228 = vmatprep.subr.mxu0 0.0
  %3229 = vmatpush1.msra.mxu0 0.0
  %3230 = vmatprep.subr.mxu0 0.0
  %3231 = vmatpush1.msra.mxu0 0.0
  %3232 = vmatprep.subr.mxu0 0.0
  %3233 = vmatpush1.msra.mxu0 0.0
  %3234 = vmatprep.subr.mxu0 0.0
  %3235 = vmatpush1.msra.mxu0 0.0
  %3236 = vmatprep.subr.mxu0 0.0
  %3237 = vmatpush1.msra.mxu0 0.0
  %3238 = vmatprep.subr.mxu0 0.0
  %3239 = vmatpush1.msra.mxu0 0.0
  %3240 = vmatprep.subr.mxu0 0.0
  %3241 = vmatpush1.msra.mxu0 0.0
  %3242 = vmatprep.subr.mxu0 0.0
  %3243 = vmatpush1.msra.mxu0 %v3132
  %3244 = vmatprep.subr.mxu0 0.0
  %3245 = vmatpush1.msra.mxu0 %v3131
  %3246 = vmatprep.subr.mxu0 0.0
  %3247 = vmatpush2.msra.mxu0 0.0
  %3248 = vmatprep.subr.mxu0 0.0
  %3249 = vmatpush2.msra.mxu0 0.0
  %3250 = vmatprep.subr.mxu0 0.0
  %3251 = vmatpush2.msra.mxu0 0.0
  %3252 = vmatprep.subr.mxu0 0.0
  %3253 = vmatpush2.msra.mxu0 0.0
  %3254 = vmatprep.subr.mxu0 0.0
  %3255 = vmatpush2.msra.mxu0 0.0
  %3256 = vmatprep.subr.mxu0 0.0
  %3257 = vmatpush2.msra.mxu0 0.0
  %3258 = vmatprep.subr.mxu0 0.0
  %3259 = vmatpush2.msra.mxu0 0.0
  %3260 = vmatprep.subr.mxu0 0.0
  %3261 = vmatpush2.msra.mxu0 0.0
  %3262 = vmatprep.subr.mxu0 0.0
  %3263 = vmatpush2.msra.mxu0 0.0
  %3264 = vmatprep.subr.mxu0 0.0
  %3265 = vmatpush2.msra.mxu0 0.0
  %3266 = vmatprep.subr.mxu0 0.0
  %3267 = vmatpush2.msra.mxu0 0.0
  %3268 = vmatprep.subr.mxu0 0.0
  %3269 = vmatpush2.msra.mxu0 0.0
  %3270 = vmatprep.subr.mxu0 0.0
  %3271 = vmatpush2.msra.mxu0 0.0
  %3272 = vmatprep.subr.mxu0 0.0
  %3273 = vmatpush2.msra.mxu0 0.0
  %3274 = vmatprep.subr.mxu0 0.0
  %3275 = vmatpush2.msra.mxu0 0.0
  %3276 = vmatprep.subr.mxu0 0.0
  %3277 = vmatpush2.msra.mxu0 0.0
  %3278 = vmatprep.mubr.f32.mxu0 0.0
  %3279 = vmatmul.mubr.f32.gmra.mxu0 %v229
  %v3280 = vpop.f32.mrf.mxu0
  %v3281 = vadd.f32 0.0, %v3280
  %v3282 = vpop.f32.mrf.mxu0
  %3283 = vmatprep.mubr.f32.mxu0 0.0
  %3284 = vmatmul.mubr.f32.gmra.mxu0 %v232
  %v3285 = vpop.f32.mrf.mxu0
  %v3286 = vadd.f32 0.0, %v3285
  %v3287 = vpop.f32.mrf.mxu0
  %3288 = vdwg.mxu0
  %3289 = vmatprep.subr.mxu0 0.0
  %3290 = vmatpush1.msra.mxu0 0.0
  %3291 = vmatprep.subr.mxu0 0.0
  %3292 = vmatpush1.msra.mxu0 0.0
  %3293 = vmatprep.subr.mxu0 0.0
  %3294 = vmatpush1.msra.mxu0 0.0
  %3295 = vmatprep.subr.mxu0 0.0
  %3296 = vmatpush1.msra.mxu0 0.0
  %3297 = vmatprep.subr.mxu0 0.0
  %3298 = vmatpush1.msra.mxu0 0.0
  %3299 = vmatprep.subr.mxu0 0.0
  %3300 = vmatpush1.msra.mxu0 0.0
  %3301 = vmatprep.subr.mxu0 0.0
  %3302 = vmatpush1.msra.mxu0 0.0
  %3303 = vmatprep.subr.mxu0 0.0
  %3304 = vmatpush1.msra.mxu0 0.0
  %3305 = vmatprep.subr.mxu0 0.0
  %3306 = vmatpush1.msra.mxu0 0.0
  %3307 = vmatprep.subr.mxu0 0.0
  %3308 = vmatpush1.msra.mxu0 0.0
  %3309 = vmatprep.subr.mxu0 0.0
  %3310 = vmatpush1.msra.mxu0 0.0
  %3311 = vmatprep.subr.mxu0 0.0
  %3312 = vmatpush1.msra.mxu0 0.0
  %3313 = vmatprep.subr.mxu0 0.0
  %3314 = vmatpush1.msra.mxu0 0.0
  %3315 = vmatprep.subr.mxu0 0.0
  %3316 = vmatpush1.msra.mxu0 0.0
  %3317 = vmatprep.subr.mxu0 0.0
  %3318 = vmatpush1.msra.mxu0 %v3211
  %3319 = vmatprep.subr.mxu0 0.0
  %3320 = vmatpush1.msra.mxu0 %v3206
  %3321 = vmatprep.subr.mxu0 0.0
  %3322 = vmatpush2.msra.mxu0 0.0
  %3323 = vmatprep.subr.mxu0 0.0
  %3324 = vmatpush2.msra.mxu0 0.0
  %3325 = vmatprep.subr.mxu0 0.0
  %3326 = vmatpush2.msra.mxu0 0.0
  %3327 = vmatprep.subr.mxu0 0.0
  %3328 = vmatpush2.msra.mxu0 0.0
  %3329 = vmatprep.subr.mxu0 0.0
  %3330 = vmatpush2.msra.mxu0 0.0
  %3331 = vmatprep.subr.mxu0 0.0
  %3332 = vmatpush2.msra.mxu0 0.0
  %3333 = vmatprep.subr.mxu0 0.0
  %3334 = vmatpush2.msra.mxu0 0.0
  %3335 = vmatprep.subr.mxu0 0.0
  %3336 = vmatpush2.msra.mxu0 0.0
  %3337 = vmatprep.subr.mxu0 0.0
  %3338 = vmatpush2.msra.mxu0 0.0
  %3339 = vmatprep.subr.mxu0 0.0
  %3340 = vmatpush2.msra.mxu0 0.0
  %3341 = vmatprep.subr.mxu0 0.0
  %3342 = vmatpush2.msra.mxu0 0.0
  %3343 = vmatprep.subr.mxu0 0.0
  %3344 = vmatpush2.msra.mxu0 0.0
  %3345 = vmatprep.subr.mxu0 0.0
  %3346 = vmatpush2.msra.mxu0 0.0
  %3347 = vmatprep.subr.mxu0 0.0
  %3348 = vmatpush2.msra.mxu0 0.0
  %3349 = vmatprep.subr.mxu0 0.0
  %3350 = vmatpush2.msra.mxu0 0.0
  %3351 = vmatprep.subr.mxu0 0.0
  %3352 = vmatpush2.msra.mxu0 0.0
  %3353 = vmatprep.mubr.f32.mxu0 0.0
  %3354 = vmatmul.mubr.f32.gmra.mxu0 %v310
  %v3355 = vpop.f32.mrf.mxu0
  %v3356 = vadd.f32 %v3281, %v3355
  %v3357 = vpop.f32.mrf.mxu0
  %3358 = vmatprep.mubr.f32.mxu0 0.0
  %3359 = vmatmul.mubr.f32.gmra.mxu0 %v313
  %v3360 = vpop.f32.mrf.mxu0
  %v3361 = vadd.f32 %v3286, %v3360
  %v3362 = vpop.f32.mrf.mxu0
  %3363 = vdwg.mxu0
  %v3364 = vadd.f32 %v3356, %v393
  %v3365 = vadd.f32 %v3361, %v398
  %v3366 = vmax.f32 %v3364, 0.0
  %v3367 = vmax.f32 %v3365, 0.0
  %v3369 = vsel %vm145, %v3366, 0
  %v3372 = vsel %vm145, %v3367, 0
  %3374 = vmatprep.subr.mxu0 0.0
  %3375 = vmatpush1.msra.mxu0 0.0
  %3376 = vmatprep.subr.mxu0 0.0
  %3377 = vmatpush1.msra.mxu0 0.0
  %3378 = vmatprep.subr.mxu0 0.0
  %3379 = vmatpush1.msra.mxu0 0.0
  %3380 = vmatprep.subr.mxu0 0.0
  %3381 = vmatpush1.msra.mxu0 0.0
  %3382 = vmatprep.subr.mxu0 0.0
  %3383 = vmatpush1.msra.mxu0 0.0
  %3384 = vmatprep.subr.mxu0 0.0
  %3385 = vmatpush1.msra.mxu0 0.0
  %3386 = vmatprep.subr.mxu0 0.0
  %3387 = vmatpush1.msra.mxu0 0.0
  %3388 = vmatprep.subr.mxu0 0.0
  %3389 = vmatpush1.msra.mxu0 0.0
  %3390 = vmatprep.subr.mxu0 0.0
  %3391 = vmatpush1.msra.mxu0 0.0
  %3392 = vmatprep.subr.mxu0 0.0
  %3393 = vmatpush1.msra.mxu0 0.0
  %3394 = vmatprep.subr.mxu0 0.0
  %3395 = vmatpush1.msra.mxu0 0.0
  %3396 = vmatprep.subr.mxu0 0.0
  %3397 = vmatpush1.msra.mxu0 0.0
  %3398 = vmatprep.subr.mxu0 0.0
  %3399 = vmatpush1.msra.mxu0 0.0
  %3400 = vmatprep.subr.mxu0 0.0
  %3401 = vmatpush1.msra.mxu0 0.0
  %3402 = vmatprep.subr.mxu0 0.0
  %3403 = vmatpush1.msra.mxu0 0.0
  %3404 = vmatprep.subr.mxu0 0.0
  %3405 = vmatpush1.msra.mxu0 %v132
  %3406 = vmatprep.subr.mxu0 0.0
  %3407 = vmatpush2.msra.mxu0 0.0
  %3408 = vmatprep.subr.mxu0 0.0
  %3409 = vmatpush2.msra.mxu0 0.0
  %3410 = vmatprep.subr.mxu0 0.0
  %3411 = vmatpush2.msra.mxu0 0.0
  %3412 = vmatprep.subr.mxu0 0.0
  %3413 = vmatpush2.msra.mxu0 0.0
  %3414 = vmatprep.subr.mxu0 0.0
  %3415 = vmatpush2.msra.mxu0 0.0
  %3416 = vmatprep.subr.mxu0 0.0
  %3417 = vmatpush2.msra.mxu0 0.0
  %3418 = vmatprep.subr.mxu0 0.0
  %3419 = vmatpush2.msra.mxu0 0.0
  %3420 = vmatprep.subr.mxu0 0.0
  %3421 = vmatpush2.msra.mxu0 0.0
  %3422 = vmatprep.subr.mxu0 0.0
  %3423 = vmatpush2.msra.mxu0 0.0
  %3424 = vmatprep.subr.mxu0 0.0
  %3425 = vmatpush2.msra.mxu0 0.0
  %3426 = vmatprep.subr.mxu0 0.0
  %3427 = vmatpush2.msra.mxu0 0.0
  %3428 = vmatprep.subr.mxu0 0.0
  %3429 = vmatpush2.msra.mxu0 0.0
  %3430 = vmatprep.subr.mxu0 0.0
  %3431 = vmatpush2.msra.mxu0 0.0
  %3432 = vmatprep.subr.mxu0 0.0
  %3433 = vmatpush2.msra.mxu0 0.0
  %3434 = vmatprep.subr.mxu0 0.0
  %3435 = vmatpush2.msra.mxu0 0.0
  %3436 = vmatprep.subr.mxu0 0.0
  %3437 = vmatpush2.msra.mxu0 0.0
  %3438 = vmatprep.mubr.f32.mxu0 0.0
  %3439 = vmatmul.mubr.f32.gmra.mxu0 %v3369
  %v3440 = vpop.f32.mrf.mxu0
  %v3441 = vadd.f32 0.0, %v3440
  %v3442 = vpop.f32.mrf.mxu0
  %3443 = vmatprep.mubr.f32.mxu0 0.0
  %3444 = vmatmul.mubr.f32.gmra.mxu0 %v3372
  %v3445 = vpop.f32.mrf.mxu0
  %v3446 = vadd.f32 0.0, %v3445
  %v3447 = vpop.f32.mrf.mxu0
  %3448 = vdwg.mxu0
  %3449 = vmatprep.subr.mxu0 0.0
  %3450 = vmatpush1.msra.mxu0 0.0
  %3451 = vmatprep.subr.mxu0 0.0
  %3452 = vmatpush1.msra.mxu0 0.0
  %3453 = vmatprep.subr.mxu0 0.0
  %3454 = vmatpush1.msra.mxu0 0.0
  %3455 = vmatprep.subr.mxu0 0.0
  %3456 = vmatpush1.msra.mxu0 0.0
  %3457 = vmatprep.subr.mxu0 0.0
  %3458 = vmatpush1.msra.mxu0 0.0
  %3459 = vmatprep.subr.mxu0 0.0
  %3460 = vmatpush1.msra.mxu0 0.0
  %3461 = vmatprep.subr.mxu0 0.0
  %3462 = vmatpush1.msra.mxu0 0.0
  %3463 = vmatprep.subr.mxu0 0.0
  %3464 = vmatpush1.msra.mxu0 0.0
  %3465 = vmatprep.subr.mxu0 0.0
  %3466 = vmatpush1.msra.mxu0 0.0
  %3467 = vmatprep.subr.mxu0 0.0
  %3468 = vmatpush1.msra.mxu0 0.0
  %3469 = vmatprep.subr.mxu0 0.0
  %3470 = vmatpush1.msra.mxu0 0.0
  %3471 = vmatprep.subr.mxu0 0.0
  %3472 = vmatpush1.msra.mxu0 0.0
  %3473 = vmatprep.subr.mxu0 0.0
  %3474 = vmatpush1.msra.mxu0 0.0
  %3475 = vmatprep.subr.mxu0 0.0
  %3476 = vmatpush1.msra.mxu0 0.0
  %3477 = vmatprep.subr.mxu0 0.0
  %3478 = vmatpush1.msra.mxu0 %v3367
  %3479 = vmatprep.subr.mxu0 0.0
  %3480 = vmatpush1.msra.mxu0 %v3366
  %3481 = vmatprep.subr.mxu0 0.0
  %3482 = vmatpush2.msra.mxu0 0.0
  %3483 = vmatprep.subr.mxu0 0.0
  %3484 = vmatpush2.msra.mxu0 0.0
  %3485 = vmatprep.subr.mxu0 0.0
  %3486 = vmatpush2.msra.mxu0 0.0
  %3487 = vmatprep.subr.mxu0 0.0
  %3488 = vmatpush2.msra.mxu0 0.0
  %3489 = vmatprep.subr.mxu0 0.0
  %3490 = vmatpush2.msra.mxu0 0.0
  %3491 = vmatprep.subr.mxu0 0.0
  %3492 = vmatpush2.msra.mxu0 0.0
  %3493 = vmatprep.subr.mxu0 0.0
  %3494 = vmatpush2.msra.mxu0 0.0
  %3495 = vmatprep.subr.mxu0 0.0
  %3496 = vmatpush2.msra.mxu0 0.0
  %3497 = vmatprep.subr.mxu0 0.0
  %3498 = vmatpush2.msra.mxu0 0.0
  %3499 = vmatprep.subr.mxu0 0.0
  %3500 = vmatpush2.msra.mxu0 0.0
  %3501 = vmatprep.subr.mxu0 0.0
  %3502 = vmatpush2.msra.mxu0 0.0
  %3503 = vmatprep.subr.mxu0 0.0
  %3504 = vmatpush2.msra.mxu0 0.0
  %3505 = vmatprep.subr.mxu0 0.0
  %3506 = vmatpush2.msra.mxu0 0.0
  %3507 = vmatprep.subr.mxu0 0.0
  %3508 = vmatpush2.msra.mxu0 0.0
  %3509 = vmatprep.subr.mxu0 0.0
  %3510 = vmatpush2.msra.mxu0 0.0
  %3511 = vmatprep.subr.mxu0 0.0
  %3512 = vmatpush2.msra.mxu0 0.0
  %3513 = vmatprep.mubr.f32.mxu0 0.0
  %3514 = vmatmul.mubr.f32.gmra.mxu0 %v486
  %v3515 = vpop.f32.mrf.mxu0
  %v3516 = vadd.f32 0.0, %v3515
  %v3517 = vpop.f32.mrf.mxu0
  %3518 = vmatprep.mubr.f32.mxu0 0.0
  %3519 = vmatmul.mubr.f32.gmra.mxu0 %v489
  %v3520 = vpop.f32.mrf.mxu0
  %v3521 = vadd.f32 0.0, %v3520
  %v3522 = vpop.f32.mrf.mxu0
  %3523 = vdwg.mxu0
  %3524 = vmatprep.subr.mxu0 0.0
  %3525 = vmatpush1.msra.mxu0 0.0
  %3526 = vmatprep.subr.mxu0 0.0
  %3527 = vmatpush1.msra.mxu0 0.0
  %3528 = vmatprep.subr.mxu0 0.0
  %3529 = vmatpush1.msra.mxu0 0.0
  %3530 = vmatprep.subr.mxu0 0.0
  %3531 = vmatpush1.msra.mxu0 0.0
  %3532 = vmatprep.subr.mxu0 0.0
  %3533 = vmatpush1.msra.mxu0 0.0
  %3534 = vmatprep.subr.mxu0 0.0
  %3535 = vmatpush1.msra.mxu0 0.0
  %3536 = vmatprep.subr.mxu0 0.0
  %3537 = vmatpush1.msra.mxu0 0.0
  %3538 = vmatprep.subr.mxu0 0.0
  %3539 = vmatpush1.msra.mxu0 0.0
  %3540 = vmatprep.subr.mxu0 0.0
  %3541 = vmatpush1.msra.mxu0 0.0
  %3542 = vmatprep.subr.mxu0 0.0
  %3543 = vmatpush1.msra.mxu0 0.0
  %3544 = vmatprep.subr.mxu0 0.0
  %3545 = vmatpush1.msra.mxu0 0.0
  %3546 = vmatprep.subr.mxu0 0.0
  %3547 = vmatpush1.msra.mxu0 0.0
  %3548 = vmatprep.subr.mxu0 0.0
  %3549 = vmatpush1.msra.mxu0 0.0
  %3550 = vmatprep.subr.mxu0 0.0
  %3551 = vmatpush1.msra.mxu0 0.0
  %3552 = vmatprep.subr.mxu0 0.0
  %3553 = vmatpush1.msra.mxu0 %v3446
  %3554 = vmatprep.subr.mxu0 0.0
  %3555 = vmatpush1.msra.mxu0 %v3441
  %3556 = vmatprep.subr.mxu0 0.0
  %3557 = vmatpush2.msra.mxu0 0.0
  %3558 = vmatprep.subr.mxu0 0.0
  %3559 = vmatpush2.msra.mxu0 0.0
  %3560 = vmatprep.subr.mxu0 0.0
  %3561 = vmatpush2.msra.mxu0 0.0
  %3562 = vmatprep.subr.mxu0 0.0
  %3563 = vmatpush2.msra.mxu0 0.0
  %3564 = vmatprep.subr.mxu0 0.0
  %3565 = vmatpush2.msra.mxu0 0.0
  %3566 = vmatprep.subr.mxu0 0.0
  %3567 = vmatpush2.msra.mxu0 0.0
  %3568 = vmatprep.subr.mxu0 0.0
  %3569 = vmatpush2.msra.mxu0 0.0
  %3570 = vmatprep.subr.mxu0 0.0
  %3571 = vmatpush2.msra.mxu0 0.0
  %3572 = vmatprep.subr.mxu0 0.0
  %3573 = vmatpush2.msra.mxu0 0.0
  %3574 = vmatprep.subr.mxu0 0.0
  %3575 = vmatpush2.msra.mxu0 0.0
  %3576 = vmatprep.subr.mxu0 0.0
  %3577 = vmatpush2.msra.mxu0 0.0
  %3578 = vmatprep.subr.mxu0 0.0
  %3579 = vmatpush2.msra.mxu0 0.0
  %3580 = vmatprep.subr.mxu0 0.0
  %3581 = vmatpush2.msra.mxu0 0.0
  %3582 = vmatprep.subr.mxu0 0.0
  %3583 = vmatpush2.msra.mxu0 0.0
  %3584 = vmatprep.subr.mxu0 0.0
  %3585 = vmatpush2.msra.mxu0 0.0
  %3586 = vmatprep.subr.mxu0 0.0
  %3587 = vmatpush2.msra.mxu0 0.0
  %3588 = vmatprep.mubr.f32.mxu0 0.0
  %3589 = vmatmul.mubr.f32.gmra.mxu0 %v567
  %v3590 = vpop.f32.mrf.mxu0
  %v3591 = vadd.f32 %v3516, %v3590
  %v3592 = vpop.f32.mrf.mxu0
  %3593 = vmatprep.mubr.f32.mxu0 0.0
  %3594 = vmatmul.mubr.f32.gmra.mxu0 %v570
  %v3595 = vpop.f32.mrf.mxu0
  %v3596 = vadd.f32 %v3521, %v3595
  %v3597 = vpop.f32.mrf.mxu0
  %3598 = vdwg.mxu0
  %v3599 = vadd.f32 %v3591, %v650
  %v3600 = vadd.f32 %v3596, %v655
  %v3601 = vmax.f32 %v3599, 0.0
  %v3602 = vmax.f32 %v3600, 0.0
  %v3603 = vadd.f32 %v3601, %v3131
  %v3604 = vadd.f32 %v3602, %v3132
  %v3605 = vmax.f32 %v3603, 0.0
  %v3606 = vmax.f32 %v3604, 0.0
  %v3608 = vsel %vm145, %v3605, 0
  %v3611 = vsel %vm145, %v3606, 0
  %3613 = vmatprep.subr.mxu0 0.0
  %3614 = vmatpush1.msra.mxu0 0.0
  %3615 = vmatprep.subr.mxu0 0.0
  %3616 = vmatpush1.msra.mxu0 0.0
  %3617 = vmatprep.subr.mxu0 0.0
  %3618 = vmatpush1.msra.mxu0 0.0
  %3619 = vmatprep.subr.mxu0 0.0
  %3620 = vmatpush1.msra.mxu0 0.0
  %3621 = vmatprep.subr.mxu0 0.0
  %3622 = vmatpush1.msra.mxu0 0.0
  %3623 = vmatprep.subr.mxu0 0.0
  %3624 = vmatpush1.msra.mxu0 0.0
  %3625 = vmatprep.subr.mxu0 0.0
  %3626 = vmatpush1.msra.mxu0 0.0
  %3627 = vmatprep.subr.mxu0 0.0
  %3628 = vmatpush1.msra.mxu0 0.0
  %3629 = vmatprep.subr.mxu0 0.0
  %3630 = vmatpush1.msra.mxu0 0.0
  %3631 = vmatprep.subr.mxu0 0.0
  %3632 = vmatpush1.msra.mxu0 0.0
  %3633 = vmatprep.subr.mxu0 0.0
  %3634 = vmatpush1.msra.mxu0 0.0
  %3635 = vmatprep.subr.mxu0 0.0
  %3636 = vmatpush1.msra.mxu0 0.0
  %3637 = vmatprep.subr.mxu0 0.0
  %3638 = vmatpush1.msra.mxu0 0.0
  %3639 = vmatprep.subr.mxu0 0.0
  %3640 = vmatpush1.msra.mxu0 0.0
  %3641 = vmatprep.subr.mxu0 0.0
  %3642 = vmatpush1.msra.mxu0 0.0
  %3643 = vmatprep.subr.mxu0 0.0
  %3644 = vmatpush1.msra.mxu0 %v666
  %3645 = vmatprep.subr.mxu0 0.0
  %3646 = vmatpush2.msra.mxu0 0.0
  %3647 = vmatprep.subr.mxu0 0.0
  %3648 = vmatpush2.msra.mxu0 0.0
  %3649 = vmatprep.subr.mxu0 0.0
  %3650 = vmatpush2.msra.mxu0 0.0
  %3651 = vmatprep.subr.mxu0 0.0
  %3652 = vmatpush2.msra.mxu0 0.0
  %3653 = vmatprep.subr.mxu0 0.0
  %3654 = vmatpush2.msra.mxu0 0.0
  %3655 = vmatprep.subr.mxu0 0.0
  %3656 = vmatpush2.msra.mxu0 0.0
  %3657 = vmatprep.subr.mxu0 0.0
  %3658 = vmatpush2.msra.mxu0 0.0
  %3659 = vmatprep.subr.mxu0 0.0
  %3660 = vmatpush2.msra.mxu0 0.0
  %3661 = vmatprep.subr.mxu0 0.0
  %3662 = vmatpush2.msra.mxu0 0.0
  %3663 = vmatprep.subr.mxu0 0.0
  %3664 = vmatpush2.msra.mxu0 0.0
  %3665 = vmatprep.subr.mxu0 0.0
  %3666 = vmatpush2.msra.mxu0 0.0
  %3667 = vmatprep.subr.mxu0 0.0
  %3668 = vmatpush2.msra.mxu0 0.0
  %3669 = vmatprep.subr.mxu0 0.0
  %3670 = vmatpush2.msra.mxu0 0.0
  %3671 = vmatprep.subr.mxu0 0.0
  %3672 = vmatpush2.msra.mxu0 0.0
  %3673 = vmatprep.subr.mxu0 0.0
  %3674 = vmatpush2.msra.mxu0 0.0
  %3675 = vmatprep.subr.mxu0 0.0
  %3676 = vmatpush2.msra.mxu0 0.0
  %3677 = vmatprep.mubr.f32.mxu0 0.0
  %3678 = vmatmul.mubr.f32.gmra.mxu0 %v3608
  %v3679 = vpop.f32.mrf.mxu0
  %v3680 = vadd.f32 0.0, %v3679
  %v3681 = vpop.f32.mrf.mxu0
  %3682 = vmatprep.mubr.f32.mxu0 0.0
  %3683 = vmatmul.mubr.f32.gmra.mxu0 %v3611
  %v3684 = vpop.f32.mrf.mxu0
  %v3685 = vadd.f32 0.0, %v3684
  %v3686 = vpop.f32.mrf.mxu0
  %3687 = vdwg.mxu0
  %3688 = vmatprep.subr.mxu0 0.0
  %3689 = vmatpush1.msra.mxu0 0.0
  %3690 = vmatprep.subr.mxu0 0.0
  %3691 = vmatpush1.msra.mxu0 0.0
  %3692 = vmatprep.subr.mxu0 0.0
  %3693 = vmatpush1.msra.mxu0 0.0
  %3694 = vmatprep.subr.mxu0 0.0
  %3695 = vmatpush1.msra.mxu0 0.0
  %3696 = vmatprep.subr.mxu0 0.0
  %3697 = vmatpush1.msra.mxu0 0.0
  %3698 = vmatprep.subr.mxu0 0.0
  %3699 = vmatpush1.msra.mxu0 0.0
  %3700 = vmatprep.subr.mxu0 0.0
  %3701 = vmatpush1.msra.mxu0 0.0
  %3702 = vmatprep.subr.mxu0 0.0
  %3703 = vmatpush1.msra.mxu0 0.0
  %3704 = vmatprep.subr.mxu0 0.0
  %3705 = vmatpush1.msra.mxu0 0.0
  %3706 = vmatprep.subr.mxu0 0.0
  %3707 = vmatpush1.msra.mxu0 0.0
  %3708 = vmatprep.subr.mxu0 0.0
  %3709 = vmatpush1.msra.mxu0 0.0
  %3710 = vmatprep.subr.mxu0 0.0
  %3711 = vmatpush1.msra.mxu0 0.0
  %3712 = vmatprep.subr.mxu0 0.0
  %3713 = vmatpush1.msra.mxu0 0.0
  %3714 = vmatprep.subr.mxu0 0.0
  %3715 = vmatpush1.msra.mxu0 0.0
  %3716 = vmatprep.subr.mxu0 0.0
  %3717 = vmatpush1.msra.mxu0 %v3606
  %3718 = vmatprep.subr.mxu0 0.0
  %3719 = vmatpush1.msra.mxu0 %v3605
  %3720 = vmatprep.subr.mxu0 0.0
  %3721 = vmatpush2.msra.mxu0 0.0
  %3722 = vmatprep.subr.mxu0 0.0
  %3723 = vmatpush2.msra.mxu0 0.0
  %3724 = vmatprep.subr.mxu0 0.0
  %3725 = vmatpush2.msra.mxu0 0.0
  %3726 = vmatprep.subr.mxu0 0.0
  %3727 = vmatpush2.msra.mxu0 0.0
  %3728 = vmatprep.subr.mxu0 0.0
  %3729 = vmatpush2.msra.mxu0 0.0
  %3730 = vmatprep.subr.mxu0 0.0
  %3731 = vmatpush2.msra.mxu0 0.0
  %3732 = vmatprep.subr.mxu0 0.0
  %3733 = vmatpush2.msra.mxu0 0.0
  %3734 = vmatprep.subr.mxu0 0.0
  %3735 = vmatpush2.msra.mxu0 0.0
  %3736 = vmatprep.subr.mxu0 0.0
  %3737 = vmatpush2.msra.mxu0 0.0
  %3738 = vmatprep.subr.mxu0 0.0
  %3739 = vmatpush2.msra.mxu0 0.0
  %3740 = vmatprep.subr.mxu0 0.0
  %3741 = vmatpush2.msra.mxu0 0.0
  %3742 = vmatprep.subr.mxu0 0.0
  %3743 = vmatpush2.msra.mxu0 0.0
  %3744 = vmatprep.subr.mxu0 0.0
  %3745 = vmatpush2.msra.mxu0 0.0
  %3746 = vmatprep.subr.mxu0 0.0
  %3747 = vmatpush2.msra.mxu0 0.0
  %3748 = vmatprep.subr.mxu0 0.0
  %3749 = vmatpush2.msra.mxu0 0.0
  %3750 = vmatprep.subr.mxu0 0.0
  %3751 = vmatpush2.msra.mxu0 0.0
  %3752 = vmatprep.mubr.f32.mxu0 0.0
  %3753 = vmatmul.mubr.f32.gmra.mxu0 %v767
  %v3754 = vpop.f32.mrf.mxu0
  %v3755 = vadd.f32 0.0, %v3754
  %v3756 = vpop.f32.mrf.mxu0
  %3757 = vmatprep.mubr.f32.mxu0 0.0
  %3758 = vmatmul.mubr.f32.gmra.mxu0 %v770
  %v3759 = vpop.f32.mrf.mxu0
  %v3760 = vadd.f32 0.0, %v3759
  %v3761 = vpop.f32.mrf.mxu0
  %3762 = vdwg.mxu0
  %3763 = vmatprep.subr.mxu0 0.0
  %3764 = vmatpush1.msra.mxu0 0.0
  %3765 = vmatprep.subr.mxu0 0.0
  %3766 = vmatpush1.msra.mxu0 0.0
  %3767 = vmatprep.subr.mxu0 0.0
  %3768 = vmatpush1.msra.mxu0 0.0
  %3769 = vmatprep.subr.mxu0 0.0
  %3770 = vmatpush1.msra.mxu0 0.0
  %3771 = vmatprep.subr.mxu0 0.0
  %3772 = vmatpush1.msra.mxu0 0.0
  %3773 = vmatprep.subr.mxu0 0.0
  %3774 = vmatpush1.msra.mxu0 0.0
  %3775 = vmatprep.subr.mxu0 0.0
  %3776 = vmatpush1.msra.mxu0 0.0
  %3777 = vmatprep.subr.mxu0 0.0
  %3778 = vmatpush1.msra.mxu0 0.0
  %3779 = vmatprep.subr.mxu0 0.0
  %3780 = vmatpush1.msra.mxu0 0.0
  %3781 = vmatprep.subr.mxu0 0.0
  %3782 = vmatpush1.msra.mxu0 0.0
  %3783 = vmatprep.subr.mxu0 0.0
  %3784 = vmatpush1.msra.mxu0 0.0
  %3785 = vmatprep.subr.mxu0 0.0
  %3786 = vmatpush1.msra.mxu0 0.0
  %3787 = vmatprep.subr.mxu0 0.0
  %3788 = vmatpush1.msra.mxu0 0.0
  %3789 = vmatprep.subr.mxu0 0.0
  %3790 = vmatpush1.msra.mxu0 0.0
  %3791 = vmatprep.subr.mxu0 0.0
  %3792 = vmatpush1.msra.mxu0 %v3685
  %3793 = vmatprep.subr.mxu0 0.0
  %3794 = vmatpush1.msra.mxu0 %v3680
  %3795 = vmatprep.subr.mxu0 0.0
  %3796 = vmatpush2.msra.mxu0 0.0
  %3797 = vmatprep.subr.mxu0 0.0
  %3798 = vmatpush2.msra.mxu0 0.0
  %3799 = vmatprep.subr.mxu0 0.0
  %3800 = vmatpush2.msra.mxu0 0.0
  %3801 = vmatprep.subr.mxu0 0.0
  %3802 = vmatpush2.msra.mxu0 0.0
  %3803 = vmatprep.subr.mxu0 0.0
  %3804 = vmatpush2.msra.mxu0 0.0
  %3805 = vmatprep.subr.mxu0 0.0
  %3806 = vmatpush2.msra.mxu0 0.0
  %3807 = vmatprep.subr.mxu0 0.0
  %3808 = vmatpush2.msra.mxu0 0.0
  %3809 = vmatprep.subr.mxu0 0.0
  %3810 = vmatpush2.msra.mxu0 0.0
  %3811 = vmatprep.subr.mxu0 0.0
  %3812 = vmatpush2.msra.mxu0 0.0
  %3813 = vmatprep.subr.mxu0 0.0
  %3814 = vmatpush2.msra.mxu0 0.0
  %3815 = vmatprep.subr.mxu0 0.0
  %3816 = vmatpush2.msra.mxu0 0.0
  %3817 = vmatprep.subr.mxu0 0.0
  %3818 = vmatpush2.msra.mxu0 0.0
  %3819 = vmatprep.subr.mxu0 0.0
  %3820 = vmatpush2.msra.mxu0 0.0
  %3821 = vmatprep.subr.mxu0 0.0
  %3822 = vmatpush2.msra.mxu0 0.0
  %3823 = vmatprep.subr.mxu0 0.0
  %3824 = vmatpush2.msra.mxu0 0.0
  %3825 = vmatprep.subr.mxu0 0.0
  %3826 = vmatpush2.msra.mxu0 0.0
  %3827 = vmatprep.mubr.f32.mxu0 0.0
  %3828 = vmatmul.mubr.f32.gmra.mxu0 %v848
  %v3829 = vpop.f32.mrf.mxu0
  %v3830 = vadd.f32 %v3755, %v3829
  %v3831 = vpop.f32.mrf.mxu0
  %3832 = vmatprep.mubr.f32.mxu0 0.0
  %3833 = vmatmul.mubr.f32.gmra.mxu0 %v851
  %v3834 = vpop.f32.mrf.mxu0
  %v3835 = vadd.f32 %v3760, %v3834
  %v3836 = vpop.f32.mrf.mxu0
  %3837 = vdwg.mxu0
  %v3838 = vadd.f32 %v3830, %v931
  %v3839 = vadd.f32 %v3835, %v936
  %v3840 = vmax.f32 %v3838, 0.0
  %v3841 = vmax.f32 %v3839, 0.0
  %v3843 = vsel %vm145, %v3840, 0
  %v3846 = vsel %vm145, %v3841, 0
  %3848 = vmatprep.subr.mxu0 0.0
  %3849 = vmatpush1.msra.mxu0 0.0
  %3850 = vmatprep.subr.mxu0 0.0
  %3851 = vmatpush1.msra.mxu0 0.0
  %3852 = vmatprep.subr.mxu0 0.0
  %3853 = vmatpush1.msra.mxu0 0.0
  %3854 = vmatprep.subr.mxu0 0.0
  %3855 = vmatpush1.msra.mxu0 0.0
  %3856 = vmatprep.subr.mxu0 0.0
  %3857 = vmatpush1.msra.mxu0 0.0
  %3858 = vmatprep.subr.mxu0 0.0
  %3859 = vmatpush1.msra.mxu0 0.0
  %3860 = vmatprep.subr.mxu0 0.0
  %3861 = vmatpush1.msra.mxu0 0.0
  %3862 = vmatprep.subr.mxu0 0.0
  %3863 = vmatpush1.msra.mxu0 0.0
  %3864 = vmatprep.subr.mxu0 0.0
  %3865 = vmatpush1.msra.mxu0 0.0
  %3866 = vmatprep.subr.mxu0 0.0
  %3867 = vmatpush1.msra.mxu0 0.0
  %3868 = vmatprep.subr.mxu0 0.0
  %3869 = vmatpush1.msra.mxu0 0.0
  %3870 = vmatprep.subr.mxu0 0.0
  %3871 = vmatpush1.msra.mxu0 0.0
  %3872 = vmatprep.subr.mxu0 0.0
  %3873 = vmatpush1.msra.mxu0 0.0
  %3874 = vmatprep.subr.mxu0 0.0
  %3875 = vmatpush1.msra.mxu0 0.0
  %3876 = vmatprep.subr.mxu0 0.0
  %3877 = vmatpush1.msra.mxu0 0.0
  %3878 = vmatprep.subr.mxu0 0.0
  %3879 = vmatpush1.msra.mxu0 %v666
  %3880 = vmatprep.subr.mxu0 0.0
  %3881 = vmatpush2.msra.mxu0 0.0
  %3882 = vmatprep.subr.mxu0 0.0
  %3883 = vmatpush2.msra.mxu0 0.0
  %3884 = vmatprep.subr.mxu0 0.0
  %3885 = vmatpush2.msra.mxu0 0.0
  %3886 = vmatprep.subr.mxu0 0.0
  %3887 = vmatpush2.msra.mxu0 0.0
  %3888 = vmatprep.subr.mxu0 0.0
  %3889 = vmatpush2.msra.mxu0 0.0
  %3890 = vmatprep.subr.mxu0 0.0
  %3891 = vmatpush2.msra.mxu0 0.0
  %3892 = vmatprep.subr.mxu0 0.0
  %3893 = vmatpush2.msra.mxu0 0.0
  %3894 = vmatprep.subr.mxu0 0.0
  %3895 = vmatpush2.msra.mxu0 0.0
  %3896 = vmatprep.subr.mxu0 0.0
  %3897 = vmatpush2.msra.mxu0 0.0
  %3898 = vmatprep.subr.mxu0 0.0
  %3899 = vmatpush2.msra.mxu0 0.0
  %3900 = vmatprep.subr.mxu0 0.0
  %3901 = vmatpush2.msra.mxu0 0.0
  %3902 = vmatprep.subr.mxu0 0.0
  %3903 = vmatpush2.msra.mxu0 0.0
  %3904 = vmatprep.subr.mxu0 0.0
  %3905 = vmatpush2.msra.mxu0 0.0
  %3906 = vmatprep.subr.mxu0 0.0
  %3907 = vmatpush2.msra.mxu0 0.0
  %3908 = vmatprep.subr.mxu0 0.0
  %3909 = vmatpush2.msra.mxu0 0.0
  %3910 = vmatprep.subr.mxu0 0.0
  %3911 = vmatpush2.msra.mxu0 0.0
  %3912 = vmatprep.mubr.f32.mxu0 0.0
  %3913 = vmatmul.mubr.f32.gmra.mxu0 %v3843
  %v3914 = vpop.f32.mrf.mxu0
  %v3915 = vadd.f32 0.0, %v3914
  %v3916 = vpop.f32.mrf.mxu0
  %3917 = vmatprep.mubr.f32.mxu0 0.0
  %3918 = vmatmul.mubr.f32.gmra.mxu0 %v3846
  %v3919 = vpop.f32.mrf.mxu0
  %v3920 = vadd.f32 0.0, %v3919
  %v3921 = vpop.f32.mrf.mxu0
  %3922 = vdwg.mxu0
  %3923 = vmatprep.subr.mxu0 0.0
  %3924 = vmatpush1.msra.mxu0 0.0
  %3925 = vmatprep.subr.mxu0 0.0
  %3926 = vmatpush1.msra.mxu0 0.0
  %3927 = vmatprep.subr.mxu0 0.0
  %3928 = vmatpush1.msra.mxu0 0.0
  %3929 = vmatprep.subr.mxu0 0.0
  %3930 = vmatpush1.msra.mxu0 0.0
  %3931 = vmatprep.subr.mxu0 0.0
  %3932 = vmatpush1.msra.mxu0 0.0
  %3933 = vmatprep.subr.mxu0 0.0
  %3934 = vmatpush1.msra.mxu0 0.0
  %3935 = vmatprep.subr.mxu0 0.0
  %3936 = vmatpush1.msra.mxu0 0.0
  %3937 = vmatprep.subr.mxu0 0.0
  %3938 = vmatpush1.msra.mxu0 0.0
  %3939 = vmatprep.subr.mxu0 0.0
  %3940 = vmatpush1.msra.mxu0 0.0
  %3941 = vmatprep.subr.mxu0 0.0
  %3942 = vmatpush1.msra.mxu0 0.0
  %3943 = vmatprep.subr.mxu0 0.0
  %3944 = vmatpush1.msra.mxu0 0.0
  %3945 = vmatprep.subr.mxu0 0.0
  %3946 = vmatpush1.msra.mxu0 0.0
  %3947 = vmatprep.subr.mxu0 0.0
  %3948 = vmatpush1.msra.mxu0 0.0
  %3949 = vmatprep.subr.mxu0 0.0
  %3950 = vmatpush1.msra.mxu0 0.0
  %3951 = vmatprep.subr.mxu0 0.0
  %3952 = vmatpush1.msra.mxu0 %v3841
  %3953 = vmatprep.subr.mxu0 0.0
  %3954 = vmatpush1.msra.mxu0 %v3840
  %3955 = vmatprep.subr.mxu0 0.0
  %3956 = vmatpush2.msra.mxu0 0.0
  %3957 = vmatprep.subr.mxu0 0.0
  %3958 = vmatpush2.msra.mxu0 0.0
  %3959 = vmatprep.subr.mxu0 0.0
  %3960 = vmatpush2.msra.mxu0 0.0
  %3961 = vmatprep.subr.mxu0 0.0
  %3962 = vmatpush2.msra.mxu0 0.0
  %3963 = vmatprep.subr.mxu0 0.0
  %3964 = vmatpush2.msra.mxu0 0.0
  %3965 = vmatprep.subr.mxu0 0.0
  %3966 = vmatpush2.msra.mxu0 0.0
  %3967 = vmatprep.subr.mxu0 0.0
  %3968 = vmatpush2.msra.mxu0 0.0
  %3969 = vmatprep.subr.mxu0 0.0
  %3970 = vmatpush2.msra.mxu0 0.0
  %3971 = vmatprep.subr.mxu0 0.0
  %3972 = vmatpush2.msra.mxu0 0.0
  %3973 = vmatprep.subr.mxu0 0.0
  %3974 = vmatpush2.msra.mxu0 0.0
  %3975 = vmatprep.subr.mxu0 0.0
  %3976 = vmatpush2.msra.mxu0 0.0
  %3977 = vmatprep.subr.mxu0 0.0
  %3978 = vmatpush2.msra.mxu0 0.0
  %3979 = vmatprep.subr.mxu0 0.0
  %3980 = vmatpush2.msra.mxu0 0.0
  %3981 = vmatprep.subr.mxu0 0.0
  %3982 = vmatpush2.msra.mxu0 0.0
  %3983 = vmatprep.subr.mxu0 0.0
  %3984 = vmatpush2.msra.mxu0 0.0
  %3985 = vmatprep.subr.mxu0 0.0
  %3986 = vmatpush2.msra.mxu0 0.0
  %3987 = vmatprep.mubr.f32.mxu0 0.0
  %3988 = vmatmul.mubr.f32.gmra.mxu0 %v1024
  %v3989 = vpop.f32.mrf.mxu0
  %v3990 = vadd.f32 0.0, %v3989
  %v3991 = vpop.f32.mrf.mxu0
  %3992 = vmatprep.mubr.f32.mxu0 0.0
  %3993 = vmatmul.mubr.f32.gmra.mxu0 %v1027
  %v3994 = vpop.f32.mrf.mxu0
  %v3995 = vadd.f32 0.0, %v3994
  %v3996 = vpop.f32.mrf.mxu0
  %3997 = vdwg.mxu0
  %3998 = vmatprep.subr.mxu0 0.0
  %3999 = vmatpush1.msra.mxu0 0.0
  %4000 = vmatprep.subr.mxu0 0.0
  %4001 = vmatpush1.msra.mxu0 0.0
  %4002 = vmatprep.subr.mxu0 0.0
  %4003 = vmatpush1.msra.mxu0 0.0
  %4004 = vmatprep.subr.mxu0 0.0
  %4005 = vmatpush1.msra.mxu0 0.0
  %4006 = vmatprep.subr.mxu0 0.0
  %4007 = vmatpush1.msra.mxu0 0.0
  %4008 = vmatprep.subr.mxu0 0.0
  %4009 = vmatpush1.msra.mxu0 0.0
  %4010 = vmatprep.subr.mxu0 0.0
  %4011 = vmatpush1.msra.mxu0 0.0
  %4012 = vmatprep.subr.mxu0 0.0
  %4013 = vmatpush1.msra.mxu0 0.0
  %4014 = vmatprep.subr.mxu0 0.0
  %4015 = vmatpush1.msra.mxu0 0.0
  %4016 = vmatprep.subr.mxu0 0.0
  %4017 = vmatpush1.msra.mxu0 0.0
  %4018 = vmatprep.subr.mxu0 0.0
  %4019 = vmatpush1.msra.mxu0 0.0
  %4020 = vmatprep.subr.mxu0 0.0
  %4021 = vmatpush1.msra.mxu0 0.0
  %4022 = vmatprep.subr.mxu0 0.0
  %4023 = vmatpush1.msra.mxu0 0.0
  %4024 = vmatprep.subr.mxu0 0.0
  %4025 = vmatpush1.msra.mxu0 0.0
  %4026 = vmatprep.subr.mxu0 0.0
  %4027 = vmatpush1.msra.mxu0 %v3920
  %4028 = vmatprep.subr.mxu0 0.0
  %4029 = vmatpush1.msra.mxu0 %v3915
  %4030 = vmatprep.subr.mxu0 0.0
  %4031 = vmatpush2.msra.mxu0 0.0
  %4032 = vmatprep.subr.mxu0 0.0
  %4033 = vmatpush2.msra.mxu0 0.0
  %4034 = vmatprep.subr.mxu0 0.0
  %4035 = vmatpush2.msra.mxu0 0.0
  %4036 = vmatprep.subr.mxu0 0.0
  %4037 = vmatpush2.msra.mxu0 0.0
  %4038 = vmatprep.subr.mxu0 0.0
  %4039 = vmatpush2.msra.mxu0 0.0
  %4040 = vmatprep.subr.mxu0 0.0
  %4041 = vmatpush2.msra.mxu0 0.0
  %4042 = vmatprep.subr.mxu0 0.0
  %4043 = vmatpush2.msra.mxu0 0.0
  %4044 = vmatprep.subr.mxu0 0.0
  %4045 = vmatpush2.msra.mxu0 0.0
  %4046 = vmatprep.subr.mxu0 0.0
  %4047 = vmatpush2.msra.mxu0 0.0
  %4048 = vmatprep.subr.mxu0 0.0
  %4049 = vmatpush2.msra.mxu0 0.0
  %4050 = vmatprep.subr.mxu0 0.0
  %4051 = vmatpush2.msra.mxu0 0.0
  %4052 = vmatprep.subr.mxu0 0.0
  %4053 = vmatpush2.msra.mxu0 0.0
  %4054 = vmatprep.subr.mxu0 0.0
  %4055 = vmatpush2.msra.mxu0 0.0
  %4056 = vmatprep.subr.mxu0 0.0
  %4057 = vmatpush2.msra.mxu0 0.0
  %4058 = vmatprep.subr.mxu0 0.0
  %4059 = vmatpush2.msra.mxu0 0.0
  %4060 = vmatprep.subr.mxu0 0.0
  %4061 = vmatpush2.msra.mxu0 0.0
  %4062 = vmatprep.mubr.f32.mxu0 0.0
  %4063 = vmatmul.mubr.f32.gmra.mxu0 %v1105
  %v4064 = vpop.f32.mrf.mxu0
  %v4065 = vadd.f32 %v3990, %v4064
  %v4066 = vpop.f32.mrf.mxu0
  %4067 = vmatprep.mubr.f32.mxu0 0.0
  %4068 = vmatmul.mubr.f32.gmra.mxu0 %v1108
  %v4069 = vpop.f32.mrf.mxu0
  %v4070 = vadd.f32 %v3995, %v4069
  %v4071 = vpop.f32.mrf.mxu0
  %4072 = vdwg.mxu0
  %v4073 = vadd.f32 %v4065, %v1188
  %v4074 = vadd.f32 %v4070, %v1193
  %v4075 = vmax.f32 %v4073, 0.0
  %v4076 = vmax.f32 %v4074, 0.0
  %v4077 = vadd.f32 %v4075, %v3605
  %v4078 = vadd.f32 %v4076, %v3606
  %v4079 = vmax.f32 %v4077, 0.0
  %v4080 = vmax.f32 %v4078, 0.0
  %v4082 = vsel %vm145, %v4079, 0
  %v4085 = vsel %vm145, %v4080, 0
  %4087 = vmatprep.subr.mxu0 0.0
  %4088 = vmatpush1.msra.mxu0 0.0
  %4089 = vmatprep.subr.mxu0 0.0
  %4090 = vmatpush1.msra.mxu0 0.0
  %4091 = vmatprep.subr.mxu0 0.0
  %4092 = vmatpush1.msra.mxu0 0.0
  %4093 = vmatprep.subr.mxu0 0.0
  %4094 = vmatpush1.msra.mxu0 0.0
  %4095 = vmatprep.subr.mxu0 0.0
  %4096 = vmatpush1.msra.mxu0 0.0
  %4097 = vmatprep.subr.mxu0 0.0
  %4098 = vmatpush1.msra.mxu0 0.0
  %4099 = vmatprep.subr.mxu0 0.0
  %4100 = vmatpush1.msra.mxu0 0.0
  %4101 = vmatprep.subr.mxu0 0.0
  %4102 = vmatpush1.msra.mxu0 0.0
  %4103 = vmatprep.subr.mxu0 0.0
  %4104 = vmatpush1.msra.mxu0 0.0
  %4105 = vmatprep.subr.mxu0 0.0
  %4106 = vmatpush1.msra.mxu0 0.0
  %4107 = vmatprep.subr.mxu0 0.0
  %4108 = vmatpush1.msra.mxu0 0.0
  %4109 = vmatprep.subr.mxu0 0.0
  %4110 = vmatpush1.msra.mxu0 0.0
  %4111 = vmatprep.subr.mxu0 0.0
  %4112 = vmatpush1.msra.mxu0 0.0
  %4113 = vmatprep.subr.mxu0 0.0
  %4114 = vmatpush1.msra.mxu0 0.0
  %4115 = vmatprep.subr.mxu0 0.0
  %4116 = vmatpush1.msra.mxu0 0.0
  %4117 = vmatprep.subr.mxu0 0.0
  %4118 = vmatpush1.msra.mxu0 %v1204
  %4119 = vmatprep.subr.mxu0 0.0
  %4120 = vmatpush2.msra.mxu0 0.0
  %4121 = vmatprep.subr.mxu0 0.0
  %4122 = vmatpush2.msra.mxu0 0.0
  %4123 = vmatprep.subr.mxu0 0.0
  %4124 = vmatpush2.msra.mxu0 0.0
  %4125 = vmatprep.subr.mxu0 0.0
  %4126 = vmatpush2.msra.mxu0 0.0
  %4127 = vmatprep.subr.mxu0 0.0
  %4128 = vmatpush2.msra.mxu0 0.0
  %4129 = vmatprep.subr.mxu0 0.0
  %4130 = vmatpush2.msra.mxu0 0.0
  %4131 = vmatprep.subr.mxu0 0.0
  %4132 = vmatpush2.msra.mxu0 0.0
  %4133 = vmatprep.subr.mxu0 0.0
  %4134 = vmatpush2.msra.mxu0 0.0
  %4135 = vmatprep.subr.mxu0 0.0
  %4136 = vmatpush2.msra.mxu0 0.0
  %4137 = vmatprep.subr.mxu0 0.0
  %4138 = vmatpush2.msra.mxu0 0.0
  %4139 = vmatprep.subr.mxu0 0.0
  %4140 = vmatpush2.msra.mxu0 0.0
  %4141 = vmatprep.subr.mxu0 0.0
  %4142 = vmatpush2.msra.mxu0 0.0
  %4143 = vmatprep.subr.mxu0 0.0
  %4144 = vmatpush2.msra.mxu0 0.0
  %4145 = vmatprep.subr.mxu0 0.0
  %4146 = vmatpush2.msra.mxu0 0.0
  %4147 = vmatprep.subr.mxu0 0.0
  %4148 = vmatpush2.msra.mxu0 0.0
  %4149 = vmatprep.subr.mxu0 0.0
  %4150 = vmatpush2.msra.mxu0 0.0
  %4151 = vmatprep.mubr.f32.mxu0 0.0
  %4152 = vmatmul.mubr.f32.gmra.mxu0 %v4082
  %v4153 = vpop.f32.mrf.mxu0
  %v4154 = vadd.f32 0.0, %v4153
  %v4155 = vpop.f32.mrf.mxu0
  %4156 = vmatprep.mubr.f32.mxu0 0.0
  %4157 = vmatmul.mubr.f32.gmra.mxu0 %v4085
  %v4158 = vpop.f32.mrf.mxu0
  %v4159 = vadd.f32 0.0, %v4158
  %v4160 = vpop.f32.mrf.mxu0
  %4161 = vdwg.mxu0
  %4162 = vmatprep.subr.mxu0 0.0
  %4163 = vmatpush1.msra.mxu0 0.0
  %4164 = vmatprep.subr.mxu0 0.0
  %4165 = vmatpush1.msra.mxu0 0.0
  %4166 = vmatprep.subr.mxu0 0.0
  %4167 = vmatpush1.msra.mxu0 0.0
  %4168 = vmatprep.subr.mxu0 0.0
  %4169 = vmatpush1.msra.mxu0 0.0
  %4170 = vmatprep.subr.mxu0 0.0
  %4171 = vmatpush1.msra.mxu0 0.0
  %4172 = vmatprep.subr.mxu0 0.0
  %4173 = vmatpush1.msra.mxu0 0.0
  %4174 = vmatprep.subr.mxu0 0.0
  %4175 = vmatpush1.msra.mxu0 0.0
  %4176 = vmatprep.subr.mxu0 0.0
  %4177 = vmatpush1.msra.mxu0 0.0
  %4178 = vmatprep.subr.mxu0 0.0
  %4179 = vmatpush1.msra.mxu0 0.0
  %4180 = vmatprep.subr.mxu0 0.0
  %4181 = vmatpush1.msra.mxu0 0.0
  %4182 = vmatprep.subr.mxu0 0.0
  %4183 = vmatpush1.msra.mxu0 0.0
  %4184 = vmatprep.subr.mxu0 0.0
  %4185 = vmatpush1.msra.mxu0 0.0
  %4186 = vmatprep.subr.mxu0 0.0
  %4187 = vmatpush1.msra.mxu0 0.0
  %4188 = vmatprep.subr.mxu0 0.0
  %4189 = vmatpush1.msra.mxu0 0.0
  %4190 = vmatprep.subr.mxu0 0.0
  %4191 = vmatpush1.msra.mxu0 %v4080
  %4192 = vmatprep.subr.mxu0 0.0
  %4193 = vmatpush1.msra.mxu0 %v4079
  %4194 = vmatprep.subr.mxu0 0.0
  %4195 = vmatpush2.msra.mxu0 0.0
  %4196 = vmatprep.subr.mxu0 0.0
  %4197 = vmatpush2.msra.mxu0 0.0
  %4198 = vmatprep.subr.mxu0 0.0
  %4199 = vmatpush2.msra.mxu0 0.0
  %4200 = vmatprep.subr.mxu0 0.0
  %4201 = vmatpush2.msra.mxu0 0.0
  %4202 = vmatprep.subr.mxu0 0.0
  %4203 = vmatpush2.msra.mxu0 0.0
  %4204 = vmatprep.subr.mxu0 0.0
  %4205 = vmatpush2.msra.mxu0 0.0
  %4206 = vmatprep.subr.mxu0 0.0
  %4207 = vmatpush2.msra.mxu0 0.0
  %4208 = vmatprep.subr.mxu0 0.0
  %4209 = vmatpush2.msra.mxu0 0.0
  %4210 = vmatprep.subr.mxu0 0.0
  %4211 = vmatpush2.msra.mxu0 0.0
  %4212 = vmatprep.subr.mxu0 0.0
  %4213 = vmatpush2.msra.mxu0 0.0
  %4214 = vmatprep.subr.mxu0 0.0
  %4215 = vmatpush2.msra.mxu0 0.0
  %4216 = vmatprep.subr.mxu0 0.0
  %4217 = vmatpush2.msra.mxu0 0.0
  %4218 = vmatprep.subr.mxu0 0.0
  %4219 = vmatpush2.msra.mxu0 0.0
  %4220 = vmatprep.subr.mxu0 0.0
  %4221 = vmatpush2.msra.mxu0 0.0
  %4222 = vmatprep.subr.mxu0 0.0
  %4223 = vmatpush2.msra.mxu0 0.0
  %4224 = vmatprep.subr.mxu0 0.0
  %4225 = vmatpush2.msra.mxu0 0.0
  %4226 = vmatprep.mubr.f32.mxu0 0.0
  %4227 = vmatmul.mubr.f32.gmra.mxu0 %v1305
  %v4228 = vpop.f32.mrf.mxu0
  %v4229 = vadd.f32 0.0, %v4228
  %v4230 = vpop.f32.mrf.mxu0
  %4231 = vmatprep.mubr.f32.mxu0 0.0
  %4232 = vmatmul.mubr.f32.gmra.mxu0 %v1308
  %v4233 = vpop.f32.mrf.mxu0
  %v4234 = vadd.f32 0.0, %v4233
  %v4235 = vpop.f32.mrf.mxu0
  %4236 = vdwg.mxu0
  %4237 = vmatprep.subr.mxu0 0.0
  %4238 = vmatpush1.msra.mxu0 0.0
  %4239 = vmatprep.subr.mxu0 0.0
  %4240 = vmatpush1.msra.mxu0 0.0
  %4241 = vmatprep.subr.mxu0 0.0
  %4242 = vmatpush1.msra.mxu0 0.0
  %4243 = vmatprep.subr.mxu0 0.0
  %4244 = vmatpush1.msra.mxu0 0.0
  %4245 = vmatprep.subr.mxu0 0.0
  %4246 = vmatpush1.msra.mxu0 0.0
  %4247 = vmatprep.subr.mxu0 0.0
  %4248 = vmatpush1.msra.mxu0 0.0
  %4249 = vmatprep.subr.mxu0 0.0
  %4250 = vmatpush1.msra.mxu0 0.0
  %4251 = vmatprep.subr.mxu0 0.0
  %4252 = vmatpush1.msra.mxu0 0.0
  %4253 = vmatprep.subr.mxu0 0.0
  %4254 = vmatpush1.msra.mxu0 0.0
  %4255 = vmatprep.subr.mxu0 0.0
  %4256 = vmatpush1.msra.mxu0 0.0
  %4257 = vmatprep.subr.mxu0 0.0
  %4258 = vmatpush1.msra.mxu0 0.0
  %4259 = vmatprep.subr.mxu0 0.0
  %4260 = vmatpush1.msra.mxu0 0.0
  %4261 = vmatprep.subr.mxu0 0.0
  %4262 = vmatpush1.msra.mxu0 0.0
  %4263 = vmatprep.subr.mxu0 0.0
  %4264 = vmatpush1.msra.mxu0 0.0
  %4265 = vmatprep.subr.mxu0 0.0
  %4266 = vmatpush1.msra.mxu0 %v4159
  %4267 = vmatprep.subr.mxu0 0.0
  %4268 = vmatpush1.msra.mxu0 %v4154
  %4269 = vmatprep.subr.mxu0 0.0
  %4270 = vmatpush2.msra.mxu0 0.0
  %4271 = vmatprep.subr.mxu0 0.0
  %4272 = vmatpush2.msra.mxu0 0.0
  %4273 = vmatprep.subr.mxu0 0.0
  %4274 = vmatpush2.msra.mxu0 0.0
  %4275 = vmatprep.subr.mxu0 0.0
  %4276 = vmatpush2.msra.mxu0 0.0
  %4277 = vmatprep.subr.mxu0 0.0
  %4278 = vmatpush2.msra.mxu0 0.0
  %4279 = vmatprep.subr.mxu0 0.0
  %4280 = vmatpush2.msra.mxu0 0.0
  %4281 = vmatprep.subr.mxu0 0.0
  %4282 = vmatpush2.msra.mxu0 0.0
  %4283 = vmatprep.subr.mxu0 0.0
  %4284 = vmatpush2.msra.mxu0 0.0
  %4285 = vmatprep.subr.mxu0 0.0
  %4286 = vmatpush2.msra.mxu0 0.0
  %4287 = vmatprep.subr.mxu0 0.0
  %4288 = vmatpush2.msra.mxu0 0.0
  %4289 = vmatprep.subr.mxu0 0.0
  %4290 = vmatpush2.msra.mxu0 0.0
  %4291 = vmatprep.subr.mxu0 0.0
  %4292 = vmatpush2.msra.mxu0 0.0
  %4293 = vmatprep.subr.mxu0 0.0
  %4294 = vmatpush2.msra.mxu0 0.0
  %4295 = vmatprep.subr.mxu0 0.0
  %4296 = vmatpush2.msra.mxu0 0.0
  %4297 = vmatprep.subr.mxu0 0.0
  %4298 = vmatpush2.msra.mxu0 0.0
  %4299 = vmatprep.subr.mxu0 0.0
  %4300 = vmatpush2.msra.mxu0 0.0
  %4301 = vmatprep.mubr.f32.mxu0 0.0
  %4302 = vmatmul.mubr.f32.gmra.mxu0 %v1386
  %v4303 = vpop.f32.mrf.mxu0
  %v4304 = vadd.f32 %v4229, %v4303
  %v4305 = vpop.f32.mrf.mxu0
  %4306 = vmatprep.mubr.f32.mxu0 0.0
  %4307 = vmatmul.mubr.f32.gmra.mxu0 %v1389
  %v4308 = vpop.f32.mrf.mxu0
  %v4309 = vadd.f32 %v4234, %v4308
  %v4310 = vpop.f32.mrf.mxu0
  %4311 = vdwg.mxu0
  %v4312 = vadd.f32 %v4304, %v1469
  %v4313 = vadd.f32 %v4309, %v1474
  %v4314 = vmax.f32 %v4312, 0.0
  %v4315 = vmax.f32 %v4313, 0.0
  %v4317 = vsel %vm145, %v4314, 0
  %v4320 = vsel %vm145, %v4315, 0
  %4322 = vmatprep.subr.mxu0 0.0
  %4323 = vmatpush1.msra.mxu0 0.0
  %4324 = vmatprep.subr.mxu0 0.0
  %4325 = vmatpush1.msra.mxu0 0.0
  %4326 = vmatprep.subr.mxu0 0.0
  %4327 = vmatpush1.msra.mxu0 0.0
  %4328 = vmatprep.subr.mxu0 0.0
  %4329 = vmatpush1.msra.mxu0 0.0
  %4330 = vmatprep.subr.mxu0 0.0
  %4331 = vmatpush1.msra.mxu0 0.0
  %4332 = vmatprep.subr.mxu0 0.0
  %4333 = vmatpush1.msra.mxu0 0.0
  %4334 = vmatprep.subr.mxu0 0.0
  %4335 = vmatpush1.msra.mxu0 0.0
  %4336 = vmatprep.subr.mxu0 0.0
  %4337 = vmatpush1.msra.mxu0 0.0
  %4338 = vmatprep.subr.mxu0 0.0
  %4339 = vmatpush1.msra.mxu0 0.0
  %4340 = vmatprep.subr.mxu0 0.0
  %4341 = vmatpush1.msra.mxu0 0.0
  %4342 = vmatprep.subr.mxu0 0.0
  %4343 = vmatpush1.msra.mxu0 0.0
  %4344 = vmatprep.subr.mxu0 0.0
  %4345 = vmatpush1.msra.mxu0 0.0
  %4346 = vmatprep.subr.mxu0 0.0
  %4347 = vmatpush1.msra.mxu0 0.0
  %4348 = vmatprep.subr.mxu0 0.0
  %4349 = vmatpush1.msra.mxu0 0.0
  %4350 = vmatprep.subr.mxu0 0.0
  %4351 = vmatpush1.msra.mxu0 0.0
  %4352 = vmatprep.subr.mxu0 0.0
  %4353 = vmatpush1.msra.mxu0 %v1204
  %4354 = vmatprep.subr.mxu0 0.0
  %4355 = vmatpush2.msra.mxu0 0.0
  %4356 = vmatprep.subr.mxu0 0.0
  %4357 = vmatpush2.msra.mxu0 0.0
  %4358 = vmatprep.subr.mxu0 0.0
  %4359 = vmatpush2.msra.mxu0 0.0
  %4360 = vmatprep.subr.mxu0 0.0
  %4361 = vmatpush2.msra.mxu0 0.0
  %4362 = vmatprep.subr.mxu0 0.0
  %4363 = vmatpush2.msra.mxu0 0.0
  %4364 = vmatprep.subr.mxu0 0.0
  %4365 = vmatpush2.msra.mxu0 0.0
  %4366 = vmatprep.subr.mxu0 0.0
  %4367 = vmatpush2.msra.mxu0 0.0
  %4368 = vmatprep.subr.mxu0 0.0
  %4369 = vmatpush2.msra.mxu0 0.0
  %4370 = vmatprep.subr.mxu0 0.0
  %4371 = vmatpush2.msra.mxu0 0.0
  %4372 = vmatprep.subr.mxu0 0.0
  %4373 = vmatpush2.msra.mxu0 0.0
  %4374 = vmatprep.subr.mxu0 0.0
  %4375 = vmatpush2.msra.mxu0 0.0
  %4376 = vmatprep.subr.mxu0 0.0
  %4377 = vmatpush2.msra.mxu0 0.0
  %4378 = vmatprep.subr.mxu0 0.0
  %4379 = vmatpush2.msra.mxu0 0.0
  %4380 = vmatprep.subr.mxu0 0.0
  %4381 = vmatpush2.msra.mxu0 0.0
  %4382 = vmatprep.subr.mxu0 0.0
  %4383 = vmatpush2.msra.mxu0 0.0
  %4384 = vmatprep.subr.mxu0 0.0
  %4385 = vmatpush2.msra.mxu0 0.0
  %4386 = vmatprep.mubr.f32.mxu0 0.0
  %4387 = vmatmul.mubr.f32.gmra.mxu0 %v4317
  %v4388 = vpop.f32.mrf.mxu0
  %v4389 = vadd.f32 0.0, %v4388
  %v4390 = vpop.f32.mrf.mxu0
  %4391 = vmatprep.mubr.f32.mxu0 0.0
  %4392 = vmatmul.mubr.f32.gmra.mxu0 %v4320
  %v4393 = vpop.f32.mrf.mxu0
  %v4394 = vadd.f32 0.0, %v4393
  %v4395 = vpop.f32.mrf.mxu0
  %4396 = vdwg.mxu0
  %4397 = vmatprep.subr.mxu0 0.0
  %4398 = vmatpush1.msra.mxu0 0.0
  %4399 = vmatprep.subr.mxu0 0.0
  %4400 = vmatpush1.msra.mxu0 0.0
  %4401 = vmatprep.subr.mxu0 0.0
  %4402 = vmatpush1.msra.mxu0 0.0
  %4403 = vmatprep.subr.mxu0 0.0
  %4404 = vmatpush1.msra.mxu0 0.0
  %4405 = vmatprep.subr.mxu0 0.0
  %4406 = vmatpush1.msra.mxu0 0.0
  %4407 = vmatprep.subr.mxu0 0.0
  %4408 = vmatpush1.msra.mxu0 0.0
  %4409 = vmatprep.subr.mxu0 0.0
  %4410 = vmatpush1.msra.mxu0 0.0
  %4411 = vmatprep.subr.mxu0 0.0
  %4412 = vmatpush1.msra.mxu0 0.0
  %4413 = vmatprep.subr.mxu0 0.0
  %4414 = vmatpush1.msra.mxu0 0.0
  %4415 = vmatprep.subr.mxu0 0.0
  %4416 = vmatpush1.msra.mxu0 0.0
  %4417 = vmatprep.subr.mxu0 0.0
  %4418 = vmatpush1.msra.mxu0 0.0
  %4419 = vmatprep.subr.mxu0 0.0
  %4420 = vmatpush1.msra.mxu0 0.0
  %4421 = vmatprep.subr.mxu0 0.0
  %4422 = vmatpush1.msra.mxu0 0.0
  %4423 = vmatprep.subr.mxu0 0.0
  %4424 = vmatpush1.msra.mxu0 0.0
  %4425 = vmatprep.subr.mxu0 0.0
  %4426 = vmatpush1.msra.mxu0 %v4315
  %4427 = vmatprep.subr.mxu0 0.0
  %4428 = vmatpush1.msra.mxu0 %v4314
  %4429 = vmatprep.subr.mxu0 0.0
  %4430 = vmatpush2.msra.mxu0 0.0
  %4431 = vmatprep.subr.mxu0 0.0
  %4432 = vmatpush2.msra.mxu0 0.0
  %4433 = vmatprep.subr.mxu0 0.0
  %4434 = vmatpush2.msra.mxu0 0.0
  %4435 = vmatprep.subr.mxu0 0.0
  %4436 = vmatpush2.msra.mxu0 0.0
  %4437 = vmatprep.subr.mxu0 0.0
  %4438 = vmatpush2.msra.mxu0 0.0
  %4439 = vmatprep.subr.mxu0 0.0
  %4440 = vmatpush2.msra.mxu0 0.0
  %4441 = vmatprep.subr.mxu0 0.0
  %4442 = vmatpush2.msra.mxu0 0.0
  %4443 = vmatprep.subr.mxu0 0.0
  %4444 = vmatpush2.msra.mxu0 0.0
  %4445 = vmatprep.subr.mxu0 0.0
  %4446 = vmatpush2.msra.mxu0 0.0
  %4447 = vmatprep.subr.mxu0 0.0
  %4448 = vmatpush2.msra.mxu0 0.0
  %4449 = vmatprep.subr.mxu0 0.0
  %4450 = vmatpush2.msra.mxu0 0.0
  %4451 = vmatprep.subr.mxu0 0.0
  %4452 = vmatpush2.msra.mxu0 0.0
  %4453 = vmatprep.subr.mxu0 0.0
  %4454 = vmatpush2.msra.mxu0 0.0
  %4455 = vmatprep.subr.mxu0 0.0
  %4456 = vmatpush2.msra.mxu0 0.0
  %4457 = vmatprep.subr.mxu0 0.0
  %4458 = vmatpush2.msra.mxu0 0.0
  %4459 = vmatprep.subr.mxu0 0.0
  %4460 = vmatpush2.msra.mxu0 0.0
  %4461 = vmatprep.mubr.f32.mxu0 0.0
  %4462 = vmatmul.mubr.f32.gmra.mxu0 %v1562
  %v4463 = vpop.f32.mrf.mxu0
  %v4464 = vadd.f32 0.0, %v4463
  %v4465 = vpop.f32.mrf.mxu0
  %4466 = vmatprep.mubr.f32.mxu0 0.0
  %4467 = vmatmul.mubr.f32.gmra.mxu0 %v1565
  %v4468 = vpop.f32.mrf.mxu0
  %v4469 = vadd.f32 0.0, %v4468
  %v4470 = vpop.f32.mrf.mxu0
  %4471 = vdwg.mxu0
  %4472 = vmatprep.subr.mxu0 0.0
  %4473 = vmatpush1.msra.mxu0 0.0
  %4474 = vmatprep.subr.mxu0 0.0
  %4475 = vmatpush1.msra.mxu0 0.0
  %4476 = vmatprep.subr.mxu0 0.0
  %4477 = vmatpush1.msra.mxu0 0.0
  %4478 = vmatprep.subr.mxu0 0.0
  %4479 = vmatpush1.msra.mxu0 0.0
  %4480 = vmatprep.subr.mxu0 0.0
  %4481 = vmatpush1.msra.mxu0 0.0
  %4482 = vmatprep.subr.mxu0 0.0
  %4483 = vmatpush1.msra.mxu0 0.0
  %4484 = vmatprep.subr.mxu0 0.0
  %4485 = vmatpush1.msra.mxu0 0.0
  %4486 = vmatprep.subr.mxu0 0.0
  %4487 = vmatpush1.msra.mxu0 0.0
  %4488 = vmatprep.subr.mxu0 0.0
  %4489 = vmatpush1.msra.mxu0 0.0
  %4490 = vmatprep.subr.mxu0 0.0
  %4491 = vmatpush1.msra.mxu0 0.0
  %4492 = vmatprep.subr.mxu0 0.0
  %4493 = vmatpush1.msra.mxu0 0.0
  %4494 = vmatprep.subr.mxu0 0.0
  %4495 = vmatpush1.msra.mxu0 0.0
  %4496 = vmatprep.subr.mxu0 0.0
  %4497 = vmatpush1.msra.mxu0 0.0
  %4498 = vmatprep.subr.mxu0 0.0
  %4499 = vmatpush1.msra.mxu0 0.0
  %4500 = vmatprep.subr.mxu0 0.0
  %4501 = vmatpush1.msra.mxu0 %v4394
  %4502 = vmatprep.subr.mxu0 0.0
  %4503 = vmatpush1.msra.mxu0 %v4389
  %4504 = vmatprep.subr.mxu0 0.0
  %4505 = vmatpush2.msra.mxu0 0.0
  %4506 = vmatprep.subr.mxu0 0.0
  %4507 = vmatpush2.msra.mxu0 0.0
  %4508 = vmatprep.subr.mxu0 0.0
  %4509 = vmatpush2.msra.mxu0 0.0
  %4510 = vmatprep.subr.mxu0 0.0
  %4511 = vmatpush2.msra.mxu0 0.0
  %4512 = vmatprep.subr.mxu0 0.0
  %4513 = vmatpush2.msra.mxu0 0.0
  %4514 = vmatprep.subr.mxu0 0.0
  %4515 = vmatpush2.msra.mxu0 0.0
  %4516 = vmatprep.subr.mxu0 0.0
  %4517 = vmatpush2.msra.mxu0 0.0
  %4518 = vmatprep.subr.mxu0 0.0
  %4519 = vmatpush2.msra.mxu0 0.0
  %4520 = vmatprep.subr.mxu0 0.0
  %4521 = vmatpush2.msra.mxu0 0.0
  %4522 = vmatprep.subr.mxu0 0.0
  %4523 = vmatpush2.msra.mxu0 0.0
  %4524 = vmatprep.subr.mxu0 0.0
  %4525 = vmatpush2.msra.mxu0 0.0
  %4526 = vmatprep.subr.mxu0 0.0
  %4527 = vmatpush2.msra.mxu0 0.0
  %4528 = vmatprep.subr.mxu0 0.0
  %4529 = vmatpush2.msra.mxu0 0.0
  %4530 = vmatprep.subr.mxu0 0.0
  %4531 = vmatpush2.msra.mxu0 0.0
  %4532 = vmatprep.subr.mxu0 0.0
  %4533 = vmatpush2.msra.mxu0 0.0
  %4534 = vmatprep.subr.mxu0 0.0
  %4535 = vmatpush2.msra.mxu0 0.0
  %4536 = vmatprep.mubr.f32.mxu0 0.0
  %4537 = vmatmul.mubr.f32.gmra.mxu0 %v1643
  %v4538 = vpop.f32.mrf.mxu0
  %v4539 = vadd.f32 %v4464, %v4538
  %v4540 = vpop.f32.mrf.mxu0
  %4541 = vmatprep.mubr.f32.mxu0 0.0
  %4542 = vmatmul.mubr.f32.gmra.mxu0 %v1646
  %v4543 = vpop.f32.mrf.mxu0
  %v4544 = vadd.f32 %v4469, %v4543
  %v4545 = vpop.f32.mrf.mxu0
  %4546 = vdwg.mxu0
  %v4547 = vadd.f32 %v4539, %v1726
  %v4548 = vadd.f32 %v4544, %v1731
  %v4549 = vmax.f32 %v4547, 0.0
  %v4550 = vmax.f32 %v4548, 0.0
  %v4551 = vadd.f32 %v4549, %v4079
  %v4552 = vadd.f32 %v4550, %v4080
  %v4553 = vmax.f32 %v4551, 0.0
  %v4554 = vmax.f32 %v4552, 0.0
  %v4556 = vsel %vm145, %v4553, 0
  %v4559 = vsel %vm145, %v4554, 0
  %4561 = vmatprep.subr.mxu0 0.0
  %4562 = vmatpush1.msra.mxu0 0.0
  %4563 = vmatprep.subr.mxu0 0.0
  %4564 = vmatpush1.msra.mxu0 0.0
  %4565 = vmatprep.subr.mxu0 0.0
  %4566 = vmatpush1.msra.mxu0 0.0
  %4567 = vmatprep.subr.mxu0 0.0
  %4568 = vmatpush1.msra.mxu0 0.0
  %4569 = vmatprep.subr.mxu0 0.0
  %4570 = vmatpush1.msra.mxu0 0.0
  %4571 = vmatprep.subr.mxu0 0.0
  %4572 = vmatpush1.msra.mxu0 0.0
  %4573 = vmatprep.subr.mxu0 0.0
  %4574 = vmatpush1.msra.mxu0 0.0
  %4575 = vmatprep.subr.mxu0 0.0
  %4576 = vmatpush1.msra.mxu0 0.0
  %4577 = vmatprep.subr.mxu0 0.0
  %4578 = vmatpush1.msra.mxu0 0.0
  %4579 = vmatprep.subr.mxu0 0.0
  %4580 = vmatpush1.msra.mxu0 0.0
  %4581 = vmatprep.subr.mxu0 0.0
  %4582 = vmatpush1.msra.mxu0 0.0
  %4583 = vmatprep.subr.mxu0 0.0
  %4584 = vmatpush1.msra.mxu0 0.0
  %4585 = vmatprep.subr.mxu0 0.0
  %4586 = vmatpush1.msra.mxu0 0.0
  %4587 = vmatprep.subr.mxu0 0.0
  %4588 = vmatpush1.msra.mxu0 0.0
  %4589 = vmatprep.subr.mxu0 0.0
  %4590 = vmatpush1.msra.mxu0 0.0
  %4591 = vmatprep.subr.mxu0 0.0
  %4592 = vmatpush1.msra.mxu0 %v1742
  %4593 = vmatprep.subr.mxu0 0.0
  %4594 = vmatpush2.msra.mxu0 0.0
  %4595 = vmatprep.subr.mxu0 0.0
  %4596 = vmatpush2.msra.mxu0 0.0
  %4597 = vmatprep.subr.mxu0 0.0
  %4598 = vmatpush2.msra.mxu0 0.0
  %4599 = vmatprep.subr.mxu0 0.0
  %4600 = vmatpush2.msra.mxu0 0.0
  %4601 = vmatprep.subr.mxu0 0.0
  %4602 = vmatpush2.msra.mxu0 0.0
  %4603 = vmatprep.subr.mxu0 0.0
  %4604 = vmatpush2.msra.mxu0 0.0
  %4605 = vmatprep.subr.mxu0 0.0
  %4606 = vmatpush2.msra.mxu0 0.0
  %4607 = vmatprep.subr.mxu0 0.0
  %4608 = vmatpush2.msra.mxu0 0.0
  %4609 = vmatprep.subr.mxu0 0.0
  %4610 = vmatpush2.msra.mxu0 0.0
  %4611 = vmatprep.subr.mxu0 0.0
  %4612 = vmatpush2.msra.mxu0 0.0
  %4613 = vmatprep.subr.mxu0 0.0
  %4614 = vmatpush2.msra.mxu0 0.0
  %4615 = vmatprep.subr.mxu0 0.0
  %4616 = vmatpush2.msra.mxu0 0.0
  %4617 = vmatprep.subr.mxu0 0.0
  %4618 = vmatpush2.msra.mxu0 0.0
  %4619 = vmatprep.subr.mxu0 0.0
  %4620 = vmatpush2.msra.mxu0 0.0
  %4621 = vmatprep.subr.mxu0 0.0
  %4622 = vmatpush2.msra.mxu0 0.0
  %4623 = vmatprep.subr.mxu0 0.0
  %4624 = vmatpush2.msra.mxu0 0.0
  %4625 = vmatprep.mubr.f32.mxu0 0.0
  %4626 = vmatmul.mubr.f32.gmra.mxu0 %v4556
  %v4627 = vpop.f32.mrf.mxu0
  %v4628 = vadd.f32 0.0, %v4627
  %v4629 = vpop.f32.mrf.mxu0
  %4630 = vmatprep.mubr.f32.mxu0 0.0
  %4631 = vmatmul.mubr.f32.gmra.mxu0 %v4559
  %v4632 = vpop.f32.mrf.mxu0
  %v4633 = vadd.f32 0.0, %v4632
  %v4634 = vpop.f32.mrf.mxu0
  %4635 = vdwg.mxu0
  %4636 = vmatprep.subr.mxu0 0.0
  %4637 = vmatpush1.msra.mxu0 0.0
  %4638 = vmatprep.subr.mxu0 0.0
  %4639 = vmatpush1.msra.mxu0 0.0
  %4640 = vmatprep.subr.mxu0 0.0
  %4641 = vmatpush1.msra.mxu0 0.0
  %4642 = vmatprep.subr.mxu0 0.0
  %4643 = vmatpush1.msra.mxu0 0.0
  %4644 = vmatprep.subr.mxu0 0.0
  %4645 = vmatpush1.msra.mxu0 0.0
  %4646 = vmatprep.subr.mxu0 0.0
  %4647 = vmatpush1.msra.mxu0 0.0
  %4648 = vmatprep.subr.mxu0 0.0
  %4649 = vmatpush1.msra.mxu0 0.0
  %4650 = vmatprep.subr.mxu0 0.0
  %4651 = vmatpush1.msra.mxu0 0.0
  %4652 = vmatprep.subr.mxu0 0.0
  %4653 = vmatpush1.msra.mxu0 0.0
  %4654 = vmatprep.subr.mxu0 0.0
  %4655 = vmatpush1.msra.mxu0 0.0
  %4656 = vmatprep.subr.mxu0 0.0
  %4657 = vmatpush1.msra.mxu0 0.0
  %4658 = vmatprep.subr.mxu0 0.0
  %4659 = vmatpush1.msra.mxu0 0.0
  %4660 = vmatprep.subr.mxu0 0.0
  %4661 = vmatpush1.msra.mxu0 0.0
  %4662 = vmatprep.subr.mxu0 0.0
  %4663 = vmatpush1.msra.mxu0 0.0
  %4664 = vmatprep.subr.mxu0 0.0
  %4665 = vmatpush1.msra.mxu0 %v4554
  %4666 = vmatprep.subr.mxu0 0.0
  %4667 = vmatpush1.msra.mxu0 %v4553
  %4668 = vmatprep.subr.mxu0 0.0
  %4669 = vmatpush2.msra.mxu0 0.0
  %4670 = vmatprep.subr.mxu0 0.0
  %4671 = vmatpush2.msra.mxu0 0.0
  %4672 = vmatprep.subr.mxu0 0.0
  %4673 = vmatpush2.msra.mxu0 0.0
  %4674 = vmatprep.subr.mxu0 0.0
  %4675 = vmatpush2.msra.mxu0 0.0
  %4676 = vmatprep.subr.mxu0 0.0
  %4677 = vmatpush2.msra.mxu0 0.0
  %4678 = vmatprep.subr.mxu0 0.0
  %4679 = vmatpush2.msra.mxu0 0.0
  %4680 = vmatprep.subr.mxu0 0.0
  %4681 = vmatpush2.msra.mxu0 0.0
  %4682 = vmatprep.subr.mxu0 0.0
  %4683 = vmatpush2.msra.mxu0 0.0
  %4684 = vmatprep.subr.mxu0 0.0
  %4685 = vmatpush2.msra.mxu0 0.0
  %4686 = vmatprep.subr.mxu0 0.0
  %4687 = vmatpush2.msra.mxu0 0.0
  %4688 = vmatprep.subr.mxu0 0.0
  %4689 = vmatpush2.msra.mxu0 0.0
  %4690 = vmatprep.subr.mxu0 0.0
  %4691 = vmatpush2.msra.mxu0 0.0
  %4692 = vmatprep.subr.mxu0 0.0
  %4693 = vmatpush2.msra.mxu0 0.0
  %4694 = vmatprep.subr.mxu0 0.0
  %4695 = vmatpush2.msra.mxu0 0.0
  %4696 = vmatprep.subr.mxu0 0.0
  %4697 = vmatpush2.msra.mxu0 0.0
  %4698 = vmatprep.subr.mxu0 0.0
  %4699 = vmatpush2.msra.mxu0 0.0
  %4700 = vmatprep.mubr.f32.mxu0 0.0
  %4701 = vmatmul.mubr.f32.gmra.mxu0 %v1843
  %v4702 = vpop.f32.mrf.mxu0
  %v4703 = vadd.f32 0.0, %v4702
  %v4704 = vpop.f32.mrf.mxu0
  %4705 = vmatprep.mubr.f32.mxu0 0.0
  %4706 = vmatmul.mubr.f32.gmra.mxu0 %v1846
  %v4707 = vpop.f32.mrf.mxu0
  %v4708 = vadd.f32 0.0, %v4707
  %v4709 = vpop.f32.mrf.mxu0
  %4710 = vdwg.mxu0
  %4711 = vmatprep.subr.mxu0 0.0
  %4712 = vmatpush1.msra.mxu0 0.0
  %4713 = vmatprep.subr.mxu0 0.0
  %4714 = vmatpush1.msra.mxu0 0.0
  %4715 = vmatprep.subr.mxu0 0.0
  %4716 = vmatpush1.msra.mxu0 0.0
  %4717 = vmatprep.subr.mxu0 0.0
  %4718 = vmatpush1.msra.mxu0 0.0
  %4719 = vmatprep.subr.mxu0 0.0
  %4720 = vmatpush1.msra.mxu0 0.0
  %4721 = vmatprep.subr.mxu0 0.0
  %4722 = vmatpush1.msra.mxu0 0.0
  %4723 = vmatprep.subr.mxu0 0.0
  %4724 = vmatpush1.msra.mxu0 0.0
  %4725 = vmatprep.subr.mxu0 0.0
  %4726 = vmatpush1.msra.mxu0 0.0
  %4727 = vmatprep.subr.mxu0 0.0
  %4728 = vmatpush1.msra.mxu0 0.0
  %4729 = vmatprep.subr.mxu0 0.0
  %4730 = vmatpush1.msra.mxu0 0.0
  %4731 = vmatprep.subr.mxu0 0.0
  %4732 = vmatpush1.msra.mxu0 0.0
  %4733 = vmatprep.subr.mxu0 0.0
  %4734 = vmatpush1.msra.mxu0 0.0
  %4735 = vmatprep.subr.mxu0 0.0
  %4736 = vmatpush1.msra.mxu0 0.0
  %4737 = vmatprep.subr.mxu0 0.0
  %4738 = vmatpush1.msra.mxu0 0.0
  %4739 = vmatprep.subr.mxu0 0.0
  %4740 = vmatpush1.msra.mxu0 %v4633
  %4741 = vmatprep.subr.mxu0 0.0
  %4742 = vmatpush1.msra.mxu0 %v4628
  %4743 = vmatprep.subr.mxu0 0.0
  %4744 = vmatpush2.msra.mxu0 0.0
  %4745 = vmatprep.subr.mxu0 0.0
  %4746 = vmatpush2.msra.mxu0 0.0
  %4747 = vmatprep.subr.mxu0 0.0
  %4748 = vmatpush2.msra.mxu0 0.0
  %4749 = vmatprep.subr.mxu0 0.0
  %4750 = vmatpush2.msra.mxu0 0.0
  %4751 = vmatprep.subr.mxu0 0.0
  %4752 = vmatpush2.msra.mxu0 0.0
  %4753 = vmatprep.subr.mxu0 0.0
  %4754 = vmatpush2.msra.mxu0 0.0
  %4755 = vmatprep.subr.mxu0 0.0
  %4756 = vmatpush2.msra.mxu0 0.0
  %4757 = vmatprep.subr.mxu0 0.0
  %4758 = vmatpush2.msra.mxu0 0.0
  %4759 = vmatprep.subr.mxu0 0.0
  %4760 = vmatpush2.msra.mxu0 0.0
  %4761 = vmatprep.subr.mxu0 0.0
  %4762 = vmatpush2.msra.mxu0 0.0
  %4763 = vmatprep.subr.mxu0 0.0
  %4764 = vmatpush2.msra.mxu0 0.0
  %4765 = vmatprep.subr.mxu0 0.0
  %4766 = vmatpush2.msra.mxu0 0.0
  %4767 = vmatprep.subr.mxu0 0.0
  %4768 = vmatpush2.msra.mxu0 0.0
  %4769 = vmatprep.subr.mxu0 0.0
  %4770 = vmatpush2.msra.mxu0 0.0
  %4771 = vmatprep.subr.mxu0 0.0
  %4772 = vmatpush2.msra.mxu0 0.0
  %4773 = vmatprep.subr.mxu0 0.0
  %4774 = vmatpush2.msra.mxu0 0.0
  %4775 = vmatprep.mubr.f32.mxu0 0.0
  %4776 = vmatmul.mubr.f32.gmra.mxu0 %v1924
  %v4777 = vpop.f32.mrf.mxu0
  %v4778 = vadd.f32 %v4703, %v4777
  %v4779 = vpop.f32.mrf.mxu0
  %4780 = vmatprep.mubr.f32.mxu0 0.0
  %4781 = vmatmul.mubr.f32.gmra.mxu0 %v1927
  %v4782 = vpop.f32.mrf.mxu0
  %v4783 = vadd.f32 %v4708, %v4782
  %v4784 = vpop.f32.mrf.mxu0
  %4785 = vdwg.mxu0
  %v4786 = vadd.f32 %v4778, %v2007
  %v4787 = vadd.f32 %v4783, %v2012
  %v4788 = vmax.f32 %v4786, 0.0
  %v4789 = vmax.f32 %v4787, 0.0
  %v4791 = vsel %vm145, %v4788, 0
  %v4794 = vsel %vm145, %v4789, 0
  %4796 = vmatprep.subr.mxu0 0.0
  %4797 = vmatpush1.msra.mxu0 0.0
  %4798 = vmatprep.subr.mxu0 0.0
  %4799 = vmatpush1.msra.mxu0 0.0
  %4800 = vmatprep.subr.mxu0 0.0
  %4801 = vmatpush1.msra.mxu0 0.0
  %4802 = vmatprep.subr.mxu0 0.0
  %4803 = vmatpush1.msra.mxu0 0.0
  %4804 = vmatprep.subr.mxu0 0.0
  %4805 = vmatpush1.msra.mxu0 0.0
  %4806 = vmatprep.subr.mxu0 0.0
  %4807 = vmatpush1.msra.mxu0 0.0
  %4808 = vmatprep.subr.mxu0 0.0
  %4809 = vmatpush1.msra.mxu0 0.0
  %4810 = vmatprep.subr.mxu0 0.0
  %4811 = vmatpush1.msra.mxu0 0.0
  %4812 = vmatprep.subr.mxu0 0.0
  %4813 = vmatpush1.msra.mxu0 0.0
  %4814 = vmatprep.subr.mxu0 0.0
  %4815 = vmatpush1.msra.mxu0 0.0
  %4816 = vmatprep.subr.mxu0 0.0
  %4817 = vmatpush1.msra.mxu0 0.0
  %4818 = vmatprep.subr.mxu0 0.0
  %4819 = vmatpush1.msra.mxu0 0.0
  %4820 = vmatprep.subr.mxu0 0.0
  %4821 = vmatpush1.msra.mxu0 0.0
  %4822 = vmatprep.subr.mxu0 0.0
  %4823 = vmatpush1.msra.mxu0 0.0
  %4824 = vmatprep.subr.mxu0 0.0
  %4825 = vmatpush1.msra.mxu0 0.0
  %4826 = vmatprep.subr.mxu0 0.0
  %4827 = vmatpush1.msra.mxu0 %v1742
  %4828 = vmatprep.subr.mxu0 0.0
  %4829 = vmatpush2.msra.mxu0 0.0
  %4830 = vmatprep.subr.mxu0 0.0
  %4831 = vmatpush2.msra.mxu0 0.0
  %4832 = vmatprep.subr.mxu0 0.0
  %4833 = vmatpush2.msra.mxu0 0.0
  %4834 = vmatprep.subr.mxu0 0.0
  %4835 = vmatpush2.msra.mxu0 0.0
  %4836 = vmatprep.subr.mxu0 0.0
  %4837 = vmatpush2.msra.mxu0 0.0
  %4838 = vmatprep.subr.mxu0 0.0
  %4839 = vmatpush2.msra.mxu0 0.0
  %4840 = vmatprep.subr.mxu0 0.0
  %4841 = vmatpush2.msra.mxu0 0.0
  %4842 = vmatprep.subr.mxu0 0.0
  %4843 = vmatpush2.msra.mxu0 0.0
  %4844 = vmatprep.subr.mxu0 0.0
  %4845 = vmatpush2.msra.mxu0 0.0
  %4846 = vmatprep.subr.mxu0 0.0
  %4847 = vmatpush2.msra.mxu0 0.0
  %4848 = vmatprep.subr.mxu0 0.0
  %4849 = vmatpush2.msra.mxu0 0.0
  %4850 = vmatprep.subr.mxu0 0.0
  %4851 = vmatpush2.msra.mxu0 0.0
  %4852 = vmatprep.subr.mxu0 0.0
  %4853 = vmatpush2.msra.mxu0 0.0
  %4854 = vmatprep.subr.mxu0 0.0
  %4855 = vmatpush2.msra.mxu0 0.0
  %4856 = vmatprep.subr.mxu0 0.0
  %4857 = vmatpush2.msra.mxu0 0.0
  %4858 = vmatprep.subr.mxu0 0.0
  %4859 = vmatpush2.msra.mxu0 0.0
  %4860 = vmatprep.mubr.f32.mxu0 0.0
  %4861 = vmatmul.mubr.f32.gmra.mxu0 %v4791
  %v4862 = vpop.f32.mrf.mxu0
  %v4863 = vadd.f32 0.0, %v4862
  %v4864 = vpop.f32.mrf.mxu0
  %4865 = vmatprep.mubr.f32.mxu0 0.0
  %4866 = vmatmul.mubr.f32.gmra.mxu0 %v4794
  %v4867 = vpop.f32.mrf.mxu0
  %v4868 = vadd.f32 0.0, %v4867
  %v4869 = vpop.f32.mrf.mxu0
  %4870 = vdwg.mxu0
  %4871 = vmatprep.subr.mxu0 0.0
  %4872 = vmatpush1.msra.mxu0 0.0
  %4873 = vmatprep.subr.mxu0 0.0
  %4874 = vmatpush1.msra.mxu0 0.0
  %4875 = vmatprep.subr.mxu0 0.0
  %4876 = vmatpush1.msra.mxu0 0.0
  %4877 = vmatprep.subr.mxu0 0.0
  %4878 = vmatpush1.msra.mxu0 0.0
  %4879 = vmatprep.subr.mxu0 0.0
  %4880 = vmatpush1.msra.mxu0 0.0
  %4881 = vmatprep.subr.mxu0 0.0
  %4882 = vmatpush1.msra.mxu0 0.0
  %4883 = vmatprep.subr.mxu0 0.0
  %4884 = vmatpush1.msra.mxu0 0.0
  %4885 = vmatprep.subr.mxu0 0.0
  %4886 = vmatpush1.msra.mxu0 0.0
  %4887 = vmatprep.subr.mxu0 0.0
  %4888 = vmatpush1.msra.mxu0 0.0
  %4889 = vmatprep.subr.mxu0 0.0
  %4890 = vmatpush1.msra.mxu0 0.0
  %4891 = vmatprep.subr.mxu0 0.0
  %4892 = vmatpush1.msra.mxu0 0.0
  %4893 = vmatprep.subr.mxu0 0.0
  %4894 = vmatpush1.msra.mxu0 0.0
  %4895 = vmatprep.subr.mxu0 0.0
  %4896 = vmatpush1.msra.mxu0 0.0
  %4897 = vmatprep.subr.mxu0 0.0
  %4898 = vmatpush1.msra.mxu0 0.0
  %4899 = vmatprep.subr.mxu0 0.0
  %4900 = vmatpush1.msra.mxu0 %v4789
  %4901 = vmatprep.subr.mxu0 0.0
  %4902 = vmatpush1.msra.mxu0 %v4788
  %4903 = vmatprep.subr.mxu0 0.0
  %4904 = vmatpush2.msra.mxu0 0.0
  %4905 = vmatprep.subr.mxu0 0.0
  %4906 = vmatpush2.msra.mxu0 0.0
  %4907 = vmatprep.subr.mxu0 0.0
  %4908 = vmatpush2.msra.mxu0 0.0
  %4909 = vmatprep.subr.mxu0 0.0
  %4910 = vmatpush2.msra.mxu0 0.0
  %4911 = vmatprep.subr.mxu0 0.0
  %4912 = vmatpush2.msra.mxu0 0.0
  %4913 = vmatprep.subr.mxu0 0.0
  %4914 = vmatpush2.msra.mxu0 0.0
  %4915 = vmatprep.subr.mxu0 0.0
  %4916 = vmatpush2.msra.mxu0 0.0
  %4917 = vmatprep.subr.mxu0 0.0
  %4918 = vmatpush2.msra.mxu0 0.0
  %4919 = vmatprep.subr.mxu0 0.0
  %4920 = vmatpush2.msra.mxu0 0.0
  %4921 = vmatprep.subr.mxu0 0.0
  %4922 = vmatpush2.msra.mxu0 0.0
  %4923 = vmatprep.subr.mxu0 0.0
  %4924 = vmatpush2.msra.mxu0 0.0
  %4925 = vmatprep.subr.mxu0 0.0
  %4926 = vmatpush2.msra.mxu0 0.0
  %4927 = vmatprep.subr.mxu0 0.0
  %4928 = vmatpush2.msra.mxu0 0.0
  %4929 = vmatprep.subr.mxu0 0.0
  %4930 = vmatpush2.msra.mxu0 0.0
  %4931 = vmatprep.subr.mxu0 0.0
  %4932 = vmatpush2.msra.mxu0 0.0
  %4933 = vmatprep.subr.mxu0 0.0
  %4934 = vmatpush2.msra.mxu0 0.0
  %4935 = vmatprep.mubr.f32.mxu0 0.0
  %4936 = vmatmul.mubr.f32.gmra.mxu0 %v2100
  %v4937 = vpop.f32.mrf.mxu0
  %v4938 = vadd.f32 0.0, %v4937
  %v4939 = vpop.f32.mrf.mxu0
  %4940 = vmatprep.mubr.f32.mxu0 0.0
  %4941 = vmatmul.mubr.f32.gmra.mxu0 %v2103
  %v4942 = vpop.f32.mrf.mxu0
  %v4943 = vadd.f32 0.0, %v4942
  %v4944 = vpop.f32.mrf.mxu0
  %4945 = vdwg.mxu0
  %4946 = vmatprep.subr.mxu0 0.0
  %4947 = vmatpush1.msra.mxu0 0.0
  %4948 = vmatprep.subr.mxu0 0.0
  %4949 = vmatpush1.msra.mxu0 0.0
  %4950 = vmatprep.subr.mxu0 0.0
  %4951 = vmatpush1.msra.mxu0 0.0
  %4952 = vmatprep.subr.mxu0 0.0
  %4953 = vmatpush1.msra.mxu0 0.0
  %4954 = vmatprep.subr.mxu0 0.0
  %4955 = vmatpush1.msra.mxu0 0.0
  %4956 = vmatprep.subr.mxu0 0.0
  %4957 = vmatpush1.msra.mxu0 0.0
  %4958 = vmatprep.subr.mxu0 0.0
  %4959 = vmatpush1.msra.mxu0 0.0
  %4960 = vmatprep.subr.mxu0 0.0
  %4961 = vmatpush1.msra.mxu0 0.0
  %4962 = vmatprep.subr.mxu0 0.0
  %4963 = vmatpush1.msra.mxu0 0.0
  %4964 = vmatprep.subr.mxu0 0.0
  %4965 = vmatpush1.msra.mxu0 0.0
  %4966 = vmatprep.subr.mxu0 0.0
  %4967 = vmatpush1.msra.mxu0 0.0
  %4968 = vmatprep.subr.mxu0 0.0
  %4969 = vmatpush1.msra.mxu0 0.0
  %4970 = vmatprep.subr.mxu0 0.0
  %4971 = vmatpush1.msra.mxu0 0.0
  %4972 = vmatprep.subr.mxu0 0.0
  %4973 = vmatpush1.msra.mxu0 0.0
  %4974 = vmatprep.subr.mxu0 0.0
  %4975 = vmatpush1.msra.mxu0 %v4868
  %4976 = vmatprep.subr.mxu0 0.0
  %4977 = vmatpush1.msra.mxu0 %v4863
  %4978 = vmatprep.subr.mxu0 0.0
  %4979 = vmatpush2.msra.mxu0 0.0
  %4980 = vmatprep.subr.mxu0 0.0
  %4981 = vmatpush2.msra.mxu0 0.0
  %4982 = vmatprep.subr.mxu0 0.0
  %4983 = vmatpush2.msra.mxu0 0.0
  %4984 = vmatprep.subr.mxu0 0.0
  %4985 = vmatpush2.msra.mxu0 0.0
  %4986 = vmatprep.subr.mxu0 0.0
  %4987 = vmatpush2.msra.mxu0 0.0
  %4988 = vmatprep.subr.mxu0 0.0
  %4989 = vmatpush2.msra.mxu0 0.0
  %4990 = vmatprep.subr.mxu0 0.0
  %4991 = vmatpush2.msra.mxu0 0.0
  %4992 = vmatprep.subr.mxu0 0.0
  %4993 = vmatpush2.msra.mxu0 0.0
  %4994 = vmatprep.subr.mxu0 0.0
  %4995 = vmatpush2.msra.mxu0 0.0
  %4996 = vmatprep.subr.mxu0 0.0
  %4997 = vmatpush2.msra.mxu0 0.0
  %4998 = vmatprep.subr.mxu0 0.0
  %4999 = vmatpush2.msra.mxu0 0.0
  %5000 = vmatprep.subr.mxu0 0.0
  %5001 = vmatpush2.msra.mxu0 0.0
  %5002 = vmatprep.subr.mxu0 0.0
  %5003 = vmatpush2.msra.mxu0 0.0
  %5004 = vmatprep.subr.mxu0 0.0
  %5005 = vmatpush2.msra.mxu0 0.0
  %5006 = vmatprep.subr.mxu0 0.0
  %5007 = vmatpush2.msra.mxu0 0.0
  %5008 = vmatprep.subr.mxu0 0.0
  %5009 = vmatpush2.msra.mxu0 0.0
  %5010 = vmatprep.mubr.f32.mxu0 0.0
  %5011 = vmatmul.mubr.f32.gmra.mxu0 %v2181
  %v5012 = vpop.f32.mrf.mxu0
  %v5013 = vadd.f32 %v4938, %v5012
  %v5014 = vpop.f32.mrf.mxu0
  %5015 = vmatprep.mubr.f32.mxu0 0.0
  %5016 = vmatmul.mubr.f32.gmra.mxu0 %v2184
  %v5017 = vpop.f32.mrf.mxu0
  %v5018 = vadd.f32 %v4943, %v5017
  %v5019 = vpop.f32.mrf.mxu0
  %5020 = vdwg.mxu0
  %v5021 = vadd.f32 %v5013, %v2264
  %v5022 = vadd.f32 %v5018, %v2269
  %v5023 = vmax.f32 %v5021, 0.0
  %v5024 = vmax.f32 %v5022, 0.0
  %v5025 = vadd.f32 %v5023, %v4553
  %v5026 = vadd.f32 %v5024, %v4554
  %v5027 = vmax.f32 %v5025, 0.0
  %v5028 = vmax.f32 %v5026, 0.0
  %v5029 = vadd.f32 %v5027, %v3131
  %v5030 = vadd.f32 %v5028, %v3132
  %v5031 = vlaneseq
  %v5032 = vshrl.u32 %v5031, 7
  %v5033 = vsub.s32 0, %v5032
  %v5034 = vrot.slane %v3131, %v5033
  %5036 = vbcast.lane.b32.xlu0 %v5034, 256
  %v5037 = vpop.permute.xlu0 %5036
  %v5038 = vlaneseq
  %v5039 = vshrl.u32 %v5038, 7
  %v5040 = vsub.s32 1, %v5039
  %v5041 = vrot.slane %v3131, %v5040
  %5043 = vbcast.lane.b32.xlu0 %v5041, 256
  %v5044 = vpop.permute.xlu0 %5043
  %v5045 = vlaneseq
  %v5046 = vshrl.u32 %v5045, 7
  %v5047 = vsub.s32 2, %v5046
  %v5048 = vrot.slane %v3131, %v5047
  %5050 = vbcast.lane.b32.xlu0 %v5048, 256
  %v5051 = vpop.permute.xlu0 %5050
  %v5052 = vlaneseq
  %v5053 = vshrl.u32 %v5052, 7
  %v5054 = vsub.s32 3, %v5053
  %v5055 = vrot.slane %v3131, %v5054
  %5057 = vbcast.lane.b32.xlu0 %v5055, 256
  %v5058 = vpop.permute.xlu0 %5057
  %v5059 = vlaneseq
  %v5060 = vshrl.u32 %v5059, 7
  %v5061 = vsub.s32 4, %v5060
  %v5062 = vrot.slane %v3131, %v5061
  %5064 = vbcast.lane.b32.xlu0 %v5062, 256
  %v5065 = vpop.permute.xlu0 %5064
  %v5066 = vlaneseq
  %v5067 = vshrl.u32 %v5066, 7
  %v5068 = vsub.s32 5, %v5067
  %v5069 = vrot.slane %v3131, %v5068
  %5071 = vbcast.lane.b32.xlu0 %v5069, 256
  %v5072 = vpop.permute.xlu0 %5071
  %v5073 = vlaneseq
  %v5074 = vshrl.u32 %v5073, 7
  %v5075 = vsub.s32 6, %v5074
  %v5076 = vrot.slane %v3131, %v5075
  %5078 = vbcast.lane.b32.xlu0 %v5076, 256
  %v5079 = vpop.permute.xlu0 %5078
  %v5080 = vlaneseq
  %v5081 = vshrl.u32 %v5080, 7
  %v5082 = vsub.s32 7, %v5081
  %v5083 = vrot.slane %v3131, %v5082
  %5085 = vbcast.lane.b32.xlu0 %v5083, 256
  %v5086 = vpop.permute.xlu0 %5085
  %v5087 = vlaneseq
  %v5088 = vshrl.u32 %v5087, 7
  %v5089 = vsub.s32 0, %v5088
  %v5090 = vrot.slane %v3132, %v5089
  %5092 = vbcast.lane.b32.xlu0 %v5090, 256
  %v5093 = vpop.permute.xlu0 %5092
  %v5094 = vlaneseq
  %v5095 = vshrl.u32 %v5094, 7
  %v5096 = vsub.s32 1, %v5095
  %v5097 = vrot.slane %v3132, %v5096
  %5099 = vbcast.lane.b32.xlu0 %v5097, 256
  %v5100 = vpop.permute.xlu0 %5099
  %v5101 = vlaneseq
  %v5102 = vshrl.u32 %v5101, 7
  %v5103 = vsub.s32 2, %v5102
  %v5104 = vrot.slane %v3132, %v5103
  %5106 = vbcast.lane.b32.xlu0 %v5104, 256
  %v5107 = vpop.permute.xlu0 %5106
  %v5108 = vlaneseq
  %v5109 = vshrl.u32 %v5108, 7
  %v5110 = vsub.s32 3, %v5109
  %v5111 = vrot.slane %v3132, %v5110
  %5113 = vbcast.lane.b32.xlu0 %v5111, 256
  %v5114 = vpop.permute.xlu0 %5113
  %v5115 = vlaneseq
  %v5116 = vshrl.u32 %v5115, 7
  %v5117 = vsub.s32 4, %v5116
  %v5118 = vrot.slane %v3132, %v5117
  %5120 = vbcast.lane.b32.xlu0 %v5118, 256
  %v5121 = vpop.permute.xlu0 %5120
  %v5122 = vlaneseq
  %v5123 = vshrl.u32 %v5122, 7
  %v5124 = vsub.s32 5, %v5123
  %v5125 = vrot.slane %v3132, %v5124
  %5127 = vbcast.lane.b32.xlu0 %v5125, 256
  %v5128 = vpop.permute.xlu0 %5127
  %v5129 = vlaneseq
  %v5130 = vshrl.u32 %v5129, 7
  %v5131 = vsub.s32 6, %v5130
  %v5132 = vrot.slane %v3132, %v5131
  %5134 = vbcast.lane.b32.xlu0 %v5132, 256
  %v5135 = vpop.permute.xlu0 %5134
  %v5136 = vlaneseq
  %v5137 = vshrl.u32 %v5136, 7
  %v5138 = vsub.s32 7, %v5137
  %v5139 = vrot.slane %v3132, %v5138
  %5141 = vbcast.lane.b32.xlu0 %v5139, 256
  %v5142 = vpop.permute.xlu0 %5141
  %v5143 = vmul.f32 %v72, %v5037
  %v5144 = vmul.f32 %v73, %v5044
  %v5145 = vmul.f32 %v74, %v5051
  %v5146 = vmul.f32 %v75, %v5058
  %v5147 = vmul.f32 %v76, %v5065
  %v5148 = vmul.f32 %v77, %v5072
  %v5149 = vmul.f32 %v78, %v5079
  %v5150 = vmul.f32 %v79, %v5086
  %v5151 = vmul.f32 %v80, %v5093
  %v5152 = vmul.f32 %v81, %v5100
  %v5153 = vmul.f32 %v82, %v5107
  %v5154 = vmul.f32 %v83, %v5114
  %v5155 = vmul.f32 %v84, %v5121
  %v5156 = vmul.f32 %v85, %v5128
  %v5157 = vmul.f32 %v86, %v5135
  %v5158 = vmul.f32 %v87, %v5142
  %v5159 = vsel %vm145, %v5143, 0.0
  %v5160 = vrot.slane %v5159, 4
  %v5161 = vadd.f32 %v5159, %v5160
  %v5162 = vrot.slane %v5161, 2
  %v5163 = vadd.f32 %v5161, %v5162
  %v5164 = vrot.slane %v5163, 1
  %v5165 = vadd.f32 %v5163, %v5164
  %v5166 = vsel %vm145, %v5144, 0.0
  %v5167 = vrot.slane %v5166, 4
  %v5168 = vadd.f32 %v5166, %v5167
  %v5169 = vrot.slane %v5168, 2
  %v5170 = vadd.f32 %v5168, %v5169
  %v5171 = vrot.slane %v5170, 1
  %v5172 = vadd.f32 %v5170, %v5171
  %v5173 = vsel %vm145, %v5145, 0.0
  %v5174 = vrot.slane %v5173, 4
  %v5175 = vadd.f32 %v5173, %v5174
  %v5176 = vrot.slane %v5175, 2
  %v5177 = vadd.f32 %v5175, %v5176
  %v5178 = vrot.slane %v5177, 1
  %v5179 = vadd.f32 %v5177, %v5178
  %v5180 = vsel %vm145, %v5146, 0.0
  %v5181 = vrot.slane %v5180, 4
  %v5182 = vadd.f32 %v5180, %v5181
  %v5183 = vrot.slane %v5182, 2
  %v5184 = vadd.f32 %v5182, %v5183
  %v5185 = vrot.slane %v5184, 1
  %v5186 = vadd.f32 %v5184, %v5185
  %v5187 = vsel %vm145, %v5147, 0.0
  %v5188 = vrot.slane %v5187, 4
  %v5189 = vadd.f32 %v5187, %v5188
  %v5190 = vrot.slane %v5189, 2
  %v5191 = vadd.f32 %v5189, %v5190
  %v5192 = vrot.slane %v5191, 1
  %v5193 = vadd.f32 %v5191, %v5192
  %v5194 = vsel %vm145, %v5148, 0.0
  %v5195 = vrot.slane %v5194, 4
  %v5196 = vadd.f32 %v5194, %v5195
  %v5197 = vrot.slane %v5196, 2
  %v5198 = vadd.f32 %v5196, %v5197
  %v5199 = vrot.slane %v5198, 1
  %v5200 = vadd.f32 %v5198, %v5199
  %v5201 = vsel %vm145, %v5149, 0.0
  %v5202 = vrot.slane %v5201, 4
  %v5203 = vadd.f32 %v5201, %v5202
  %v5204 = vrot.slane %v5203, 2
  %v5205 = vadd.f32 %v5203, %v5204
  %v5206 = vrot.slane %v5205, 1
  %v5207 = vadd.f32 %v5205, %v5206
  %v5208 = vsel %vm145, %v5150, 0.0
  %v5209 = vrot.slane %v5208, 4
  %v5210 = vadd.f32 %v5208, %v5209
  %v5211 = vrot.slane %v5210, 2
  %v5212 = vadd.f32 %v5210, %v5211
  %v5213 = vrot.slane %v5212, 1
  %v5214 = vadd.f32 %v5212, %v5213
  %v5215 = vsel %vm145, %v5151, 0.0
  %v5216 = vrot.slane %v5215, 4
  %v5217 = vadd.f32 %v5215, %v5216
  %v5218 = vrot.slane %v5217, 2
  %v5219 = vadd.f32 %v5217, %v5218
  %v5220 = vrot.slane %v5219, 1
  %v5221 = vadd.f32 %v5219, %v5220
  %v5222 = vsel %vm145, %v5152, 0.0
  %v5223 = vrot.slane %v5222, 4
  %v5224 = vadd.f32 %v5222, %v5223
  %v5225 = vrot.slane %v5224, 2
  %v5226 = vadd.f32 %v5224, %v5225
  %v5227 = vrot.slane %v5226, 1
  %v5228 = vadd.f32 %v5226, %v5227
  %v5229 = vsel %vm145, %v5153, 0.0
  %v5230 = vrot.slane %v5229, 4
  %v5231 = vadd.f32 %v5229, %v5230
  %v5232 = vrot.slane %v5231, 2
  %v5233 = vadd.f32 %v5231, %v5232
  %v5234 = vrot.slane %v5233, 1
  %v5235 = vadd.f32 %v5233, %v5234
  %v5236 = vsel %vm145, %v5154, 0.0
  %v5237 = vrot.slane %v5236, 4
  %v5238 = vadd.f32 %v5236, %v5237
  %v5239 = vrot.slane %v5238, 2
  %v5240 = vadd.f32 %v5238, %v5239
  %v5241 = vrot.slane %v5240, 1
  %v5242 = vadd.f32 %v5240, %v5241
  %v5243 = vsel %vm145, %v5155, 0.0
  %v5244 = vrot.slane %v5243, 4
  %v5245 = vadd.f32 %v5243, %v5244
  %v5246 = vrot.slane %v5245, 2
  %v5247 = vadd.f32 %v5245, %v5246
  %v5248 = vrot.slane %v5247, 1
  %v5249 = vadd.f32 %v5247, %v5248
  %v5250 = vsel %vm145, %v5156, 0.0
  %v5251 = vrot.slane %v5250, 4
  %v5252 = vadd.f32 %v5250, %v5251
  %v5253 = vrot.slane %v5252, 2
  %v5254 = vadd.f32 %v5252, %v5253
  %v5255 = vrot.slane %v5254, 1
  %v5256 = vadd.f32 %v5254, %v5255
  %v5257 = vsel %vm145, %v5157, 0.0
  %v5258 = vrot.slane %v5257, 4
  %v5259 = vadd.f32 %v5257, %v5258
  %v5260 = vrot.slane %v5259, 2
  %v5261 = vadd.f32 %v5259, %v5260
  %v5262 = vrot.slane %v5261, 1
  %v5263 = vadd.f32 %v5261, %v5262
  %v5264 = vsel %vm145, %v5158, 0.0
  %v5265 = vrot.slane %v5264, 4
  %v5266 = vadd.f32 %v5264, %v5265
  %v5267 = vrot.slane %v5266, 2
  %v5268 = vadd.f32 %v5266, %v5267
  %v5269 = vrot.slane %v5268, 1
  %v5270 = vadd.f32 %v5268, %v5269
  %v5287 = vsel %vm2537, %v5172, %v5165
  %v5288 = vsel %vm2539, %v5179, %v5287
  %v5289 = vsel %vm2541, %v5186, %v5288
  %v5290 = vsel %vm2543, %v5193, %v5289
  %v5291 = vsel %vm2545, %v5200, %v5290
  %v5292 = vsel %vm2547, %v5207, %v5291
  %v5293 = vsel %vm2549, %v5214, %v5292
  %v5294 = vsel %vm2537, %v5228, %v5221
  %v5295 = vsel %vm2539, %v5235, %v5294
  %v5296 = vsel %vm2541, %v5242, %v5295
  %v5297 = vsel %vm2543, %v5249, %v5296
  %v5298 = vsel %vm2545, %v5256, %v5297
  %v5299 = vsel %vm2547, %v5263, %v5298
  %v5300 = vsel %vm2549, %v5270, %v5299
  %v5303 = vmul.f32 %v88, %v5293
  %v5304 = vmul.f32 %v89, %v5300
  %v5305 = vmul.f32 %v90, %v5293
  %v5306 = vmul.f32 %v91, %v5300
  %v5307 = vmul.f32 %v92, %v5293
  %v5308 = vmul.f32 %v93, %v5300
  %v5309 = vmul.f32 %v94, %v5293
  %v5310 = vmul.f32 %v95, %v5300
  %v5311 = vmul.f32 %v96, %v5293
  %v5312 = vmul.f32 %v97, %v5300
  %v5313 = vmul.f32 %v98, %v5293
  %v5314 = vmul.f32 %v99, %v5300
  %v5315 = vmul.f32 %v100, %v5293
  %v5316 = vmul.f32 %v101, %v5300
  %v5317 = vmul.f32 %v102, %v5293
  %v5318 = vmul.f32 %v103, %v5300
  %v5319 = vmul.f32 %v104, %v5293
  %v5320 = vmul.f32 %v105, %v5300
  %v5321 = vmul.f32 %v106, %v5293
  %v5322 = vmul.f32 %v107, %v5300
  %v5323 = vmul.f32 %v108, %v5293
  %v5324 = vmul.f32 %v109, %v5300
  %v5325 = vmul.f32 %v110, %v5293
  %v5326 = vmul.f32 %v111, %v5300
  %v5327 = vmul.f32 %v112, %v5293
  %v5328 = vmul.f32 %v113, %v5300
  %v5329 = vmul.f32 %v114, %v5293
  %v5330 = vmul.f32 %v115, %v5300
  %v5331 = vmul.f32 %v116, %v5293
  %v5332 = vmul.f32 %v117, %v5300
  %v5333 = vmul.f32 %v118, %v5293
  %v5334 = vmul.f32 %v119, %v5300
  %v5335 = vsel %vm145, %v5303, 0.0
  %v5336 = vsel %vm145, %v5304, 0.0
  %v5337 = vadd.f32 %v5335, %v5336
  %v5338 = vrot.slane %v5337, 4
  %v5339 = vadd.f32 %v5337, %v5338
  %v5340 = vrot.slane %v5339, 2
  %v5341 = vadd.f32 %v5339, %v5340
  %v5342 = vrot.slane %v5341, 1
  %v5343 = vadd.f32 %v5341, %v5342
  %v5344 = vsel %vm145, %v5305, 0.0
  %v5345 = vsel %vm145, %v5306, 0.0
  %v5346 = vadd.f32 %v5344, %v5345
  %v5347 = vrot.slane %v5346, 4
  %v5348 = vadd.f32 %v5346, %v5347
  %v5349 = vrot.slane %v5348, 2
  %v5350 = vadd.f32 %v5348, %v5349
  %v5351 = vrot.slane %v5350, 1
  %v5352 = vadd.f32 %v5350, %v5351
  %v5353 = vsel %vm145, %v5307, 0.0
  %v5354 = vsel %vm145, %v5308, 0.0
  %v5355 = vadd.f32 %v5353, %v5354
  %v5356 = vrot.slane %v5355, 4
  %v5357 = vadd.f32 %v5355, %v5356
  %v5358 = vrot.slane %v5357, 2
  %v5359 = vadd.f32 %v5357, %v5358
  %v5360 = vrot.slane %v5359, 1
  %v5361 = vadd.f32 %v5359, %v5360
  %v5362 = vsel %vm145, %v5309, 0.0
  %v5363 = vsel %vm145, %v5310, 0.0
  %v5364 = vadd.f32 %v5362, %v5363
  %v5365 = vrot.slane %v5364, 4
  %v5366 = vadd.f32 %v5364, %v5365
  %v5367 = vrot.slane %v5366, 2
  %v5368 = vadd.f32 %v5366, %v5367
  %v5369 = vrot.slane %v5368, 1
  %v5370 = vadd.f32 %v5368, %v5369
  %v5371 = vsel %vm145, %v5311, 0.0
  %v5372 = vsel %vm145, %v5312, 0.0
  %v5373 = vadd.f32 %v5371, %v5372
  %v5374 = vrot.slane %v5373, 4
  %v5375 = vadd.f32 %v5373, %v5374
  %v5376 = vrot.slane %v5375, 2
  %v5377 = vadd.f32 %v5375, %v5376
  %v5378 = vrot.slane %v5377, 1
  %v5379 = vadd.f32 %v5377, %v5378
  %v5380 = vsel %vm145, %v5313, 0.0
  %v5381 = vsel %vm145, %v5314, 0.0
  %v5382 = vadd.f32 %v5380, %v5381
  %v5383 = vrot.slane %v5382, 4
  %v5384 = vadd.f32 %v5382, %v5383
  %v5385 = vrot.slane %v5384, 2
  %v5386 = vadd.f32 %v5384, %v5385
  %v5387 = vrot.slane %v5386, 1
  %v5388 = vadd.f32 %v5386, %v5387
  %v5389 = vsel %vm145, %v5315, 0.0
  %v5390 = vsel %vm145, %v5316, 0.0
  %v5391 = vadd.f32 %v5389, %v5390
  %v5392 = vrot.slane %v5391, 4
  %v5393 = vadd.f32 %v5391, %v5392
  %v5394 = vrot.slane %v5393, 2
  %v5395 = vadd.f32 %v5393, %v5394
  %v5396 = vrot.slane %v5395, 1
  %v5397 = vadd.f32 %v5395, %v5396
  %v5398 = vsel %vm145, %v5317, 0.0
  %v5399 = vsel %vm145, %v5318, 0.0
  %v5400 = vadd.f32 %v5398, %v5399
  %v5401 = vrot.slane %v5400, 4
  %v5402 = vadd.f32 %v5400, %v5401
  %v5403 = vrot.slane %v5402, 2
  %v5404 = vadd.f32 %v5402, %v5403
  %v5405 = vrot.slane %v5404, 1
  %v5406 = vadd.f32 %v5404, %v5405
  %v5407 = vsel %vm145, %v5319, 0.0
  %v5408 = vsel %vm145, %v5320, 0.0
  %v5409 = vadd.f32 %v5407, %v5408
  %v5410 = vrot.slane %v5409, 4
  %v5411 = vadd.f32 %v5409, %v5410
  %v5412 = vrot.slane %v5411, 2
  %v5413 = vadd.f32 %v5411, %v5412
  %v5414 = vrot.slane %v5413, 1
  %v5415 = vadd.f32 %v5413, %v5414
  %v5416 = vsel %vm145, %v5321, 0.0
  %v5417 = vsel %vm145, %v5322, 0.0
  %v5418 = vadd.f32 %v5416, %v5417
  %v5419 = vrot.slane %v5418, 4
  %v5420 = vadd.f32 %v5418, %v5419
  %v5421 = vrot.slane %v5420, 2
  %v5422 = vadd.f32 %v5420, %v5421
  %v5423 = vrot.slane %v5422, 1
  %v5424 = vadd.f32 %v5422, %v5423
  %v5425 = vsel %vm145, %v5323, 0.0
  %v5426 = vsel %vm145, %v5324, 0.0
  %v5427 = vadd.f32 %v5425, %v5426
  %v5428 = vrot.slane %v5427, 4
  %v5429 = vadd.f32 %v5427, %v5428
  %v5430 = vrot.slane %v5429, 2
  %v5431 = vadd.f32 %v5429, %v5430
  %v5432 = vrot.slane %v5431, 1
  %v5433 = vadd.f32 %v5431, %v5432
  %v5434 = vsel %vm145, %v5325, 0.0
  %v5435 = vsel %vm145, %v5326, 0.0
  %v5436 = vadd.f32 %v5434, %v5435
  %v5437 = vrot.slane %v5436, 4
  %v5438 = vadd.f32 %v5436, %v5437
  %v5439 = vrot.slane %v5438, 2
  %v5440 = vadd.f32 %v5438, %v5439
  %v5441 = vrot.slane %v5440, 1
  %v5442 = vadd.f32 %v5440, %v5441
  %v5443 = vsel %vm145, %v5327, 0.0
  %v5444 = vsel %vm145, %v5328, 0.0
  %v5445 = vadd.f32 %v5443, %v5444
  %v5446 = vrot.slane %v5445, 4
  %v5447 = vadd.f32 %v5445, %v5446
  %v5448 = vrot.slane %v5447, 2
  %v5449 = vadd.f32 %v5447, %v5448
  %v5450 = vrot.slane %v5449, 1
  %v5451 = vadd.f32 %v5449, %v5450
  %v5452 = vsel %vm145, %v5329, 0.0
  %v5453 = vsel %vm145, %v5330, 0.0
  %v5454 = vadd.f32 %v5452, %v5453
  %v5455 = vrot.slane %v5454, 4
  %v5456 = vadd.f32 %v5454, %v5455
  %v5457 = vrot.slane %v5456, 2
  %v5458 = vadd.f32 %v5456, %v5457
  %v5459 = vrot.slane %v5458, 1
  %v5460 = vadd.f32 %v5458, %v5459
  %v5461 = vsel %vm145, %v5331, 0.0
  %v5462 = vsel %vm145, %v5332, 0.0
  %v5463 = vadd.f32 %v5461, %v5462
  %v5464 = vrot.slane %v5463, 4
  %v5465 = vadd.f32 %v5463, %v5464
  %v5466 = vrot.slane %v5465, 2
  %v5467 = vadd.f32 %v5465, %v5466
  %v5468 = vrot.slane %v5467, 1
  %v5469 = vadd.f32 %v5467, %v5468
  %v5470 = vsel %vm145, %v5333, 0.0
  %v5471 = vsel %vm145, %v5334, 0.0
  %v5472 = vadd.f32 %v5470, %v5471
  %v5473 = vrot.slane %v5472, 4
  %v5474 = vadd.f32 %v5472, %v5473
  %v5475 = vrot.slane %v5474, 2
  %v5476 = vadd.f32 %v5474, %v5475
  %v5477 = vrot.slane %v5476, 1
  %v5478 = vadd.f32 %v5476, %v5477
  %v5479 = vrot.slane %v3131, 1
  %v5480 = vrot.slane %v3131, 2
  %v5481 = vrot.slane %v3131, 3
  %v5482 = vrot.slane %v3131, 4
  %v5483 = vrot.slane %v3131, 5
  %v5484 = vrot.slane %v3131, 6
  %v5485 = vrot.slane %v3131, 7
  %v5486 = vrot.slane %v3132, 1
  %v5487 = vrot.slane %v3132, 2
  %v5488 = vrot.slane %v3132, 3
  %v5489 = vrot.slane %v3132, 4
  %v5490 = vrot.slane %v3132, 5
  %v5491 = vrot.slane %v3132, 6
  %v5492 = vrot.slane %v3132, 7
  %v5509 = vadd.f32 %v5343, %v3131
  %v5510 = vadd.f32 %v5352, %v5479
  %v5511 = vadd.f32 %v5361, %v5480
  %v5512 = vadd.f32 %v5370, %v5481
  %v5513 = vadd.f32 %v5379, %v5482
  %v5514 = vadd.f32 %v5388, %v5483
  %v5515 = vadd.f32 %v5397, %v5484
  %v5516 = vadd.f32 %v5406, %v5485
  %v5517 = vadd.f32 %v5415, %v3132
  %v5518 = vadd.f32 %v5424, %v5486
  %v5519 = vadd.f32 %v5433, %v5487
  %v5520 = vadd.f32 %v5442, %v5488
  %v5521 = vadd.f32 %v5451, %v5489
  %v5522 = vadd.f32 %v5460, %v5490
  %v5523 = vadd.f32 %v5469, %v5491
  %v5524 = vadd.f32 %v5478, %v5492
  %vm5525 = vcmp.ge.f32.partialorder %v5509, 0.0
  %vm5526 = vcmp.ge.f32.partialorder %v5510, 0.0
  %vm5527 = vcmp.ge.f32.partialorder %v5511, 0.0
  %vm5528 = vcmp.ge.f32.partialorder %v5512, 0.0
  %vm5529 = vcmp.ge.f32.partialorder %v5513, 0.0
  %vm5530 = vcmp.ge.f32.partialorder %v5514, 0.0
  %vm5531 = vcmp.ge.f32.partialorder %v5515, 0.0
  %vm5532 = vcmp.ge.f32.partialorder %v5516, 0.0
  %vm5533 = vcmp.ge.f32.partialorder %v5517, 0.0
  %vm5534 = vcmp.ge.f32.partialorder %v5518, 0.0
  %vm5535 = vcmp.ge.f32.partialorder %v5519, 0.0
  %vm5536 = vcmp.ge.f32.partialorder %v5520, 0.0
  %vm5537 = vcmp.ge.f32.partialorder %v5521, 0.0
  %vm5538 = vcmp.ge.f32.partialorder %v5522, 0.0
  %vm5539 = vcmp.ge.f32.partialorder %v5523, 0.0
  %vm5540 = vcmp.ge.f32.partialorder %v5524, 0.0
  %v5541 = vmul.f32 %v2798, %v5509
  %v5542 = vmul.f32 %v2798, %v5510
  %v5543 = vmul.f32 %v2798, %v5511
  %v5544 = vmul.f32 %v2798, %v5512
  %v5545 = vmul.f32 %v2798, %v5513
  %v5546 = vmul.f32 %v2798, %v5514
  %v5547 = vmul.f32 %v2798, %v5515
  %v5548 = vmul.f32 %v2798, %v5516
  %v5549 = vmul.f32 %v2798, %v5517
  %v5550 = vmul.f32 %v2798, %v5518
  %v5551 = vmul.f32 %v2798, %v5519
  %v5552 = vmul.f32 %v2798, %v5520
  %v5553 = vmul.f32 %v2798, %v5521
  %v5554 = vmul.f32 %v2798, %v5522
  %v5555 = vmul.f32 %v2798, %v5523
  %v5556 = vmul.f32 %v2798, %v5524
  %v5557 = vsel %vm5525, %v5509, %v5541
  %v5558 = vsel %vm5526, %v5510, %v5542
  %v5559 = vsel %vm5527, %v5511, %v5543
  %v5560 = vsel %vm5528, %v5512, %v5544
  %v5561 = vsel %vm5529, %v5513, %v5545
  %v5562 = vsel %vm5530, %v5514, %v5546
  %v5563 = vsel %vm5531, %v5515, %v5547
  %v5564 = vsel %vm5532, %v5516, %v5548
  %v5565 = vsel %vm5533, %v5517, %v5549
  %v5566 = vsel %vm5534, %v5518, %v5550
  %v5567 = vsel %vm5535, %v5519, %v5551
  %v5568 = vsel %vm5536, %v5520, %v5552
  %v5569 = vsel %vm5537, %v5521, %v5553
  %v5570 = vsel %vm5538, %v5522, %v5554
  %v5571 = vsel %vm5539, %v5523, %v5555
  %v5572 = vsel %vm5540, %v5524, %v5556
  %v5574 = vsel %vm145, %v5029, 0
  %v5577 = vsel %vm145, %v5030, 0
  %5579 = vmatprep.subr.mxu0 0.0
  %5580 = vmatpush1.msra.mxu0 0.0
  %5581 = vmatprep.subr.mxu0 0.0
  %5582 = vmatpush1.msra.mxu0 0.0
  %5583 = vmatprep.subr.mxu0 0.0
  %5584 = vmatpush1.msra.mxu0 0.0
  %5585 = vmatprep.subr.mxu0 0.0
  %5586 = vmatpush1.msra.mxu0 0.0
  %5587 = vmatprep.subr.mxu0 0.0
  %5588 = vmatpush1.msra.mxu0 0.0
  %5589 = vmatprep.subr.mxu0 0.0
  %5590 = vmatpush1.msra.mxu0 0.0
  %5591 = vmatprep.subr.mxu0 0.0
  %5592 = vmatpush1.msra.mxu0 0.0
  %5593 = vmatprep.subr.mxu0 0.0
  %5594 = vmatpush1.msra.mxu0 0.0
  %5595 = vmatprep.subr.mxu0 0.0
  %5596 = vmatpush1.msra.mxu0 0.0
  %5597 = vmatprep.subr.mxu0 0.0
  %5598 = vmatpush1.msra.mxu0 0.0
  %5599 = vmatprep.subr.mxu0 0.0
  %5600 = vmatpush1.msra.mxu0 0.0
  %5601 = vmatprep.subr.mxu0 0.0
  %5602 = vmatpush1.msra.mxu0 0.0
  %5603 = vmatprep.subr.mxu0 0.0
  %5604 = vmatpush1.msra.mxu0 0.0
  %5605 = vmatprep.subr.mxu0 0.0
  %5606 = vmatpush1.msra.mxu0 0.0
  %5607 = vmatprep.subr.mxu0 0.0
  %5608 = vmatpush1.msra.mxu0 0.0
  %5609 = vmatprep.subr.mxu0 0.0
  %5610 = vmatpush1.msra.mxu0 %v121
  %5611 = vmatprep.subr.mxu0 0.0
  %5612 = vmatpush2.msra.mxu0 0.0
  %5613 = vmatprep.subr.mxu0 0.0
  %5614 = vmatpush2.msra.mxu0 0.0
  %5615 = vmatprep.subr.mxu0 0.0
  %5616 = vmatpush2.msra.mxu0 0.0
  %5617 = vmatprep.subr.mxu0 0.0
  %5618 = vmatpush2.msra.mxu0 0.0
  %5619 = vmatprep.subr.mxu0 0.0
  %5620 = vmatpush2.msra.mxu0 0.0
  %5621 = vmatprep.subr.mxu0 0.0
  %5622 = vmatpush2.msra.mxu0 0.0
  %5623 = vmatprep.subr.mxu0 0.0
  %5624 = vmatpush2.msra.mxu0 0.0
  %5625 = vmatprep.subr.mxu0 0.0
  %5626 = vmatpush2.msra.mxu0 0.0
  %5627 = vmatprep.subr.mxu0 0.0
  %5628 = vmatpush2.msra.mxu0 0.0
  %5629 = vmatprep.subr.mxu0 0.0
  %5630 = vmatpush2.msra.mxu0 0.0
  %5631 = vmatprep.subr.mxu0 0.0
  %5632 = vmatpush2.msra.mxu0 0.0
  %5633 = vmatprep.subr.mxu0 0.0
  %5634 = vmatpush2.msra.mxu0 0.0
  %5635 = vmatprep.subr.mxu0 0.0
  %5636 = vmatpush2.msra.mxu0 0.0
  %5637 = vmatprep.subr.mxu0 0.0
  %5638 = vmatpush2.msra.mxu0 0.0
  %5639 = vmatprep.subr.mxu0 0.0
  %5640 = vmatpush2.msra.mxu0 0.0
  %5641 = vmatprep.subr.mxu0 0.0
  %5642 = vmatpush2.msra.mxu0 0.0
  %5643 = vmatprep.mubr.f32.mxu0 0.0
  %5644 = vmatmul.mubr.f32.gmra.mxu0 %v5574
  %v5645 = vpop.f32.mrf.mxu0
  %v5646 = vadd.f32 0.0, %v5645
  %v5647 = vpop.f32.mrf.mxu0
  %5648 = vmatprep.mubr.f32.mxu0 0.0
  %5649 = vmatmul.mubr.f32.gmra.mxu0 %v5577
  %v5650 = vpop.f32.mrf.mxu0
  %v5651 = vadd.f32 0.0, %v5650
  %v5652 = vpop.f32.mrf.mxu0
  %5653 = vdwg.mxu0
  %v5670 = vrot.slane %v5558, 7
  %v5671 = vsel %vm2537, %v5670, %v5557
  %v5672 = vrot.slane %v5559, 6
  %v5673 = vsel %vm2539, %v5672, %v5671
  %v5674 = vrot.slane %v5560, 5
  %v5675 = vsel %vm2541, %v5674, %v5673
  %v5676 = vrot.slane %v5561, 4
  %v5677 = vsel %vm2543, %v5676, %v5675
  %v5678 = vrot.slane %v5562, 3
  %v5679 = vsel %vm2545, %v5678, %v5677
  %v5680 = vrot.slane %v5563, 2
  %v5681 = vsel %vm2547, %v5680, %v5679
  %v5682 = vrot.slane %v5564, 1
  %v5683 = vsel %vm2549, %v5682, %v5681
  %v5684 = vrot.slane %v5566, 7
  %v5685 = vsel %vm2537, %v5684, %v5565
  %v5686 = vrot.slane %v5567, 6
  %v5687 = vsel %vm2539, %v5686, %v5685
  %v5688 = vrot.slane %v5568, 5
  %v5689 = vsel %vm2541, %v5688, %v5687
  %v5690 = vrot.slane %v5569, 4
  %v5691 = vsel %vm2543, %v5690, %v5689
  %v5692 = vrot.slane %v5570, 3
  %v5693 = vsel %vm2545, %v5692, %v5691
  %v5694 = vrot.slane %v5571, 2
  %v5695 = vsel %vm2547, %v5694, %v5693
  %v5696 = vrot.slane %v5572, 1
  %v5697 = vsel %vm2549, %v5696, %v5695
  %v5698 = vsel %vm145, %v5683, 0
  %v5700 = vsel %vm145, %v5697, 0
  %5702 = vmatprep.subr.mxu0 0.0
  %5703 = vmatpush1.msra.mxu0 0.0
  %5704 = vmatprep.subr.mxu0 0.0
  %5705 = vmatpush1.msra.mxu0 0.0
  %5706 = vmatprep.subr.mxu0 0.0
  %5707 = vmatpush1.msra.mxu0 0.0
  %5708 = vmatprep.subr.mxu0 0.0
  %5709 = vmatpush1.msra.mxu0 0.0
  %5710 = vmatprep.subr.mxu0 0.0
  %5711 = vmatpush1.msra.mxu0 0.0
  %5712 = vmatprep.subr.mxu0 0.0
  %5713 = vmatpush1.msra.mxu0 0.0
  %5714 = vmatprep.subr.mxu0 0.0
  %5715 = vmatpush1.msra.mxu0 0.0
  %5716 = vmatprep.subr.mxu0 0.0
  %5717 = vmatpush1.msra.mxu0 0.0
  %5718 = vmatprep.subr.mxu0 0.0
  %5719 = vmatpush1.msra.mxu0 0.0
  %5720 = vmatprep.subr.mxu0 0.0
  %5721 = vmatpush1.msra.mxu0 0.0
  %5722 = vmatprep.subr.mxu0 0.0
  %5723 = vmatpush1.msra.mxu0 0.0
  %5724 = vmatprep.subr.mxu0 0.0
  %5725 = vmatpush1.msra.mxu0 0.0
  %5726 = vmatprep.subr.mxu0 0.0
  %5727 = vmatpush1.msra.mxu0 0.0
  %5728 = vmatprep.subr.mxu0 0.0
  %5729 = vmatpush1.msra.mxu0 0.0
  %5730 = vmatprep.subr.mxu0 0.0
  %5731 = vmatpush1.msra.mxu0 0.0
  %5732 = vmatprep.subr.mxu0 0.0
  %5733 = vmatpush1.msra.mxu0 %v120
  %5734 = vmatprep.subr.mxu0 0.0
  %5735 = vmatpush2.msra.mxu0 0.0
  %5736 = vmatprep.subr.mxu0 0.0
  %5737 = vmatpush2.msra.mxu0 0.0
  %5738 = vmatprep.subr.mxu0 0.0
  %5739 = vmatpush2.msra.mxu0 0.0
  %5740 = vmatprep.subr.mxu0 0.0
  %5741 = vmatpush2.msra.mxu0 0.0
  %5742 = vmatprep.subr.mxu0 0.0
  %5743 = vmatpush2.msra.mxu0 0.0
  %5744 = vmatprep.subr.mxu0 0.0
  %5745 = vmatpush2.msra.mxu0 0.0
  %5746 = vmatprep.subr.mxu0 0.0
  %5747 = vmatpush2.msra.mxu0 0.0
  %5748 = vmatprep.subr.mxu0 0.0
  %5749 = vmatpush2.msra.mxu0 0.0
  %5750 = vmatprep.subr.mxu0 0.0
  %5751 = vmatpush2.msra.mxu0 0.0
  %5752 = vmatprep.subr.mxu0 0.0
  %5753 = vmatpush2.msra.mxu0 0.0
  %5754 = vmatprep.subr.mxu0 0.0
  %5755 = vmatpush2.msra.mxu0 0.0
  %5756 = vmatprep.subr.mxu0 0.0
  %5757 = vmatpush2.msra.mxu0 0.0
  %5758 = vmatprep.subr.mxu0 0.0
  %5759 = vmatpush2.msra.mxu0 0.0
  %5760 = vmatprep.subr.mxu0 0.0
  %5761 = vmatpush2.msra.mxu0 0.0
  %5762 = vmatprep.subr.mxu0 0.0
  %5763 = vmatpush2.msra.mxu0 0.0
  %5764 = vmatprep.subr.mxu0 0.0
  %5765 = vmatpush2.msra.mxu0 0.0
  %5766 = vmatprep.mubr.f32.mxu0 0.0
  %5767 = vmatmul.mubr.f32.gmra.mxu0 %v5698
  %v5768 = vpop.f32.mrf.mxu0
  %v5769 = vadd.f32 %v5646, %v5768
  %v5770 = vpop.f32.mrf.mxu0
  %5771 = vmatprep.mubr.f32.mxu0 0.0
  %5772 = vmatmul.mubr.f32.gmra.mxu0 %v5700
  %v5773 = vpop.f32.mrf.mxu0
  %v5774 = vadd.f32 %v5651, %v5773
  %v5775 = vpop.f32.mrf.mxu0
  %5776 = vdwg.mxu0
  %v5777 = vadd.f32 %v5769, %v3039
  %v5778 = vadd.f32 %v5774, %v3039
  %v5780 = vsel %vm145, %v5777, 0
  %v5783 = vsel %vm145, %v5778, 0
  %5785 = vmatprep.subr.mxu0 0.0
  %5786 = vmatpush1.msra.mxu0 0.0
  %5787 = vmatprep.subr.mxu0 0.0
  %5788 = vmatpush1.msra.mxu0 0.0
  %5789 = vmatprep.subr.mxu0 0.0
  %5790 = vmatpush1.msra.mxu0 0.0
  %5791 = vmatprep.subr.mxu0 0.0
  %5792 = vmatpush1.msra.mxu0 0.0
  %5793 = vmatprep.subr.mxu0 0.0
  %5794 = vmatpush1.msra.mxu0 0.0
  %5795 = vmatprep.subr.mxu0 0.0
  %5796 = vmatpush1.msra.mxu0 0.0
  %5797 = vmatprep.subr.mxu0 0.0
  %5798 = vmatpush1.msra.mxu0 0.0
  %5799 = vmatprep.subr.mxu0 0.0
  %5800 = vmatpush1.msra.mxu0 0.0
  %5801 = vmatprep.subr.mxu0 0.0
  %5802 = vmatpush1.msra.mxu0 0.0
  %5803 = vmatprep.subr.mxu0 0.0
  %5804 = vmatpush1.msra.mxu0 0.0
  %5805 = vmatprep.subr.mxu0 0.0
  %5806 = vmatpush1.msra.mxu0 0.0
  %5807 = vmatprep.subr.mxu0 0.0
  %5808 = vmatpush1.msra.mxu0 0.0
  %5809 = vmatprep.subr.mxu0 0.0
  %5810 = vmatpush1.msra.mxu0 0.0
  %5811 = vmatprep.subr.mxu0 0.0
  %5812 = vmatpush1.msra.mxu0 0.0
  %5813 = vmatprep.subr.mxu0 0.0
  %5814 = vmatpush1.msra.mxu0 0.0
  %5815 = vmatprep.subr.mxu0 0.0
  %5816 = vmatpush1.msra.mxu0 %v123
  %5817 = vmatprep.subr.mxu0 0.0
  %5818 = vmatpush2.msra.mxu0 0.0
  %5819 = vmatprep.subr.mxu0 0.0
  %5820 = vmatpush2.msra.mxu0 0.0
  %5821 = vmatprep.subr.mxu0 0.0
  %5822 = vmatpush2.msra.mxu0 0.0
  %5823 = vmatprep.subr.mxu0 0.0
  %5824 = vmatpush2.msra.mxu0 0.0
  %5825 = vmatprep.subr.mxu0 0.0
  %5826 = vmatpush2.msra.mxu0 0.0
  %5827 = vmatprep.subr.mxu0 0.0
  %5828 = vmatpush2.msra.mxu0 0.0
  %5829 = vmatprep.subr.mxu0 0.0
  %5830 = vmatpush2.msra.mxu0 0.0
  %5831 = vmatprep.subr.mxu0 0.0
  %5832 = vmatpush2.msra.mxu0 0.0
  %5833 = vmatprep.subr.mxu0 0.0
  %5834 = vmatpush2.msra.mxu0 0.0
  %5835 = vmatprep.subr.mxu0 0.0
  %5836 = vmatpush2.msra.mxu0 0.0
  %5837 = vmatprep.subr.mxu0 0.0
  %5838 = vmatpush2.msra.mxu0 0.0
  %5839 = vmatprep.subr.mxu0 0.0
  %5840 = vmatpush2.msra.mxu0 0.0
  %5841 = vmatprep.subr.mxu0 0.0
  %5842 = vmatpush2.msra.mxu0 0.0
  %5843 = vmatprep.subr.mxu0 0.0
  %5844 = vmatpush2.msra.mxu0 0.0
  %5845 = vmatprep.subr.mxu0 0.0
  %5846 = vmatpush2.msra.mxu0 0.0
  %5847 = vmatprep.subr.mxu0 0.0
  %5848 = vmatpush2.msra.mxu0 0.0
  %5849 = vmatprep.mubr.f32.mxu0 0.0
  %5850 = vmatmul.mubr.f32.gmra.mxu0 %v5780
  %v5851 = vpop.f32.mrf.mxu0
  %v5852 = vadd.f32 %v3047, %v5851
  %v5853 = vpop.f32.mrf.mxu0
  %5854 = vmatprep.mubr.f32.mxu0 0.0
  %5855 = vmatmul.mubr.f32.gmra.mxu0 %v5783
  %v5856 = vpop.f32.mrf.mxu0
  %v5857 = vadd.f32 %v3047, %v5856
  %v5858 = vpop.f32.mrf.mxu0
  %5859 = vdwg.mxu0
  %v5860 = vld [vmem:[%s18] sm:$0x3]
  %v5862 = vrot.slane %v5852, 7
  %vm5864 = vcmask 1040384
  %v5865 = vsel %vm5864, %v3122, %v5862
  %v5867 = vlaneseq
  %v5868 = vshrl.u32 %v5867, 7
  %v5869 = vsub.s32 0, %v5868
  %v5870 = vrot.slane %v129, %v5869
  %vm5872 = vcmask 261120
  %v5874 = vsel %vm5872, %v5860, 0
  %5876 = vmatprep.subr.mxu0 0.0
  %5877 = vmatpush1.msra.mxu0 0.0
  %5878 = vmatprep.subr.mxu0 0.0
  %5879 = vmatpush1.msra.mxu0 0.0
  %5880 = vmatprep.subr.mxu0 0.0
  %5881 = vmatpush1.msra.mxu0 0.0
  %5882 = vmatprep.subr.mxu0 0.0
  %5883 = vmatpush1.msra.mxu0 0.0
  %5884 = vmatprep.subr.mxu0 0.0
  %5885 = vmatpush1.msra.mxu0 0.0
  %5886 = vmatprep.subr.mxu0 0.0
  %5887 = vmatpush1.msra.mxu0 0.0
  %5888 = vmatprep.subr.mxu0 0.0
  %5889 = vmatpush1.msra.mxu0 0.0
  %5890 = vmatprep.subr.mxu0 0.0
  %5891 = vmatpush1.msra.mxu0 0.0
  %5892 = vmatprep.subr.mxu0 0.0
  %5893 = vmatpush1.msra.mxu0 0.0
  %5894 = vmatprep.subr.mxu0 0.0
  %5895 = vmatpush1.msra.mxu0 0.0
  %5896 = vmatprep.subr.mxu0 0.0
  %5897 = vmatpush1.msra.mxu0 0.0
  %5898 = vmatprep.subr.mxu0 0.0
  %5899 = vmatpush1.msra.mxu0 0.0
  %5900 = vmatprep.subr.mxu0 0.0
  %5901 = vmatpush1.msra.mxu0 %v128
  %5902 = vmatprep.subr.mxu0 0.0
  %5903 = vmatpush1.msra.mxu0 %v127
  %5904 = vmatprep.subr.mxu0 0.0
  %5905 = vmatpush1.msra.mxu0 %v126
  %5906 = vmatprep.subr.mxu0 0.0
  %5907 = vmatpush1.msra.mxu0 %v125
  %5908 = vmatprep.subr.mxu0 0.0
  %5909 = vmatpush2.msra.mxu0 0.0
  %5910 = vmatprep.subr.mxu0 0.0
  %5911 = vmatpush2.msra.mxu0 0.0
  %5912 = vmatprep.subr.mxu0 0.0
  %5913 = vmatpush2.msra.mxu0 0.0
  %5914 = vmatprep.subr.mxu0 0.0
  %5915 = vmatpush2.msra.mxu0 0.0
  %5916 = vmatprep.subr.mxu0 0.0
  %5917 = vmatpush2.msra.mxu0 0.0
  %5918 = vmatprep.subr.mxu0 0.0
  %5919 = vmatpush2.msra.mxu0 0.0
  %5920 = vmatprep.subr.mxu0 0.0
  %5921 = vmatpush2.msra.mxu0 0.0
  %5922 = vmatprep.subr.mxu0 0.0
  %5923 = vmatpush2.msra.mxu0 0.0
  %5924 = vmatprep.subr.mxu0 0.0
  %5925 = vmatpush2.msra.mxu0 0.0
  %5926 = vmatprep.subr.mxu0 0.0
  %5927 = vmatpush2.msra.mxu0 0.0
  %5928 = vmatprep.subr.mxu0 0.0
  %5929 = vmatpush2.msra.mxu0 0.0
  %5930 = vmatprep.subr.mxu0 0.0
  %5931 = vmatpush2.msra.mxu0 0.0
  %5932 = vmatprep.subr.mxu0 0.0
  %5933 = vmatpush2.msra.mxu0 0.0
  %5934 = vmatprep.subr.mxu0 0.0
  %5935 = vmatpush2.msra.mxu0 0.0
  %5936 = vmatprep.subr.mxu0 0.0
  %5937 = vmatpush2.msra.mxu0 0.0
  %5938 = vmatprep.subr.mxu0 0.0
  %5939 = vmatpush2.msra.mxu0 0.0
  %5940 = vmatprep.mubr.f32.mxu0 0.0
  %5941 = vmatmul.mubr.f32.gmra.mxu0 %v5874
  %v5942 = vpop.f32.mrf.mxu0
  %v5943 = vadd.f32 %v5870, %v5942
  %v5944 = vpop.f32.mrf.mxu0
  %5945 = vdwg.mxu0
  %v5946 = vadd.f32 %v5865, %v5943
  %v5947 = vxor.u32 %v5946, 2147483648
  %v5948 = vmul.f32 %v5947, 1.442695
  %v5949 = vpow.pop %v5948
  %v5950 = vadd.f32 %v5949, 1.0
  %v5951 = vrcp.pop %v5950
  %v5952 = vmul.f32 1.0, %v5951
  %5954 = vrot.lane.b32.xlu0 %v5943, 64
  %v5955 = vpop.permute.xlu0 %5954
  %v5957 = vmul.f32 %v5952, %v5955
  %5959 = vrot.lane.b32.xlu0 %v5957, 64
  %v5960 = vpop.permute.xlu0 %5959
  %v5962 = vadd.f32 %v5865, %v5960
  %v5963 = vtanh.pop %v5962
  %v5964 = vsub.f32 1.0, %v5952
  %5966 = vrot.lane.b32.xlu0 %v5963, 96
  %v5967 = vpop.permute.xlu0 %5966
  %v5969 = vmul.f32 %v5964, %v5967
  %5970 = vrot.lane.b32.xlu0 %v5860, 32
  %v5971 = vpop.permute.xlu0 %5970
  %v5973 = vmul.f32 %v5952, %v5971
  %v5974 = vadd.f32 %v5969, %v5973
  %v5976 = vrot.slane %v3122, 1
  %v5978 = vsel %vm5864, %v5976, %v5852
  %5980 = vrot.lane.b32.xlu0 %v5974, 96
  %v5981 = vpop.permute.xlu0 %5980
  %v5982 = vsel %vm5872, %v5981, 0
  %5984 = vmatprep.subr.mxu0 0.0
  %5985 = vmatpush1.msra.mxu0 0.0
  %5986 = vmatprep.subr.mxu0 0.0
  %5987 = vmatpush1.msra.mxu0 0.0
  %5988 = vmatprep.subr.mxu0 0.0
  %5989 = vmatpush1.msra.mxu0 0.0
  %5990 = vmatprep.subr.mxu0 0.0
  %5991 = vmatpush1.msra.mxu0 0.0
  %5992 = vmatprep.subr.mxu0 0.0
  %5993 = vmatpush1.msra.mxu0 0.0
  %5994 = vmatprep.subr.mxu0 0.0
  %5995 = vmatpush1.msra.mxu0 0.0
  %5996 = vmatprep.subr.mxu0 0.0
  %5997 = vmatpush1.msra.mxu0 0.0
  %5998 = vmatprep.subr.mxu0 0.0
  %5999 = vmatpush1.msra.mxu0 0.0
  %6000 = vmatprep.subr.mxu0 0.0
  %6001 = vmatpush1.msra.mxu0 0.0
  %6002 = vmatprep.subr.mxu0 0.0
  %6003 = vmatpush1.msra.mxu0 0.0
  %6004 = vmatprep.subr.mxu0 0.0
  %6005 = vmatpush1.msra.mxu0 0.0
  %6006 = vmatprep.subr.mxu0 0.0
  %6007 = vmatpush1.msra.mxu0 0.0
  %6008 = vmatprep.subr.mxu0 0.0
  %6009 = vmatpush1.msra.mxu0 %v128
  %6010 = vmatprep.subr.mxu0 0.0
  %6011 = vmatpush1.msra.mxu0 %v127
  %6012 = vmatprep.subr.mxu0 0.0
  %6013 = vmatpush1.msra.mxu0 %v126
  %6014 = vmatprep.subr.mxu0 0.0
  %6015 = vmatpush1.msra.mxu0 %v125
  %6016 = vmatprep.subr.mxu0 0.0
  %6017 = vmatpush2.msra.mxu0 0.0
  %6018 = vmatprep.subr.mxu0 0.0
  %6019 = vmatpush2.msra.mxu0 0.0
  %6020 = vmatprep.subr.mxu0 0.0
  %6021 = vmatpush2.msra.mxu0 0.0
  %6022 = vmatprep.subr.mxu0 0.0
  %6023 = vmatpush2.msra.mxu0 0.0
  %6024 = vmatprep.subr.mxu0 0.0
  %6025 = vmatpush2.msra.mxu0 0.0
  %6026 = vmatprep.subr.mxu0 0.0
  %6027 = vmatpush2.msra.mxu0 0.0
  %6028 = vmatprep.subr.mxu0 0.0
  %6029 = vmatpush2.msra.mxu0 0.0
  %6030 = vmatprep.subr.mxu0 0.0
  %6031 = vmatpush2.msra.mxu0 0.0
  %6032 = vmatprep.subr.mxu0 0.0
  %6033 = vmatpush2.msra.mxu0 0.0
  %6034 = vmatprep.subr.mxu0 0.0
  %6035 = vmatpush2.msra.mxu0 0.0
  %6036 = vmatprep.subr.mxu0 0.0
  %6037 = vmatpush2.msra.mxu0 0.0
  %6038 = vmatprep.subr.mxu0 0.0
  %6039 = vmatpush2.msra.mxu0 0.0
  %6040 = vmatprep.subr.mxu0 0.0
  %6041 = vmatpush2.msra.mxu0 0.0
  %6042 = vmatprep.subr.mxu0 0.0
  %6043 = vmatpush2.msra.mxu0 0.0
  %6044 = vmatprep.subr.mxu0 0.0
  %6045 = vmatpush2.msra.mxu0 0.0
  %6046 = vmatprep.subr.mxu0 0.0
  %6047 = vmatpush2.msra.mxu0 0.0
  %6048 = vmatprep.mubr.f32.mxu0 0.0
  %6049 = vmatmul.mubr.f32.gmra.mxu0 %v5982
  %v6050 = vpop.f32.mrf.mxu0
  %v6051 = vadd.f32 %v5870, %v6050
  %v6052 = vpop.f32.mrf.mxu0
  %6053 = vdwg.mxu0
  %v6054 = vadd.f32 %v5978, %v6051
  %v6055 = vxor.u32 %v6054, 2147483648
  %v6056 = vmul.f32 %v6055, 1.442695
  %v6057 = vpow.pop %v6056
  %v6058 = vadd.f32 %v6057, 1.0
  %v6059 = vrcp.pop %v6058
  %v6060 = vmul.f32 1.0, %v6059
  %6062 = vrot.lane.b32.xlu0 %v6051, 64
  %v6063 = vpop.permute.xlu0 %6062
  %v6065 = vmul.f32 %v6060, %v6063
  %6067 = vrot.lane.b32.xlu0 %v6065, 64
  %v6068 = vpop.permute.xlu0 %6067
  %v6070 = vadd.f32 %v5978, %v6068
  %v6071 = vtanh.pop %v6070
  %v6072 = vsub.f32 1.0, %v6060
  %6074 = vrot.lane.b32.xlu0 %v6071, 96
  %v6075 = vpop.permute.xlu0 %6074
  %v6077 = vmul.f32 %v6072, %v6075
  %v6078 = vmul.f32 %v6060, %v5974
  %v6079 = vadd.f32 %v6077, %v6078
  %v6080 = vrot.slane %v3122, 2
  %v6082 = vrot.slane %v5852, 1
  %v6084 = vsel %vm5864, %v6080, %v6082
  %6086 = vrot.lane.b32.xlu0 %v6079, 96
  %v6087 = vpop.permute.xlu0 %6086
  %v6088 = vsel %vm5872, %v6087, 0
  %6090 = vmatprep.subr.mxu0 0.0
  %6091 = vmatpush1.msra.mxu0 0.0
  %6092 = vmatprep.subr.mxu0 0.0
  %6093 = vmatpush1.msra.mxu0 0.0
  %6094 = vmatprep.subr.mxu0 0.0
  %6095 = vmatpush1.msra.mxu0 0.0
  %6096 = vmatprep.subr.mxu0 0.0
  %6097 = vmatpush1.msra.mxu0 0.0
  %6098 = vmatprep.subr.mxu0 0.0
  %6099 = vmatpush1.msra.mxu0 0.0
  %6100 = vmatprep.subr.mxu0 0.0
  %6101 = vmatpush1.msra.mxu0 0.0
  %6102 = vmatprep.subr.mxu0 0.0
  %6103 = vmatpush1.msra.mxu0 0.0
  %6104 = vmatprep.subr.mxu0 0.0
  %6105 = vmatpush1.msra.mxu0 0.0
  %6106 = vmatprep.subr.mxu0 0.0
  %6107 = vmatpush1.msra.mxu0 0.0
  %6108 = vmatprep.subr.mxu0 0.0
  %6109 = vmatpush1.msra.mxu0 0.0
  %6110 = vmatprep.subr.mxu0 0.0
  %6111 = vmatpush1.msra.mxu0 0.0
  %6112 = vmatprep.subr.mxu0 0.0
  %6113 = vmatpush1.msra.mxu0 0.0
  %6114 = vmatprep.subr.mxu0 0.0
  %6115 = vmatpush1.msra.mxu0 %v128
  %6116 = vmatprep.subr.mxu0 0.0
  %6117 = vmatpush1.msra.mxu0 %v127
  %6118 = vmatprep.subr.mxu0 0.0
  %6119 = vmatpush1.msra.mxu0 %v126
  %6120 = vmatprep.subr.mxu0 0.0
  %6121 = vmatpush1.msra.mxu0 %v125
  %6122 = vmatprep.subr.mxu0 0.0
  %6123 = vmatpush2.msra.mxu0 0.0
  %6124 = vmatprep.subr.mxu0 0.0
  %6125 = vmatpush2.msra.mxu0 0.0
  %6126 = vmatprep.subr.mxu0 0.0
  %6127 = vmatpush2.msra.mxu0 0.0
  %6128 = vmatprep.subr.mxu0 0.0
  %6129 = vmatpush2.msra.mxu0 0.0
  %6130 = vmatprep.subr.mxu0 0.0
  %6131 = vmatpush2.msra.mxu0 0.0
  %6132 = vmatprep.subr.mxu0 0.0
  %6133 = vmatpush2.msra.mxu0 0.0
  %6134 = vmatprep.subr.mxu0 0.0
  %6135 = vmatpush2.msra.mxu0 0.0
  %6136 = vmatprep.subr.mxu0 0.0
  %6137 = vmatpush2.msra.mxu0 0.0
  %6138 = vmatprep.subr.mxu0 0.0
  %6139 = vmatpush2.msra.mxu0 0.0
  %6140 = vmatprep.subr.mxu0 0.0
  %6141 = vmatpush2.msra.mxu0 0.0
  %6142 = vmatprep.subr.mxu0 0.0
  %6143 = vmatpush2.msra.mxu0 0.0
  %6144 = vmatprep.subr.mxu0 0.0
  %6145 = vmatpush2.msra.mxu0 0.0
  %6146 = vmatprep.subr.mxu0 0.0
  %6147 = vmatpush2.msra.mxu0 0.0
  %6148 = vmatprep.subr.mxu0 0.0
  %6149 = vmatpush2.msra.mxu0 0.0
  %6150 = vmatprep.subr.mxu0 0.0
  %6151 = vmatpush2.msra.mxu0 0.0
  %6152 = vmatprep.subr.mxu0 0.0
  %6153 = vmatpush2.msra.mxu0 0.0
  %6154 = vmatprep.mubr.f32.mxu0 0.0
  %6155 = vmatmul.mubr.f32.gmra.mxu0 %v6088
  %v6156 = vpop.f32.mrf.mxu0
  %v6157 = vadd.f32 %v5870, %v6156
  %v6158 = vpop.f32.mrf.mxu0
  %6159 = vdwg.mxu0
  %v6160 = vadd.f32 %v6084, %v6157
  %v6161 = vxor.u32 %v6160, 2147483648
  %v6162 = vmul.f32 %v6161, 1.442695
  %v6163 = vpow.pop %v6162
  %v6164 = vadd.f32 %v6163, 1.0
  %v6165 = vrcp.pop %v6164
  %v6166 = vmul.f32 1.0, %v6165
  %6168 = vrot.lane.b32.xlu0 %v6157, 64
  %v6169 = vpop.permute.xlu0 %6168
  %v6171 = vmul.f32 %v6166, %v6169
  %6173 = vrot.lane.b32.xlu0 %v6171, 64
  %v6174 = vpop.permute.xlu0 %6173
  %v6176 = vadd.f32 %v6084, %v6174
  %v6177 = vtanh.pop %v6176
  %v6178 = vsub.f32 1.0, %v6166
  %6180 = vrot.lane.b32.xlu0 %v6177, 96
  %v6181 = vpop.permute.xlu0 %6180
  %v6183 = vmul.f32 %v6178, %v6181
  %v6184 = vmul.f32 %v6166, %v6079
  %v6185 = vadd.f32 %v6183, %v6184
  %v6186 = vrot.slane %v3122, 3
  %v6188 = vrot.slane %v5852, 2
  %v6190 = vsel %vm5864, %v6186, %v6188
  %6192 = vrot.lane.b32.xlu0 %v6185, 96
  %v6193 = vpop.permute.xlu0 %6192
  %v6194 = vsel %vm5872, %v6193, 0
  %6196 = vmatprep.subr.mxu0 0.0
  %6197 = vmatpush1.msra.mxu0 0.0
  %6198 = vmatprep.subr.mxu0 0.0
  %6199 = vmatpush1.msra.mxu0 0.0
  %6200 = vmatprep.subr.mxu0 0.0
  %6201 = vmatpush1.msra.mxu0 0.0
  %6202 = vmatprep.subr.mxu0 0.0
  %6203 = vmatpush1.msra.mxu0 0.0
  %6204 = vmatprep.subr.mxu0 0.0
  %6205 = vmatpush1.msra.mxu0 0.0
  %6206 = vmatprep.subr.mxu0 0.0
  %6207 = vmatpush1.msra.mxu0 0.0
  %6208 = vmatprep.subr.mxu0 0.0
  %6209 = vmatpush1.msra.mxu0 0.0
  %6210 = vmatprep.subr.mxu0 0.0
  %6211 = vmatpush1.msra.mxu0 0.0
  %6212 = vmatprep.subr.mxu0 0.0
  %6213 = vmatpush1.msra.mxu0 0.0
  %6214 = vmatprep.subr.mxu0 0.0
  %6215 = vmatpush1.msra.mxu0 0.0
  %6216 = vmatprep.subr.mxu0 0.0
  %6217 = vmatpush1.msra.mxu0 0.0
  %6218 = vmatprep.subr.mxu0 0.0
  %6219 = vmatpush1.msra.mxu0 0.0
  %6220 = vmatprep.subr.mxu0 0.0
  %6221 = vmatpush1.msra.mxu0 %v128
  %6222 = vmatprep.subr.mxu0 0.0
  %6223 = vmatpush1.msra.mxu0 %v127
  %6224 = vmatprep.subr.mxu0 0.0
  %6225 = vmatpush1.msra.mxu0 %v126
  %6226 = vmatprep.subr.mxu0 0.0
  %6227 = vmatpush1.msra.mxu0 %v125
  %6228 = vmatprep.subr.mxu0 0.0
  %6229 = vmatpush2.msra.mxu0 0.0
  %6230 = vmatprep.subr.mxu0 0.0
  %6231 = vmatpush2.msra.mxu0 0.0
  %6232 = vmatprep.subr.mxu0 0.0
  %6233 = vmatpush2.msra.mxu0 0.0
  %6234 = vmatprep.subr.mxu0 0.0
  %6235 = vmatpush2.msra.mxu0 0.0
  %6236 = vmatprep.subr.mxu0 0.0
  %6237 = vmatpush2.msra.mxu0 0.0
  %6238 = vmatprep.subr.mxu0 0.0
  %6239 = vmatpush2.msra.mxu0 0.0
  %6240 = vmatprep.subr.mxu0 0.0
  %6241 = vmatpush2.msra.mxu0 0.0
  %6242 = vmatprep.subr.mxu0 0.0
  %6243 = vmatpush2.msra.mxu0 0.0
  %6244 = vmatprep.subr.mxu0 0.0
  %6245 = vmatpush2.msra.mxu0 0.0
  %6246 = vmatprep.subr.mxu0 0.0
  %6247 = vmatpush2.msra.mxu0 0.0
  %6248 = vmatprep.subr.mxu0 0.0
  %6249 = vmatpush2.msra.mxu0 0.0
  %6250 = vmatprep.subr.mxu0 0.0
  %6251 = vmatpush2.msra.mxu0 0.0
  %6252 = vmatprep.subr.mxu0 0.0
  %6253 = vmatpush2.msra.mxu0 0.0
  %6254 = vmatprep.subr.mxu0 0.0
  %6255 = vmatpush2.msra.mxu0 0.0
  %6256 = vmatprep.subr.mxu0 0.0
  %6257 = vmatpush2.msra.mxu0 0.0
  %6258 = vmatprep.subr.mxu0 0.0
  %6259 = vmatpush2.msra.mxu0 0.0
  %6260 = vmatprep.mubr.f32.mxu0 0.0
  %6261 = vmatmul.mubr.f32.gmra.mxu0 %v6194
  %v6262 = vpop.f32.mrf.mxu0
  %v6263 = vadd.f32 %v5870, %v6262
  %v6264 = vpop.f32.mrf.mxu0
  %6265 = vdwg.mxu0
  %v6266 = vadd.f32 %v6190, %v6263
  %v6267 = vxor.u32 %v6266, 2147483648
  %v6268 = vmul.f32 %v6267, 1.442695
  %v6269 = vpow.pop %v6268
  %v6270 = vadd.f32 %v6269, 1.0
  %v6271 = vrcp.pop %v6270
  %v6272 = vmul.f32 1.0, %v6271
  %6274 = vrot.lane.b32.xlu0 %v6263, 64
  %v6275 = vpop.permute.xlu0 %6274
  %v6277 = vmul.f32 %v6272, %v6275
  %6279 = vrot.lane.b32.xlu0 %v6277, 64
  %v6280 = vpop.permute.xlu0 %6279
  %v6282 = vadd.f32 %v6190, %v6280
  %v6283 = vtanh.pop %v6282
  %v6284 = vsub.f32 1.0, %v6272
  %6286 = vrot.lane.b32.xlu0 %v6283, 96
  %v6287 = vpop.permute.xlu0 %6286
  %v6289 = vmul.f32 %v6284, %v6287
  %v6290 = vmul.f32 %v6272, %v6185
  %v6291 = vadd.f32 %v6289, %v6290
  %v6292 = vrot.slane %v3122, 4
  %v6294 = vrot.slane %v5852, 3
  %v6296 = vsel %vm5864, %v6292, %v6294
  %6298 = vrot.lane.b32.xlu0 %v6291, 96
  %v6299 = vpop.permute.xlu0 %6298
  %v6300 = vsel %vm5872, %v6299, 0
  %6302 = vmatprep.subr.mxu0 0.0
  %6303 = vmatpush1.msra.mxu0 0.0
  %6304 = vmatprep.subr.mxu0 0.0
  %6305 = vmatpush1.msra.mxu0 0.0
  %6306 = vmatprep.subr.mxu0 0.0
  %6307 = vmatpush1.msra.mxu0 0.0
  %6308 = vmatprep.subr.mxu0 0.0
  %6309 = vmatpush1.msra.mxu0 0.0
  %6310 = vmatprep.subr.mxu0 0.0
  %6311 = vmatpush1.msra.mxu0 0.0
  %6312 = vmatprep.subr.mxu0 0.0
  %6313 = vmatpush1.msra.mxu0 0.0
  %6314 = vmatprep.subr.mxu0 0.0
  %6315 = vmatpush1.msra.mxu0 0.0
  %6316 = vmatprep.subr.mxu0 0.0
  %6317 = vmatpush1.msra.mxu0 0.0
  %6318 = vmatprep.subr.mxu0 0.0
  %6319 = vmatpush1.msra.mxu0 0.0
  %6320 = vmatprep.subr.mxu0 0.0
  %6321 = vmatpush1.msra.mxu0 0.0
  %6322 = vmatprep.subr.mxu0 0.0
  %6323 = vmatpush1.msra.mxu0 0.0
  %6324 = vmatprep.subr.mxu0 0.0
  %6325 = vmatpush1.msra.mxu0 0.0
  %6326 = vmatprep.subr.mxu0 0.0
  %6327 = vmatpush1.msra.mxu0 %v128
  %6328 = vmatprep.subr.mxu0 0.0
  %6329 = vmatpush1.msra.mxu0 %v127
  %6330 = vmatprep.subr.mxu0 0.0
  %6331 = vmatpush1.msra.mxu0 %v126
  %6332 = vmatprep.subr.mxu0 0.0
  %6333 = vmatpush1.msra.mxu0 %v125
  %6334 = vmatprep.subr.mxu0 0.0
  %6335 = vmatpush2.msra.mxu0 0.0
  %6336 = vmatprep.subr.mxu0 0.0
  %6337 = vmatpush2.msra.mxu0 0.0
  %6338 = vmatprep.subr.mxu0 0.0
  %6339 = vmatpush2.msra.mxu0 0.0
  %6340 = vmatprep.subr.mxu0 0.0
  %6341 = vmatpush2.msra.mxu0 0.0
  %6342 = vmatprep.subr.mxu0 0.0
  %6343 = vmatpush2.msra.mxu0 0.0
  %6344 = vmatprep.subr.mxu0 0.0
  %6345 = vmatpush2.msra.mxu0 0.0
  %6346 = vmatprep.subr.mxu0 0.0
  %6347 = vmatpush2.msra.mxu0 0.0
  %6348 = vmatprep.subr.mxu0 0.0
  %6349 = vmatpush2.msra.mxu0 0.0
  %6350 = vmatprep.subr.mxu0 0.0
  %6351 = vmatpush2.msra.mxu0 0.0
  %6352 = vmatprep.subr.mxu0 0.0
  %6353 = vmatpush2.msra.mxu0 0.0
  %6354 = vmatprep.subr.mxu0 0.0
  %6355 = vmatpush2.msra.mxu0 0.0
  %6356 = vmatprep.subr.mxu0 0.0
  %6357 = vmatpush2.msra.mxu0 0.0
  %6358 = vmatprep.subr.mxu0 0.0
  %6359 = vmatpush2.msra.mxu0 0.0
  %6360 = vmatprep.subr.mxu0 0.0
  %6361 = vmatpush2.msra.mxu0 0.0
  %6362 = vmatprep.subr.mxu0 0.0
  %6363 = vmatpush2.msra.mxu0 0.0
  %6364 = vmatprep.subr.mxu0 0.0
  %6365 = vmatpush2.msra.mxu0 0.0
  %6366 = vmatprep.mubr.f32.mxu0 0.0
  %6367 = vmatmul.mubr.f32.gmra.mxu0 %v6300
  %v6368 = vpop.f32.mrf.mxu0
  %v6369 = vadd.f32 %v5870, %v6368
  %v6370 = vpop.f32.mrf.mxu0
  %6371 = vdwg.mxu0
  %v6372 = vadd.f32 %v6296, %v6369
  %v6373 = vxor.u32 %v6372, 2147483648
  %v6374 = vmul.f32 %v6373, 1.442695
  %v6375 = vpow.pop %v6374
  %v6376 = vadd.f32 %v6375, 1.0
  %v6377 = vrcp.pop %v6376
  %v6378 = vmul.f32 1.0, %v6377
  %6380 = vrot.lane.b32.xlu0 %v6369, 64
  %v6381 = vpop.permute.xlu0 %6380
  %v6383 = vmul.f32 %v6378, %v6381
  %6385 = vrot.lane.b32.xlu0 %v6383, 64
  %v6386 = vpop.permute.xlu0 %6385
  %v6388 = vadd.f32 %v6296, %v6386
  %v6389 = vtanh.pop %v6388
  %v6390 = vsub.f32 1.0, %v6378
  %6392 = vrot.lane.b32.xlu0 %v6389, 96
  %v6393 = vpop.permute.xlu0 %6392
  %v6395 = vmul.f32 %v6390, %v6393
  %v6396 = vmul.f32 %v6378, %v6291
  %v6397 = vadd.f32 %v6395, %v6396
  %v6398 = vrot.slane %v3122, 5
  %v6400 = vrot.slane %v5852, 4
  %v6402 = vsel %vm5864, %v6398, %v6400
  %6404 = vrot.lane.b32.xlu0 %v6397, 96
  %v6405 = vpop.permute.xlu0 %6404
  %v6406 = vsel %vm5872, %v6405, 0
  %6408 = vmatprep.subr.mxu0 0.0
  %6409 = vmatpush1.msra.mxu0 0.0
  %6410 = vmatprep.subr.mxu0 0.0
  %6411 = vmatpush1.msra.mxu0 0.0
  %6412 = vmatprep.subr.mxu0 0.0
  %6413 = vmatpush1.msra.mxu0 0.0
  %6414 = vmatprep.subr.mxu0 0.0
  %6415 = vmatpush1.msra.mxu0 0.0
  %6416 = vmatprep.subr.mxu0 0.0
  %6417 = vmatpush1.msra.mxu0 0.0
  %6418 = vmatprep.subr.mxu0 0.0
  %6419 = vmatpush1.msra.mxu0 0.0
  %6420 = vmatprep.subr.mxu0 0.0
  %6421 = vmatpush1.msra.mxu0 0.0
  %6422 = vmatprep.subr.mxu0 0.0
  %6423 = vmatpush1.msra.mxu0 0.0
  %6424 = vmatprep.subr.mxu0 0.0
  %6425 = vmatpush1.msra.mxu0 0.0
  %6426 = vmatprep.subr.mxu0 0.0
  %6427 = vmatpush1.msra.mxu0 0.0
  %6428 = vmatprep.subr.mxu0 0.0
  %6429 = vmatpush1.msra.mxu0 0.0
  %6430 = vmatprep.subr.mxu0 0.0
  %6431 = vmatpush1.msra.mxu0 0.0
  %6432 = vmatprep.subr.mxu0 0.0
  %6433 = vmatpush1.msra.mxu0 %v128
  %6434 = vmatprep.subr.mxu0 0.0
  %6435 = vmatpush1.msra.mxu0 %v127
  %6436 = vmatprep.subr.mxu0 0.0
  %6437 = vmatpush1.msra.mxu0 %v126
  %6438 = vmatprep.subr.mxu0 0.0
  %6439 = vmatpush1.msra.mxu0 %v125
  %6440 = vmatprep.subr.mxu0 0.0
  %6441 = vmatpush2.msra.mxu0 0.0
  %6442 = vmatprep.subr.mxu0 0.0
  %6443 = vmatpush2.msra.mxu0 0.0
  %6444 = vmatprep.subr.mxu0 0.0
  %6445 = vmatpush2.msra.mxu0 0.0
  %6446 = vmatprep.subr.mxu0 0.0
  %6447 = vmatpush2.msra.mxu0 0.0
  %6448 = vmatprep.subr.mxu0 0.0
  %6449 = vmatpush2.msra.mxu0 0.0
  %6450 = vmatprep.subr.mxu0 0.0
  %6451 = vmatpush2.msra.mxu0 0.0
  %6452 = vmatprep.subr.mxu0 0.0
  %6453 = vmatpush2.msra.mxu0 0.0
  %6454 = vmatprep.subr.mxu0 0.0
  %6455 = vmatpush2.msra.mxu0 0.0
  %6456 = vmatprep.subr.mxu0 0.0
  %6457 = vmatpush2.msra.mxu0 0.0
  %6458 = vmatprep.subr.mxu0 0.0
  %6459 = vmatpush2.msra.mxu0 0.0
  %6460 = vmatprep.subr.mxu0 0.0
  %6461 = vmatpush2.msra.mxu0 0.0
  %6462 = vmatprep.subr.mxu0 0.0
  %6463 = vmatpush2.msra.mxu0 0.0
  %6464 = vmatprep.subr.mxu0 0.0
  %6465 = vmatpush2.msra.mxu0 0.0
  %6466 = vmatprep.subr.mxu0 0.0
  %6467 = vmatpush2.msra.mxu0 0.0
  %6468 = vmatprep.subr.mxu0 0.0
  %6469 = vmatpush2.msra.mxu0 0.0
  %6470 = vmatprep.subr.mxu0 0.0
  %6471 = vmatpush2.msra.mxu0 0.0
  %6472 = vmatprep.mubr.f32.mxu0 0.0
  %6473 = vmatmul.mubr.f32.gmra.mxu0 %v6406
  %v6474 = vpop.f32.mrf.mxu0
  %v6475 = vadd.f32 %v5870, %v6474
  %v6476 = vpop.f32.mrf.mxu0
  %6477 = vdwg.mxu0
  %v6478 = vadd.f32 %v6402, %v6475
  %v6479 = vxor.u32 %v6478, 2147483648
  %v6480 = vmul.f32 %v6479, 1.442695
  %v6481 = vpow.pop %v6480
  %v6482 = vadd.f32 %v6481, 1.0
  %v6483 = vrcp.pop %v6482
  %v6484 = vmul.f32 1.0, %v6483
  %6486 = vrot.lane.b32.xlu0 %v6475, 64
  %v6487 = vpop.permute.xlu0 %6486
  %v6489 = vmul.f32 %v6484, %v6487
  %6491 = vrot.lane.b32.xlu0 %v6489, 64
  %v6492 = vpop.permute.xlu0 %6491
  %v6494 = vadd.f32 %v6402, %v6492
  %v6495 = vtanh.pop %v6494
  %v6496 = vsub.f32 1.0, %v6484
  %6498 = vrot.lane.b32.xlu0 %v6495, 96
  %v6499 = vpop.permute.xlu0 %6498
  %v6501 = vmul.f32 %v6496, %v6499
  %v6502 = vmul.f32 %v6484, %v6397
  %v6503 = vadd.f32 %v6501, %v6502
  %v6504 = vrot.slane %v3122, 6
  %v6506 = vrot.slane %v5852, 5
  %v6508 = vsel %vm5864, %v6504, %v6506
  %6510 = vrot.lane.b32.xlu0 %v6503, 96
  %v6511 = vpop.permute.xlu0 %6510
  %v6512 = vsel %vm5872, %v6511, 0
  %6514 = vmatprep.subr.mxu0 0.0
  %6515 = vmatpush1.msra.mxu0 0.0
  %6516 = vmatprep.subr.mxu0 0.0
  %6517 = vmatpush1.msra.mxu0 0.0
  %6518 = vmatprep.subr.mxu0 0.0
  %6519 = vmatpush1.msra.mxu0 0.0
  %6520 = vmatprep.subr.mxu0 0.0
  %6521 = vmatpush1.msra.mxu0 0.0
  %6522 = vmatprep.subr.mxu0 0.0
  %6523 = vmatpush1.msra.mxu0 0.0
  %6524 = vmatprep.subr.mxu0 0.0
  %6525 = vmatpush1.msra.mxu0 0.0
  %6526 = vmatprep.subr.mxu0 0.0
  %6527 = vmatpush1.msra.mxu0 0.0
  %6528 = vmatprep.subr.mxu0 0.0
  %6529 = vmatpush1.msra.mxu0 0.0
  %6530 = vmatprep.subr.mxu0 0.0
  %6531 = vmatpush1.msra.mxu0 0.0
  %6532 = vmatprep.subr.mxu0 0.0
  %6533 = vmatpush1.msra.mxu0 0.0
  %6534 = vmatprep.subr.mxu0 0.0
  %6535 = vmatpush1.msra.mxu0 0.0
  %6536 = vmatprep.subr.mxu0 0.0
  %6537 = vmatpush1.msra.mxu0 0.0
  %6538 = vmatprep.subr.mxu0 0.0
  %6539 = vmatpush1.msra.mxu0 %v128
  %6540 = vmatprep.subr.mxu0 0.0
  %6541 = vmatpush1.msra.mxu0 %v127
  %6542 = vmatprep.subr.mxu0 0.0
  %6543 = vmatpush1.msra.mxu0 %v126
  %6544 = vmatprep.subr.mxu0 0.0
  %6545 = vmatpush1.msra.mxu0 %v125
  %6546 = vmatprep.subr.mxu0 0.0
  %6547 = vmatpush2.msra.mxu0 0.0
  %6548 = vmatprep.subr.mxu0 0.0
  %6549 = vmatpush2.msra.mxu0 0.0
  %6550 = vmatprep.subr.mxu0 0.0
  %6551 = vmatpush2.msra.mxu0 0.0
  %6552 = vmatprep.subr.mxu0 0.0
  %6553 = vmatpush2.msra.mxu0 0.0
  %6554 = vmatprep.subr.mxu0 0.0
  %6555 = vmatpush2.msra.mxu0 0.0
  %6556 = vmatprep.subr.mxu0 0.0
  %6557 = vmatpush2.msra.mxu0 0.0
  %6558 = vmatprep.subr.mxu0 0.0
  %6559 = vmatpush2.msra.mxu0 0.0
  %6560 = vmatprep.subr.mxu0 0.0
  %6561 = vmatpush2.msra.mxu0 0.0
  %6562 = vmatprep.subr.mxu0 0.0
  %6563 = vmatpush2.msra.mxu0 0.0
  %6564 = vmatprep.subr.mxu0 0.0
  %6565 = vmatpush2.msra.mxu0 0.0
  %6566 = vmatprep.subr.mxu0 0.0
  %6567 = vmatpush2.msra.mxu0 0.0
  %6568 = vmatprep.subr.mxu0 0.0
  %6569 = vmatpush2.msra.mxu0 0.0
  %6570 = vmatprep.subr.mxu0 0.0
  %6571 = vmatpush2.msra.mxu0 0.0
  %6572 = vmatprep.subr.mxu0 0.0
  %6573 = vmatpush2.msra.mxu0 0.0
  %6574 = vmatprep.subr.mxu0 0.0
  %6575 = vmatpush2.msra.mxu0 0.0
  %6576 = vmatprep.subr.mxu0 0.0
  %6577 = vmatpush2.msra.mxu0 0.0
  %6578 = vmatprep.mubr.f32.mxu0 0.0
  %6579 = vmatmul.mubr.f32.gmra.mxu0 %v6512
  %v6580 = vpop.f32.mrf.mxu0
  %v6581 = vadd.f32 %v5870, %v6580
  %v6582 = vpop.f32.mrf.mxu0
  %6583 = vdwg.mxu0
  %v6584 = vadd.f32 %v6508, %v6581
  %v6585 = vxor.u32 %v6584, 2147483648
  %v6586 = vmul.f32 %v6585, 1.442695
  %v6587 = vpow.pop %v6586
  %v6588 = vadd.f32 %v6587, 1.0
  %v6589 = vrcp.pop %v6588
  %v6590 = vmul.f32 1.0, %v6589
  %6592 = vrot.lane.b32.xlu0 %v6581, 64
  %v6593 = vpop.permute.xlu0 %6592
  %v6595 = vmul.f32 %v6590, %v6593
  %6597 = vrot.lane.b32.xlu0 %v6595, 64
  %v6598 = vpop.permute.xlu0 %6597
  %v6600 = vadd.f32 %v6508, %v6598
  %v6601 = vtanh.pop %v6600
  %v6602 = vsub.f32 1.0, %v6590
  %6604 = vrot.lane.b32.xlu0 %v6601, 96
  %v6605 = vpop.permute.xlu0 %6604
  %v6607 = vmul.f32 %v6602, %v6605
  %v6608 = vmul.f32 %v6590, %v6503
  %v6609 = vadd.f32 %v6607, %v6608
  %v6610 = vrot.slane %v3122, 7
  %v6612 = vrot.slane %v5852, 6
  %v6614 = vsel %vm5864, %v6610, %v6612
  %6616 = vrot.lane.b32.xlu0 %v6609, 96
  %v6617 = vpop.permute.xlu0 %6616
  %v6618 = vsel %vm5872, %v6617, 0
  %6620 = vmatprep.subr.mxu0 0.0
  %6621 = vmatpush1.msra.mxu0 0.0
  %6622 = vmatprep.subr.mxu0 0.0
  %6623 = vmatpush1.msra.mxu0 0.0
  %6624 = vmatprep.subr.mxu0 0.0
  %6625 = vmatpush1.msra.mxu0 0.0
  %6626 = vmatprep.subr.mxu0 0.0
  %6627 = vmatpush1.msra.mxu0 0.0
  %6628 = vmatprep.subr.mxu0 0.0
  %6629 = vmatpush1.msra.mxu0 0.0
  %6630 = vmatprep.subr.mxu0 0.0
  %6631 = vmatpush1.msra.mxu0 0.0
  %6632 = vmatprep.subr.mxu0 0.0
  %6633 = vmatpush1.msra.mxu0 0.0
  %6634 = vmatprep.subr.mxu0 0.0
  %6635 = vmatpush1.msra.mxu0 0.0
  %6636 = vmatprep.subr.mxu0 0.0
  %6637 = vmatpush1.msra.mxu0 0.0
  %6638 = vmatprep.subr.mxu0 0.0
  %6639 = vmatpush1.msra.mxu0 0.0
  %6640 = vmatprep.subr.mxu0 0.0
  %6641 = vmatpush1.msra.mxu0 0.0
  %6642 = vmatprep.subr.mxu0 0.0
  %6643 = vmatpush1.msra.mxu0 0.0
  %6644 = vmatprep.subr.mxu0 0.0
  %6645 = vmatpush1.msra.mxu0 %v128
  %6646 = vmatprep.subr.mxu0 0.0
  %6647 = vmatpush1.msra.mxu0 %v127
  %6648 = vmatprep.subr.mxu0 0.0
  %6649 = vmatpush1.msra.mxu0 %v126
  %6650 = vmatprep.subr.mxu0 0.0
  %6651 = vmatpush1.msra.mxu0 %v125
  %6652 = vmatprep.subr.mxu0 0.0
  %6653 = vmatpush2.msra.mxu0 0.0
  %6654 = vmatprep.subr.mxu0 0.0
  %6655 = vmatpush2.msra.mxu0 0.0
  %6656 = vmatprep.subr.mxu0 0.0
  %6657 = vmatpush2.msra.mxu0 0.0
  %6658 = vmatprep.subr.mxu0 0.0
  %6659 = vmatpush2.msra.mxu0 0.0
  %6660 = vmatprep.subr.mxu0 0.0
  %6661 = vmatpush2.msra.mxu0 0.0
  %6662 = vmatprep.subr.mxu0 0.0
  %6663 = vmatpush2.msra.mxu0 0.0
  %6664 = vmatprep.subr.mxu0 0.0
  %6665 = vmatpush2.msra.mxu0 0.0
  %6666 = vmatprep.subr.mxu0 0.0
  %6667 = vmatpush2.msra.mxu0 0.0
  %6668 = vmatprep.subr.mxu0 0.0
  %6669 = vmatpush2.msra.mxu0 0.0
  %6670 = vmatprep.subr.mxu0 0.0
  %6671 = vmatpush2.msra.mxu0 0.0
  %6672 = vmatprep.subr.mxu0 0.0
  %6673 = vmatpush2.msra.mxu0 0.0
  %6674 = vmatprep.subr.mxu0 0.0
  %6675 = vmatpush2.msra.mxu0 0.0
  %6676 = vmatprep.subr.mxu0 0.0
  %6677 = vmatpush2.msra.mxu0 0.0
  %6678 = vmatprep.subr.mxu0 0.0
  %6679 = vmatpush2.msra.mxu0 0.0
  %6680 = vmatprep.subr.mxu0 0.0
  %6681 = vmatpush2.msra.mxu0 0.0
  %6682 = vmatprep.subr.mxu0 0.0
  %6683 = vmatpush2.msra.mxu0 0.0
  %6684 = vmatprep.mubr.f32.mxu0 0.0
  %6685 = vmatmul.mubr.f32.gmra.mxu0 %v6618
  %v6686 = vpop.f32.mrf.mxu0
  %v6687 = vadd.f32 %v5870, %v6686
  %v6688 = vpop.f32.mrf.mxu0
  %6689 = vdwg.mxu0
  %v6690 = vadd.f32 %v6614, %v6687
  %v6691 = vxor.u32 %v6690, 2147483648
  %v6692 = vmul.f32 %v6691, 1.442695
  %v6693 = vpow.pop %v6692
  %v6694 = vadd.f32 %v6693, 1.0
  %v6695 = vrcp.pop %v6694
  %v6696 = vmul.f32 1.0, %v6695
  %6698 = vrot.lane.b32.xlu0 %v6687, 64
  %v6699 = vpop.permute.xlu0 %6698
  %v6701 = vmul.f32 %v6696, %v6699
  %6703 = vrot.lane.b32.xlu0 %v6701, 64
  %v6704 = vpop.permute.xlu0 %6703
  %v6706 = vadd.f32 %v6614, %v6704
  %v6707 = vtanh.pop %v6706
  %v6708 = vsub.f32 1.0, %v6696
  %6710 = vrot.lane.b32.xlu0 %v6707, 96
  %v6711 = vpop.permute.xlu0 %6710
  %v6713 = vmul.f32 %v6708, %v6711
  %v6714 = vmul.f32 %v6696, %v6609
  %v6715 = vadd.f32 %v6713, %v6714
  %v6717 = vrot.slane %v5857, 7
  %v6719 = vsel %vm5864, %v3127, %v6717
  %6721 = vrot.lane.b32.xlu0 %v6715, 96
  %v6722 = vpop.permute.xlu0 %6721
  %v6723 = vsel %vm5872, %v6722, 0
  %6725 = vmatprep.subr.mxu0 0.0
  %6726 = vmatpush1.msra.mxu0 0.0
  %6727 = vmatprep.subr.mxu0 0.0
  %6728 = vmatpush1.msra.mxu0 0.0
  %6729 = vmatprep.subr.mxu0 0.0
  %6730 = vmatpush1.msra.mxu0 0.0
  %6731 = vmatprep.subr.mxu0 0.0
  %6732 = vmatpush1.msra.mxu0 0.0
  %6733 = vmatprep.subr.mxu0 0.0
  %6734 = vmatpush1.msra.mxu0 0.0
  %6735 = vmatprep.subr.mxu0 0.0
  %6736 = vmatpush1.msra.mxu0 0.0
  %6737 = vmatprep.subr.mxu0 0.0
  %6738 = vmatpush1.msra.mxu0 0.0
  %6739 = vmatprep.subr.mxu0 0.0
  %6740 = vmatpush1.msra.mxu0 0.0
  %6741 = vmatprep.subr.mxu0 0.0
  %6742 = vmatpush1.msra.mxu0 0.0
  %6743 = vmatprep.subr.mxu0 0.0
  %6744 = vmatpush1.msra.mxu0 0.0
  %6745 = vmatprep.subr.mxu0 0.0
  %6746 = vmatpush1.msra.mxu0 0.0
  %6747 = vmatprep.subr.mxu0 0.0
  %6748 = vmatpush1.msra.mxu0 0.0
  %6749 = vmatprep.subr.mxu0 0.0
  %6750 = vmatpush1.msra.mxu0 %v128
  %6751 = vmatprep.subr.mxu0 0.0
  %6752 = vmatpush1.msra.mxu0 %v127
  %6753 = vmatprep.subr.mxu0 0.0
  %6754 = vmatpush1.msra.mxu0 %v126
  %6755 = vmatprep.subr.mxu0 0.0
  %6756 = vmatpush1.msra.mxu0 %v125
  %6757 = vmatprep.subr.mxu0 0.0
  %6758 = vmatpush2.msra.mxu0 0.0
  %6759 = vmatprep.subr.mxu0 0.0
  %6760 = vmatpush2.msra.mxu0 0.0
  %6761 = vmatprep.subr.mxu0 0.0
  %6762 = vmatpush2.msra.mxu0 0.0
  %6763 = vmatprep.subr.mxu0 0.0
  %6764 = vmatpush2.msra.mxu0 0.0
  %6765 = vmatprep.subr.mxu0 0.0
  %6766 = vmatpush2.msra.mxu0 0.0
  %6767 = vmatprep.subr.mxu0 0.0
  %6768 = vmatpush2.msra.mxu0 0.0
  %6769 = vmatprep.subr.mxu0 0.0
  %6770 = vmatpush2.msra.mxu0 0.0
  %6771 = vmatprep.subr.mxu0 0.0
  %6772 = vmatpush2.msra.mxu0 0.0
  %6773 = vmatprep.subr.mxu0 0.0
  %6774 = vmatpush2.msra.mxu0 0.0
  %6775 = vmatprep.subr.mxu0 0.0
  %6776 = vmatpush2.msra.mxu0 0.0
  %6777 = vmatprep.subr.mxu0 0.0
  %6778 = vmatpush2.msra.mxu0 0.0
  %6779 = vmatprep.subr.mxu0 0.0
  %6780 = vmatpush2.msra.mxu0 0.0
  %6781 = vmatprep.subr.mxu0 0.0
  %6782 = vmatpush2.msra.mxu0 0.0
  %6783 = vmatprep.subr.mxu0 0.0
  %6784 = vmatpush2.msra.mxu0 0.0
  %6785 = vmatprep.subr.mxu0 0.0
  %6786 = vmatpush2.msra.mxu0 0.0
  %6787 = vmatprep.subr.mxu0 0.0
  %6788 = vmatpush2.msra.mxu0 0.0
  %6789 = vmatprep.mubr.f32.mxu0 0.0
  %6790 = vmatmul.mubr.f32.gmra.mxu0 %v6723
  %v6791 = vpop.f32.mrf.mxu0
  %v6792 = vadd.f32 %v5870, %v6791
  %v6793 = vpop.f32.mrf.mxu0
  %6794 = vdwg.mxu0
  %v6795 = vadd.f32 %v6719, %v6792
  %v6796 = vxor.u32 %v6795, 2147483648
  %v6797 = vmul.f32 %v6796, 1.442695
  %v6798 = vpow.pop %v6797
  %v6799 = vadd.f32 %v6798, 1.0
  %v6800 = vrcp.pop %v6799
  %v6801 = vmul.f32 1.0, %v6800
  %6803 = vrot.lane.b32.xlu0 %v6792, 64
  %v6804 = vpop.permute.xlu0 %6803
  %v6806 = vmul.f32 %v6801, %v6804
  %6808 = vrot.lane.b32.xlu0 %v6806, 64
  %v6809 = vpop.permute.xlu0 %6808
  %v6811 = vadd.f32 %v6719, %v6809
  %v6812 = vtanh.pop %v6811
  %v6813 = vsub.f32 1.0, %v6801
  %6815 = vrot.lane.b32.xlu0 %v6812, 96
  %v6816 = vpop.permute.xlu0 %6815
  %v6818 = vmul.f32 %v6813, %v6816
  %v6819 = vmul.f32 %v6801, %v6715
  %v6820 = vadd.f32 %v6818, %v6819
  %v6822 = vrot.slane %v3127, 1
  %v6824 = vsel %vm5864, %v6822, %v5857
  %6826 = vrot.lane.b32.xlu0 %v6820, 96
  %v6827 = vpop.permute.xlu0 %6826
  %v6828 = vsel %vm5872, %v6827, 0
  %6830 = vmatprep.subr.mxu0 0.0
  %6831 = vmatpush1.msra.mxu0 0.0
  %6832 = vmatprep.subr.mxu0 0.0
  %6833 = vmatpush1.msra.mxu0 0.0
  %6834 = vmatprep.subr.mxu0 0.0
  %6835 = vmatpush1.msra.mxu0 0.0
  %6836 = vmatprep.subr.mxu0 0.0
  %6837 = vmatpush1.msra.mxu0 0.0
  %6838 = vmatprep.subr.mxu0 0.0
  %6839 = vmatpush1.msra.mxu0 0.0
  %6840 = vmatprep.subr.mxu0 0.0
  %6841 = vmatpush1.msra.mxu0 0.0
  %6842 = vmatprep.subr.mxu0 0.0
  %6843 = vmatpush1.msra.mxu0 0.0
  %6844 = vmatprep.subr.mxu0 0.0
  %6845 = vmatpush1.msra.mxu0 0.0
  %6846 = vmatprep.subr.mxu0 0.0
  %6847 = vmatpush1.msra.mxu0 0.0
  %6848 = vmatprep.subr.mxu0 0.0
  %6849 = vmatpush1.msra.mxu0 0.0
  %6850 = vmatprep.subr.mxu0 0.0
  %6851 = vmatpush1.msra.mxu0 0.0
  %6852 = vmatprep.subr.mxu0 0.0
  %6853 = vmatpush1.msra.mxu0 0.0
  %6854 = vmatprep.subr.mxu0 0.0
  %6855 = vmatpush1.msra.mxu0 %v128
  %6856 = vmatprep.subr.mxu0 0.0
  %6857 = vmatpush1.msra.mxu0 %v127
  %6858 = vmatprep.subr.mxu0 0.0
  %6859 = vmatpush1.msra.mxu0 %v126
  %6860 = vmatprep.subr.mxu0 0.0
  %6861 = vmatpush1.msra.mxu0 %v125
  %6862 = vmatprep.subr.mxu0 0.0
  %6863 = vmatpush2.msra.mxu0 0.0
  %6864 = vmatprep.subr.mxu0 0.0
  %6865 = vmatpush2.msra.mxu0 0.0
  %6866 = vmatprep.subr.mxu0 0.0
  %6867 = vmatpush2.msra.mxu0 0.0
  %6868 = vmatprep.subr.mxu0 0.0
  %6869 = vmatpush2.msra.mxu0 0.0
  %6870 = vmatprep.subr.mxu0 0.0
  %6871 = vmatpush2.msra.mxu0 0.0
  %6872 = vmatprep.subr.mxu0 0.0
  %6873 = vmatpush2.msra.mxu0 0.0
  %6874 = vmatprep.subr.mxu0 0.0
  %6875 = vmatpush2.msra.mxu0 0.0
  %6876 = vmatprep.subr.mxu0 0.0
  %6877 = vmatpush2.msra.mxu0 0.0
  %6878 = vmatprep.subr.mxu0 0.0
  %6879 = vmatpush2.msra.mxu0 0.0
  %6880 = vmatprep.subr.mxu0 0.0
  %6881 = vmatpush2.msra.mxu0 0.0
  %6882 = vmatprep.subr.mxu0 0.0
  %6883 = vmatpush2.msra.mxu0 0.0
  %6884 = vmatprep.subr.mxu0 0.0
  %6885 = vmatpush2.msra.mxu0 0.0
  %6886 = vmatprep.subr.mxu0 0.0
  %6887 = vmatpush2.msra.mxu0 0.0
  %6888 = vmatprep.subr.mxu0 0.0
  %6889 = vmatpush2.msra.mxu0 0.0
  %6890 = vmatprep.subr.mxu0 0.0
  %6891 = vmatpush2.msra.mxu0 0.0
  %6892 = vmatprep.subr.mxu0 0.0
  %6893 = vmatpush2.msra.mxu0 0.0
  %6894 = vmatprep.mubr.f32.mxu0 0.0
  %6895 = vmatmul.mubr.f32.gmra.mxu0 %v6828
  %v6896 = vpop.f32.mrf.mxu0
  %v6897 = vadd.f32 %v5870, %v6896
  %v6898 = vpop.f32.mrf.mxu0
  %6899 = vdwg.mxu0
  %v6900 = vadd.f32 %v6824, %v6897
  %v6901 = vxor.u32 %v6900, 2147483648
  %v6902 = vmul.f32 %v6901, 1.442695
  %v6903 = vpow.pop %v6902
  %v6904 = vadd.f32 %v6903, 1.0
  %v6905 = vrcp.pop %v6904
  %v6906 = vmul.f32 1.0, %v6905
  %6908 = vrot.lane.b32.xlu0 %v6897, 64
  %v6909 = vpop.permute.xlu0 %6908
  %v6911 = vmul.f32 %v6906, %v6909
  %6913 = vrot.lane.b32.xlu0 %v6911, 64
  %v6914 = vpop.permute.xlu0 %6913
  %v6916 = vadd.f32 %v6824, %v6914
  %v6917 = vtanh.pop %v6916
  %v6918 = vsub.f32 1.0, %v6906
  %6920 = vrot.lane.b32.xlu0 %v6917, 96
  %v6921 = vpop.permute.xlu0 %6920
  %v6923 = vmul.f32 %v6918, %v6921
  %v6924 = vmul.f32 %v6906, %v6820
  %v6925 = vadd.f32 %v6923, %v6924
  %v6926 = vrot.slane %v3127, 2
  %v6928 = vrot.slane %v5857, 1
  %v6930 = vsel %vm5864, %v6926, %v6928
  %6932 = vrot.lane.b32.xlu0 %v6925, 96
  %v6933 = vpop.permute.xlu0 %6932
  %v6934 = vsel %vm5872, %v6933, 0
  %6936 = vmatprep.subr.mxu0 0.0
  %6937 = vmatpush1.msra.mxu0 0.0
  %6938 = vmatprep.subr.mxu0 0.0
  %6939 = vmatpush1.msra.mxu0 0.0
  %6940 = vmatprep.subr.mxu0 0.0
  %6941 = vmatpush1.msra.mxu0 0.0
  %6942 = vmatprep.subr.mxu0 0.0
  %6943 = vmatpush1.msra.mxu0 0.0
  %6944 = vmatprep.subr.mxu0 0.0
  %6945 = vmatpush1.msra.mxu0 0.0
  %6946 = vmatprep.subr.mxu0 0.0
  %6947 = vmatpush1.msra.mxu0 0.0
  %6948 = vmatprep.subr.mxu0 0.0
  %6949 = vmatpush1.msra.mxu0 0.0
  %6950 = vmatprep.subr.mxu0 0.0
  %6951 = vmatpush1.msra.mxu0 0.0
  %6952 = vmatprep.subr.mxu0 0.0
  %6953 = vmatpush1.msra.mxu0 0.0
  %6954 = vmatprep.subr.mxu0 0.0
  %6955 = vmatpush1.msra.mxu0 0.0
  %6956 = vmatprep.subr.mxu0 0.0
  %6957 = vmatpush1.msra.mxu0 0.0
  %6958 = vmatprep.subr.mxu0 0.0
  %6959 = vmatpush1.msra.mxu0 0.0
  %6960 = vmatprep.subr.mxu0 0.0
  %6961 = vmatpush1.msra.mxu0 %v128
  %6962 = vmatprep.subr.mxu0 0.0
  %6963 = vmatpush1.msra.mxu0 %v127
  %6964 = vmatprep.subr.mxu0 0.0
  %6965 = vmatpush1.msra.mxu0 %v126
  %6966 = vmatprep.subr.mxu0 0.0
  %6967 = vmatpush1.msra.mxu0 %v125
  %6968 = vmatprep.subr.mxu0 0.0
  %6969 = vmatpush2.msra.mxu0 0.0
  %6970 = vmatprep.subr.mxu0 0.0
  %6971 = vmatpush2.msra.mxu0 0.0
  %6972 = vmatprep.subr.mxu0 0.0
  %6973 = vmatpush2.msra.mxu0 0.0
  %6974 = vmatprep.subr.mxu0 0.0
  %6975 = vmatpush2.msra.mxu0 0.0
  %6976 = vmatprep.subr.mxu0 0.0
  %6977 = vmatpush2.msra.mxu0 0.0
  %6978 = vmatprep.subr.mxu0 0.0
  %6979 = vmatpush2.msra.mxu0 0.0
  %6980 = vmatprep.subr.mxu0 0.0
  %6981 = vmatpush2.msra.mxu0 0.0
  %6982 = vmatprep.subr.mxu0 0.0
  %6983 = vmatpush2.msra.mxu0 0.0
  %6984 = vmatprep.subr.mxu0 0.0
  %6985 = vmatpush2.msra.mxu0 0.0
  %6986 = vmatprep.subr.mxu0 0.0
  %6987 = vmatpush2.msra.mxu0 0.0
  %6988 = vmatprep.subr.mxu0 0.0
  %6989 = vmatpush2.msra.mxu0 0.0
  %6990 = vmatprep.subr.mxu0 0.0
  %6991 = vmatpush2.msra.mxu0 0.0
  %6992 = vmatprep.subr.mxu0 0.0
  %6993 = vmatpush2.msra.mxu0 0.0
  %6994 = vmatprep.subr.mxu0 0.0
  %6995 = vmatpush2.msra.mxu0 0.0
  %6996 = vmatprep.subr.mxu0 0.0
  %6997 = vmatpush2.msra.mxu0 0.0
  %6998 = vmatprep.subr.mxu0 0.0
  %6999 = vmatpush2.msra.mxu0 0.0
  %7000 = vmatprep.mubr.f32.mxu0 0.0
  %7001 = vmatmul.mubr.f32.gmra.mxu0 %v6934
  %v7002 = vpop.f32.mrf.mxu0
  %v7003 = vadd.f32 %v5870, %v7002
  %v7004 = vpop.f32.mrf.mxu0
  %7005 = vdwg.mxu0
  %v7006 = vadd.f32 %v6930, %v7003
  %v7007 = vxor.u32 %v7006, 2147483648
  %v7008 = vmul.f32 %v7007, 1.442695
  %v7009 = vpow.pop %v7008
  %v7010 = vadd.f32 %v7009, 1.0
  %v7011 = vrcp.pop %v7010
  %v7012 = vmul.f32 1.0, %v7011
  %7014 = vrot.lane.b32.xlu0 %v7003, 64
  %v7015 = vpop.permute.xlu0 %7014
  %v7017 = vmul.f32 %v7012, %v7015
  %7019 = vrot.lane.b32.xlu0 %v7017, 64
  %v7020 = vpop.permute.xlu0 %7019
  %v7022 = vadd.f32 %v6930, %v7020
  %v7023 = vtanh.pop %v7022
  %v7024 = vsub.f32 1.0, %v7012
  %7026 = vrot.lane.b32.xlu0 %v7023, 96
  %v7027 = vpop.permute.xlu0 %7026
  %v7029 = vmul.f32 %v7024, %v7027
  %v7030 = vmul.f32 %v7012, %v6925
  %v7031 = vadd.f32 %v7029, %v7030
  %v7032 = vrot.slane %v3127, 3
  %v7034 = vrot.slane %v5857, 2
  %v7036 = vsel %vm5864, %v7032, %v7034
  %7038 = vrot.lane.b32.xlu0 %v7031, 96
  %v7039 = vpop.permute.xlu0 %7038
  %v7040 = vsel %vm5872, %v7039, 0
  %7042 = vmatprep.subr.mxu0 0.0
  %7043 = vmatpush1.msra.mxu0 0.0
  %7044 = vmatprep.subr.mxu0 0.0
  %7045 = vmatpush1.msra.mxu0 0.0
  %7046 = vmatprep.subr.mxu0 0.0
  %7047 = vmatpush1.msra.mxu0 0.0
  %7048 = vmatprep.subr.mxu0 0.0
  %7049 = vmatpush1.msra.mxu0 0.0
  %7050 = vmatprep.subr.mxu0 0.0
  %7051 = vmatpush1.msra.mxu0 0.0
  %7052 = vmatprep.subr.mxu0 0.0
  %7053 = vmatpush1.msra.mxu0 0.0
  %7054 = vmatprep.subr.mxu0 0.0
  %7055 = vmatpush1.msra.mxu0 0.0
  %7056 = vmatprep.subr.mxu0 0.0
  %7057 = vmatpush1.msra.mxu0 0.0
  %7058 = vmatprep.subr.mxu0 0.0
  %7059 = vmatpush1.msra.mxu0 0.0
  %7060 = vmatprep.subr.mxu0 0.0
  %7061 = vmatpush1.msra.mxu0 0.0
  %7062 = vmatprep.subr.mxu0 0.0
  %7063 = vmatpush1.msra.mxu0 0.0
  %7064 = vmatprep.subr.mxu0 0.0
  %7065 = vmatpush1.msra.mxu0 0.0
  %7066 = vmatprep.subr.mxu0 0.0
  %7067 = vmatpush1.msra.mxu0 %v128
  %7068 = vmatprep.subr.mxu0 0.0
  %7069 = vmatpush1.msra.mxu0 %v127
  %7070 = vmatprep.subr.mxu0 0.0
  %7071 = vmatpush1.msra.mxu0 %v126
  %7072 = vmatprep.subr.mxu0 0.0
  %7073 = vmatpush1.msra.mxu0 %v125
  %7074 = vmatprep.subr.mxu0 0.0
  %7075 = vmatpush2.msra.mxu0 0.0
  %7076 = vmatprep.subr.mxu0 0.0
  %7077 = vmatpush2.msra.mxu0 0.0
  %7078 = vmatprep.subr.mxu0 0.0
  %7079 = vmatpush2.msra.mxu0 0.0
  %7080 = vmatprep.subr.mxu0 0.0
  %7081 = vmatpush2.msra.mxu0 0.0
  %7082 = vmatprep.subr.mxu0 0.0
  %7083 = vmatpush2.msra.mxu0 0.0
  %7084 = vmatprep.subr.mxu0 0.0
  %7085 = vmatpush2.msra.mxu0 0.0
  %7086 = vmatprep.subr.mxu0 0.0
  %7087 = vmatpush2.msra.mxu0 0.0
  %7088 = vmatprep.subr.mxu0 0.0
  %7089 = vmatpush2.msra.mxu0 0.0
  %7090 = vmatprep.subr.mxu0 0.0
  %7091 = vmatpush2.msra.mxu0 0.0
  %7092 = vmatprep.subr.mxu0 0.0
  %7093 = vmatpush2.msra.mxu0 0.0
  %7094 = vmatprep.subr.mxu0 0.0
  %7095 = vmatpush2.msra.mxu0 0.0
  %7096 = vmatprep.subr.mxu0 0.0
  %7097 = vmatpush2.msra.mxu0 0.0
  %7098 = vmatprep.subr.mxu0 0.0
  %7099 = vmatpush2.msra.mxu0 0.0
  %7100 = vmatprep.subr.mxu0 0.0
  %7101 = vmatpush2.msra.mxu0 0.0
  %7102 = vmatprep.subr.mxu0 0.0
  %7103 = vmatpush2.msra.mxu0 0.0
  %7104 = vmatprep.subr.mxu0 0.0
  %7105 = vmatpush2.msra.mxu0 0.0
  %7106 = vmatprep.mubr.f32.mxu0 0.0
  %7107 = vmatmul.mubr.f32.gmra.mxu0 %v7040
  %v7108 = vpop.f32.mrf.mxu0
  %v7109 = vadd.f32 %v5870, %v7108
  %v7110 = vpop.f32.mrf.mxu0
  %7111 = vdwg.mxu0
  %v7112 = vadd.f32 %v7036, %v7109
  %v7113 = vxor.u32 %v7112, 2147483648
  %v7114 = vmul.f32 %v7113, 1.442695
  %v7115 = vpow.pop %v7114
  %v7116 = vadd.f32 %v7115, 1.0
  %v7117 = vrcp.pop %v7116
  %v7118 = vmul.f32 1.0, %v7117
  %7120 = vrot.lane.b32.xlu0 %v7109, 64
  %v7121 = vpop.permute.xlu0 %7120
  %v7123 = vmul.f32 %v7118, %v7121
  %7125 = vrot.lane.b32.xlu0 %v7123, 64
  %v7126 = vpop.permute.xlu0 %7125
  %v7128 = vadd.f32 %v7036, %v7126
  %v7129 = vtanh.pop %v7128
  %v7130 = vsub.f32 1.0, %v7118
  %7132 = vrot.lane.b32.xlu0 %v7129, 96
  %v7133 = vpop.permute.xlu0 %7132
  %v7135 = vmul.f32 %v7130, %v7133
  %v7136 = vmul.f32 %v7118, %v7031
  %v7137 = vadd.f32 %v7135, %v7136
  %v7138 = vrot.slane %v3127, 4
  %v7140 = vrot.slane %v5857, 3
  %v7142 = vsel %vm5864, %v7138, %v7140
  %7144 = vrot.lane.b32.xlu0 %v7137, 96
  %v7145 = vpop.permute.xlu0 %7144
  %v7146 = vsel %vm5872, %v7145, 0
  %7148 = vmatprep.subr.mxu0 0.0
  %7149 = vmatpush1.msra.mxu0 0.0
  %7150 = vmatprep.subr.mxu0 0.0
  %7151 = vmatpush1.msra.mxu0 0.0
  %7152 = vmatprep.subr.mxu0 0.0
  %7153 = vmatpush1.msra.mxu0 0.0
  %7154 = vmatprep.subr.mxu0 0.0
  %7155 = vmatpush1.msra.mxu0 0.0
  %7156 = vmatprep.subr.mxu0 0.0
  %7157 = vmatpush1.msra.mxu0 0.0
  %7158 = vmatprep.subr.mxu0 0.0
  %7159 = vmatpush1.msra.mxu0 0.0
  %7160 = vmatprep.subr.mxu0 0.0
  %7161 = vmatpush1.msra.mxu0 0.0
  %7162 = vmatprep.subr.mxu0 0.0
  %7163 = vmatpush1.msra.mxu0 0.0
  %7164 = vmatprep.subr.mxu0 0.0
  %7165 = vmatpush1.msra.mxu0 0.0
  %7166 = vmatprep.subr.mxu0 0.0
  %7167 = vmatpush1.msra.mxu0 0.0
  %7168 = vmatprep.subr.mxu0 0.0
  %7169 = vmatpush1.msra.mxu0 0.0
  %7170 = vmatprep.subr.mxu0 0.0
  %7171 = vmatpush1.msra.mxu0 0.0
  %7172 = vmatprep.subr.mxu0 0.0
  %7173 = vmatpush1.msra.mxu0 %v128
  %7174 = vmatprep.subr.mxu0 0.0
  %7175 = vmatpush1.msra.mxu0 %v127
  %7176 = vmatprep.subr.mxu0 0.0
  %7177 = vmatpush1.msra.mxu0 %v126
  %7178 = vmatprep.subr.mxu0 0.0
  %7179 = vmatpush1.msra.mxu0 %v125
  %7180 = vmatprep.subr.mxu0 0.0
  %7181 = vmatpush2.msra.mxu0 0.0
  %7182 = vmatprep.subr.mxu0 0.0
  %7183 = vmatpush2.msra.mxu0 0.0
  %7184 = vmatprep.subr.mxu0 0.0
  %7185 = vmatpush2.msra.mxu0 0.0
  %7186 = vmatprep.subr.mxu0 0.0
  %7187 = vmatpush2.msra.mxu0 0.0
  %7188 = vmatprep.subr.mxu0 0.0
  %7189 = vmatpush2.msra.mxu0 0.0
  %7190 = vmatprep.subr.mxu0 0.0
  %7191 = vmatpush2.msra.mxu0 0.0
  %7192 = vmatprep.subr.mxu0 0.0
  %7193 = vmatpush2.msra.mxu0 0.0
  %7194 = vmatprep.subr.mxu0 0.0
  %7195 = vmatpush2.msra.mxu0 0.0
  %7196 = vmatprep.subr.mxu0 0.0
  %7197 = vmatpush2.msra.mxu0 0.0
  %7198 = vmatprep.subr.mxu0 0.0
  %7199 = vmatpush2.msra.mxu0 0.0
  %7200 = vmatprep.subr.mxu0 0.0
  %7201 = vmatpush2.msra.mxu0 0.0
  %7202 = vmatprep.subr.mxu0 0.0
  %7203 = vmatpush2.msra.mxu0 0.0
  %7204 = vmatprep.subr.mxu0 0.0
  %7205 = vmatpush2.msra.mxu0 0.0
  %7206 = vmatprep.subr.mxu0 0.0
  %7207 = vmatpush2.msra.mxu0 0.0
  %7208 = vmatprep.subr.mxu0 0.0
  %7209 = vmatpush2.msra.mxu0 0.0
  %7210 = vmatprep.subr.mxu0 0.0
  %7211 = vmatpush2.msra.mxu0 0.0
  %7212 = vmatprep.mubr.f32.mxu0 0.0
  %7213 = vmatmul.mubr.f32.gmra.mxu0 %v7146
  %v7214 = vpop.f32.mrf.mxu0
  %v7215 = vadd.f32 %v5870, %v7214
  %v7216 = vpop.f32.mrf.mxu0
  %7217 = vdwg.mxu0
  %v7218 = vadd.f32 %v7142, %v7215
  %v7219 = vxor.u32 %v7218, 2147483648
  %v7220 = vmul.f32 %v7219, 1.442695
  %v7221 = vpow.pop %v7220
  %v7222 = vadd.f32 %v7221, 1.0
  %v7223 = vrcp.pop %v7222
  %v7224 = vmul.f32 1.0, %v7223
  %7226 = vrot.lane.b32.xlu0 %v7215, 64
  %v7227 = vpop.permute.xlu0 %7226
  %v7229 = vmul.f32 %v7224, %v7227
  %7231 = vrot.lane.b32.xlu0 %v7229, 64
  %v7232 = vpop.permute.xlu0 %7231
  %v7234 = vadd.f32 %v7142, %v7232
  %v7235 = vtanh.pop %v7234
  %v7236 = vsub.f32 1.0, %v7224
  %7238 = vrot.lane.b32.xlu0 %v7235, 96
  %v7239 = vpop.permute.xlu0 %7238
  %v7241 = vmul.f32 %v7236, %v7239
  %v7242 = vmul.f32 %v7224, %v7137
  %v7243 = vadd.f32 %v7241, %v7242
  %v7244 = vrot.slane %v3127, 5
  %v7246 = vrot.slane %v5857, 4
  %v7248 = vsel %vm5864, %v7244, %v7246
  %7250 = vrot.lane.b32.xlu0 %v7243, 96
  %v7251 = vpop.permute.xlu0 %7250
  %v7252 = vsel %vm5872, %v7251, 0
  %7254 = vmatprep.subr.mxu0 0.0
  %7255 = vmatpush1.msra.mxu0 0.0
  %7256 = vmatprep.subr.mxu0 0.0
  %7257 = vmatpush1.msra.mxu0 0.0
  %7258 = vmatprep.subr.mxu0 0.0
  %7259 = vmatpush1.msra.mxu0 0.0
  %7260 = vmatprep.subr.mxu0 0.0
  %7261 = vmatpush1.msra.mxu0 0.0
  %7262 = vmatprep.subr.mxu0 0.0
  %7263 = vmatpush1.msra.mxu0 0.0
  %7264 = vmatprep.subr.mxu0 0.0
  %7265 = vmatpush1.msra.mxu0 0.0
  %7266 = vmatprep.subr.mxu0 0.0
  %7267 = vmatpush1.msra.mxu0 0.0
  %7268 = vmatprep.subr.mxu0 0.0
  %7269 = vmatpush1.msra.mxu0 0.0
  %7270 = vmatprep.subr.mxu0 0.0
  %7271 = vmatpush1.msra.mxu0 0.0
  %7272 = vmatprep.subr.mxu0 0.0
  %7273 = vmatpush1.msra.mxu0 0.0
  %7274 = vmatprep.subr.mxu0 0.0
  %7275 = vmatpush1.msra.mxu0 0.0
  %7276 = vmatprep.subr.mxu0 0.0
  %7277 = vmatpush1.msra.mxu0 0.0
  %7278 = vmatprep.subr.mxu0 0.0
  %7279 = vmatpush1.msra.mxu0 %v128
  %7280 = vmatprep.subr.mxu0 0.0
  %7281 = vmatpush1.msra.mxu0 %v127
  %7282 = vmatprep.subr.mxu0 0.0
  %7283 = vmatpush1.msra.mxu0 %v126
  %7284 = vmatprep.subr.mxu0 0.0
  %7285 = vmatpush1.msra.mxu0 %v125
  %7286 = vmatprep.subr.mxu0 0.0
  %7287 = vmatpush2.msra.mxu0 0.0
  %7288 = vmatprep.subr.mxu0 0.0
  %7289 = vmatpush2.msra.mxu0 0.0
  %7290 = vmatprep.subr.mxu0 0.0
  %7291 = vmatpush2.msra.mxu0 0.0
  %7292 = vmatprep.subr.mxu0 0.0
  %7293 = vmatpush2.msra.mxu0 0.0
  %7294 = vmatprep.subr.mxu0 0.0
  %7295 = vmatpush2.msra.mxu0 0.0
  %7296 = vmatprep.subr.mxu0 0.0
  %7297 = vmatpush2.msra.mxu0 0.0
  %7298 = vmatprep.subr.mxu0 0.0
  %7299 = vmatpush2.msra.mxu0 0.0
  %7300 = vmatprep.subr.mxu0 0.0
  %7301 = vmatpush2.msra.mxu0 0.0
  %7302 = vmatprep.subr.mxu0 0.0
  %7303 = vmatpush2.msra.mxu0 0.0
  %7304 = vmatprep.subr.mxu0 0.0
  %7305 = vmatpush2.msra.mxu0 0.0
  %7306 = vmatprep.subr.mxu0 0.0
  %7307 = vmatpush2.msra.mxu0 0.0
  %7308 = vmatprep.subr.mxu0 0.0
  %7309 = vmatpush2.msra.mxu0 0.0
  %7310 = vmatprep.subr.mxu0 0.0
  %7311 = vmatpush2.msra.mxu0 0.0
  %7312 = vmatprep.subr.mxu0 0.0
  %7313 = vmatpush2.msra.mxu0 0.0
  %7314 = vmatprep.subr.mxu0 0.0
  %7315 = vmatpush2.msra.mxu0 0.0
  %7316 = vmatprep.subr.mxu0 0.0
  %7317 = vmatpush2.msra.mxu0 0.0
  %7318 = vmatprep.mubr.f32.mxu0 0.0
  %7319 = vmatmul.mubr.f32.gmra.mxu0 %v7252
  %v7320 = vpop.f32.mrf.mxu0
  %v7321 = vadd.f32 %v5870, %v7320
  %v7322 = vpop.f32.mrf.mxu0
  %7323 = vdwg.mxu0
  %v7324 = vadd.f32 %v7248, %v7321
  %v7325 = vxor.u32 %v7324, 2147483648
  %v7326 = vmul.f32 %v7325, 1.442695
  %v7327 = vpow.pop %v7326
  %v7328 = vadd.f32 %v7327, 1.0
  %v7329 = vrcp.pop %v7328
  %v7330 = vmul.f32 1.0, %v7329
  %7332 = vrot.lane.b32.xlu0 %v7321, 64
  %v7333 = vpop.permute.xlu0 %7332
  %v7335 = vmul.f32 %v7330, %v7333
  %7337 = vrot.lane.b32.xlu0 %v7335, 64
  %v7338 = vpop.permute.xlu0 %7337
  %v7340 = vadd.f32 %v7248, %v7338
  %v7341 = vtanh.pop %v7340
  %v7342 = vsub.f32 1.0, %v7330
  %7344 = vrot.lane.b32.xlu0 %v7341, 96
  %v7345 = vpop.permute.xlu0 %7344
  %v7347 = vmul.f32 %v7342, %v7345
  %v7348 = vmul.f32 %v7330, %v7243
  %v7349 = vadd.f32 %v7347, %v7348
  %v7350 = vrot.slane %v3127, 6
  %v7352 = vrot.slane %v5857, 5
  %v7354 = vsel %vm5864, %v7350, %v7352
  %7356 = vrot.lane.b32.xlu0 %v7349, 96
  %v7357 = vpop.permute.xlu0 %7356
  %v7358 = vsel %vm5872, %v7357, 0
  %7360 = vmatprep.subr.mxu0 0.0
  %7361 = vmatpush1.msra.mxu0 0.0
  %7362 = vmatprep.subr.mxu0 0.0
  %7363 = vmatpush1.msra.mxu0 0.0
  %7364 = vmatprep.subr.mxu0 0.0
  %7365 = vmatpush1.msra.mxu0 0.0
  %7366 = vmatprep.subr.mxu0 0.0
  %7367 = vmatpush1.msra.mxu0 0.0
  %7368 = vmatprep.subr.mxu0 0.0
  %7369 = vmatpush1.msra.mxu0 0.0
  %7370 = vmatprep.subr.mxu0 0.0
  %7371 = vmatpush1.msra.mxu0 0.0
  %7372 = vmatprep.subr.mxu0 0.0
  %7373 = vmatpush1.msra.mxu0 0.0
  %7374 = vmatprep.subr.mxu0 0.0
  %7375 = vmatpush1.msra.mxu0 0.0
  %7376 = vmatprep.subr.mxu0 0.0
  %7377 = vmatpush1.msra.mxu0 0.0
  %7378 = vmatprep.subr.mxu0 0.0
  %7379 = vmatpush1.msra.mxu0 0.0
  %7380 = vmatprep.subr.mxu0 0.0
  %7381 = vmatpush1.msra.mxu0 0.0
  %7382 = vmatprep.subr.mxu0 0.0
  %7383 = vmatpush1.msra.mxu0 0.0
  %7384 = vmatprep.subr.mxu0 0.0
  %7385 = vmatpush1.msra.mxu0 %v128
  %7386 = vmatprep.subr.mxu0 0.0
  %7387 = vmatpush1.msra.mxu0 %v127
  %7388 = vmatprep.subr.mxu0 0.0
  %7389 = vmatpush1.msra.mxu0 %v126
  %7390 = vmatprep.subr.mxu0 0.0
  %7391 = vmatpush1.msra.mxu0 %v125
  %7392 = vmatprep.subr.mxu0 0.0
  %7393 = vmatpush2.msra.mxu0 0.0
  %7394 = vmatprep.subr.mxu0 0.0
  %7395 = vmatpush2.msra.mxu0 0.0
  %7396 = vmatprep.subr.mxu0 0.0
  %7397 = vmatpush2.msra.mxu0 0.0
  %7398 = vmatprep.subr.mxu0 0.0
  %7399 = vmatpush2.msra.mxu0 0.0
  %7400 = vmatprep.subr.mxu0 0.0
  %7401 = vmatpush2.msra.mxu0 0.0
  %7402 = vmatprep.subr.mxu0 0.0
  %7403 = vmatpush2.msra.mxu0 0.0
  %7404 = vmatprep.subr.mxu0 0.0
  %7405 = vmatpush2.msra.mxu0 0.0
  %7406 = vmatprep.subr.mxu0 0.0
  %7407 = vmatpush2.msra.mxu0 0.0
  %7408 = vmatprep.subr.mxu0 0.0
  %7409 = vmatpush2.msra.mxu0 0.0
  %7410 = vmatprep.subr.mxu0 0.0
  %7411 = vmatpush2.msra.mxu0 0.0
  %7412 = vmatprep.subr.mxu0 0.0
  %7413 = vmatpush2.msra.mxu0 0.0
  %7414 = vmatprep.subr.mxu0 0.0
  %7415 = vmatpush2.msra.mxu0 0.0
  %7416 = vmatprep.subr.mxu0 0.0
  %7417 = vmatpush2.msra.mxu0 0.0
  %7418 = vmatprep.subr.mxu0 0.0
  %7419 = vmatpush2.msra.mxu0 0.0
  %7420 = vmatprep.subr.mxu0 0.0
  %7421 = vmatpush2.msra.mxu0 0.0
  %7422 = vmatprep.subr.mxu0 0.0
  %7423 = vmatpush2.msra.mxu0 0.0
  %7424 = vmatprep.mubr.f32.mxu0 0.0
  %7425 = vmatmul.mubr.f32.gmra.mxu0 %v7358
  %v7426 = vpop.f32.mrf.mxu0
  %v7427 = vadd.f32 %v5870, %v7426
  %v7428 = vpop.f32.mrf.mxu0
  %7429 = vdwg.mxu0
  %v7430 = vadd.f32 %v7354, %v7427
  %v7431 = vxor.u32 %v7430, 2147483648
  %v7432 = vmul.f32 %v7431, 1.442695
  %v7433 = vpow.pop %v7432
  %v7434 = vadd.f32 %v7433, 1.0
  %v7435 = vrcp.pop %v7434
  %v7436 = vmul.f32 1.0, %v7435
  %7438 = vrot.lane.b32.xlu0 %v7427, 64
  %v7439 = vpop.permute.xlu0 %7438
  %v7441 = vmul.f32 %v7436, %v7439
  %7443 = vrot.lane.b32.xlu0 %v7441, 64
  %v7444 = vpop.permute.xlu0 %7443
  %v7446 = vadd.f32 %v7354, %v7444
  %v7447 = vtanh.pop %v7446
  %v7448 = vsub.f32 1.0, %v7436
  %7450 = vrot.lane.b32.xlu0 %v7447, 96
  %v7451 = vpop.permute.xlu0 %7450
  %v7453 = vmul.f32 %v7448, %v7451
  %v7454 = vmul.f32 %v7436, %v7349
  %v7455 = vadd.f32 %v7453, %v7454
  %v7456 = vrot.slane %v3127, 7
  %v7458 = vrot.slane %v5857, 6
  %v7460 = vsel %vm5864, %v7456, %v7458
  %7462 = vrot.lane.b32.xlu0 %v7455, 96
  %v7463 = vpop.permute.xlu0 %7462
  %v7464 = vsel %vm5872, %v7463, 0
  %7466 = vmatprep.subr.mxu0 0.0
  %7467 = vmatpush1.msra.mxu0 0.0
  %7468 = vmatprep.subr.mxu0 0.0
  %7469 = vmatpush1.msra.mxu0 0.0
  %7470 = vmatprep.subr.mxu0 0.0
  %7471 = vmatpush1.msra.mxu0 0.0
  %7472 = vmatprep.subr.mxu0 0.0
  %7473 = vmatpush1.msra.mxu0 0.0
  %7474 = vmatprep.subr.mxu0 0.0
  %7475 = vmatpush1.msra.mxu0 0.0
  %7476 = vmatprep.subr.mxu0 0.0
  %7477 = vmatpush1.msra.mxu0 0.0
  %7478 = vmatprep.subr.mxu0 0.0
  %7479 = vmatpush1.msra.mxu0 0.0
  %7480 = vmatprep.subr.mxu0 0.0
  %7481 = vmatpush1.msra.mxu0 0.0
  %7482 = vmatprep.subr.mxu0 0.0
  %7483 = vmatpush1.msra.mxu0 0.0
  %7484 = vmatprep.subr.mxu0 0.0
  %7485 = vmatpush1.msra.mxu0 0.0
  %7486 = vmatprep.subr.mxu0 0.0
  %7487 = vmatpush1.msra.mxu0 0.0
  %7488 = vmatprep.subr.mxu0 0.0
  %7489 = vmatpush1.msra.mxu0 0.0
  %7490 = vmatprep.subr.mxu0 0.0
  %7491 = vmatpush1.msra.mxu0 %v128
  %7492 = vmatprep.subr.mxu0 0.0
  %7493 = vmatpush1.msra.mxu0 %v127
  %7494 = vmatprep.subr.mxu0 0.0
  %7495 = vmatpush1.msra.mxu0 %v126
  %7496 = vmatprep.subr.mxu0 0.0
  %7497 = vmatpush1.msra.mxu0 %v125
  %7498 = vmatprep.subr.mxu0 0.0
  %7499 = vmatpush2.msra.mxu0 0.0
  %7500 = vmatprep.subr.mxu0 0.0
  %7501 = vmatpush2.msra.mxu0 0.0
  %7502 = vmatprep.subr.mxu0 0.0
  %7503 = vmatpush2.msra.mxu0 0.0
  %7504 = vmatprep.subr.mxu0 0.0
  %7505 = vmatpush2.msra.mxu0 0.0
  %7506 = vmatprep.subr.mxu0 0.0
  %7507 = vmatpush2.msra.mxu0 0.0
  %7508 = vmatprep.subr.mxu0 0.0
  %7509 = vmatpush2.msra.mxu0 0.0
  %7510 = vmatprep.subr.mxu0 0.0
  %7511 = vmatpush2.msra.mxu0 0.0
  %7512 = vmatprep.subr.mxu0 0.0
  %7513 = vmatpush2.msra.mxu0 0.0
  %7514 = vmatprep.subr.mxu0 0.0
  %7515 = vmatpush2.msra.mxu0 0.0
  %7516 = vmatprep.subr.mxu0 0.0
  %7517 = vmatpush2.msra.mxu0 0.0
  %7518 = vmatprep.subr.mxu0 0.0
  %7519 = vmatpush2.msra.mxu0 0.0
  %7520 = vmatprep.subr.mxu0 0.0
  %7521 = vmatpush2.msra.mxu0 0.0
  %7522 = vmatprep.subr.mxu0 0.0
  %7523 = vmatpush2.msra.mxu0 0.0
  %7524 = vmatprep.subr.mxu0 0.0
  %7525 = vmatpush2.msra.mxu0 0.0
  %7526 = vmatprep.subr.mxu0 0.0
  %7527 = vmatpush2.msra.mxu0 0.0
  %7528 = vmatprep.subr.mxu0 0.0
  %7529 = vmatpush2.msra.mxu0 0.0
  %7530 = vmatprep.mubr.f32.mxu0 0.0
  %7531 = vmatmul.mubr.f32.gmra.mxu0 %v7464
  %v7532 = vpop.f32.mrf.mxu0
  %v7533 = vadd.f32 %v5870, %v7532
  %v7534 = vpop.f32.mrf.mxu0
  %7535 = vdwg.mxu0
  %v7536 = vadd.f32 %v7460, %v7533
  %v7537 = vxor.u32 %v7536, 2147483648
  %v7538 = vmul.f32 %v7537, 1.442695
  %v7539 = vpow.pop %v7538
  %v7540 = vadd.f32 %v7539, 1.0
  %v7541 = vrcp.pop %v7540
  %v7542 = vmul.f32 1.0, %v7541
  %7544 = vrot.lane.b32.xlu0 %v7533, 64
  %v7545 = vpop.permute.xlu0 %7544
  %v7547 = vmul.f32 %v7542, %v7545
  %7549 = vrot.lane.b32.xlu0 %v7547, 64
  %v7550 = vpop.permute.xlu0 %7549
  %v7552 = vadd.f32 %v7460, %v7550
  %v7553 = vtanh.pop %v7552
  %v7554 = vsub.f32 1.0, %v7542
  %7556 = vrot.lane.b32.xlu0 %v7553, 96
  %v7557 = vpop.permute.xlu0 %7556
  %v7559 = vmul.f32 %v7554, %v7557
  %v7560 = vmul.f32 %v7542, %v7455
  %v7561 = vadd.f32 %v7559, %v7560
  %v7562 = vld [vmem:[%s19] sm:$0xff]
  %v7563 = vld [vmem:[%s19 + $0x8] sm:$0xff]
  %v7564 = vld [vmem:[%s19 + $0x10] sm:$0xff]
  %v7565 = vld [vmem:[%s19 + $0x18] sm:$0xff]
  %v7566 = vld [vmem:[%s20] sm:$0x1]
  %v7567 = vrot.slane %v6079, 7
  %v7569 = vrot.slane %v6185, 6
  %v7571 = vrot.slane %v6291, 5
  %v7573 = vrot.slane %v6397, 4
  %v7575 = vrot.slane %v6503, 3
  %v7577 = vrot.slane %v6609, 2
  %v7579 = vrot.slane %v6715, 1
  %v7581 = vrot.slane %v6925, 7
  %v7583 = vrot.slane %v7031, 6
  %v7585 = vrot.slane %v7137, 5
  %v7587 = vrot.slane %v7243, 4
  %v7589 = vrot.slane %v7349, 3
  %v7591 = vrot.slane %v7455, 2
  %v7594 = vrot.slane %v7561, 1
  %v7596 = vsel %vm5864, %v5974, %v7567
  %vm7597 = vcmask 1041408
  %v7598 = vsel %vm7597, %v7596, %v7569
  %vm7599 = vcmask 1042432
  %v7600 = vsel %vm7599, %v7598, %v7571
  %vm7601 = vcmask 1043456
  %v7602 = vsel %vm7601, %v7600, %v7573
  %vm7603 = vcmask 1044480
  %v7604 = vsel %vm7603, %v7602, %v7575
  %vm7605 = vcmask 1045504
  %v7606 = vsel %vm7605, %v7604, %v7577
  %vm7607 = vcmask 1046528
  %v7608 = vsel %vm7607, %v7606, %v7579
  %v7609 = vsel %vm5864, %v6820, %v7581
  %v7610 = vsel %vm7597, %v7609, %v7583
  %v7611 = vsel %vm7599, %v7610, %v7585
  %v7612 = vsel %vm7601, %v7611, %v7587
  %v7613 = vsel %vm7603, %v7612, %v7589
  %v7614 = vsel %vm7605, %v7613, %v7591
  %v7615 = vsel %vm7607, %v7614, %v7594
  %v7617 = vlaneseq
  %v7618 = vshrl.u32 %v7617, 7
  %v7619 = vsub.s32 0, %v7618
  %v7620 = vrot.slane %v7566, %v7619
  %7624 = vrot.lane.b32.xlu0 %v7608, 96
  %v7625 = vpop.permute.xlu0 %7624
  %7626 = vrot.lane.b32.xlu0 %v7615, 96
  %v7627 = vpop.permute.xlu0 %7626
  %v7628 = vsel %vm5872, %v7625, 0
  %v7630 = vsel %vm5872, %v7627, 0
  %7632 = vmatprep.subr.mxu0 0.0
  %7633 = vmatpush1.msra.mxu0 0.0
  %7634 = vmatprep.subr.mxu0 0.0
  %7635 = vmatpush1.msra.mxu0 0.0
  %7636 = vmatprep.subr.mxu0 0.0
  %7637 = vmatpush1.msra.mxu0 0.0
  %7638 = vmatprep.subr.mxu0 0.0
  %7639 = vmatpush1.msra.mxu0 0.0
  %7640 = vmatprep.subr.mxu0 0.0
  %7641 = vmatpush1.msra.mxu0 0.0
  %7642 = vmatprep.subr.mxu0 0.0
  %7643 = vmatpush1.msra.mxu0 0.0
  %7644 = vmatprep.subr.mxu0 0.0
  %7645 = vmatpush1.msra.mxu0 0.0
  %7646 = vmatprep.subr.mxu0 0.0
  %7647 = vmatpush1.msra.mxu0 0.0
  %7648 = vmatprep.subr.mxu0 0.0
  %7649 = vmatpush1.msra.mxu0 0.0
  %7650 = vmatprep.subr.mxu0 0.0
  %7651 = vmatpush1.msra.mxu0 0.0
  %7652 = vmatprep.subr.mxu0 0.0
  %7653 = vmatpush1.msra.mxu0 0.0
  %7654 = vmatprep.subr.mxu0 0.0
  %7655 = vmatpush1.msra.mxu0 0.0
  %7656 = vmatprep.subr.mxu0 0.0
  %7657 = vmatpush1.msra.mxu0 %v7565
  %7658 = vmatprep.subr.mxu0 0.0
  %7659 = vmatpush1.msra.mxu0 %v7564
  %7660 = vmatprep.subr.mxu0 0.0
  %7661 = vmatpush1.msra.mxu0 %v7563
  %7662 = vmatprep.subr.mxu0 0.0
  %7663 = vmatpush1.msra.mxu0 %v7562
  %7664 = vmatprep.subr.mxu0 0.0
  %7665 = vmatpush2.msra.mxu0 0.0
  %7666 = vmatprep.subr.mxu0 0.0
  %7667 = vmatpush2.msra.mxu0 0.0
  %7668 = vmatprep.subr.mxu0 0.0
  %7669 = vmatpush2.msra.mxu0 0.0
  %7670 = vmatprep.subr.mxu0 0.0
  %7671 = vmatpush2.msra.mxu0 0.0
  %7672 = vmatprep.subr.mxu0 0.0
  %7673 = vmatpush2.msra.mxu0 0.0
  %7674 = vmatprep.subr.mxu0 0.0
  %7675 = vmatpush2.msra.mxu0 0.0
  %7676 = vmatprep.subr.mxu0 0.0
  %7677 = vmatpush2.msra.mxu0 0.0
  %7678 = vmatprep.subr.mxu0 0.0
  %7679 = vmatpush2.msra.mxu0 0.0
  %7680 = vmatprep.subr.mxu0 0.0
  %7681 = vmatpush2.msra.mxu0 0.0
  %7682 = vmatprep.subr.mxu0 0.0
  %7683 = vmatpush2.msra.mxu0 0.0
  %7684 = vmatprep.subr.mxu0 0.0
  %7685 = vmatpush2.msra.mxu0 0.0
  %7686 = vmatprep.subr.mxu0 0.0
  %7687 = vmatpush2.msra.mxu0 0.0
  %7688 = vmatprep.subr.mxu0 0.0
  %7689 = vmatpush2.msra.mxu0 0.0
  %7690 = vmatprep.subr.mxu0 0.0
  %7691 = vmatpush2.msra.mxu0 0.0
  %7692 = vmatprep.subr.mxu0 0.0
  %7693 = vmatpush2.msra.mxu0 0.0
  %7694 = vmatprep.subr.mxu0 0.0
  %7695 = vmatpush2.msra.mxu0 0.0
  %7696 = vmatprep.mubr.f32.mxu0 0.0
  %7697 = vmatmul.mubr.f32.gmra.mxu0 %v7628
  %v7698 = vpop.f32.mrf.mxu0
  %v7699 = vadd.f32 %v7620, %v7698
  %v7700 = vpop.f32.mrf.mxu0
  %7701 = vmatprep.mubr.f32.mxu0 0.0
  %7702 = vmatmul.mubr.f32.gmra.mxu0 %v7630
  %v7703 = vpop.f32.mrf.mxu0
  %v7704 = vadd.f32 %v7620, %v7703
  %v7705 = vpop.f32.mrf.mxu0
  %7706 = vdwg.mxu0
  %vm7707 = vcmask 31744
  %7708 = vst.msk [vmem:[%s21] sm:$0xff] %vm7707, %v7699
  %7709 = vst.msk [vmem:[%s21 + $0x8] sm:$0xff] %vm7707, %v7704
  %v7710 = vrot.slane %v5974, 1
  %v7712 = vrot.slane %v6185, 7
  %v7714 = vrot.slane %v6291, 6
  %v7716 = vrot.slane %v6397, 5
  %v7718 = vrot.slane %v6503, 4
  %v7720 = vrot.slane %v6609, 3
  %v7722 = vrot.slane %v6715, 2
  %v7724 = vrot.slane %v6820, 1
  %v7726 = vrot.slane %v7031, 7
  %v7728 = vrot.slane %v7137, 6
  %v7730 = vrot.slane %v7243, 5
  %v7732 = vrot.slane %v7349, 4
  %v7734 = vrot.slane %v7455, 3
  %v7736 = vrot.slane %v7561, 2
  %v7738 = vsel %vm5864, %v7710, %v6079
  %v7739 = vsel %vm7597, %v7738, %v7712
  %v7740 = vsel %vm7599, %v7739, %v7714
  %v7741 = vsel %vm7601, %v7740, %v7716
  %v7742 = vsel %vm7603, %v7741, %v7718
  %v7743 = vsel %vm7605, %v7742, %v7720
  %v7744 = vsel %vm7607, %v7743, %v7722
  %v7745 = vsel %vm5864, %v7724, %v6925
  %v7746 = vsel %vm7597, %v7745, %v7726
  %v7747 = vsel %vm7599, %v7746, %v7728
  %v7748 = vsel %vm7601, %v7747, %v7730
  %v7749 = vsel %vm7603, %v7748, %v7732
  %v7750 = vsel %vm7605, %v7749, %v7734
  %v7751 = vsel %vm7607, %v7750, %v7736
  %7754 = vrot.lane.b32.xlu0 %v7744, 96
  %v7755 = vpop.permute.xlu0 %7754
  %7756 = vrot.lane.b32.xlu0 %v7751, 96
  %v7757 = vpop.permute.xlu0 %7756
  %v7758 = vsel %vm5872, %v7755, 0
  %v7760 = vsel %vm5872, %v7757, 0
  %7762 = vmatprep.subr.mxu0 0.0
  %7763 = vmatpush1.msra.mxu0 0.0
  %7764 = vmatprep.subr.mxu0 0.0
  %7765 = vmatpush1.msra.mxu0 0.0
  %7766 = vmatprep.subr.mxu0 0.0
  %7767 = vmatpush1.msra.mxu0 0.0
  %7768 = vmatprep.subr.mxu0 0.0
  %7769 = vmatpush1.msra.mxu0 0.0
  %7770 = vmatprep.subr.mxu0 0.0
  %7771 = vmatpush1.msra.mxu0 0.0
  %7772 = vmatprep.subr.mxu0 0.0
  %7773 = vmatpush1.msra.mxu0 0.0
  %7774 = vmatprep.subr.mxu0 0.0
  %7775 = vmatpush1.msra.mxu0 0.0
  %7776 = vmatprep.subr.mxu0 0.0
  %7777 = vmatpush1.msra.mxu0 0.0
  %7778 = vmatprep.subr.mxu0 0.0
  %7779 = vmatpush1.msra.mxu0 0.0
  %7780 = vmatprep.subr.mxu0 0.0
  %7781 = vmatpush1.msra.mxu0 0.0
  %7782 = vmatprep.subr.mxu0 0.0
  %7783 = vmatpush1.msra.mxu0 0.0
  %7784 = vmatprep.subr.mxu0 0.0
  %7785 = vmatpush1.msra.mxu0 0.0
  %7786 = vmatprep.subr.mxu0 0.0
  %7787 = vmatpush1.msra.mxu0 %v7565
  %7788 = vmatprep.subr.mxu0 0.0
  %7789 = vmatpush1.msra.mxu0 %v7564
  %7790 = vmatprep.subr.mxu0 0.0
  %7791 = vmatpush1.msra.mxu0 %v7563
  %7792 = vmatprep.subr.mxu0 0.0
  %7793 = vmatpush1.msra.mxu0 %v7562
  %7794 = vmatprep.subr.mxu0 0.0
  %7795 = vmatpush2.msra.mxu0 0.0
  %7796 = vmatprep.subr.mxu0 0.0
  %7797 = vmatpush2.msra.mxu0 0.0
  %7798 = vmatprep.subr.mxu0 0.0
  %7799 = vmatpush2.msra.mxu0 0.0
  %7800 = vmatprep.subr.mxu0 0.0
  %7801 = vmatpush2.msra.mxu0 0.0
  %7802 = vmatprep.subr.mxu0 0.0
  %7803 = vmatpush2.msra.mxu0 0.0
  %7804 = vmatprep.subr.mxu0 0.0
  %7805 = vmatpush2.msra.mxu0 0.0
  %7806 = vmatprep.subr.mxu0 0.0
  %7807 = vmatpush2.msra.mxu0 0.0
  %7808 = vmatprep.subr.mxu0 0.0
  %7809 = vmatpush2.msra.mxu0 0.0
  %7810 = vmatprep.subr.mxu0 0.0
  %7811 = vmatpush2.msra.mxu0 0.0
  %7812 = vmatprep.subr.mxu0 0.0
  %7813 = vmatpush2.msra.mxu0 0.0
  %7814 = vmatprep.subr.mxu0 0.0
  %7815 = vmatpush2.msra.mxu0 0.0
  %7816 = vmatprep.subr.mxu0 0.0
  %7817 = vmatpush2.msra.mxu0 0.0
  %7818 = vmatprep.subr.mxu0 0.0
  %7819 = vmatpush2.msra.mxu0 0.0
  %7820 = vmatprep.subr.mxu0 0.0
  %7821 = vmatpush2.msra.mxu0 0.0
  %7822 = vmatprep.subr.mxu0 0.0
  %7823 = vmatpush2.msra.mxu0 0.0
  %7824 = vmatprep.subr.mxu0 0.0
  %7825 = vmatpush2.msra.mxu0 0.0
  %7826 = vmatprep.mubr.f32.mxu0 0.0
  %7827 = vmatmul.mubr.f32.gmra.mxu0 %v7758
  %v7828 = vpop.f32.mrf.mxu0
  %v7829 = vadd.f32 %v7620, %v7828
  %v7830 = vpop.f32.mrf.mxu0
  %7831 = vmatprep.mubr.f32.mxu0 0.0
  %7832 = vmatmul.mubr.f32.gmra.mxu0 %v7760
  %v7833 = vpop.f32.mrf.mxu0
  %v7834 = vadd.f32 %v7620, %v7833
  %v7835 = vpop.f32.mrf.mxu0
  %7836 = vdwg.mxu0
  %s7837 = scalar_lea.vmem %s21, 16
  %7838 = vst.msk [vmem:[%s7837] sm:$0xff] %vm7707, %v7829
  %7839 = vst.msk [vmem:[%s7837 + $0x8] sm:$0xff] %vm7707, %v7834
  // Predicated region
  $region86: #{generator_forward.1} parent=0 // pred_check
    _
  $region87: #{generator_forward.1} parent=0 // pred_check_branch
    %7841 = sbr.rel (0) target = $region89
  $region88: #{generator_forward.1} parent=0 // pred_region
    _
  $region89: #{generator_forward.1} parent=0 // pred_fallthru
    _
  // Predicated region
  $region90: #{generator_forward.1} parent=0 // pred_check
    _
  $region91: #{generator_forward.1} parent=0 // pred_check_branch
    %7843 = sbr.rel (0) target = $region93
  $region92: #{generator_forward.1} parent=0 // pred_region
    _
  $region93: #{generator_forward.1} parent=0 // pred_fallthru
    _

</llo_original>
